<compile_context>
chip_gen: v7x
topology: tpu7x:2x2x1
jax: 0.10.0
libtpu: 0.0.40
codegen_flags: <defaults>
</compile_context>

<pallas_src>
import math

import jax
import jax.numpy as jnp
from jax import lax
from jax.experimental import pallas as pl
from jax.experimental.pallas import tpu as pltpu

EPS = 1e-5


def _round_up(x, m):
    return (x + m - 1) // m * m


def _conv3x3_acc(pad_ref, w_ref, h, w):
    """3x3 stride-1 conv of a zero-padded block via 9 shifted matmuls.

    pad_ref: (1, h+2, w+2, cin) float32 VMEM scratch (spatial zero-padding in place)
    w_ref:   (9, cin, cout)     bfloat16 weights, k = dy*3 + dx
    returns: (h*w, cout) float32 accumulator
    """
    cin = pad_ref.shape[3]
    cout = w_ref.shape[2]
    acc = jnp.zeros((h * w, cout), jnp.float32)
    for dy in range(3):
        for dx in range(3):
            patch = pad_ref[0, dy:dy + h, dx:dx + w, :]          # (h, w, cin)
            patch = patch.reshape(h * w, cin).astype(jnp.bfloat16)
            acc = acc + jnp.dot(patch, w_ref[dy * 3 + dx],
                                preferred_element_type=jnp.float32)
    return acc


def conv_stats_kernel(xp_ref, w_ref, y_ref, s_ref, ss_ref, pad_ref):
    """conv3x3(x) + per-block partial BN statistics (sum, sum of squares)."""
    h, w = y_ref.shape[1], y_ref.shape[2]
    cout = w_ref.shape[2]
    # Stage the halo block as f32 in VMEM; halo slicing then stays on the
    # well-supported 32-bit layout path.
    pad_ref[...] = xp_ref[...].astype(jnp.float32)
    acc = _conv3x3_acc(pad_ref, w_ref, h, w)                     # (h*w, cout) f32
    y_ref[...] = acc.reshape(1, h, w, cout).astype(y_ref.dtype)
    s_ref[...] = jnp.sum(acc, axis=0, keepdims=True).reshape(1, 1, cout)
    ss_ref[...] = jnp.sum(acc * acc, axis=0, keepdims=True).reshape(1, 1, cout)


def bn_relu_conv_stats_kernel(y1_ref, sc_ref, sh_ref, w_ref,
                              z_ref, s_ref, ss_ref, pad_ref):
    """BN1-normalize -> ReLU -> conv3x3 -> partial BN statistics (fused)."""
    h, w = y1_ref.shape[1], y1_ref.shape[2]
    cin = y1_ref.shape[3]
    cout = w_ref.shape[2]
    sc = sc_ref[...].reshape(1, 1, 1, cin)
    sh = sh_ref[...].reshape(1, 1, 1, cin)
    y1n = jnp.maximum(y1_ref[...].astype(jnp.float32) * sc + sh, 0.0)
    # Build the spatially zero-padded activation for the second conv in VMEM.
    pad_ref[...] = jnp.zeros(pad_ref.shape, pad_ref.dtype)
    pad_ref[:, 1:h + 1, 1:w + 1, :] = y1n
    acc = _conv3x3_acc(pad_ref, w_ref, h, w)                     # (h*w, cout) f32
    z_ref[...] = acc.reshape(1, h, w, cout).astype(z_ref.dtype)
    s_ref[...] = jnp.sum(acc, axis=0, keepdims=True).reshape(1, 1, cout)
    ss_ref[...] = jnp.sum(acc * acc, axis=0, keepdims=True).reshape(1, 1, cout)


def bn_add_relu_kernel(z_ref, r_ref, sc_ref, sh_ref, o_ref):
    """BN2-normalize + residual add + ReLU (element-wise epilogue, M-tiled)."""
    z = z_ref[...].astype(jnp.float32)
    r = r_ref[...].astype(jnp.float32)
    o_ref[...] = jnp.maximum(z * sc_ref[...] + sh_ref[...] + r, 0.0)


def _stats_to_scale_shift(s, ss, count, gamma2d, beta2d):
    """Fold global batch statistics into per-channel scale/shift (f32)."""
    mu = jnp.sum(s, axis=0) / count                              # (1, cp)
    ex2 = jnp.sum(ss, axis=0) / count                            # (1, cp)
    var = ex2 - mu * mu                                          # biased variance
    rsig = lax.rsqrt(var + EPS)
    scale = gamma2d * rsig
    shift = beta2d - mu * scale
    return scale.astype(jnp.float32), shift.astype(jnp.float32)


@jax.jit
def basic_block_forward(x_nchw, w1, w2, gamma, beta):
    """BasicBlock forward (stride=1, no downsample, in_planes == planes).

    x_nchw : (N, C, H, W) float32 (PyTorch layout)
    w1, w2 : (3, 3, Cin, Cout) conv weights (HWIO, bias=False)
    gamma, beta : (Cout,) shared BatchNorm2d affine parameters
    """
    n, c, h, w = x_nchw.shape
    cout = w1.shape[-1]
    assert c == cout, "residual path requires in_planes == planes"
    assert w % 8 == 0, "W should be a multiple of 8 for sublane-friendly reshapes"
    cp = _round_up(cout, 128)            # lane-dense channel padding
    m = n * h * w
    count = jnp.float32(m)

    # ---- layout prep: NCHW -> channel-padded NHWC (bf16) + spatial halo ----
    x_nhwc = jnp.transpose(x_nchw, (0, 2, 3, 1)).astype(jnp.float32)
    x_cp = jnp.pad(x_nhwc, ((0, 0), (0, 0), (0, 0), (0, cp - c)))
    xp = jnp.pad(x_cp, ((0, 0), (1, 1), (1, 1), (0, 0))).astype(jnp.bfloat16)

    w1p = jnp.pad(w1.astype(jnp.float32),
                  ((0, 0), (0, 0), (0, cp - c), (0, cp - cout)))
    w1p = w1p.reshape(9, cp, cp).astype(jnp.bfloat16)
    w2p = jnp.pad(w2.astype(jnp.float32),
                  ((0, 0), (0, 0), (0, cp - cout), (0, cp - cout)))
    w2p = w2p.reshape(9, cp, cp).astype(jnp.bfloat16)
    g2 = jnp.pad(gamma.astype(jnp.float32), (0, cp - cout)).reshape(1, cp)
    b2 = jnp.pad(beta.astype(jnp.float32), (0, cp - cout)).reshape(1, cp)

    conv_cost = pl.CostEstimate(
        flops=2 * m * 9 * cp * cp, transcendentals=0,
        bytes_accessed=xp.size * 2 + w1p.size * 2 + m * cp * 2 + 2 * n * cp * 4)
    cparams = pltpu.CompilerParams(
        dimension_semantics=("parallel",),
        vmem_limit_bytes=32 * 1024 * 1024)

    # ---- stage 1: conv1 + partial BN statistics (grid over batch) ----
    y1raw, s1, ss1 = pl.pallas_call(
        conv_stats_kernel,
        grid=(n,),
        in_specs=[
            pl.BlockSpec((1, h + 2, w + 2, cp), lambda i: (i, 0, 0, 0)),
            pl.BlockSpec((9, cp, cp), lambda i: (0, 0, 0)),
        ],
        out_specs=[
            pl.BlockSpec((1, h, w, cp), lambda i: (i, 0, 0, 0)),
            pl.BlockSpec((1, 1, cp), lambda i: (i, 0, 0)),
            pl.BlockSpec((1, 1, cp), lambda i: (i, 0, 0)),
        ],
        out_shape=[
            jax.ShapeDtypeStruct((n, h, w, cp), jnp.bfloat16),
            jax.ShapeDtypeStruct((n, 1, cp), jnp.float32),
            jax.ShapeDtypeStruct((n, 1, cp), jnp.float32),
        ],
        scratch_shapes=[pltpu.VMEM((1, h + 2, w + 2, cp), jnp.float32)],
        compiler_params=cparams,
        cost_estimate=conv_cost,
    )(xp, w1p)

    scale1, shift1 = _stats_to_scale_shift(s1, ss1, count, g2, b2)

    # ---- stage 2: BN1-normalize + ReLU + conv2 + partial BN statistics ----
    z2raw, s2, ss2 = pl.pallas_call(
        bn_relu_conv_stats_kernel,
        grid=(n,),
        in_specs=[
            pl.BlockSpec((1, h, w, cp), lambda i: (i, 0, 0, 0)),
            pl.BlockSpec((1, cp), lambda i: (0, 0)),
            pl.BlockSpec((1, cp), lambda i: (0, 0)),
            pl.BlockSpec((9, cp, cp), lambda i: (0, 0, 0)),
        ],
        out_specs=[
            pl.BlockSpec((1, h, w, cp), lambda i: (i, 0, 0, 0)),
            pl.BlockSpec((1, 1, cp), lambda i: (i, 0, 0)),
            pl.BlockSpec((1, 1, cp), lambda i: (i, 0, 0)),
        ],
        out_shape=[
            jax.ShapeDtypeStruct((n, h, w, cp), jnp.bfloat16),
            jax.ShapeDtypeStruct((n, 1, cp), jnp.float32),
            jax.ShapeDtypeStruct((n, 1, cp), jnp.float32),
        ],
        scratch_shapes=[pltpu.VMEM((1, h + 2, w + 2, cp), jnp.float32)],
        compiler_params=cparams,
        cost_estimate=conv_cost,
    )(y1raw, scale1, shift1, w2p)

    scale2, shift2 = _stats_to_scale_shift(s2, ss2, count, g2, b2)

    # ---- stage 3: BN2-normalize + residual + ReLU, tiled over M rows ----
    tile_m = math.gcd(m, 1024)
    if tile_m < 8:
        tile_m = m
    z2_2d = z2raw.reshape(m, cp)
    res_2d = x_cp.reshape(m, cp).astype(jnp.bfloat16)
    out2d = pl.pallas_call(
        bn_add_relu_kernel,
        grid=(m // tile_m,),
        in_specs=[
            pl.BlockSpec((tile_m, cp), lambda i: (i, 0)),
            pl.BlockSpec((tile_m, cp), lambda i: (i, 0)),
            pl.BlockSpec((1, cp), lambda i: (0, 0)),
            pl.BlockSpec((1, cp), lambda i: (0, 0)),
        ],
        out_specs=pl.BlockSpec((tile_m, cp), lambda i: (i, 0)),
        out_shape=jax.ShapeDtypeStruct((m, cp), jnp.float32),
        compiler_params=cparams,
        cost_estimate=pl.CostEstimate(
            flops=4 * m * cp, transcendentals=0,
            bytes_accessed=2 * m * cp * 2 + m * cp * 4),
    )(z2_2d, res_2d, scale2, shift2)

    out = out2d.reshape(n, h, w, cp)[..., :cout]
    return jnp.transpose(out, (0, 3, 1, 2))


def _reference_forward(x_nchw, w1, w2, gamma, beta):
    """Pure-JAX f32 reference mirroring the PyTorch module (training-mode BN)."""
    def conv(x, w_hwio):
        w_oihw = jnp.transpose(w_hwio, (3, 2, 0, 1))
        return lax.conv_general_dilated(
            x, w_oihw, window_strides=(1, 1), padding=((1, 1), (1, 1)),
            dimension_numbers=("NCHW", "OIHW", "NCHW"))

    def bn(x):
        mu = jnp.mean(x, axis=(0, 2, 3), keepdims=True)
        var = jnp.mean(jnp.square(x - mu), axis=(0, 2, 3), keepdims=True)
        return ((x - mu) * lax.rsqrt(var + EPS) * gamma.reshape(1, -1, 1, 1)
                + beta.reshape(1, -1, 1, 1))

    y = jnp.maximum(bn(conv(x_nchw, w1)), 0.0)
    y = jnp.maximum(bn(conv(y, w2)) + x_nchw, 0.0)
    return y


if __name__ == "__main__":
    # Small shapes: batch=2, in_planes=planes=8, spatial=16 (stride=1, no downsample).
    N, C, H, W = 2, 8, 16, 16
    PLANES = 8

    key = jax.random.PRNGKey(0)
    kx, k1, k2 = jax.random.split(key, 3)
    x = jax.random.normal(kx, (N, C, H, W), dtype=jnp.float32)
    w1 = 0.1 * jax.random.normal(k1, (3, 3, C, PLANES), dtype=jnp.float32)
    w2 = 0.1 * jax.random.normal(k2, (3, 3, PLANES, PLANES), dtype=jnp.float32)
    gamma = jnp.ones((PLANES,), dtype=jnp.float32)   # nn.BatchNorm2d default weight
    beta = jnp.zeros((PLANES,), dtype=jnp.float32)   # nn.BatchNorm2d default bias

    out = basic_block_forward(x, w1, w2, gamma, beta)
    out = jax.block_until_ready(out)

    ref = _reference_forward(x, w1, w2, gamma, beta)
    assert out.shape == (N, PLANES, H, W)
    max_err = float(jnp.max(jnp.abs(out - ref)))
    # bf16 MXU operands + bf16 intermediates vs an all-f32 reference -> relaxed tol.
    assert jnp.allclose(out, ref, rtol=5e-2, atol=5e-2), (
        f"Pallas output mismatch vs reference (max abs err {max_err})")
    print("KERNEL_OK")
</pallas_src>

<mosaic_0001>
module attributes {stable_mosaic.version = 11 : i64} {
  func.func @conv_stats_kernel(%arg0: i32, %arg1: memref<1x18x18x128xbf16, #tpu.memory_space<vmem>>, %arg2: memref<9x128x128xbf16, #tpu.memory_space<vmem>>, %arg3: memref<1x16x16x128xbf16, #tpu.memory_space<vmem>>, %arg4: memref<1x1x128xf32, #tpu.memory_space<vmem>>, %arg5: memref<1x1x128xf32, #tpu.memory_space<vmem>>, %arg6: memref<1x18x18x128xf32, #tpu.memory_space<vmem>>) attributes {dimension_semantics = [#tpu.dimension_semantics<parallel>], iteration_bounds = array<i64: 2>, scalar_prefetch = 0 : i64, scratch_operands = 1 : i64, tpu.core_type = #tpu.core_type<tc>, window_params = [{transform_indices = @transform_0, window_bounds = array<i64: 1, 18, 18, 128>}, {pipeline_mode = #tpu.pipeline_mode<synchronous>, transform_indices = @transform_1, window_bounds = array<i64: 9, 128, 128>}, {transform_indices = @transform_2, window_bounds = array<i64: 1, 16, 16, 128>}, {transform_indices = @transform_3, window_bounds = array<i64: 1, 1, 128>}, {transform_indices = @transform_4, window_bounds = array<i64: 1, 1, 128>}]} {
    %c0 = arith.constant 0 : index
    %c0_0 = arith.constant 0 : index
    %c0_1 = arith.constant 0 : index
    %c0_2 = arith.constant 0 : index
    %0 = vector.load %arg1[%c0, %c0_0, %c0_1, %c0_2] : memref<1x18x18x128xbf16, #tpu.memory_space<vmem>>, vector<1x18x18x128xbf16>
    %1 = arith.extf %0 : vector<1x18x18x128xbf16> to vector<1x18x18x128xf32>
    %c0_3 = arith.constant 0 : index
    %c0_4 = arith.constant 0 : index
    %c0_5 = arith.constant 0 : index
    %c0_6 = arith.constant 0 : index
    %2 = vector.load %arg6[%c0_3, %c0_4, %c0_5, %c0_6] : memref<1x18x18x128xf32, #tpu.memory_space<vmem>>, vector<1x18x18x128xf32>
    tpu.vector_store %arg6[%c0_3, %c0_4, %c0_5, %c0_6], %1 {strides = array<i32>} : memref<1x18x18x128xf32, #tpu.memory_space<vmem>>, vector<1x18x18x128xf32>,
    %cst = arith.constant 0.000000e+00 : f32
    %3 = vector.broadcast %cst : f32 to vector<256x128xf32>
    %c0_7 = arith.constant 0 : index
    %c0_8 = arith.constant 0 : index
    %c0_9 = arith.constant 0 : index
    %c0_10 = arith.constant 0 : index
    %4 = vector.load %arg6[%c0_7, %c0_8, %c0_9, %c0_10] : memref<1x18x18x128xf32, #tpu.memory_space<vmem>>, vector<1x16x16x128xf32>
    %5 = vector.shape_cast %4 : vector<1x16x16x128xf32> to vector<16x16x128xf32>
    %6 = vector.shape_cast %5 : vector<16x16x128xf32> to vector<256x128xf32>
    %7 = arith.truncf %6 : vector<256x128xf32> to vector<256x128xbf16>
    %c0_11 = arith.constant 0 : index
    %c0_12 = arith.constant 0 : index
    %c0_13 = arith.constant 0 : index
    %8 = vector.load %arg2[%c0_11, %c0_12, %c0_13] : memref<9x128x128xbf16, #tpu.memory_space<vmem>>, vector<1x128x128xbf16>
    %9 = vector.shape_cast %8 : vector<1x128x128xbf16> to vector<128x128xbf16>
    %cst_14 = arith.constant dense<0.000000e+00> : vector<256x128xf32>
    %10 = tpu.matmul %7, %9, %cst_14 {dimension_numbers = #tpu.dot_dimension_numbers<[1], [0], [0], [1], [0, 0, 1, 1], [], []>} : vector<256x128xbf16>, vector<128x128xbf16>, vector<256x128xf32> -> vector<256x128xf32>
    %11 = arith.addf %3, %10 : vector<256x128xf32>
    %c0_15 = arith.constant 0 : index
    %c0_16 = arith.constant 0 : index
    %c1 = arith.constant 1 : index
    %c0_17 = arith.constant 0 : index
    %12 = vector.load %arg6[%c0_15, %c0_16, %c1, %c0_17] : memref<1x18x18x128xf32, #tpu.memory_space<vmem>>, vector<1x16x16x128xf32>
    %13 = vector.shape_cast %12 : vector<1x16x16x128xf32> to vector<16x16x128xf32>
    %14 = vector.shape_cast %13 : vector<16x16x128xf32> to vector<256x128xf32>
    %15 = arith.truncf %14 : vector<256x128xf32> to vector<256x128xbf16>
    %c1_18 = arith.constant 1 : index
    %c0_19 = arith.constant 0 : index
    %c0_20 = arith.constant 0 : index
    %16 = vector.load %arg2[%c1_18, %c0_19, %c0_20] : memref<9x128x128xbf16, #tpu.memory_space<vmem>>, vector<1x128x128xbf16>
    %17 = vector.shape_cast %16 : vector<1x128x128xbf16> to vector<128x128xbf16>
    %cst_21 = arith.constant dense<0.000000e+00> : vector<256x128xf32>
    %18 = tpu.matmul %15, %17, %cst_21 {dimension_numbers = #tpu.dot_dimension_numbers<[1], [0], [0], [1], [0, 0, 1, 1], [], []>} : vector<256x128xbf16>, vector<128x128xbf16>, vector<256x128xf32> -> vector<256x128xf32>
    %19 = arith.addf %11, %18 : vector<256x128xf32>
    %c0_22 = arith.constant 0 : index
    %c0_23 = arith.constant 0 : index
    %c2 = arith.constant 2 : index
    %c0_24 = arith.constant 0 : index
    %20 = vector.load %arg6[%c0_22, %c0_23, %c2, %c0_24] : memref<1x18x18x128xf32, #tpu.memory_space<vmem>>, vector<1x16x16x128xf32>
    %21 = vector.shape_cast %20 : vector<1x16x16x128xf32> to vector<16x16x128xf32>
    %22 = vector.shape_cast %21 : vector<16x16x128xf32> to vector<256x128xf32>
    %23 = arith.truncf %22 : vector<256x128xf32> to vector<256x128xbf16>
    %c2_25 = arith.constant 2 : index
    %c0_26 = arith.constant 0 : index
    %c0_27 = arith.constant 0 : index
    %24 = vector.load %arg2[%c2_25, %c0_26, %c0_27] : memref<9x128x128xbf16, #tpu.memory_space<vmem>>, vector<1x128x128xbf16>
    %25 = vector.shape_cast %24 : vector<1x128x128xbf16> to vector<128x128xbf16>
    %cst_28 = arith.constant dense<0.000000e+00> : vector<256x128xf32>
    %26 = tpu.matmul %23, %25, %cst_28 {dimension_numbers = #tpu.dot_dimension_numbers<[1], [0], [0], [1], [0, 0, 1, 1], [], []>} : vector<256x128xbf16>, vector<128x128xbf16>, vector<256x128xf32> -> vector<256x128xf32>
    %27 = arith.addf %19, %26 : vector<256x128xf32>
    %c0_29 = arith.constant 0 : index
    %c1_30 = arith.constant 1 : index
    %c0_31 = arith.constant 0 : index
    %c0_32 = arith.constant 0 : index
    %28 = vector.load %arg6[%c0_29, %c1_30, %c0_31, %c0_32] : memref<1x18x18x128xf32, #tpu.memory_space<vmem>>, vector<1x16x16x128xf32>
    %29 = vector.shape_cast %28 : vector<1x16x16x128xf32> to vector<16x16x128xf32>
    %30 = vector.shape_cast %29 : vector<16x16x128xf32> to vector<256x128xf32>
    %31 = arith.truncf %30 : vector<256x128xf32> to vector<256x128xbf16>
    %c3 = arith.constant 3 : index
    %c0_33 = arith.constant 0 : index
    %c0_34 = arith.constant 0 : index
    %32 = vector.load %arg2[%c3, %c0_33, %c0_34] : memref<9x128x128xbf16, #tpu.memory_space<vmem>>, vector<1x128x128xbf16>
    %33 = vector.shape_cast %32 : vector<1x128x128xbf16> to vector<128x128xbf16>
    %cst_35 = arith.constant dense<0.000000e+00> : vector<256x128xf32>
    %34 = tpu.matmul %31, %33, %cst_35 {dimension_numbers = #tpu.dot_dimension_numbers<[1], [0], [0], [1], [0, 0, 1, 1], [], []>} : vector<256x128xbf16>, vector<128x128xbf16>, vector<256x128xf32> -> vector<256x128xf32>
    %35 = arith.addf %27, %34 : vector<256x128xf32>
    %c0_36 = arith.constant 0 : index
    %c1_37 = arith.constant 1 : index
    %c1_38 = arith.constant 1 : index
    %c0_39 = arith.constant 0 : index
    %36 = vector.load %arg6[%c0_36, %c1_37, %c1_38, %c0_39] : memref<1x18x18x128xf32, #tpu.memory_space<vmem>>, vector<1x16x16x128xf32>
    %37 = vector.shape_cast %36 : vector<1x16x16x128xf32> to vector<16x16x128xf32>
    %38 = vector.shape_cast %37 : vector<16x16x128xf32> to vector<256x128xf32>
    %39 = arith.truncf %38 : vector<256x128xf32> to vector<256x128xbf16>
    %c4 = arith.constant 4 : index
    %c0_40 = arith.constant 0 : index
    %c0_41 = arith.constant 0 : index
    %40 = vector.load %arg2[%c4, %c0_40, %c0_41] : memref<9x128x128xbf16, #tpu.memory_space<vmem>>, vector<1x128x128xbf16>
    %41 = vector.shape_cast %40 : vector<1x128x128xbf16> to vector<128x128xbf16>
    %cst_42 = arith.constant dense<0.000000e+00> : vector<256x128xf32>
    %42 = tpu.matmul %39, %41, %cst_42 {dimension_numbers = #tpu.dot_dimension_numbers<[1], [0], [0], [1], [0, 0, 1, 1], [], []>} : vector<256x128xbf16>, vector<128x128xbf16>, vector<256x128xf32> -> vector<256x128xf32>
    %43 = arith.addf %35, %42 : vector<256x128xf32>
    %c0_43 = arith.constant 0 : index
    %c1_44 = arith.constant 1 : index
    %c2_45 = arith.constant 2 : index
    %c0_46 = arith.constant 0 : index
    %44 = vector.load %arg6[%c0_43, %c1_44, %c2_45, %c0_46] : memref<1x18x18x128xf32, #tpu.memory_space<vmem>>, vector<1x16x16x128xf32>
    %45 = vector.shape_cast %44 : vector<1x16x16x128xf32> to vector<16x16x128xf32>
    %46 = vector.shape_cast %45 : vector<16x16x128xf32> to vector<256x128xf32>
    %47 = arith.truncf %46 : vector<256x128xf32> to vector<256x128xbf16>
    %c5 = arith.constant 5 : index
    %c0_47 = arith.constant 0 : index
    %c0_48 = arith.constant 0 : index
    %48 = vector.load %arg2[%c5, %c0_47, %c0_48] : memref<9x128x128xbf16, #tpu.memory_space<vmem>>, vector<1x128x128xbf16>
    %49 = vector.shape_cast %48 : vector<1x128x128xbf16> to vector<128x128xbf16>
    %cst_49 = arith.constant dense<0.000000e+00> : vector<256x128xf32>
    %50 = tpu.matmul %47, %49, %cst_49 {dimension_numbers = #tpu.dot_dimension_numbers<[1], [0], [0], [1], [0, 0, 1, 1], [], []>} : vector<256x128xbf16>, vector<128x128xbf16>, vector<256x128xf32> -> vector<256x128xf32>
    %51 = arith.addf %43, %50 : vector<256x128xf32>
    %c0_50 = arith.constant 0 : index
    %c2_51 = arith.constant 2 : index
    %c0_52 = arith.constant 0 : index
    %c0_53 = arith.constant 0 : index
    %52 = vector.load %arg6[%c0_50, %c2_51, %c0_52, %c0_53] : memref<1x18x18x128xf32, #tpu.memory_space<vmem>>, vector<1x16x16x128xf32>
    %53 = vector.shape_cast %52 : vector<1x16x16x128xf32> to vector<16x16x128xf32>
    %54 = vector.shape_cast %53 : vector<16x16x128xf32> to vector<256x128xf32>
    %55 = arith.truncf %54 : vector<256x128xf32> to vector<256x128xbf16>
    %c6 = arith.constant 6 : index
    %c0_54 = arith.constant 0 : index
    %c0_55 = arith.constant 0 : index
    %56 = vector.load %arg2[%c6, %c0_54, %c0_55] : memref<9x128x128xbf16, #tpu.memory_space<vmem>>, vector<1x128x128xbf16>
    %57 = vector.shape_cast %56 : vector<1x128x128xbf16> to vector<128x128xbf16>
    %cst_56 = arith.constant dense<0.000000e+00> : vector<256x128xf32>
    %58 = tpu.matmul %55, %57, %cst_56 {dimension_numbers = #tpu.dot_dimension_numbers<[1], [0], [0], [1], [0, 0, 1, 1], [], []>} : vector<256x128xbf16>, vector<128x128xbf16>, vector<256x128xf32> -> vector<256x128xf32>
    %59 = arith.addf %51, %58 : vector<256x128xf32>
    %c0_57 = arith.constant 0 : index
    %c2_58 = arith.constant 2 : index
    %c1_59 = arith.constant 1 : index
    %c0_60 = arith.constant 0 : index
    %60 = vector.load %arg6[%c0_57, %c2_58, %c1_59, %c0_60] : memref<1x18x18x128xf32, #tpu.memory_space<vmem>>, vector<1x16x16x128xf32>
    %61 = vector.shape_cast %60 : vector<1x16x16x128xf32> to vector<16x16x128xf32>
    %62 = vector.shape_cast %61 : vector<16x16x128xf32> to vector<256x128xf32>
    %63 = arith.truncf %62 : vector<256x128xf32> to vector<256x128xbf16>
    %c7 = arith.constant 7 : index
    %c0_61 = arith.constant 0 : index
    %c0_62 = arith.constant 0 : index
    %64 = vector.load %arg2[%c7, %c0_61, %c0_62] : memref<9x128x128xbf16, #tpu.memory_space<vmem>>, vector<1x128x128xbf16>
    %65 = vector.shape_cast %64 : vector<1x128x128xbf16> to vector<128x128xbf16>
    %cst_63 = arith.constant dense<0.000000e+00> : vector<256x128xf32>
    %66 = tpu.matmul %63, %65, %cst_63 {dimension_numbers = #tpu.dot_dimension_numbers<[1], [0], [0], [1], [0, 0, 1, 1], [], []>} : vector<256x128xbf16>, vector<128x128xbf16>, vector<256x128xf32> -> vector<256x128xf32>
    %67 = arith.addf %59, %66 : vector<256x128xf32>
    %c0_64 = arith.constant 0 : index
    %c2_65 = arith.constant 2 : index
    %c2_66 = arith.constant 2 : index
    %c0_67 = arith.constant 0 : index
    %68 = vector.load %arg6[%c0_64, %c2_65, %c2_66, %c0_67] : memref<1x18x18x128xf32, #tpu.memory_space<vmem>>, vector<1x16x16x128xf32>
    %69 = vector.shape_cast %68 : vector<1x16x16x128xf32> to vector<16x16x128xf32>
    %70 = vector.shape_cast %69 : vector<16x16x128xf32> to vector<256x128xf32>
    %71 = arith.truncf %70 : vector<256x128xf32> to vector<256x128xbf16>
    %c8 = arith.constant 8 : index
    %c0_68 = arith.constant 0 : index
    %c0_69 = arith.constant 0 : index
    %72 = vector.load %arg2[%c8, %c0_68, %c0_69] : memref<9x128x128xbf16, #tpu.memory_space<vmem>>, vector<1x128x128xbf16>
    %73 = vector.shape_cast %72 : vector<1x128x128xbf16> to vector<128x128xbf16>
    %cst_70 = arith.constant dense<0.000000e+00> : vector<256x128xf32>
    %74 = tpu.matmul %71, %73, %cst_70 {dimension_numbers = #tpu.dot_dimension_numbers<[1], [0], [0], [1], [0, 0, 1, 1], [], []>} : vector<256x128xbf16>, vector<128x128xbf16>, vector<256x128xf32> -> vector<256x128xf32>
    %75 = arith.addf %67, %74 : vector<256x128xf32>
    %76 = vector.shape_cast %75 : vector<256x128xf32> to vector<1x16x16x128xf32>
    %77 = arith.truncf %76 : vector<1x16x16x128xf32> to vector<1x16x16x128xbf16>
    %c0_71 = arith.constant 0 : index
    %c0_72 = arith.constant 0 : index
    %c0_73 = arith.constant 0 : index
    %c0_74 = arith.constant 0 : index
    %78 = vector.load %arg3[%c0_71, %c0_72, %c0_73, %c0_74] : memref<1x16x16x128xbf16, #tpu.memory_space<vmem>>, vector<1x16x16x128xbf16>
    tpu.vector_store %arg3[%c0_71, %c0_72, %c0_73, %c0_74], %77 {strides = array<i32>} : memref<1x16x16x128xbf16, #tpu.memory_space<vmem>>, vector<1x16x16x128xbf16>,
    %cst_75 = arith.constant dense<0.000000e+00> : vector<128xf32>
    %79 = vector.multi_reduction <add>, %75, %cst_75 [0] : vector<256x128xf32> to vector<128xf32>
    %80 = vector.shape_cast %79 : vector<128xf32> to vector<1x128xf32>
    %81 = vector.shape_cast %80 : vector<1x128xf32> to vector<1x1x128xf32>
    %c0_76 = arith.constant 0 : index
    %c0_77 = arith.constant 0 : index
    %c0_78 = arith.constant 0 : index
    %82 = vector.load %arg4[%c0_76, %c0_77, %c0_78] : memref<1x1x128xf32, #tpu.memory_space<vmem>>, vector<1x1x128xf32>
    tpu.vector_store %arg4[%c0_76, %c0_77, %c0_78], %81 {strides = array<i32>} : memref<1x1x128xf32, #tpu.memory_space<vmem>>, vector<1x1x128xf32>,
    %83 = arith.mulf %75, %75 : vector<256x128xf32>
    %cst_79 = arith.constant dense<0.000000e+00> : vector<128xf32>
    %84 = vector.multi_reduction <add>, %83, %cst_79 [0] : vector<256x128xf32> to vector<128xf32>
    %85 = vector.shape_cast %84 : vector<128xf32> to vector<1x128xf32>
    %86 = vector.shape_cast %85 : vector<1x128xf32> to vector<1x1x128xf32>
    %c0_80 = arith.constant 0 : index
    %c0_81 = arith.constant 0 : index
    %c0_82 = arith.constant 0 : index
    %87 = vector.load %arg5[%c0_80, %c0_81, %c0_82] : memref<1x1x128xf32, #tpu.memory_space<vmem>>, vector<1x1x128xf32>
    tpu.vector_store %arg5[%c0_80, %c0_81, %c0_82], %86 {strides = array<i32>} : memref<1x1x128xf32, #tpu.memory_space<vmem>>, vector<1x1x128xf32>,
    return
  }
  func.func @transform_0(%arg0: i32) -> (i32, i32, i32, i32) {
    %c0_i32 = arith.constant 0 : i32
    %c0_i32_0 = arith.constant 0 : i32
    %c0_i32_1 = arith.constant 0 : i32
    %c0_i32_2 = arith.constant 0 : i32
    return %arg0, %c0_i32, %c0_i32_0, %c0_i32_1 : i32, i32, i32, i32
  }
  func.func @transform_1(%arg0: i32) -> (i32, i32, i32) {
    %c0_i32 = arith.constant 0 : i32
    %c0_i32_0 = arith.constant 0 : i32
    %c0_i32_1 = arith.constant 0 : i32
    %c0_i32_2 = arith.constant 0 : i32
    return %c0_i32, %c0_i32_0, %c0_i32_1 : i32, i32, i32
  }
  func.func @transform_2(%arg0: i32) -> (i32, i32, i32, i32) {
    %c0_i32 = arith.constant 0 : i32
    %c0_i32_0 = arith.constant 0 : i32
    %c0_i32_1 = arith.constant 0 : i32
    %c0_i32_2 = arith.constant 0 : i32
    return %arg0, %c0_i32, %c0_i32_0, %c0_i32_1 : i32, i32, i32, i32
  }
  func.func @transform_3(%arg0: i32) -> (i32, i32, i32) {
    %c0_i32 = arith.constant 0 : i32
    %c0_i32_0 = arith.constant 0 : i32
    %c0_i32_1 = arith.constant 0 : i32
    return %arg0, %c0_i32, %c0_i32_0 : i32, i32, i32
  }
  func.func @transform_4(%arg0: i32) -> (i32, i32, i32) {
    %c0_i32 = arith.constant 0 : i32
    %c0_i32_0 = arith.constant 0 : i32
    %c0_i32_1 = arith.constant 0 : i32
    return %arg0, %c0_i32, %c0_i32_0 : i32, i32, i32
  }
}

module attributes {stable_mosaic.version = 11 : i64} {
  func.func @bn_add_relu_kernel(%arg0: i32, %arg1: memref<512x128xbf16, #tpu.memory_space<vmem>>, %arg2: memref<512x128xbf16, #tpu.memory_space<vmem>>, %arg3: memref<1x128xf32, #tpu.memory_space<vmem>>, %arg4: memref<1x128xf32, #tpu.memory_space<vmem>>, %arg5: memref<512x128xf32, #tpu.memory_space<vmem>>) attributes {dimension_semantics = [#tpu.dimension_semantics<parallel>], iteration_bounds = array<i64: 1>, scalar_prefetch = 0 : i64, scratch_operands = 0 : i64, tpu.core_type = #tpu.core_type<tc>, window_params = [{transform_indices = @transform_0, window_bounds = array<i64: 512, 128>}, {transform_indices = @transform_1, window_bounds = array<i64: 512, 128>}, {pipeline_mode = #tpu.pipeline_mode<synchronous>, transform_indices = @transform_2, window_bounds = array<i64: 1, 128>}, {pipeline_mode = #tpu.pipeline_mode<synchronous>, transform_indices = @transform_3, window_bounds = array<i64: 1, 128>}, {transform_indices = @transform_4, window_bounds = array<i64: 512, 128>}]} {
    %c0 = arith.constant 0 : index
    %c0_0 = arith.constant 0 : index
    %0 = vector.load %arg1[%c0, %c0_0] : memref<512x128xbf16, #tpu.memory_space<vmem>>, vector<512x128xbf16>
    %1 = arith.extf %0 : vector<512x128xbf16> to vector<512x128xf32>
    %c0_1 = arith.constant 0 : index
    %c0_2 = arith.constant 0 : index
    %2 = vector.load %arg2[%c0_1, %c0_2] : memref<512x128xbf16, #tpu.memory_space<vmem>>, vector<512x128xbf16>
    %3 = arith.extf %2 : vector<512x128xbf16> to vector<512x128xf32>
    %c0_3 = arith.constant 0 : index
    %c0_4 = arith.constant 0 : index
    %4 = vector.load %arg3[%c0_3, %c0_4] : memref<1x128xf32, #tpu.memory_space<vmem>>, vector<1x128xf32>
    %5 = vector.broadcast %4 : vector<1x128xf32> to vector<512x128xf32>
    %6 = arith.mulf %1, %5 : vector<512x128xf32>
    %c0_5 = arith.constant 0 : index
    %c0_6 = arith.constant 0 : index
    %7 = vector.load %arg4[%c0_5, %c0_6] : memref<1x128xf32, #tpu.memory_space<vmem>>, vector<1x128xf32>
    %8 = vector.broadcast %7 : vector<1x128xf32> to vector<512x128xf32>
    %9 = arith.addf %6, %8 : vector<512x128xf32>
    %10 = arith.addf %9, %3 : vector<512x128xf32>
    %cst = arith.constant 0.000000e+00 : f32
    %11 = vector.broadcast %cst : f32 to vector<512x128xf32>
    %12 = arith.maximumf %10, %11 : vector<512x128xf32>
    %c0_7 = arith.constant 0 : index
    %c0_8 = arith.constant 0 : index
    %13 = vector.load %arg5[%c0_7, %c0_8] : memref<512x128xf32, #tpu.memory_space<vmem>>, vector<512x128xf32>
    tpu.vector_store %arg5[%c0_7, %c0_8], %12 {strides = array<i32>} : memref<512x128xf32, #tpu.memory_space<vmem>>, vector<512x128xf32>,
    return
  }
  func.func @transform_0(%arg0: i32) -> (i32, i32) {
    %c0_i32 = arith.constant 0 : i32
    %c0_i32_0 = arith.constant 0 : i32
    return %arg0, %c0_i32 : i32, i32
  }
  func.func @transform_1(%arg0: i32) -> (i32, i32) {
    %c0_i32 = arith.constant 0 : i32
    %c0_i32_0 = arith.constant 0 : i32
    return %arg0, %c0_i32 : i32, i32
  }
  func.func @transform_2(%arg0: i32) -> (i32, i32) {
    %c0_i32 = arith.constant 0 : i32
    %c0_i32_0 = arith.constant 0 : i32
    %c0_i32_1 = arith.constant 0 : i32
    return %c0_i32, %c0_i32_0 : i32, i32
  }
  func.func @transform_3(%arg0: i32) -> (i32, i32) {
    %c0_i32 = arith.constant 0 : i32
    %c0_i32_0 = arith.constant 0 : i32
    %c0_i32_1 = arith.constant 0 : i32
    return %c0_i32, %c0_i32_0 : i32, i32
  }
  func.func @transform_4(%arg0: i32) -> (i32, i32) {
    %c0_i32 = arith.constant 0 : i32
    %c0_i32_0 = arith.constant 0 : i32
    return %arg0, %c0_i32 : i32, i32
  }
}

module attributes {stable_mosaic.version = 11 : i64} {
  func.func @bn_relu_conv_stats_kernel(%arg0: i32, %arg1: memref<1x16x16x128xbf16, #tpu.memory_space<vmem>>, %arg2: memref<1x128xf32, #tpu.memory_space<vmem>>, %arg3: memref<1x128xf32, #tpu.memory_space<vmem>>, %arg4: memref<9x128x128xbf16, #tpu.memory_space<vmem>>, %arg5: memref<1x16x16x128xbf16, #tpu.memory_space<vmem>>, %arg6: memref<1x1x128xf32, #tpu.memory_space<vmem>>, %arg7: memref<1x1x128xf32, #tpu.memory_space<vmem>>, %arg8: memref<1x18x18x128xf32, #tpu.memory_space<vmem>>) attributes {dimension_semantics = [#tpu.dimension_semantics<parallel>], iteration_bounds = array<i64: 2>, scalar_prefetch = 0 : i64, scratch_operands = 1 : i64, tpu.core_type = #tpu.core_type<tc>, window_params = [{transform_indices = @transform_0, window_bounds = array<i64: 1, 16, 16, 128>}, {pipeline_mode = #tpu.pipeline_mode<synchronous>, transform_indices = @transform_1, window_bounds = array<i64: 1, 128>}, {pipeline_mode = #tpu.pipeline_mode<synchronous>, transform_indices = @transform_2, window_bounds = array<i64: 1, 128>}, {pipeline_mode = #tpu.pipeline_mode<synchronous>, transform_indices = @transform_3, window_bounds = array<i64: 9, 128, 128>}, {transform_indices = @transform_4, window_bounds = array<i64: 1, 16, 16, 128>}, {transform_indices = @transform_5, window_bounds = array<i64: 1, 1, 128>}, {transform_indices = @transform_6, window_bounds = array<i64: 1, 1, 128>}]} {
    %c0 = arith.constant 0 : index
    %c0_0 = arith.constant 0 : index
    %0 = vector.load %arg2[%c0, %c0_0] : memref<1x128xf32, #tpu.memory_space<vmem>>, vector<1x128xf32>
    %1 = vector.shape_cast %0 : vector<1x128xf32> to vector<1x1x1x128xf32>
    %c0_1 = arith.constant 0 : index
    %c0_2 = arith.constant 0 : index
    %2 = vector.load %arg3[%c0_1, %c0_2] : memref<1x128xf32, #tpu.memory_space<vmem>>, vector<1x128xf32>
    %3 = vector.shape_cast %2 : vector<1x128xf32> to vector<1x1x1x128xf32>
    %c0_3 = arith.constant 0 : index
    %c0_4 = arith.constant 0 : index
    %c0_5 = arith.constant 0 : index
    %c0_6 = arith.constant 0 : index
    %4 = vector.load %arg1[%c0_3, %c0_4, %c0_5, %c0_6] : memref<1x16x16x128xbf16, #tpu.memory_space<vmem>>, vector<1x16x16x128xbf16>
    %5 = arith.extf %4 : vector<1x16x16x128xbf16> to vector<1x16x16x128xf32>
    %6 = vector.broadcast %1 : vector<1x1x1x128xf32> to vector<1x16x16x128xf32>
    %7 = arith.mulf %5, %6 : vector<1x16x16x128xf32>
    %8 = vector.broadcast %3 : vector<1x1x1x128xf32> to vector<1x16x16x128xf32>
    %9 = arith.addf %7, %8 : vector<1x16x16x128xf32>
    %cst = arith.constant 0.000000e+00 : f32
    %10 = vector.broadcast %cst : f32 to vector<1x16x16x128xf32>
    %11 = arith.maximumf %9, %10 : vector<1x16x16x128xf32>
    %cst_7 = arith.constant 0.000000e+00 : f32
    %12 = vector.broadcast %cst_7 : f32 to vector<1x18x18x128xf32>
    %c0_8 = arith.constant 0 : index
    %c0_9 = arith.constant 0 : index
    %c0_10 = arith.constant 0 : index
    %c0_11 = arith.constant 0 : index
    %13 = vector.load %arg8[%c0_8, %c0_9, %c0_10, %c0_11] : memref<1x18x18x128xf32, #tpu.memory_space<vmem>>, vector<1x18x18x128xf32>
    tpu.vector_store %arg8[%c0_8, %c0_9, %c0_10, %c0_11], %12 {strides = array<i32>} : memref<1x18x18x128xf32, #tpu.memory_space<vmem>>, vector<1x18x18x128xf32>,
    %c0_12 = arith.constant 0 : index
    %c1 = arith.constant 1 : index
    %c1_13 = arith.constant 1 : index
    %c0_14 = arith.constant 0 : index
    %14 = vector.load %arg8[%c0_12, %c1, %c1_13, %c0_14] : memref<1x18x18x128xf32, #tpu.memory_space<vmem>>, vector<1x16x16x128xf32>
    tpu.vector_store %arg8[%c0_12, %c1, %c1_13, %c0_14], %11 {strides = array<i32>} : memref<1x18x18x128xf32, #tpu.memory_space<vmem>>, vector<1x16x16x128xf32>,
    %cst_15 = arith.constant 0.000000e+00 : f32
    %15 = vector.broadcast %cst_15 : f32 to vector<256x128xf32>
    %c0_16 = arith.constant 0 : index
    %c0_17 = arith.constant 0 : index
    %c0_18 = arith.constant 0 : index
    %c0_19 = arith.constant 0 : index
    %16 = vector.load %arg8[%c0_16, %c0_17, %c0_18, %c0_19] : memref<1x18x18x128xf32, #tpu.memory_space<vmem>>, vector<1x16x16x128xf32>
    %17 = vector.shape_cast %16 : vector<1x16x16x128xf32> to vector<16x16x128xf32>
    %18 = vector.shape_cast %17 : vector<16x16x128xf32> to vector<256x128xf32>
    %19 = arith.truncf %18 : vector<256x128xf32> to vector<256x128xbf16>
    %c0_20 = arith.constant 0 : index
    %c0_21 = arith.constant 0 : index
    %c0_22 = arith.constant 0 : index
    %20 = vector.load %arg4[%c0_20, %c0_21, %c0_22] : memref<9x128x128xbf16, #tpu.memory_space<vmem>>, vector<1x128x128xbf16>
    %21 = vector.shape_cast %20 : vector<1x128x128xbf16> to vector<128x128xbf16>
    %cst_23 = arith.constant dense<0.000000e+00> : vector<256x128xf32>
    %22 = tpu.matmul %19, %21, %cst_23 {dimension_numbers = #tpu.dot_dimension_numbers<[1], [0], [0], [1], [0, 0, 1, 1], [], []>} : vector<256x128xbf16>, vector<128x128xbf16>, vector<256x128xf32> -> vector<256x128xf32>
    %23 = arith.addf %15, %22 : vector<256x128xf32>
    %c0_24 = arith.constant 0 : index
    %c0_25 = arith.constant 0 : index
    %c1_26 = arith.constant 1 : index
    %c0_27 = arith.constant 0 : index
    %24 = vector.load %arg8[%c0_24, %c0_25, %c1_26, %c0_27] : memref<1x18x18x128xf32, #tpu.memory_space<vmem>>, vector<1x16x16x128xf32>
    %25 = vector.shape_cast %24 : vector<1x16x16x128xf32> to vector<16x16x128xf32>
    %26 = vector.shape_cast %25 : vector<16x16x128xf32> to vector<256x128xf32>
    %27 = arith.truncf %26 : vector<256x128xf32> to vector<256x128xbf16>
    %c1_28 = arith.constant 1 : index
    %c0_29 = arith.constant 0 : index
    %c0_30 = arith.constant 0 : index
    %28 = vector.load %arg4[%c1_28, %c0_29, %c0_30] : memref<9x128x128xbf16, #tpu.memory_space<vmem>>, vector<1x128x128xbf16>
    %29 = vector.shape_cast %28 : vector<1x128x128xbf16> to vector<128x128xbf16>
    %cst_31 = arith.constant dense<0.000000e+00> : vector<256x128xf32>
    %30 = tpu.matmul %27, %29, %cst_31 {dimension_numbers = #tpu.dot_dimension_numbers<[1], [0], [0], [1], [0, 0, 1, 1], [], []>} : vector<256x128xbf16>, vector<128x128xbf16>, vector<256x128xf32> -> vector<256x128xf32>
    %31 = arith.addf %23, %30 : vector<256x128xf32>
    %c0_32 = arith.constant 0 : index
    %c0_33 = arith.constant 0 : index
    %c2 = arith.constant 2 : index
    %c0_34 = arith.constant 0 : index
    %32 = vector.load %arg8[%c0_32, %c0_33, %c2, %c0_34] : memref<1x18x18x128xf32, #tpu.memory_space<vmem>>, vector<1x16x16x128xf32>
    %33 = vector.shape_cast %32 : vector<1x16x16x128xf32> to vector<16x16x128xf32>
    %34 = vector.shape_cast %33 : vector<16x16x128xf32> to vector<256x128xf32>
    %35 = arith.truncf %34 : vector<256x128xf32> to vector<256x128xbf16>
    %c2_35 = arith.constant 2 : index
    %c0_36 = arith.constant 0 : index
    %c0_37 = arith.constant 0 : index
    %36 = vector.load %arg4[%c2_35, %c0_36, %c0_37] : memref<9x128x128xbf16, #tpu.memory_space<vmem>>, vector<1x128x128xbf16>
    %37 = vector.shape_cast %36 : vector<1x128x128xbf16> to vector<128x128xbf16>
    %cst_38 = arith.constant dense<0.000000e+00> : vector<256x128xf32>
    %38 = tpu.matmul %35, %37, %cst_38 {dimension_numbers = #tpu.dot_dimension_numbers<[1], [0], [0], [1], [0, 0, 1, 1], [], []>} : vector<256x128xbf16>, vector<128x128xbf16>, vector<256x128xf32> -> vector<256x128xf32>
    %39 = arith.addf %31, %38 : vector<256x128xf32>
    %c0_39 = arith.constant 0 : index
    %c1_40 = arith.constant 1 : index
    %c0_41 = arith.constant 0 : index
    %c0_42 = arith.constant 0 : index
    %40 = vector.load %arg8[%c0_39, %c1_40, %c0_41, %c0_42] : memref<1x18x18x128xf32, #tpu.memory_space<vmem>>, vector<1x16x16x128xf32>
    %41 = vector.shape_cast %40 : vector<1x16x16x128xf32> to vector<16x16x128xf32>
    %42 = vector.shape_cast %41 : vector<16x16x128xf32> to vector<256x128xf32>
    %43 = arith.truncf %42 : vector<256x128xf32> to vector<256x128xbf16>
    %c3 = arith.constant 3 : index
    %c0_43 = arith.constant 0 : index
    %c0_44 = arith.constant 0 : index
    %44 = vector.load %arg4[%c3, %c0_43, %c0_44] : memref<9x128x128xbf16, #tpu.memory_space<vmem>>, vector<1x128x128xbf16>
    %45 = vector.shape_cast %44 : vector<1x128x128xbf16> to vector<128x128xbf16>
    %cst_45 = arith.constant dense<0.000000e+00> : vector<256x128xf32>
    %46 = tpu.matmul %43, %45, %cst_45 {dimension_numbers = #tpu.dot_dimension_numbers<[1], [0], [0], [1], [0, 0, 1, 1], [], []>} : vector<256x128xbf16>, vector<128x128xbf16>, vector<256x128xf32> -> vector<256x128xf32>
    %47 = arith.addf %39, %46 : vector<256x128xf32>
    %c0_46 = arith.constant 0 : index
    %c1_47 = arith.constant 1 : index
    %c1_48 = arith.constant 1 : index
    %c0_49 = arith.constant 0 : index
    %48 = vector.load %arg8[%c0_46, %c1_47, %c1_48, %c0_49] : memref<1x18x18x128xf32, #tpu.memory_space<vmem>>, vector<1x16x16x128xf32>
    %49 = vector.shape_cast %48 : vector<1x16x16x128xf32> to vector<16x16x128xf32>
    %50 = vector.shape_cast %49 : vector<16x16x128xf32> to vector<256x128xf32>
    %51 = arith.truncf %50 : vector<256x128xf32> to vector<256x128xbf16>
    %c4 = arith.constant 4 : index
    %c0_50 = arith.constant 0 : index
    %c0_51 = arith.constant 0 : index
    %52 = vector.load %arg4[%c4, %c0_50, %c0_51] : memref<9x128x128xbf16, #tpu.memory_space<vmem>>, vector<1x128x128xbf16>
    %53 = vector.shape_cast %52 : vector<1x128x128xbf16> to vector<128x128xbf16>
    %cst_52 = arith.constant dense<0.000000e+00> : vector<256x128xf32>
    %54 = tpu.matmul %51, %53, %cst_52 {dimension_numbers = #tpu.dot_dimension_numbers<[1], [0], [0], [1], [0, 0, 1, 1], [], []>} : vector<256x128xbf16>, vector<128x128xbf16>, vector<256x128xf32> -> vector<256x128xf32>
    %55 = arith.addf %47, %54 : vector<256x128xf32>
    %c0_53 = arith.constant 0 : index
    %c1_54 = arith.constant 1 : index
    %c2_55 = arith.constant 2 : index
    %c0_56 = arith.constant 0 : index
    %56 = vector.load %arg8[%c0_53, %c1_54, %c2_55, %c0_56] : memref<1x18x18x128xf32, #tpu.memory_space<vmem>>, vector<1x16x16x128xf32>
    %57 = vector.shape_cast %56 : vector<1x16x16x128xf32> to vector<16x16x128xf32>
    %58 = vector.shape_cast %57 : vector<16x16x128xf32> to vector<256x128xf32>
    %59 = arith.truncf %58 : vector<256x128xf32> to vector<256x128xbf16>
    %c5 = arith.constant 5 : index
    %c0_57 = arith.constant 0 : index
    %c0_58 = arith.constant 0 : index
    %60 = vector.load %arg4[%c5, %c0_57, %c0_58] : memref<9x128x128xbf16, #tpu.memory_space<vmem>>, vector<1x128x128xbf16>
    %61 = vector.shape_cast %60 : vector<1x128x128xbf16> to vector<128x128xbf16>
    %cst_59 = arith.constant dense<0.000000e+00> : vector<256x128xf32>
    %62 = tpu.matmul %59, %61, %cst_59 {dimension_numbers = #tpu.dot_dimension_numbers<[1], [0], [0], [1], [0, 0, 1, 1], [], []>} : vector<256x128xbf16>, vector<128x128xbf16>, vector<256x128xf32> -> vector<256x128xf32>
    %63 = arith.addf %55, %62 : vector<256x128xf32>
    %c0_60 = arith.constant 0 : index
    %c2_61 = arith.constant 2 : index
    %c0_62 = arith.constant 0 : index
    %c0_63 = arith.constant 0 : index
    %64 = vector.load %arg8[%c0_60, %c2_61, %c0_62, %c0_63] : memref<1x18x18x128xf32, #tpu.memory_space<vmem>>, vector<1x16x16x128xf32>
    %65 = vector.shape_cast %64 : vector<1x16x16x128xf32> to vector<16x16x128xf32>
    %66 = vector.shape_cast %65 : vector<16x16x128xf32> to vector<256x128xf32>
    %67 = arith.truncf %66 : vector<256x128xf32> to vector<256x128xbf16>
    %c6 = arith.constant 6 : index
    %c0_64 = arith.constant 0 : index
    %c0_65 = arith.constant 0 : index
    %68 = vector.load %arg4[%c6, %c0_64, %c0_65] : memref<9x128x128xbf16, #tpu.memory_space<vmem>>, vector<1x128x128xbf16>
    %69 = vector.shape_cast %68 : vector<1x128x128xbf16> to vector<128x128xbf16>
    %cst_66 = arith.constant dense<0.000000e+00> : vector<256x128xf32>
    %70 = tpu.matmul %67, %69, %cst_66 {dimension_numbers = #tpu.dot_dimension_numbers<[1], [0], [0], [1], [0, 0, 1, 1], [], []>} : vector<256x128xbf16>, vector<128x128xbf16>, vector<256x128xf32> -> vector<256x128xf32>
    %71 = arith.addf %63, %70 : vector<256x128xf32>
    %c0_67 = arith.constant 0 : index
    %c2_68 = arith.constant 2 : index
    %c1_69 = arith.constant 1 : index
    %c0_70 = arith.constant 0 : index
    %72 = vector.load %arg8[%c0_67, %c2_68, %c1_69, %c0_70] : memref<1x18x18x128xf32, #tpu.memory_space<vmem>>, vector<1x16x16x128xf32>
    %73 = vector.shape_cast %72 : vector<1x16x16x128xf32> to vector<16x16x128xf32>
    %74 = vector.shape_cast %73 : vector<16x16x128xf32> to vector<256x128xf32>
    %75 = arith.truncf %74 : vector<256x128xf32> to vector<256x128xbf16>
    %c7 = arith.constant 7 : index
    %c0_71 = arith.constant 0 : index
    %c0_72 = arith.constant 0 : index
    %76 = vector.load %arg4[%c7, %c0_71, %c0_72] : memref<9x128x128xbf16, #tpu.memory_space<vmem>>, vector<1x128x128xbf16>
    %77 = vector.shape_cast %76 : vector<1x128x128xbf16> to vector<128x128xbf16>
    %cst_73 = arith.constant dense<0.000000e+00> : vector<256x128xf32>
    %78 = tpu.matmul %75, %77, %cst_73 {dimension_numbers = #tpu.dot_dimension_numbers<[1], [0], [0], [1], [0, 0, 1, 1], [], []>} : vector<256x128xbf16>, vector<128x128xbf16>, vector<256x128xf32> -> vector<256x128xf32>
    %79 = arith.addf %71, %78 : vector<256x128xf32>
    %c0_74 = arith.constant 0 : index
    %c2_75 = arith.constant 2 : index
    %c2_76 = arith.constant 2 : index
    %c0_77 = arith.constant 0 : index
    %80 = vector.load %arg8[%c0_74, %c2_75, %c2_76, %c0_77] : memref<1x18x18x128xf32, #tpu.memory_space<vmem>>, vector<1x16x16x128xf32>
    %81 = vector.shape_cast %80 : vector<1x16x16x128xf32> to vector<16x16x128xf32>
    %82 = vector.shape_cast %81 : vector<16x16x128xf32> to vector<256x128xf32>
    %83 = arith.truncf %82 : vector<256x128xf32> to vector<256x128xbf16>
    %c8 = arith.constant 8 : index
    %c0_78 = arith.constant 0 : index
    %c0_79 = arith.constant 0 : index
    %84 = vector.load %arg4[%c8, %c0_78, %c0_79] : memref<9x128x128xbf16, #tpu.memory_space<vmem>>, vector<1x128x128xbf16>
    %85 = vector.shape_cast %84 : vector<1x128x128xbf16> to vector<128x128xbf16>
    %cst_80 = arith.constant dense<0.000000e+00> : vector<256x128xf32>
    %86 = tpu.matmul %83, %85, %cst_80 {dimension_numbers = #tpu.dot_dimension_numbers<[1], [0], [0], [1], [0, 0, 1, 1], [], []>} : vector<256x128xbf16>, vector<128x128xbf16>, vector<256x128xf32> -> vector<256x128xf32>
    %87 = arith.addf %79, %86 : vector<256x128xf32>
    %88 = vector.shape_cast %87 : vector<256x128xf32> to vector<1x16x16x128xf32>
    %89 = arith.truncf %88 : vector<1x16x16x128xf32> to vector<1x16x16x128xbf16>
    %c0_81 = arith.constant 0 : index
    %c0_82 = arith.constant 0 : index
    %c0_83 = arith.constant 0 : index
    %c0_84 = arith.constant 0 : index
    %90 = vector.load %arg5[%c0_81, %c0_82, %c0_83, %c0_84] : memref<1x16x16x128xbf16, #tpu.memory_space<vmem>>, vector<1x16x16x128xbf16>
    tpu.vector_store %arg5[%c0_81, %c0_82, %c0_83, %c0_84], %89 {strides = array<i32>} : memref<1x16x16x128xbf16, #tpu.memory_space<vmem>>, vector<1x16x16x128xbf16>,
    %cst_85 = arith.constant dense<0.000000e+00> : vector<128xf32>
    %91 = vector.multi_reduction <add>, %87, %cst_85 [0] : vector<256x128xf32> to vector<128xf32>
    %92 = vector.shape_cast %91 : vector<128xf32> to vector<1x128xf32>
    %93 = vector.shape_cast %92 : vector<1x128xf32> to vector<1x1x128xf32>
    %c0_86 = arith.constant 0 : index
    %c0_87 = arith.constant 0 : index
    %c0_88 = arith.constant 0 : index
    %94 = vector.load %arg6[%c0_86, %c0_87, %c0_88] : memref<1x1x128xf32, #tpu.memory_space<vmem>>, vector<1x1x128xf32>
    tpu.vector_store %arg6[%c0_86, %c0_87, %c0_88], %93 {strides = array<i32>} : memref<1x1x128xf32, #tpu.memory_space<vmem>>, vector<1x1x128xf32>,
    %95 = arith.mulf %87, %87 : vector<256x128xf32>
    %cst_89 = arith.constant dense<0.000000e+00> : vector<128xf32>
    %96 = vector.multi_reduction <add>, %95, %cst_89 [0] : vector<256x128xf32> to vector<128xf32>
    %97 = vector.shape_cast %96 : vector<128xf32> to vector<1x128xf32>
    %98 = vector.shape_cast %97 : vector<1x128xf32> to vector<1x1x128xf32>
    %c0_90 = arith.constant 0 : index
    %c0_91 = arith.constant 0 : index
    %c0_92 = arith.constant 0 : index
    %99 = vector.load %arg7[%c0_90, %c0_91, %c0_92] : memref<1x1x128xf32, #tpu.memory_space<vmem>>, vector<1x1x128xf32>
    tpu.vector_store %arg7[%c0_90, %c0_91, %c0_92], %98 {strides = array<i32>} : memref<1x1x128xf32, #tpu.memory_space<vmem>>, vector<1x1x128xf32>,
    return
  }
  func.func @transform_0(%arg0: i32) -> (i32, i32, i32, i32) {
    %c0_i32 = arith.constant 0 : i32
    %c0_i32_0 = arith.constant 0 : i32
    %c0_i32_1 = arith.constant 0 : i32
    %c0_i32_2 = arith.constant 0 : i32
    return %arg0, %c0_i32, %c0_i32_0, %c0_i32_1 : i32, i32, i32, i32
  }
  func.func @transform_1(%arg0: i32) -> (i32, i32) {
    %c0_i32 = arith.constant 0 : i32
    %c0_i32_0 = arith.constant 0 : i32
    %c0_i32_1 = arith.constant 0 : i32
    return %c0_i32, %c0_i32_0 : i32, i32
  }
  func.func @transform_2(%arg0: i32) -> (i32, i32) {
    %c0_i32 = arith.constant 0 : i32
    %c0_i32_0 = arith.constant 0 : i32
    %c0_i32_1 = arith.constant 0 : i32
    return %c0_i32, %c0_i32_0 : i32, i32
  }
  func.func @transform_3(%arg0: i32) -> (i32, i32, i32) {
    %c0_i32 = arith.constant 0 : i32
    %c0_i32_0 = arith.constant 0 : i32
    %c0_i32_1 = arith.constant 0 : i32
    %c0_i32_2 = arith.constant 0 : i32
    return %c0_i32, %c0_i32_0, %c0_i32_1 : i32, i32, i32
  }
  func.func @transform_4(%arg0: i32) -> (i32, i32, i32, i32) {
    %c0_i32 = arith.constant 0 : i32
    %c0_i32_0 = arith.constant 0 : i32
    %c0_i32_1 = arith.constant 0 : i32
    %c0_i32_2 = arith.constant 0 : i32
    return %arg0, %c0_i32, %c0_i32_0, %c0_i32_1 : i32, i32, i32, i32
  }
  func.func @transform_5(%arg0: i32) -> (i32, i32, i32) {
    %c0_i32 = arith.constant 0 : i32
    %c0_i32_0 = arith.constant 0 : i32
    %c0_i32_1 = arith.constant 0 : i32
    return %arg0, %c0_i32, %c0_i32_0 : i32, i32, i32
  }
  func.func @transform_6(%arg0: i32) -> (i32, i32, i32) {
    %c0_i32 = arith.constant 0 : i32
    %c0_i32_0 = arith.constant 0 : i32
    %c0_i32_1 = arith.constant 0 : i32
    return %arg0, %c0_i32, %c0_i32_0 : i32, i32, i32
  }
}

</mosaic_0001>

<llo_original>
// kernel: basic_block_forward.5
$region0: #{basic_block_forward.5}
  #allocation0 [shape = 'u32[]', space=smem, size = 0x4, offset = 0x4, fixed_abs, tag = 'smem constant byte address 0x4 - core index']
  #allocation1 [shape = 'u32[144,128]{1,0:T(1,128)}', space=vmem, size = 0x12000, scoped, tag = 'internal scratch']
  %s0 = inlined_call_operand.vmem [shape: bf16[512,128], index: 0, kind: input, shape index: {}]
  %s1 = inlined_call_operand.vmem [shape: bf16[512,128], index: 1, kind: input, shape index: {}]
  %s2 = inlined_call_operand.vmem [shape: f32[1,128], index: 2, kind: input, shape index: {}]
  %s3 = inlined_call_operand.vmem [shape: f32[1,128], index: 3, kind: input, shape index: {}]
  %s4 = inlined_call_operand.vmem [shape: f32[512,128], index: 4, kind: output, shape index: {}]
  %s5 = sld [smem:[#allocation0]]
  $region26: #{basic_block_forward.5} parent=0
    _
  %s7 = ssub.s32 1, %s5
  %s8 = scalar_select 0, %s7, %s5
  // Predicated region
  $region2: #{basic_block_forward.5} parent=0 // pred_check
    _
  $region3: #{basic_block_forward.5} parent=0 // pred_check_branch
    %10 = sbr.rel (0) target = $region5
  $region4: #{basic_block_forward.5} parent=0 // pred_region
    _
  $region5: #{basic_block_forward.5} parent=0 // pred_fallthru
    _
  // Predicated region
  $region6: #{basic_block_forward.5} parent=0 // pred_check
    _
  $region7: #{basic_block_forward.5} parent=0 // pred_check_branch
    %12 = sbr.rel (0) target = $region9
  $region8: #{basic_block_forward.5} parent=0 // pred_region
    _
  $region9: #{basic_block_forward.5} parent=0 // pred_fallthru
    _
  // Predicated region
  $region10: #{basic_block_forward.5} parent=0 // pred_check
    _
  $region11: #{basic_block_forward.5} parent=0 // pred_check_branch
    %14 = sbr.rel (0) target = $region13
  $region12: #{basic_block_forward.5} parent=0 // pred_region
    _
  $region13: #{basic_block_forward.5} parent=0 // pred_fallthru
    _
  // Predicated region
  $region14: #{basic_block_forward.5} parent=0 // pred_check
    _
  $region15: #{basic_block_forward.5} parent=0 // pred_check_branch
    %16 = sbr.rel (0) target = $region17
  $region16: #{basic_block_forward.5} parent=0 // pred_region
    _
  $region17: #{basic_block_forward.5} parent=0 // pred_fallthru
    _
  %v17 = vld [vmem:[%s0] sm:$0xf]
  %v18 = vld [vmem:[%s0 + $0x4] sm:$0xf]
  %v19 = vld [vmem:[%s0 + $0x8] sm:$0xf]
  %v20 = vld [vmem:[%s0 + $0xc] sm:$0xf]
  %v21 = vld [vmem:[%s0 + $0x10] sm:$0xf]
  %v22 = vld [vmem:[%s0 + $0x14] sm:$0xf]
  %v23 = vld [vmem:[%s0 + $0x18] sm:$0xf]
  %v24 = vld [vmem:[%s0 + $0x1c] sm:$0xf]
  %v25 = vld [vmem:[%s0 + $0x20] sm:$0xf]
  %v26 = vld [vmem:[%s0 + $0x24] sm:$0xf]
  %v27 = vld [vmem:[%s0 + $0x28] sm:$0xf]
  %v28 = vld [vmem:[%s0 + $0x2c] sm:$0xf]
  %v29 = vld [vmem:[%s0 + $0x30] sm:$0xf]
  %v30 = vld [vmem:[%s0 + $0x34] sm:$0xf]
  %v31 = vld [vmem:[%s0 + $0x38] sm:$0xf]
  %v32 = vld [vmem:[%s0 + $0x3c] sm:$0xf]
  %v33 = vld [vmem:[%s0 + $0x40] sm:$0xf]
  %v34 = vld [vmem:[%s0 + $0x44] sm:$0xf]
  %v35 = vld [vmem:[%s0 + $0x48] sm:$0xf]
  %v36 = vld [vmem:[%s0 + $0x4c] sm:$0xf]
  %v37 = vld [vmem:[%s0 + $0x50] sm:$0xf]
  %v38 = vld [vmem:[%s0 + $0x54] sm:$0xf]
  %v39 = vld [vmem:[%s0 + $0x58] sm:$0xf]
  %v40 = vld [vmem:[%s0 + $0x5c] sm:$0xf]
  %v41 = vld [vmem:[%s0 + $0x60] sm:$0xf]
  %v42 = vld [vmem:[%s0 + $0x64] sm:$0xf]
  %v43 = vld [vmem:[%s0 + $0x68] sm:$0xf]
  %v44 = vld [vmem:[%s0 + $0x6c] sm:$0xf]
  %v45 = vld [vmem:[%s0 + $0x70] sm:$0xf]
  %v46 = vld [vmem:[%s0 + $0x74] sm:$0xf]
  %v47 = vld [vmem:[%s0 + $0x78] sm:$0xf]
  %v48 = vld [vmem:[%s0 + $0x7c] sm:$0xf]
  %v49 = vld [vmem:[%s0 + $0x80] sm:$0xf]
  %v50 = vld [vmem:[%s0 + $0x84] sm:$0xf]
  %v51 = vld [vmem:[%s0 + $0x88] sm:$0xf]
  %v52 = vld [vmem:[%s0 + $0x8c] sm:$0xf]
  %v53 = vld [vmem:[%s0 + $0x90] sm:$0xf]
  %v54 = vld [vmem:[%s0 + $0x94] sm:$0xf]
  %v55 = vld [vmem:[%s0 + $0x98] sm:$0xf]
  %v56 = vld [vmem:[%s0 + $0x9c] sm:$0xf]
  %v57 = vld [vmem:[%s0 + $0xa0] sm:$0xf]
  %v58 = vld [vmem:[%s0 + $0xa4] sm:$0xf]
  %v59 = vld [vmem:[%s0 + $0xa8] sm:$0xf]
  %v60 = vld [vmem:[%s0 + $0xac] sm:$0xf]
  %v61 = vld [vmem:[%s0 + $0xb0] sm:$0xf]
  %v62 = vld [vmem:[%s0 + $0xb4] sm:$0xf]
  %v63 = vld [vmem:[%s0 + $0xb8] sm:$0xf]
  %v64 = vld [vmem:[%s0 + $0xbc] sm:$0xf]
  %v65 = vld [vmem:[%s0 + $0xc0] sm:$0xf]
  %v66 = vld [vmem:[%s0 + $0xc4] sm:$0xf]
  %v67 = vld [vmem:[%s0 + $0xc8] sm:$0xf]
  %v68 = vld [vmem:[%s0 + $0xcc] sm:$0xf]
  %v69 = vld [vmem:[%s0 + $0xd0] sm:$0xf]
  %v70 = vld [vmem:[%s0 + $0xd4] sm:$0xf]
  %v71 = vld [vmem:[%s0 + $0xd8] sm:$0xf]
  %v72 = vld [vmem:[%s0 + $0xdc] sm:$0xf]
  %v73 = vld [vmem:[%s0 + $0xe0] sm:$0xf]
  %v74 = vld [vmem:[%s0 + $0xe4] sm:$0xf]
  %v75 = vld [vmem:[%s0 + $0xe8] sm:$0xf]
  %v76 = vld [vmem:[%s0 + $0xec] sm:$0xf]
  %v77 = vld [vmem:[%s0 + $0xf0] sm:$0xf]
  %v78 = vld [vmem:[%s0 + $0xf4] sm:$0xf]
  %v79 = vld [vmem:[%s0 + $0xf8] sm:$0xf]
  %v80 = vld [vmem:[%s0 + $0xfc] sm:$0xf]
  %v81 = vunpack.c.l.bf16 %v17
  %v82 = vunpack.c.l.bf16 %v18
  %v83 = vunpack.c.l.bf16 %v19
  %v84 = vunpack.c.l.bf16 %v20
  %v85 = vunpack.c.l.bf16 %v21
  %v86 = vunpack.c.l.bf16 %v22
  %v87 = vunpack.c.l.bf16 %v23
  %v88 = vunpack.c.l.bf16 %v24
  %v89 = vunpack.c.l.bf16 %v25
  %v90 = vunpack.c.l.bf16 %v26
  %v91 = vunpack.c.l.bf16 %v27
  %v92 = vunpack.c.l.bf16 %v28
  %v93 = vunpack.c.l.bf16 %v29
  %v94 = vunpack.c.l.bf16 %v30
  %v95 = vunpack.c.l.bf16 %v31
  %v96 = vunpack.c.l.bf16 %v32
  %v97 = vunpack.c.l.bf16 %v33
  %v98 = vunpack.c.l.bf16 %v34
  %v99 = vunpack.c.l.bf16 %v35
  %v100 = vunpack.c.l.bf16 %v36
  %v101 = vunpack.c.l.bf16 %v37
  %v102 = vunpack.c.l.bf16 %v38
  %v103 = vunpack.c.l.bf16 %v39
  %v104 = vunpack.c.l.bf16 %v40
  %v105 = vunpack.c.l.bf16 %v41
  %v106 = vunpack.c.l.bf16 %v42
  %v107 = vunpack.c.l.bf16 %v43
  %v108 = vunpack.c.l.bf16 %v44
  %v109 = vunpack.c.l.bf16 %v45
  %v110 = vunpack.c.l.bf16 %v46
  %v111 = vunpack.c.l.bf16 %v47
  %v112 = vunpack.c.l.bf16 %v48
  %v113 = vunpack.c.l.bf16 %v49
  %v114 = vunpack.c.l.bf16 %v50
  %v115 = vunpack.c.l.bf16 %v51
  %v116 = vunpack.c.l.bf16 %v52
  %v117 = vunpack.c.l.bf16 %v53
  %v118 = vunpack.c.l.bf16 %v54
  %v119 = vunpack.c.l.bf16 %v55
  %v120 = vunpack.c.l.bf16 %v56
  %v121 = vunpack.c.l.bf16 %v57
  %v122 = vunpack.c.l.bf16 %v58
  %v123 = vunpack.c.l.bf16 %v59
  %v124 = vunpack.c.l.bf16 %v60
  %v125 = vunpack.c.l.bf16 %v61
  %v126 = vunpack.c.l.bf16 %v62
  %v127 = vunpack.c.l.bf16 %v63
  %v128 = vunpack.c.l.bf16 %v64
  %v129 = vunpack.c.l.bf16 %v65
  %v130 = vunpack.c.l.bf16 %v66
  %v131 = vunpack.c.l.bf16 %v67
  %v132 = vunpack.c.l.bf16 %v68
  %v133 = vunpack.c.l.bf16 %v69
  %v134 = vunpack.c.l.bf16 %v70
  %v135 = vunpack.c.l.bf16 %v71
  %v136 = vunpack.c.l.bf16 %v72
  %v137 = vunpack.c.l.bf16 %v73
  %v138 = vunpack.c.l.bf16 %v74
  %v139 = vunpack.c.l.bf16 %v75
  %v140 = vunpack.c.l.bf16 %v76
  %v141 = vunpack.c.l.bf16 %v77
  %v142 = vunpack.c.l.bf16 %v78
  %v143 = vunpack.c.l.bf16 %v79
  %v144 = vunpack.c.l.bf16 %v80
  %v145 = vld [vmem:[%s1] sm:$0xf]
  %v146 = vld [vmem:[%s1 + $0x4] sm:$0xf]
  %v147 = vld [vmem:[%s1 + $0x8] sm:$0xf]
  %v148 = vld [vmem:[%s1 + $0xc] sm:$0xf]
  %v149 = vld [vmem:[%s1 + $0x10] sm:$0xf]
  %v150 = vld [vmem:[%s1 + $0x14] sm:$0xf]
  %v151 = vld [vmem:[%s1 + $0x18] sm:$0xf]
  %v152 = vld [vmem:[%s1 + $0x1c] sm:$0xf]
  %v153 = vld [vmem:[%s1 + $0x20] sm:$0xf]
  %v154 = vld [vmem:[%s1 + $0x24] sm:$0xf]
  %v155 = vld [vmem:[%s1 + $0x28] sm:$0xf]
  %v156 = vld [vmem:[%s1 + $0x2c] sm:$0xf]
  %v157 = vld [vmem:[%s1 + $0x30] sm:$0xf]
  %v158 = vld [vmem:[%s1 + $0x34] sm:$0xf]
  %v159 = vld [vmem:[%s1 + $0x38] sm:$0xf]
  %v160 = vld [vmem:[%s1 + $0x3c] sm:$0xf]
  %v161 = vld [vmem:[%s1 + $0x40] sm:$0xf]
  %v162 = vld [vmem:[%s1 + $0x44] sm:$0xf]
  %v163 = vld [vmem:[%s1 + $0x48] sm:$0xf]
  %v164 = vld [vmem:[%s1 + $0x4c] sm:$0xf]
  %v165 = vld [vmem:[%s1 + $0x50] sm:$0xf]
  %v166 = vld [vmem:[%s1 + $0x54] sm:$0xf]
  %v167 = vld [vmem:[%s1 + $0x58] sm:$0xf]
  %v168 = vld [vmem:[%s1 + $0x5c] sm:$0xf]
  %v169 = vld [vmem:[%s1 + $0x60] sm:$0xf]
  %v170 = vld [vmem:[%s1 + $0x64] sm:$0xf]
  %v171 = vld [vmem:[%s1 + $0x68] sm:$0xf]
  %v172 = vld [vmem:[%s1 + $0x6c] sm:$0xf]
  %v173 = vld [vmem:[%s1 + $0x70] sm:$0xf]
  %v174 = vld [vmem:[%s1 + $0x74] sm:$0xf]
  %v175 = vld [vmem:[%s1 + $0x78] sm:$0xf]
  %v176 = vld [vmem:[%s1 + $0x7c] sm:$0xf]
  %v177 = vld [vmem:[%s1 + $0x80] sm:$0xf]
  %v178 = vld [vmem:[%s1 + $0x84] sm:$0xf]
  %v179 = vld [vmem:[%s1 + $0x88] sm:$0xf]
  %v180 = vld [vmem:[%s1 + $0x8c] sm:$0xf]
  %v181 = vld [vmem:[%s1 + $0x90] sm:$0xf]
  %v182 = vld [vmem:[%s1 + $0x94] sm:$0xf]
  %v183 = vld [vmem:[%s1 + $0x98] sm:$0xf]
  %v184 = vld [vmem:[%s1 + $0x9c] sm:$0xf]
  %v185 = vld [vmem:[%s1 + $0xa0] sm:$0xf]
  %v186 = vld [vmem:[%s1 + $0xa4] sm:$0xf]
  %v187 = vld [vmem:[%s1 + $0xa8] sm:$0xf]
  %v188 = vld [vmem:[%s1 + $0xac] sm:$0xf]
  %v189 = vld [vmem:[%s1 + $0xb0] sm:$0xf]
  %v190 = vld [vmem:[%s1 + $0xb4] sm:$0xf]
  %v191 = vld [vmem:[%s1 + $0xb8] sm:$0xf]
  %v192 = vld [vmem:[%s1 + $0xbc] sm:$0xf]
  %v193 = vld [vmem:[%s1 + $0xc0] sm:$0xf]
  %v194 = vld [vmem:[%s1 + $0xc4] sm:$0xf]
  %v195 = vld [vmem:[%s1 + $0xc8] sm:$0xf]
  %v196 = vld [vmem:[%s1 + $0xcc] sm:$0xf]
  %v197 = vld [vmem:[%s1 + $0xd0] sm:$0xf]
  %v198 = vld [vmem:[%s1 + $0xd4] sm:$0xf]
  %v199 = vld [vmem:[%s1 + $0xd8] sm:$0xf]
  %v200 = vld [vmem:[%s1 + $0xdc] sm:$0xf]
  %v201 = vld [vmem:[%s1 + $0xe0] sm:$0xf]
  %v202 = vld [vmem:[%s1 + $0xe4] sm:$0xf]
  %v203 = vld [vmem:[%s1 + $0xe8] sm:$0xf]
  %v204 = vld [vmem:[%s1 + $0xec] sm:$0xf]
  %v205 = vld [vmem:[%s1 + $0xf0] sm:$0xf]
  %v206 = vld [vmem:[%s1 + $0xf4] sm:$0xf]
  %v207 = vld [vmem:[%s1 + $0xf8] sm:$0xf]
  %v208 = vld [vmem:[%s1 + $0xfc] sm:$0xf]
  %v209 = vunpack.c.l.bf16 %v145
  %v210 = vunpack.c.l.bf16 %v146
  %v211 = vunpack.c.l.bf16 %v147
  %v212 = vunpack.c.l.bf16 %v148
  %v213 = vunpack.c.l.bf16 %v149
  %v214 = vunpack.c.l.bf16 %v150
  %v215 = vunpack.c.l.bf16 %v151
  %v216 = vunpack.c.l.bf16 %v152
  %v217 = vunpack.c.l.bf16 %v153
  %v218 = vunpack.c.l.bf16 %v154
  %v219 = vunpack.c.l.bf16 %v155
  %v220 = vunpack.c.l.bf16 %v156
  %v221 = vunpack.c.l.bf16 %v157
  %v222 = vunpack.c.l.bf16 %v158
  %v223 = vunpack.c.l.bf16 %v159
  %v224 = vunpack.c.l.bf16 %v160
  %v225 = vunpack.c.l.bf16 %v161
  %v226 = vunpack.c.l.bf16 %v162
  %v227 = vunpack.c.l.bf16 %v163
  %v228 = vunpack.c.l.bf16 %v164
  %v229 = vunpack.c.l.bf16 %v165
  %v230 = vunpack.c.l.bf16 %v166
  %v231 = vunpack.c.l.bf16 %v167
  %v232 = vunpack.c.l.bf16 %v168
  %v233 = vunpack.c.l.bf16 %v169
  %v234 = vunpack.c.l.bf16 %v170
  %v235 = vunpack.c.l.bf16 %v171
  %v236 = vunpack.c.l.bf16 %v172
  %v237 = vunpack.c.l.bf16 %v173
  %v238 = vunpack.c.l.bf16 %v174
  %v239 = vunpack.c.l.bf16 %v175
  %v240 = vunpack.c.l.bf16 %v176
  %v241 = vunpack.c.l.bf16 %v177
  %v242 = vunpack.c.l.bf16 %v178
  %v243 = vunpack.c.l.bf16 %v179
  %v244 = vunpack.c.l.bf16 %v180
  %v245 = vunpack.c.l.bf16 %v181
  %v246 = vunpack.c.l.bf16 %v182
  %v247 = vunpack.c.l.bf16 %v183
  %v248 = vunpack.c.l.bf16 %v184
  %v249 = vunpack.c.l.bf16 %v185
  %v250 = vunpack.c.l.bf16 %v186
  %v251 = vunpack.c.l.bf16 %v187
  %v252 = vunpack.c.l.bf16 %v188
  %v253 = vunpack.c.l.bf16 %v189
  %v254 = vunpack.c.l.bf16 %v190
  %v255 = vunpack.c.l.bf16 %v191
  %v256 = vunpack.c.l.bf16 %v192
  %v257 = vunpack.c.l.bf16 %v193
  %v258 = vunpack.c.l.bf16 %v194
  %v259 = vunpack.c.l.bf16 %v195
  %v260 = vunpack.c.l.bf16 %v196
  %v261 = vunpack.c.l.bf16 %v197
  %v262 = vunpack.c.l.bf16 %v198
  %v263 = vunpack.c.l.bf16 %v199
  %v264 = vunpack.c.l.bf16 %v200
  %v265 = vunpack.c.l.bf16 %v201
  %v266 = vunpack.c.l.bf16 %v202
  %v267 = vunpack.c.l.bf16 %v203
  %v268 = vunpack.c.l.bf16 %v204
  %v269 = vunpack.c.l.bf16 %v205
  %v270 = vunpack.c.l.bf16 %v206
  %v271 = vunpack.c.l.bf16 %v207
  %v272 = vunpack.c.l.bf16 %v208
  %v273 = vld [vmem:[%s2] sm:$0x1]
  %v275 = vlaneseq
  %v276 = vshrl.u32 %v275, 7
  %v277 = vsub.s32 0, %v276
  %v278 = vrot.slane %v273, %v277
  %v280 = vmul.f32 %v81, %v278
  %v281 = vmul.f32 %v82, %v278
  %v282 = vmul.f32 %v83, %v278
  %v283 = vmul.f32 %v84, %v278
  %v284 = vmul.f32 %v85, %v278
  %v285 = vmul.f32 %v86, %v278
  %v286 = vmul.f32 %v87, %v278
  %v287 = vmul.f32 %v88, %v278
  %v288 = vmul.f32 %v89, %v278
  %v289 = vmul.f32 %v90, %v278
  %v290 = vmul.f32 %v91, %v278
  %v291 = vmul.f32 %v92, %v278
  %v292 = vmul.f32 %v93, %v278
  %v293 = vmul.f32 %v94, %v278
  %v294 = vmul.f32 %v95, %v278
  %v295 = vmul.f32 %v96, %v278
  %v296 = vmul.f32 %v97, %v278
  %v297 = vmul.f32 %v98, %v278
  %v298 = vmul.f32 %v99, %v278
  %v299 = vmul.f32 %v100, %v278
  %v300 = vmul.f32 %v101, %v278
  %v301 = vmul.f32 %v102, %v278
  %v302 = vmul.f32 %v103, %v278
  %v303 = vmul.f32 %v104, %v278
  %v304 = vmul.f32 %v105, %v278
  %v305 = vmul.f32 %v106, %v278
  %v306 = vmul.f32 %v107, %v278
  %v307 = vmul.f32 %v108, %v278
  %v308 = vmul.f32 %v109, %v278
  %v309 = vmul.f32 %v110, %v278
  %v310 = vmul.f32 %v111, %v278
  %v311 = vmul.f32 %v112, %v278
  %v312 = vmul.f32 %v113, %v278
  %v313 = vmul.f32 %v114, %v278
  %v314 = vmul.f32 %v115, %v278
  %v315 = vmul.f32 %v116, %v278
  %v316 = vmul.f32 %v117, %v278
  %v317 = vmul.f32 %v118, %v278
  %v318 = vmul.f32 %v119, %v278
  %v319 = vmul.f32 %v120, %v278
  %v320 = vmul.f32 %v121, %v278
  %v321 = vmul.f32 %v122, %v278
  %v322 = vmul.f32 %v123, %v278
  %v323 = vmul.f32 %v124, %v278
  %v324 = vmul.f32 %v125, %v278
  %v325 = vmul.f32 %v126, %v278
  %v326 = vmul.f32 %v127, %v278
  %v327 = vmul.f32 %v128, %v278
  %v328 = vmul.f32 %v129, %v278
  %v329 = vmul.f32 %v130, %v278
  %v330 = vmul.f32 %v131, %v278
  %v331 = vmul.f32 %v132, %v278
  %v332 = vmul.f32 %v133, %v278
  %v333 = vmul.f32 %v134, %v278
  %v334 = vmul.f32 %v135, %v278
  %v335 = vmul.f32 %v136, %v278
  %v336 = vmul.f32 %v137, %v278
  %v337 = vmul.f32 %v138, %v278
  %v338 = vmul.f32 %v139, %v278
  %v339 = vmul.f32 %v140, %v278
  %v340 = vmul.f32 %v141, %v278
  %v341 = vmul.f32 %v142, %v278
  %v342 = vmul.f32 %v143, %v278
  %v343 = vmul.f32 %v144, %v278
  %v344 = vld [vmem:[%s3] sm:$0x1]
  %v346 = vlaneseq
  %v347 = vshrl.u32 %v346, 7
  %v348 = vsub.s32 0, %v347
  %v349 = vrot.slane %v344, %v348
  %v351 = vadd.f32 %v280, %v349
  %v352 = vadd.f32 %v281, %v349
  %v353 = vadd.f32 %v282, %v349
  %v354 = vadd.f32 %v283, %v349
  %v355 = vadd.f32 %v284, %v349
  %v356 = vadd.f32 %v285, %v349
  %v357 = vadd.f32 %v286, %v349
  %v358 = vadd.f32 %v287, %v349
  %v359 = vadd.f32 %v288, %v349
  %v360 = vadd.f32 %v289, %v349
  %v361 = vadd.f32 %v290, %v349
  %v362 = vadd.f32 %v291, %v349
  %v363 = vadd.f32 %v292, %v349
  %v364 = vadd.f32 %v293, %v349
  %v365 = vadd.f32 %v294, %v349
  %v366 = vadd.f32 %v295, %v349
  %v367 = vadd.f32 %v296, %v349
  %v368 = vadd.f32 %v297, %v349
  %v369 = vadd.f32 %v298, %v349
  %v370 = vadd.f32 %v299, %v349
  %v371 = vadd.f32 %v300, %v349
  %v372 = vadd.f32 %v301, %v349
  %v373 = vadd.f32 %v302, %v349
  %v374 = vadd.f32 %v303, %v349
  %v375 = vadd.f32 %v304, %v349
  %v376 = vadd.f32 %v305, %v349
  %v377 = vadd.f32 %v306, %v349
  %v378 = vadd.f32 %v307, %v349
  %v379 = vadd.f32 %v308, %v349
  %v380 = vadd.f32 %v309, %v349
  %v381 = vadd.f32 %v310, %v349
  %v382 = vadd.f32 %v311, %v349
  %v383 = vadd.f32 %v312, %v349
  %v384 = vadd.f32 %v313, %v349
  %v385 = vadd.f32 %v314, %v349
  %v386 = vadd.f32 %v315, %v349
  %v387 = vadd.f32 %v316, %v349
  %v388 = vadd.f32 %v317, %v349
  %v389 = vadd.f32 %v318, %v349
  %v390 = vadd.f32 %v319, %v349
  %v391 = vadd.f32 %v320, %v349
  %v392 = vadd.f32 %v321, %v349
  %v393 = vadd.f32 %v322, %v349
  %v394 = vadd.f32 %v323, %v349
  %v395 = vadd.f32 %v324, %v349
  %v396 = vadd.f32 %v325, %v349
  %v397 = vadd.f32 %v326, %v349
  %v398 = vadd.f32 %v327, %v349
  %v399 = vadd.f32 %v328, %v349
  %v400 = vadd.f32 %v329, %v349
  %v401 = vadd.f32 %v330, %v349
  %v402 = vadd.f32 %v331, %v349
  %v403 = vadd.f32 %v332, %v349
  %v404 = vadd.f32 %v333, %v349
  %v405 = vadd.f32 %v334, %v349
  %v406 = vadd.f32 %v335, %v349
  %v407 = vadd.f32 %v336, %v349
  %v408 = vadd.f32 %v337, %v349
  %v409 = vadd.f32 %v338, %v349
  %v410 = vadd.f32 %v339, %v349
  %v411 = vadd.f32 %v340, %v349
  %v412 = vadd.f32 %v341, %v349
  %v413 = vadd.f32 %v342, %v349
  %v414 = vadd.f32 %v343, %v349
  %v415 = vadd.f32 %v351, %v209
  %v416 = vadd.f32 %v352, %v210
  %v417 = vadd.f32 %v353, %v211
  %v418 = vadd.f32 %v354, %v212
  %v419 = vadd.f32 %v355, %v213
  %v420 = vadd.f32 %v356, %v214
  %v421 = vadd.f32 %v357, %v215
  %v422 = vadd.f32 %v358, %v216
  %v423 = vadd.f32 %v359, %v217
  %v424 = vadd.f32 %v360, %v218
  %v425 = vadd.f32 %v361, %v219
  %v426 = vadd.f32 %v362, %v220
  %v427 = vadd.f32 %v363, %v221
  %v428 = vadd.f32 %v364, %v222
  %v429 = vadd.f32 %v365, %v223
  %v430 = vadd.f32 %v366, %v224
  %v431 = vadd.f32 %v367, %v225
  %v432 = vadd.f32 %v368, %v226
  %v433 = vadd.f32 %v369, %v227
  %v434 = vadd.f32 %v370, %v228
  %v435 = vadd.f32 %v371, %v229
  %v436 = vadd.f32 %v372, %v230
  %v437 = vadd.f32 %v373, %v231
  %v438 = vadd.f32 %v374, %v232
  %v439 = vadd.f32 %v375, %v233
  %v440 = vadd.f32 %v376, %v234
  %v441 = vadd.f32 %v377, %v235
  %v442 = vadd.f32 %v378, %v236
  %v443 = vadd.f32 %v379, %v237
  %v444 = vadd.f32 %v380, %v238
  %v445 = vadd.f32 %v381, %v239
  %v446 = vadd.f32 %v382, %v240
  %v447 = vadd.f32 %v383, %v241
  %v448 = vadd.f32 %v384, %v242
  %v449 = vadd.f32 %v385, %v243
  %v450 = vadd.f32 %v386, %v244
  %v451 = vadd.f32 %v387, %v245
  %v452 = vadd.f32 %v388, %v246
  %v453 = vadd.f32 %v389, %v247
  %v454 = vadd.f32 %v390, %v248
  %v455 = vadd.f32 %v391, %v249
  %v456 = vadd.f32 %v392, %v250
  %v457 = vadd.f32 %v393, %v251
  %v458 = vadd.f32 %v394, %v252
  %v459 = vadd.f32 %v395, %v253
  %v460 = vadd.f32 %v396, %v254
  %v461 = vadd.f32 %v397, %v255
  %v462 = vadd.f32 %v398, %v256
  %v463 = vadd.f32 %v399, %v257
  %v464 = vadd.f32 %v400, %v258
  %v465 = vadd.f32 %v401, %v259
  %v466 = vadd.f32 %v402, %v260
  %v467 = vadd.f32 %v403, %v261
  %v468 = vadd.f32 %v404, %v262
  %v469 = vadd.f32 %v405, %v263
  %v470 = vadd.f32 %v406, %v264
  %v471 = vadd.f32 %v407, %v265
  %v472 = vadd.f32 %v408, %v266
  %v473 = vadd.f32 %v409, %v267
  %v474 = vadd.f32 %v410, %v268
  %v475 = vadd.f32 %v411, %v269
  %v476 = vadd.f32 %v412, %v270
  %v477 = vadd.f32 %v413, %v271
  %v478 = vadd.f32 %v414, %v272
  %v479 = vmax.f32 %v415, 0.0
  %v480 = vmax.f32 %v416, 0.0
  %v481 = vmax.f32 %v417, 0.0
  %v482 = vmax.f32 %v418, 0.0
  %v483 = vmax.f32 %v419, 0.0
  %v484 = vmax.f32 %v420, 0.0
  %v485 = vmax.f32 %v421, 0.0
  %v486 = vmax.f32 %v422, 0.0
  %v487 = vmax.f32 %v423, 0.0
  %v488 = vmax.f32 %v424, 0.0
  %v489 = vmax.f32 %v425, 0.0
  %v490 = vmax.f32 %v426, 0.0
  %v491 = vmax.f32 %v427, 0.0
  %v492 = vmax.f32 %v428, 0.0
  %v493 = vmax.f32 %v429, 0.0
  %v494 = vmax.f32 %v430, 0.0
  %v495 = vmax.f32 %v431, 0.0
  %v496 = vmax.f32 %v432, 0.0
  %v497 = vmax.f32 %v433, 0.0
  %v498 = vmax.f32 %v434, 0.0
  %v499 = vmax.f32 %v435, 0.0
  %v500 = vmax.f32 %v436, 0.0
  %v501 = vmax.f32 %v437, 0.0
  %v502 = vmax.f32 %v438, 0.0
  %v503 = vmax.f32 %v439, 0.0
  %v504 = vmax.f32 %v440, 0.0
  %v505 = vmax.f32 %v441, 0.0
  %v506 = vmax.f32 %v442, 0.0
  %v507 = vmax.f32 %v443, 0.0
  %v508 = vmax.f32 %v444, 0.0
  %v509 = vmax.f32 %v445, 0.0
  %v510 = vmax.f32 %v446, 0.0
  %v511 = vmax.f32 %v447, 0.0
  %v512 = vmax.f32 %v448, 0.0
  %v513 = vmax.f32 %v449, 0.0
  %v514 = vmax.f32 %v450, 0.0
  %v515 = vmax.f32 %v451, 0.0
  %v516 = vmax.f32 %v452, 0.0
  %v517 = vmax.f32 %v453, 0.0
  %v518 = vmax.f32 %v454, 0.0
  %v519 = vmax.f32 %v455, 0.0
  %v520 = vmax.f32 %v456, 0.0
  %v521 = vmax.f32 %v457, 0.0
  %v522 = vmax.f32 %v458, 0.0
  %v523 = vmax.f32 %v459, 0.0
  %v524 = vmax.f32 %v460, 0.0
  %v525 = vmax.f32 %v461, 0.0
  %v526 = vmax.f32 %v462, 0.0
  %v527 = vmax.f32 %v463, 0.0
  %v528 = vmax.f32 %v464, 0.0
  %v529 = vmax.f32 %v465, 0.0
  %v530 = vmax.f32 %v466, 0.0
  %v531 = vmax.f32 %v467, 0.0
  %v532 = vmax.f32 %v468, 0.0
  %v533 = vmax.f32 %v469, 0.0
  %v534 = vmax.f32 %v470, 0.0
  %v535 = vmax.f32 %v471, 0.0
  %v536 = vmax.f32 %v472, 0.0
  %v537 = vmax.f32 %v473, 0.0
  %v538 = vmax.f32 %v474, 0.0
  %v539 = vmax.f32 %v475, 0.0
  %v540 = vmax.f32 %v476, 0.0
  %v541 = vmax.f32 %v477, 0.0
  %v542 = vmax.f32 %v478, 0.0
  %543 = vst [vmem:[%s4] sm:$0xff] %v479
  %544 = vst [vmem:[%s4 + $0x8] sm:$0xff] %v480
  %545 = vst [vmem:[%s4 + $0x10] sm:$0xff] %v481
  %546 = vst [vmem:[%s4 + $0x18] sm:$0xff] %v482
  %547 = vst [vmem:[%s4 + $0x20] sm:$0xff] %v483
  %548 = vst [vmem:[%s4 + $0x28] sm:$0xff] %v484
  %549 = vst [vmem:[%s4 + $0x30] sm:$0xff] %v485
  %550 = vst [vmem:[%s4 + $0x38] sm:$0xff] %v486
  %551 = vst [vmem:[%s4 + $0x40] sm:$0xff] %v487
  %552 = vst [vmem:[%s4 + $0x48] sm:$0xff] %v488
  %553 = vst [vmem:[%s4 + $0x50] sm:$0xff] %v489
  %554 = vst [vmem:[%s4 + $0x58] sm:$0xff] %v490
  %555 = vst [vmem:[%s4 + $0x60] sm:$0xff] %v491
  %556 = vst [vmem:[%s4 + $0x68] sm:$0xff] %v492
  %557 = vst [vmem:[%s4 + $0x70] sm:$0xff] %v493
  %558 = vst [vmem:[%s4 + $0x78] sm:$0xff] %v494
  %559 = vst [vmem:[%s4 + $0x80] sm:$0xff] %v495
  %560 = vst [vmem:[%s4 + $0x88] sm:$0xff] %v496
  %561 = vst [vmem:[%s4 + $0x90] sm:$0xff] %v497
  %562 = vst [vmem:[%s4 + $0x98] sm:$0xff] %v498
  %563 = vst [vmem:[%s4 + $0xa0] sm:$0xff] %v499
  %564 = vst [vmem:[%s4 + $0xa8] sm:$0xff] %v500
  %565 = vst [vmem:[%s4 + $0xb0] sm:$0xff] %v501
  %566 = vst [vmem:[%s4 + $0xb8] sm:$0xff] %v502
  %567 = vst [vmem:[%s4 + $0xc0] sm:$0xff] %v503
  %568 = vst [vmem:[%s4 + $0xc8] sm:$0xff] %v504
  %569 = vst [vmem:[%s4 + $0xd0] sm:$0xff] %v505
  %570 = vst [vmem:[%s4 + $0xd8] sm:$0xff] %v506
  %571 = vst [vmem:[%s4 + $0xe0] sm:$0xff] %v507
  %572 = vst [vmem:[%s4 + $0xe8] sm:$0xff] %v508
  %573 = vst [vmem:[%s4 + $0xf0] sm:$0xff] %v509
  %574 = vst [vmem:[%s4 + $0xf8] sm:$0xff] %v510
  %575 = vst [vmem:[%s4 + $0x100] sm:$0xff] %v511
  %576 = vst [vmem:[%s4 + $0x108] sm:$0xff] %v512
  %577 = vst [vmem:[%s4 + $0x110] sm:$0xff] %v513
  %578 = vst [vmem:[%s4 + $0x118] sm:$0xff] %v514
  %579 = vst [vmem:[%s4 + $0x120] sm:$0xff] %v515
  %580 = vst [vmem:[%s4 + $0x128] sm:$0xff] %v516
  %581 = vst [vmem:[%s4 + $0x130] sm:$0xff] %v517
  %582 = vst [vmem:[%s4 + $0x138] sm:$0xff] %v518
  %583 = vst [vmem:[%s4 + $0x140] sm:$0xff] %v519
  %584 = vst [vmem:[%s4 + $0x148] sm:$0xff] %v520
  %585 = vst [vmem:[%s4 + $0x150] sm:$0xff] %v521
  %586 = vst [vmem:[%s4 + $0x158] sm:$0xff] %v522
  %587 = vst [vmem:[%s4 + $0x160] sm:$0xff] %v523
  %588 = vst [vmem:[%s4 + $0x168] sm:$0xff] %v524
  %589 = vst [vmem:[%s4 + $0x170] sm:$0xff] %v525
  %590 = vst [vmem:[%s4 + $0x178] sm:$0xff] %v526
  %591 = vst [vmem:[%s4 + $0x180] sm:$0xff] %v527
  %592 = vst [vmem:[%s4 + $0x188] sm:$0xff] %v528
  %593 = vst [vmem:[%s4 + $0x190] sm:$0xff] %v529
  %594 = vst [vmem:[%s4 + $0x198] sm:$0xff] %v530
  %595 = vst [vmem:[%s4 + $0x1a0] sm:$0xff] %v531
  %596 = vst [vmem:[%s4 + $0x1a8] sm:$0xff] %v532
  %597 = vst [vmem:[%s4 + $0x1b0] sm:$0xff] %v533
  %598 = vst [vmem:[%s4 + $0x1b8] sm:$0xff] %v534
  %599 = vst [vmem:[%s4 + $0x1c0] sm:$0xff] %v535
  %600 = vst [vmem:[%s4 + $0x1c8] sm:$0xff] %v536
  %601 = vst [vmem:[%s4 + $0x1d0] sm:$0xff] %v537
  %602 = vst [vmem:[%s4 + $0x1d8] sm:$0xff] %v538
  %603 = vst [vmem:[%s4 + $0x1e0] sm:$0xff] %v539
  %604 = vst [vmem:[%s4 + $0x1e8] sm:$0xff] %v540
  %605 = vst [vmem:[%s4 + $0x1f0] sm:$0xff] %v541
  %606 = vst [vmem:[%s4 + $0x1f8] sm:$0xff] %v542
  // Predicated region
  $region18: #{basic_block_forward.5} parent=0 // pred_check
    _
  $region19: #{basic_block_forward.5} parent=0 // pred_check_branch
    %608 = sbr.rel (0) target = $region21
  $region20: #{basic_block_forward.5} parent=0 // pred_region
    _
  $region21: #{basic_block_forward.5} parent=0 // pred_fallthru
    _
  // Predicated region
  $region22: #{basic_block_forward.5} parent=0 // pred_check
    _
  $region23: #{basic_block_forward.5} parent=0 // pred_check_branch
    %610 = sbr.rel (0) target = $region25
  $region24: #{basic_block_forward.5} parent=0 // pred_region
    _
  $region25: #{basic_block_forward.5} parent=0 // pred_fallthru
    _

// kernel: basic_block_forward.4
$region0: #{basic_block_forward.4}
  #allocation0 [shape = 'u32[]', space=smem, size = 0x4, offset = 0x4, fixed_abs, tag = 'smem constant byte address 0x4 - core index']
  #allocation1 [shape = 'u32[144,128]{1,0:T(1,128)}', space=vmem, size = 0x12000, scoped, tag = 'internal scratch']
  #allocation2 [shape = 'f32[1,18,18,128]{3,2,1,0:T(8,128)}', space=vmem, size = 0x36000, scoped, tag = 'scratch operand']
  %s0 = inlined_call_operand.vmem [shape: bf16[2,16,16,128], index: 0, kind: input, shape index: {}]
  %s1 = inlined_call_operand.vmem [shape: f32[1,128], index: 1, kind: input, shape index: {}]
  %s2 = inlined_call_operand.vmem [shape: f32[1,128], index: 2, kind: input, shape index: {}]
  %s3 = inlined_call_operand.vmem [shape: bf16[9,128,128], index: 3, kind: input, shape index: {}]
  %s4 = inlined_call_operand.vmem [shape: bf16[2,16,16,128], index: 4, kind: output, shape index: {0}]
  %s5 = inlined_call_operand.vmem [shape: f32[2,1,128], index: 5, kind: output, shape index: {1}]
  %s6 = inlined_call_operand.vmem [shape: f32[2,1,128], index: 6, kind: output, shape index: {2}]
  %7 = xla_tuple %s4, %s5, %s6
  %s8 = sld [smem:[#allocation0]]
  $region65: #{basic_block_forward.4} parent=0
    _
  %s10 = ssub.s32 1, %s8
  %s11 = scalar_select 0, %s10, %s8
  loop: start=0, step=1, limit=4
  $region2: #{basic_block_forward.4} parent=0 // loop_pre_header
    _
  $region3: #{basic_block_forward.4} parent=0 // loop_header
    %s13 = sphi 0, %s17
    %p14 = scmp.ge.s32.totalorder %s13, 4
    %s23 = sphi 0, %s25
    %s26 = sphi 0, %s23
    %s27 = sphi 0, %s26
    %s43 = sphi 0, %s27
    %s47 = sphi 0, %s47
    %s49 = sphi 0, %s47
    %s50 = sphi 0, %s49
    %s64 = sphi 0, %s50
    %s68 = sphi 0, %s68
    %s70 = sphi 0, %s68
    %s71 = sphi 0, %s70
    %s85 = sphi 0, %s71
    %s89 = sphi 0, %s89
    %s91 = sphi 0, %s89
    %s92 = sphi 0, %s91
    %s106 = sphi 0, %s92
    %s112 = sphi 0, %s114
    %s115 = sphi 0, %s112
    %s116 = sphi 0, %s115
    %s132 = sphi 0, %s116
    %s138 = sphi 0, %s140
    %s141 = sphi 0, %s138
    %s142 = sphi 0, %s141
    %s158 = sphi 0, %s142
    %s164 = sphi 0, %s166
    %s167 = sphi 0, %s164
    %s168 = sphi 0, %s167
    %s184 = sphi 0, %s168
  $region4: #{basic_block_forward.4} parent=0 // loop_header_branch
    %16 = sbr.rel (%p14) target = $region8
  $region5: #{basic_block_forward.4} parent=0 // loop_body
    %s18 = ssub.s32 %s13, 1
    %s19 = ssub.s32 %s13, 2
    %s20 = sadd.s32 %s13, 1
    %s21 = ssub.s32 %s13, %s20
    %p22 = scmp.eq.s32.totalorder %s21, 0
    %s24 = sadd.s32 %s23, 1
    %s25 = scalar_select %p22, %s23, %s24
    %p28 = pneg %p22
    %p29 = scmp.eq.s32.totalorder %s13, 1
    %p30 = por %p28, %p29
    %p31 = scmp.ne.s32.totalorder %s23, %s26
    %p32 = scmp.eq.s32.totalorder %s13, 0
    %p33 = por %p31, %p32
    %p34 = scmp.ne.s32.totalorder %s23, %s26
    %p35 = scmp.eq.s32.totalorder %s18, 1
    %p36 = por %p34, %p35
    %p37 = scmp.ne.s32.totalorder %s26, %s27
    %p38 = scmp.eq.s32.totalorder %s18, 0
    %p39 = por %p37, %p38
    %p40 = scmp.ne.s32.totalorder %s26, %s27
    %p41 = scmp.eq.s32.totalorder %s19, 1
    %p42 = por %p40, %p41
    %p44 = scmp.ne.s32.totalorder %s27, %s43
    %p45 = scmp.eq.s32.totalorder %s19, 0
    %p46 = por %p44, %p45
    %s48 = sadd.s32 %s47, 1
    %p51 = scmp.eq.s32.totalorder %s13, 1
    %p52 = scmp.ne.s32.totalorder %s47, %s49
    %p53 = scmp.eq.s32.totalorder %s13, 0
    %p54 = por %p52, %p53
    %p55 = scmp.ne.s32.totalorder %s47, %s49
    %p56 = scmp.eq.s32.totalorder %s18, 1
    %p57 = por %p55, %p56
    %p58 = scmp.ne.s32.totalorder %s49, %s50
    %p59 = scmp.eq.s32.totalorder %s18, 0
    %p60 = por %p58, %p59
    %p61 = scmp.ne.s32.totalorder %s49, %s50
    %p62 = scmp.eq.s32.totalorder %s19, 1
    %p63 = por %p61, %p62
    %p65 = scmp.ne.s32.totalorder %s50, %s64
    %p66 = scmp.eq.s32.totalorder %s19, 0
    %p67 = por %p65, %p66
    %s69 = sadd.s32 %s68, 1
    %p72 = scmp.eq.s32.totalorder %s13, 1
    %p73 = scmp.ne.s32.totalorder %s68, %s70
    %p74 = scmp.eq.s32.totalorder %s13, 0
    %p75 = por %p73, %p74
    %p76 = scmp.ne.s32.totalorder %s68, %s70
    %p77 = scmp.eq.s32.totalorder %s18, 1
    %p78 = por %p76, %p77
    %p79 = scmp.ne.s32.totalorder %s70, %s71
    %p80 = scmp.eq.s32.totalorder %s18, 0
    %p81 = por %p79, %p80
    %p82 = scmp.ne.s32.totalorder %s70, %s71
    %p83 = scmp.eq.s32.totalorder %s19, 1
    %p84 = por %p82, %p83
    %p86 = scmp.ne.s32.totalorder %s71, %s85
    %p87 = scmp.eq.s32.totalorder %s19, 0
    %p88 = por %p86, %p87
    %s90 = sadd.s32 %s89, 1
    %p93 = scmp.eq.s32.totalorder %s13, 1
    %p94 = scmp.ne.s32.totalorder %s89, %s91
    %p95 = scmp.eq.s32.totalorder %s13, 0
    %p96 = por %p94, %p95
    %p97 = scmp.ne.s32.totalorder %s89, %s91
    %p98 = scmp.eq.s32.totalorder %s18, 1
    %p99 = por %p97, %p98
    %p100 = scmp.ne.s32.totalorder %s91, %s92
    %p101 = scmp.eq.s32.totalorder %s18, 0
    %p102 = por %p100, %p101
    %p103 = scmp.ne.s32.totalorder %s91, %s92
    %p104 = scmp.eq.s32.totalorder %s19, 1
    %p105 = por %p103, %p104
    %p107 = scmp.ne.s32.totalorder %s92, %s106
    %p108 = scmp.eq.s32.totalorder %s19, 0
    %p109 = por %p107, %p108
    %s110 = ssub.s32 %s13, %s20
    %p111 = scmp.eq.s32.totalorder %s110, 0
    %s113 = sadd.s32 %s112, 1
    %s114 = scalar_select %p111, %s112, %s113
    %p117 = pneg %p111
    %p118 = scmp.eq.s32.totalorder %s13, 1
    %p119 = por %p117, %p118
    %p120 = scmp.ne.s32.totalorder %s112, %s115
    %p121 = scmp.eq.s32.totalorder %s13, 0
    %p122 = por %p120, %p121
    %p123 = scmp.ne.s32.totalorder %s112, %s115
    %p124 = scmp.eq.s32.totalorder %s18, 1
    %p125 = por %p123, %p124
    %p126 = scmp.ne.s32.totalorder %s115, %s116
    %p127 = scmp.eq.s32.totalorder %s18, 0
    %p128 = por %p126, %p127
    %p129 = scmp.ne.s32.totalorder %s115, %s116
    %p130 = scmp.eq.s32.totalorder %s19, 1
    %p131 = por %p129, %p130
    %p133 = scmp.ne.s32.totalorder %s116, %s132
    %p134 = scmp.eq.s32.totalorder %s19, 0
    %p135 = por %p133, %p134
    %s136 = ssub.s32 %s13, %s20
    %p137 = scmp.eq.s32.totalorder %s136, 0
    %s139 = sadd.s32 %s138, 1
    %s140 = scalar_select %p137, %s138, %s139
    %p143 = pneg %p137
    %p144 = scmp.eq.s32.totalorder %s13, 1
    %p145 = por %p143, %p144
    %p146 = scmp.ne.s32.totalorder %s138, %s141
    %p147 = scmp.eq.s32.totalorder %s13, 0
    %p148 = por %p146, %p147
    %p149 = scmp.ne.s32.totalorder %s138, %s141
    %p150 = scmp.eq.s32.totalorder %s18, 1
    %p151 = por %p149, %p150
    %p152 = scmp.ne.s32.totalorder %s141, %s142
    %p153 = scmp.eq.s32.totalorder %s18, 0
    %p154 = por %p152, %p153
    %p155 = scmp.ne.s32.totalorder %s141, %s142
    %p156 = scmp.eq.s32.totalorder %s19, 1
    %p157 = por %p155, %p156
    %p159 = scmp.ne.s32.totalorder %s142, %s158
    %p160 = scmp.eq.s32.totalorder %s19, 0
    %p161 = por %p159, %p160
    %s162 = ssub.s32 %s13, %s20
    %p163 = scmp.eq.s32.totalorder %s162, 0
    %s165 = sadd.s32 %s164, 1
    %s166 = scalar_select %p163, %s164, %s165
    %p169 = pneg %p163
    %p170 = scmp.eq.s32.totalorder %s13, 1
    %p171 = por %p169, %p170
    %p172 = scmp.ne.s32.totalorder %s164, %s167
    %p173 = scmp.eq.s32.totalorder %s13, 0
    %p174 = por %p172, %p173
    %p175 = scmp.ne.s32.totalorder %s164, %s167
    %p176 = scmp.eq.s32.totalorder %s18, 1
    %p177 = por %p175, %p176
    %p178 = scmp.ne.s32.totalorder %s167, %s168
    %p179 = scmp.eq.s32.totalorder %s18, 0
    %p180 = por %p178, %p179
    %p181 = scmp.ne.s32.totalorder %s167, %s168
    %p182 = scmp.eq.s32.totalorder %s19, 1
    %p183 = por %p181, %p182
    %p185 = scmp.ne.s32.totalorder %s168, %s184
    %p186 = scmp.eq.s32.totalorder %s19, 0
    %p187 = por %p185, %p186
    %p188 = scmp.le.s32.totalorder 1, %s13
    %p189 = scmp.lt.s32.totalorder %s13, 3
    %p190 = pnand %p188, %p189
    %p191 = pneg %p190
    // Predicated region
    $region9: #{basic_block_forward.4} parent=5 // pred_check
      _
    $region10: #{basic_block_forward.4} parent=5 // pred_check_branch
      %193 = sbr.rel (%p190) target = $region12
    $region11: #{basic_block_forward.4} parent=5 // pred_region
      %s194 = ssub.s32 %s13, 1
      // Predicated region
      $region13: #{basic_block_forward.4} parent=11 // pred_check
        %p195 = pneg %p60
      $region14: #{basic_block_forward.4} parent=11 // pred_check_branch
        %197 = sbr.rel (%p195) target = $region16
      $region15: #{basic_block_forward.4} parent=11 // pred_region
        _
      $region16: #{basic_block_forward.4} parent=11 // pred_fallthru
        _
      // Predicated region
      $region17: #{basic_block_forward.4} parent=11 // pred_check
        %p198 = pneg %p81
      $region18: #{basic_block_forward.4} parent=11 // pred_check_branch
        %200 = sbr.rel (%p198) target = $region20
      $region19: #{basic_block_forward.4} parent=11 // pred_region
        _
      $region20: #{basic_block_forward.4} parent=11 // pred_fallthru
        _
      // Predicated region
      $region21: #{basic_block_forward.4} parent=11 // pred_check
        %p201 = pneg %p102
      $region22: #{basic_block_forward.4} parent=11 // pred_check_branch
        %203 = sbr.rel (%p201) target = $region24
      $region23: #{basic_block_forward.4} parent=11 // pred_region
        _
      $region24: #{basic_block_forward.4} parent=11 // pred_fallthru
        _
    $region12: #{basic_block_forward.4} parent=5 // pred_fallthru
      _
    %p204 = scmp.lt.s32.totalorder %s13, 2
    // Predicated region
    $region25: #{basic_block_forward.4} parent=5 // pred_check
      %p205 = pneg %p204
    $region26: #{basic_block_forward.4} parent=5 // pred_check_branch
      %207 = sbr.rel (%p205) target = $region28
    $region27: #{basic_block_forward.4} parent=5 // pred_region
      // Predicated region
      $region29: #{basic_block_forward.4} parent=27 // pred_check
        %p208 = pneg %p33
      $region30: #{basic_block_forward.4} parent=27 // pred_check_branch
        %210 = sbr.rel (%p208) target = $region32
      $region31: #{basic_block_forward.4} parent=27 // pred_region
        %p211 = scmp.lt.s32.totalorder %s13, 1
        %s212 = scalar_select %p211, %s13, 1
        %s213 = smul.addr %s212, 32
        %s214 = smul.addr %s213, 4
        %s215 = scalar_lea.vmem %s0, %s214
      $region32: #{basic_block_forward.4} parent=27 // pred_fallthru
        _
    $region28: #{basic_block_forward.4} parent=5 // pred_fallthru
      _
    %p216 = scmp.le.s32.totalorder 1, %s13
    %p217 = scmp.lt.s32.totalorder %s13, 3
    %p218 = pnand %p216, %p217
    %p219 = pneg %p218
    // Predicated region
    $region33: #{basic_block_forward.4} parent=5 // pred_check
      _
    $region34: #{basic_block_forward.4} parent=5 // pred_check_branch
      %221 = sbr.rel (%p218) target = $region36
    $region35: #{basic_block_forward.4} parent=5 // pred_region
      %s222 = ssub.s32 %s13, 1
      %p223 = scmp.lt.s32.totalorder %s18, 1
      %s224 = scalar_select %p223, %s18, 1
      %s225 = smul.addr %s224, 32
      %s226 = smul.addr %s225, 4
      %s227 = scalar_lea.vmem %s0, %s226
      %p228 = pneg %p39
      %p229 = pneg %p36
      %p230 = pneg %p60
      %p231 = pneg %p57
      %p232 = pneg %p81
      %p233 = pneg %p78
      %p234 = pneg %p102
      %p235 = pneg %p99
      %p236 = pneg %p128
      %p237 = pneg %p125
      %p238 = scmp.lt.s32.totalorder %s18, 1
      %s239 = scalar_select %p238, %s18, 1
      %s240 = smul.addr %s239, 32
      %s241 = smul.addr %s240, 4
      %s242 = scalar_lea.vmem %s4, %s241
      %p243 = pneg %p154
      %p244 = pneg %p151
      %p245 = scmp.lt.s32.totalorder %s18, 1
      %s246 = scalar_select %p245, %s18, 1
      %s247 = scalar_lea.vmem %s5, %s246
      %p248 = pneg %p180
      %p249 = pneg %p177
      %p250 = scmp.lt.s32.totalorder %s18, 1
      %s251 = scalar_select %p250, %s18, 1
      %s252 = scalar_lea.vmem %s6, %s251
      %p253 = scmp.lt.s32.totalorder %s18, 1
      %s254 = scalar_select %p253, %s18, 1
      %s255 = smul.addr %s254, 32
      %s256 = smul.addr %s255, 4
      %s257 = scalar_lea.vmem %s0, %s256
      %p258 = scmp.lt.s32.totalorder %s18, 1
      %s259 = scalar_select %p258, %s18, 1
      %s260 = smul.addr %s259, 32
      %s261 = smul.addr %s260, 4
      %s262 = scalar_lea.vmem %s4, %s261
      %p263 = scmp.lt.s32.totalorder %s18, 1
      %s264 = scalar_select %p263, %s18, 1
      %s265 = scalar_lea.vmem %s5, %s264
      %p266 = scmp.lt.s32.totalorder %s18, 1
      %s267 = scalar_select %p266, %s18, 1
      %s268 = scalar_lea.vmem %s6, %s267
      %v270 = vld [vmem:[%s1] sm:$0x1]
      %v271 = vld [vmem:[%s2] sm:$0x1]
      %v272 = vld [vmem:[%s257] sm:$0xf]
      %v273 = vld [vmem:[%s257 + $0x4] sm:$0xf]
      %v274 = vld [vmem:[%s257 + $0x8] sm:$0xf]
      %v275 = vld [vmem:[%s257 + $0xc] sm:$0xf]
      %v276 = vld [vmem:[%s257 + $0x10] sm:$0xf]
      %v277 = vld [vmem:[%s257 + $0x14] sm:$0xf]
      %v278 = vld [vmem:[%s257 + $0x18] sm:$0xf]
      %v279 = vld [vmem:[%s257 + $0x1c] sm:$0xf]
      %v280 = vld [vmem:[%s257 + $0x20] sm:$0xf]
      %v281 = vld [vmem:[%s257 + $0x24] sm:$0xf]
      %v282 = vld [vmem:[%s257 + $0x28] sm:$0xf]
      %v283 = vld [vmem:[%s257 + $0x2c] sm:$0xf]
      %v284 = vld [vmem:[%s257 + $0x30] sm:$0xf]
      %v285 = vld [vmem:[%s257 + $0x34] sm:$0xf]
      %v286 = vld [vmem:[%s257 + $0x38] sm:$0xf]
      %v287 = vld [vmem:[%s257 + $0x3c] sm:$0xf]
      %v288 = vld [vmem:[%s257 + $0x40] sm:$0xf]
      %v289 = vld [vmem:[%s257 + $0x44] sm:$0xf]
      %v290 = vld [vmem:[%s257 + $0x48] sm:$0xf]
      %v291 = vld [vmem:[%s257 + $0x4c] sm:$0xf]
      %v292 = vld [vmem:[%s257 + $0x50] sm:$0xf]
      %v293 = vld [vmem:[%s257 + $0x54] sm:$0xf]
      %v294 = vld [vmem:[%s257 + $0x58] sm:$0xf]
      %v295 = vld [vmem:[%s257 + $0x5c] sm:$0xf]
      %v296 = vld [vmem:[%s257 + $0x60] sm:$0xf]
      %v297 = vld [vmem:[%s257 + $0x64] sm:$0xf]
      %v298 = vld [vmem:[%s257 + $0x68] sm:$0xf]
      %v299 = vld [vmem:[%s257 + $0x6c] sm:$0xf]
      %v300 = vld [vmem:[%s257 + $0x70] sm:$0xf]
      %v301 = vld [vmem:[%s257 + $0x74] sm:$0xf]
      %v302 = vld [vmem:[%s257 + $0x78] sm:$0xf]
      %v303 = vld [vmem:[%s257 + $0x7c] sm:$0xf]
      %v304 = vunpack.c.l.bf16 %v272
      %v305 = vunpack.c.l.bf16 %v273
      %v306 = vunpack.c.l.bf16 %v274
      %v307 = vunpack.c.l.bf16 %v275
      %v308 = vunpack.c.l.bf16 %v276
      %v309 = vunpack.c.l.bf16 %v277
      %v310 = vunpack.c.l.bf16 %v278
      %v311 = vunpack.c.l.bf16 %v279
      %v312 = vunpack.c.l.bf16 %v280
      %v313 = vunpack.c.l.bf16 %v281
      %v314 = vunpack.c.l.bf16 %v282
      %v315 = vunpack.c.l.bf16 %v283
      %v316 = vunpack.c.l.bf16 %v284
      %v317 = vunpack.c.l.bf16 %v285
      %v318 = vunpack.c.l.bf16 %v286
      %v319 = vunpack.c.l.bf16 %v287
      %v320 = vunpack.c.l.bf16 %v288
      %v321 = vunpack.c.l.bf16 %v289
      %v322 = vunpack.c.l.bf16 %v290
      %v323 = vunpack.c.l.bf16 %v291
      %v324 = vunpack.c.l.bf16 %v292
      %v325 = vunpack.c.l.bf16 %v293
      %v326 = vunpack.c.l.bf16 %v294
      %v327 = vunpack.c.l.bf16 %v295
      %v328 = vunpack.c.l.bf16 %v296
      %v329 = vunpack.c.l.bf16 %v297
      %v330 = vunpack.c.l.bf16 %v298
      %v331 = vunpack.c.l.bf16 %v299
      %v332 = vunpack.c.l.bf16 %v300
      %v333 = vunpack.c.l.bf16 %v301
      %v334 = vunpack.c.l.bf16 %v302
      %v335 = vunpack.c.l.bf16 %v303
      %v337 = vlaneseq
      %v338 = vshrl.u32 %v337, 7
      %v339 = vsub.s32 0, %v338
      %v340 = vrot.slane %v270, %v339
      %v342 = vmul.f32 %v304, %v340
      %v343 = vmul.f32 %v305, %v340
      %v344 = vmul.f32 %v306, %v340
      %v345 = vmul.f32 %v307, %v340
      %v346 = vmul.f32 %v308, %v340
      %v347 = vmul.f32 %v309, %v340
      %v348 = vmul.f32 %v310, %v340
      %v349 = vmul.f32 %v311, %v340
      %v350 = vmul.f32 %v312, %v340
      %v351 = vmul.f32 %v313, %v340
      %v352 = vmul.f32 %v314, %v340
      %v353 = vmul.f32 %v315, %v340
      %v354 = vmul.f32 %v316, %v340
      %v355 = vmul.f32 %v317, %v340
      %v356 = vmul.f32 %v318, %v340
      %v357 = vmul.f32 %v319, %v340
      %v358 = vmul.f32 %v320, %v340
      %v359 = vmul.f32 %v321, %v340
      %v360 = vmul.f32 %v322, %v340
      %v361 = vmul.f32 %v323, %v340
      %v362 = vmul.f32 %v324, %v340
      %v363 = vmul.f32 %v325, %v340
      %v364 = vmul.f32 %v326, %v340
      %v365 = vmul.f32 %v327, %v340
      %v366 = vmul.f32 %v328, %v340
      %v367 = vmul.f32 %v329, %v340
      %v368 = vmul.f32 %v330, %v340
      %v369 = vmul.f32 %v331, %v340
      %v370 = vmul.f32 %v332, %v340
      %v371 = vmul.f32 %v333, %v340
      %v372 = vmul.f32 %v334, %v340
      %v373 = vmul.f32 %v335, %v340
      %v375 = vlaneseq
      %v376 = vshrl.u32 %v375, 7
      %v377 = vsub.s32 0, %v376
      %v378 = vrot.slane %v271, %v377
      %v380 = vadd.f32 %v342, %v378
      %v381 = vadd.f32 %v343, %v378
      %v382 = vadd.f32 %v344, %v378
      %v383 = vadd.f32 %v345, %v378
      %v384 = vadd.f32 %v346, %v378
      %v385 = vadd.f32 %v347, %v378
      %v386 = vadd.f32 %v348, %v378
      %v387 = vadd.f32 %v349, %v378
      %v388 = vadd.f32 %v350, %v378
      %v389 = vadd.f32 %v351, %v378
      %v390 = vadd.f32 %v352, %v378
      %v391 = vadd.f32 %v353, %v378
      %v392 = vadd.f32 %v354, %v378
      %v393 = vadd.f32 %v355, %v378
      %v394 = vadd.f32 %v356, %v378
      %v395 = vadd.f32 %v357, %v378
      %v396 = vadd.f32 %v358, %v378
      %v397 = vadd.f32 %v359, %v378
      %v398 = vadd.f32 %v360, %v378
      %v399 = vadd.f32 %v361, %v378
      %v400 = vadd.f32 %v362, %v378
      %v401 = vadd.f32 %v363, %v378
      %v402 = vadd.f32 %v364, %v378
      %v403 = vadd.f32 %v365, %v378
      %v404 = vadd.f32 %v366, %v378
      %v405 = vadd.f32 %v367, %v378
      %v406 = vadd.f32 %v368, %v378
      %v407 = vadd.f32 %v369, %v378
      %v408 = vadd.f32 %v370, %v378
      %v409 = vadd.f32 %v371, %v378
      %v410 = vadd.f32 %v372, %v378
      %v411 = vadd.f32 %v373, %v378
      %v412 = vmax.f32 %v380, 0.0
      %v413 = vmax.f32 %v381, 0.0
      %v414 = vmax.f32 %v382, 0.0
      %v415 = vmax.f32 %v383, 0.0
      %v416 = vmax.f32 %v384, 0.0
      %v417 = vmax.f32 %v385, 0.0
      %v418 = vmax.f32 %v386, 0.0
      %v419 = vmax.f32 %v387, 0.0
      %v420 = vmax.f32 %v388, 0.0
      %v421 = vmax.f32 %v389, 0.0
      %v422 = vmax.f32 %v390, 0.0
      %v423 = vmax.f32 %v391, 0.0
      %v424 = vmax.f32 %v392, 0.0
      %v425 = vmax.f32 %v393, 0.0
      %v426 = vmax.f32 %v394, 0.0
      %v427 = vmax.f32 %v395, 0.0
      %v428 = vmax.f32 %v396, 0.0
      %v429 = vmax.f32 %v397, 0.0
      %v430 = vmax.f32 %v398, 0.0
      %v431 = vmax.f32 %v399, 0.0
      %v432 = vmax.f32 %v400, 0.0
      %v433 = vmax.f32 %v401, 0.0
      %v434 = vmax.f32 %v402, 0.0
      %v435 = vmax.f32 %v403, 0.0
      %v436 = vmax.f32 %v404, 0.0
      %v437 = vmax.f32 %v405, 0.0
      %v438 = vmax.f32 %v406, 0.0
      %v439 = vmax.f32 %v407, 0.0
      %v440 = vmax.f32 %v408, 0.0
      %v441 = vmax.f32 %v409, 0.0
      %v442 = vmax.f32 %v410, 0.0
      %v443 = vmax.f32 %v411, 0.0
      %444 = vst [vmem:[#allocation2] sm:$0xff] 0.0
      %445 = vst [vmem:[#allocation2 + $0x8] sm:$0xff] 0.0
      %446 = vst [vmem:[#allocation2 + $0x10] sm:$0x3] 0.0
      %447 = vst [vmem:[#allocation2 + $0x18] sm:$0xff] 0.0
      %448 = vst [vmem:[#allocation2 + $0x20] sm:$0xff] 0.0
      %449 = vst [vmem:[#allocation2 + $0x28] sm:$0x3] 0.0
      %450 = vst [vmem:[#allocation2 + $0x30] sm:$0xff] 0.0
      %451 = vst [vmem:[#allocation2 + $0x38] sm:$0xff] 0.0
      %452 = vst [vmem:[#allocation2 + $0x40] sm:$0x3] 0.0
      %453 = vst [vmem:[#allocation2 + $0x48] sm:$0xff] 0.0
      %454 = vst [vmem:[#allocation2 + $0x50] sm:$0xff] 0.0
      %455 = vst [vmem:[#allocation2 + $0x58] sm:$0x3] 0.0
      %456 = vst [vmem:[#allocation2 + $0x60] sm:$0xff] 0.0
      %457 = vst [vmem:[#allocation2 + $0x68] sm:$0xff] 0.0
      %458 = vst [vmem:[#allocation2 + $0x70] sm:$0x3] 0.0
      %459 = vst [vmem:[#allocation2 + $0x78] sm:$0xff] 0.0
      %460 = vst [vmem:[#allocation2 + $0x80] sm:$0xff] 0.0
      %461 = vst [vmem:[#allocation2 + $0x88] sm:$0x3] 0.0
      %462 = vst [vmem:[#allocation2 + $0x90] sm:$0xff] 0.0
      %463 = vst [vmem:[#allocation2 + $0x98] sm:$0xff] 0.0
      %464 = vst [vmem:[#allocation2 + $0xa0] sm:$0x3] 0.0
      %465 = vst [vmem:[#allocation2 + $0xa8] sm:$0xff] 0.0
      %466 = vst [vmem:[#allocation2 + $0xb0] sm:$0xff] 0.0
      %467 = vst [vmem:[#allocation2 + $0xb8] sm:$0x3] 0.0
      %468 = vst [vmem:[#allocation2 + $0xc0] sm:$0xff] 0.0
      %469 = vst [vmem:[#allocation2 + $0xc8] sm:$0xff] 0.0
      %470 = vst [vmem:[#allocation2 + $0xd0] sm:$0x3] 0.0
      %471 = vst [vmem:[#allocation2 + $0xd8] sm:$0xff] 0.0
      %472 = vst [vmem:[#allocation2 + $0xe0] sm:$0xff] 0.0
      %473 = vst [vmem:[#allocation2 + $0xe8] sm:$0x3] 0.0
      %474 = vst [vmem:[#allocation2 + $0xf0] sm:$0xff] 0.0
      %475 = vst [vmem:[#allocation2 + $0xf8] sm:$0xff] 0.0
      %476 = vst [vmem:[#allocation2 + $0x100] sm:$0x3] 0.0
      %477 = vst [vmem:[#allocation2 + $0x108] sm:$0xff] 0.0
      %478 = vst [vmem:[#allocation2 + $0x110] sm:$0xff] 0.0
      %479 = vst [vmem:[#allocation2 + $0x118] sm:$0x3] 0.0
      %480 = vst [vmem:[#allocation2 + $0x120] sm:$0xff] 0.0
      %481 = vst [vmem:[#allocation2 + $0x128] sm:$0xff] 0.0
      %482 = vst [vmem:[#allocation2 + $0x130] sm:$0x3] 0.0
      %483 = vst [vmem:[#allocation2 + $0x138] sm:$0xff] 0.0
      %484 = vst [vmem:[#allocation2 + $0x140] sm:$0xff] 0.0
      %485 = vst [vmem:[#allocation2 + $0x148] sm:$0x3] 0.0
      %486 = vst [vmem:[#allocation2 + $0x150] sm:$0xff] 0.0
      %487 = vst [vmem:[#allocation2 + $0x158] sm:$0xff] 0.0
      %488 = vst [vmem:[#allocation2 + $0x160] sm:$0x3] 0.0
      %489 = vst [vmem:[#allocation2 + $0x168] sm:$0xff] 0.0
      %490 = vst [vmem:[#allocation2 + $0x170] sm:$0xff] 0.0
      %491 = vst [vmem:[#allocation2 + $0x178] sm:$0x3] 0.0
      %492 = vst [vmem:[#allocation2 + $0x180] sm:$0xff] 0.0
      %493 = vst [vmem:[#allocation2 + $0x188] sm:$0xff] 0.0
      %494 = vst [vmem:[#allocation2 + $0x190] sm:$0x3] 0.0
      %495 = vst [vmem:[#allocation2 + $0x198] sm:$0xff] 0.0
      %496 = vst [vmem:[#allocation2 + $0x1a0] sm:$0xff] 0.0
      %497 = vst [vmem:[#allocation2 + $0x1a8] sm:$0x3] 0.0
      %s498 = scalar_lea.vmem [#allocation2], 24
      %499 = vst [vmem:[%s498 + $0x1] sm:$0xff] %v412
      %500 = vst [vmem:[%s498 + $0x9] sm:$0xff] %v413
      %501 = vst [vmem:[%s498 + $0x19] sm:$0xff] %v414
      %502 = vst [vmem:[%s498 + $0x21] sm:$0xff] %v415
      %503 = vst [vmem:[%s498 + $0x31] sm:$0xff] %v416
      %504 = vst [vmem:[%s498 + $0x39] sm:$0xff] %v417
      %505 = vst [vmem:[%s498 + $0x49] sm:$0xff] %v418
      %506 = vst [vmem:[%s498 + $0x51] sm:$0xff] %v419
      %507 = vst [vmem:[%s498 + $0x61] sm:$0xff] %v420
      %508 = vst [vmem:[%s498 + $0x69] sm:$0xff] %v421
      %509 = vst [vmem:[%s498 + $0x79] sm:$0xff] %v422
      %510 = vst [vmem:[%s498 + $0x81] sm:$0xff] %v423
      %511 = vst [vmem:[%s498 + $0x91] sm:$0xff] %v424
      %512 = vst [vmem:[%s498 + $0x99] sm:$0xff] %v425
      %513 = vst [vmem:[%s498 + $0xa9] sm:$0xff] %v426
      %514 = vst [vmem:[%s498 + $0xb1] sm:$0xff] %v427
      %515 = vst [vmem:[%s498 + $0xc1] sm:$0xff] %v428
      %516 = vst [vmem:[%s498 + $0xc9] sm:$0xff] %v429
      %517 = vst [vmem:[%s498 + $0xd9] sm:$0xff] %v430
      %518 = vst [vmem:[%s498 + $0xe1] sm:$0xff] %v431
      %519 = vst [vmem:[%s498 + $0xf1] sm:$0xff] %v432
      %520 = vst [vmem:[%s498 + $0xf9] sm:$0xff] %v433
      %521 = vst [vmem:[%s498 + $0x109] sm:$0xff] %v434
      %522 = vst [vmem:[%s498 + $0x111] sm:$0xff] %v435
      %523 = vst [vmem:[%s498 + $0x121] sm:$0xff] %v436
      %524 = vst [vmem:[%s498 + $0x129] sm:$0xff] %v437
      %525 = vst [vmem:[%s498 + $0x139] sm:$0xff] %v438
      %526 = vst [vmem:[%s498 + $0x141] sm:$0xff] %v439
      %527 = vst [vmem:[%s498 + $0x151] sm:$0xff] %v440
      %528 = vst [vmem:[%s498 + $0x159] sm:$0xff] %v441
      %529 = vst [vmem:[%s498 + $0x169] sm:$0xff] %v442
      %530 = vst [vmem:[%s498 + $0x171] sm:$0xff] %v443
      %v531 = vld [vmem:[#allocation2] sm:$0xff]
      %v532 = vld [vmem:[#allocation2 + $0x8] sm:$0xff]
      %v533 = vld [vmem:[#allocation2 + $0x18] sm:$0xff]
      %v534 = vld [vmem:[#allocation2 + $0x20] sm:$0xff]
      %v535 = vld [vmem:[#allocation2 + $0x30] sm:$0xff]
      %v536 = vld [vmem:[#allocation2 + $0x38] sm:$0xff]
      %v537 = vld [vmem:[#allocation2 + $0x48] sm:$0xff]
      %v538 = vld [vmem:[#allocation2 + $0x50] sm:$0xff]
      %v539 = vld [vmem:[#allocation2 + $0x60] sm:$0xff]
      %v540 = vld [vmem:[#allocation2 + $0x68] sm:$0xff]
      %v541 = vld [vmem:[#allocation2 + $0x78] sm:$0xff]
      %v542 = vld [vmem:[#allocation2 + $0x80] sm:$0xff]
      %v543 = vld [vmem:[#allocation2 + $0x90] sm:$0xff]
      %v544 = vld [vmem:[#allocation2 + $0x98] sm:$0xff]
      %v545 = vld [vmem:[#allocation2 + $0xa8] sm:$0xff]
      %v546 = vld [vmem:[#allocation2 + $0xb0] sm:$0xff]
      %v547 = vld [vmem:[#allocation2 + $0xc0] sm:$0xff]
      %v548 = vld [vmem:[#allocation2 + $0xc8] sm:$0xff]
      %v549 = vld [vmem:[#allocation2 + $0xd8] sm:$0xff]
      %v550 = vld [vmem:[#allocation2 + $0xe0] sm:$0xff]
      %v551 = vld [vmem:[#allocation2 + $0xf0] sm:$0xff]
      %v552 = vld [vmem:[#allocation2 + $0xf8] sm:$0xff]
      %v553 = vld [vmem:[#allocation2 + $0x108] sm:$0xff]
      %v554 = vld [vmem:[#allocation2 + $0x110] sm:$0xff]
      %v555 = vld [vmem:[#allocation2 + $0x120] sm:$0xff]
      %v556 = vld [vmem:[#allocation2 + $0x128] sm:$0xff]
      %v557 = vld [vmem:[#allocation2 + $0x138] sm:$0xff]
      %v558 = vld [vmem:[#allocation2 + $0x140] sm:$0xff]
      %v559 = vld [vmem:[#allocation2 + $0x150] sm:$0xff]
      %v560 = vld [vmem:[#allocation2 + $0x158] sm:$0xff]
      %v561 = vld [vmem:[#allocation2 + $0x168] sm:$0xff]
      %v562 = vld [vmem:[#allocation2 + $0x170] sm:$0xff]
      %v563 = vpack.c.bf16 %v532, %v531
      %v564 = vpack.c.bf16 %v534, %v533
      %v565 = vpack.c.bf16 %v536, %v535
      %v566 = vpack.c.bf16 %v538, %v537
      %v567 = vpack.c.bf16 %v540, %v539
      %v568 = vpack.c.bf16 %v542, %v541
      %v569 = vpack.c.bf16 %v544, %v543
      %v570 = vpack.c.bf16 %v546, %v545
      %v571 = vpack.c.bf16 %v548, %v547
      %v572 = vpack.c.bf16 %v550, %v549
      %v573 = vpack.c.bf16 %v552, %v551
      %v574 = vpack.c.bf16 %v554, %v553
      %v575 = vpack.c.bf16 %v556, %v555
      %v576 = vpack.c.bf16 %v558, %v557
      %v577 = vpack.c.bf16 %v560, %v559
      %v578 = vpack.c.bf16 %v562, %v561
      %v579 = vld [vmem:[%s3] sm:$0xf]
      %v580 = vld [vmem:[%s3 + $0x4] sm:$0xf]
      %v581 = vld [vmem:[%s3 + $0x8] sm:$0xf]
      %v582 = vld [vmem:[%s3 + $0xc] sm:$0xf]
      %v583 = vld [vmem:[%s3 + $0x10] sm:$0xf]
      %v584 = vld [vmem:[%s3 + $0x14] sm:$0xf]
      %v585 = vld [vmem:[%s3 + $0x18] sm:$0xf]
      %v586 = vld [vmem:[%s3 + $0x1c] sm:$0xf]
      %v587 = vld [vmem:[%s3 + $0x20] sm:$0xf]
      %v588 = vld [vmem:[%s3 + $0x24] sm:$0xf]
      %v589 = vld [vmem:[%s3 + $0x28] sm:$0xf]
      %v590 = vld [vmem:[%s3 + $0x2c] sm:$0xf]
      %v591 = vld [vmem:[%s3 + $0x30] sm:$0xf]
      %v592 = vld [vmem:[%s3 + $0x34] sm:$0xf]
      %v593 = vld [vmem:[%s3 + $0x38] sm:$0xf]
      %v594 = vld [vmem:[%s3 + $0x3c] sm:$0xf]
      %v595 = vld [vmem:[#allocation2 + $0x1] sm:$0xff]
      %v596 = vld [vmem:[#allocation2 + $0x9] sm:$0xff]
      %v597 = vld [vmem:[#allocation2 + $0x19] sm:$0xff]
      %v598 = vld [vmem:[#allocation2 + $0x21] sm:$0xff]
      %v599 = vld [vmem:[#allocation2 + $0x31] sm:$0xff]
      %v600 = vld [vmem:[#allocation2 + $0x39] sm:$0xff]
      %v601 = vld [vmem:[#allocation2 + $0x49] sm:$0xff]
      %v602 = vld [vmem:[#allocation2 + $0x51] sm:$0xff]
      %v603 = vld [vmem:[#allocation2 + $0x61] sm:$0xff]
      %v604 = vld [vmem:[#allocation2 + $0x69] sm:$0xff]
      %v605 = vld [vmem:[#allocation2 + $0x79] sm:$0xff]
      %v606 = vld [vmem:[#allocation2 + $0x81] sm:$0xff]
      %v607 = vld [vmem:[#allocation2 + $0x91] sm:$0xff]
      %v608 = vld [vmem:[#allocation2 + $0x99] sm:$0xff]
      %v609 = vld [vmem:[#allocation2 + $0xa9] sm:$0xff]
      %v610 = vld [vmem:[#allocation2 + $0xb1] sm:$0xff]
      %v611 = vld [vmem:[#allocation2 + $0xc1] sm:$0xff]
      %v612 = vld [vmem:[#allocation2 + $0xc9] sm:$0xff]
      %v613 = vld [vmem:[#allocation2 + $0xd9] sm:$0xff]
      %v614 = vld [vmem:[#allocation2 + $0xe1] sm:$0xff]
      %v615 = vld [vmem:[#allocation2 + $0xf1] sm:$0xff]
      %v616 = vld [vmem:[#allocation2 + $0xf9] sm:$0xff]
      %v617 = vld [vmem:[#allocation2 + $0x109] sm:$0xff]
      %v618 = vld [vmem:[#allocation2 + $0x111] sm:$0xff]
      %v619 = vld [vmem:[#allocation2 + $0x121] sm:$0xff]
      %v620 = vld [vmem:[#allocation2 + $0x129] sm:$0xff]
      %v621 = vld [vmem:[#allocation2 + $0x139] sm:$0xff]
      %v622 = vld [vmem:[#allocation2 + $0x141] sm:$0xff]
      %v623 = vld [vmem:[#allocation2 + $0x151] sm:$0xff]
      %v624 = vld [vmem:[#allocation2 + $0x159] sm:$0xff]
      %v625 = vld [vmem:[#allocation2 + $0x169] sm:$0xff]
      %v626 = vld [vmem:[#allocation2 + $0x171] sm:$0xff]
      %v627 = vpack.c.bf16 %v596, %v595
      %v628 = vpack.c.bf16 %v598, %v597
      %v629 = vpack.c.bf16 %v600, %v599
      %v630 = vpack.c.bf16 %v602, %v601
      %v631 = vpack.c.bf16 %v604, %v603
      %v632 = vpack.c.bf16 %v606, %v605
      %v633 = vpack.c.bf16 %v608, %v607
      %v634 = vpack.c.bf16 %v610, %v609
      %v635 = vpack.c.bf16 %v612, %v611
      %v636 = vpack.c.bf16 %v614, %v613
      %v637 = vpack.c.bf16 %v616, %v615
      %v638 = vpack.c.bf16 %v618, %v617
      %v639 = vpack.c.bf16 %v620, %v619
      %v640 = vpack.c.bf16 %v622, %v621
      %v641 = vpack.c.bf16 %v624, %v623
      %v642 = vpack.c.bf16 %v626, %v625
      %s643 = scalar_lea.vmem %s3, 64
      %v644 = vld [vmem:[%s643] sm:$0xf]
      %v645 = vld [vmem:[%s643 + $0x4] sm:$0xf]
      %v646 = vld [vmem:[%s643 + $0x8] sm:$0xf]
      %v647 = vld [vmem:[%s643 + $0xc] sm:$0xf]
      %v648 = vld [vmem:[%s643 + $0x10] sm:$0xf]
      %v649 = vld [vmem:[%s643 + $0x14] sm:$0xf]
      %v650 = vld [vmem:[%s643 + $0x18] sm:$0xf]
      %v651 = vld [vmem:[%s643 + $0x1c] sm:$0xf]
      %v652 = vld [vmem:[%s643 + $0x20] sm:$0xf]
      %v653 = vld [vmem:[%s643 + $0x24] sm:$0xf]
      %v654 = vld [vmem:[%s643 + $0x28] sm:$0xf]
      %v655 = vld [vmem:[%s643 + $0x2c] sm:$0xf]
      %v656 = vld [vmem:[%s643 + $0x30] sm:$0xf]
      %v657 = vld [vmem:[%s643 + $0x34] sm:$0xf]
      %v658 = vld [vmem:[%s643 + $0x38] sm:$0xf]
      %v659 = vld [vmem:[%s643 + $0x3c] sm:$0xf]
      %v676 = vunpack.c.l.b16 %v644
      %v677 = vunpack.c.l.b16 %v645
      %v678 = vunpack.c.l.b16 %v646
      %v679 = vunpack.c.l.b16 %v647
      %v680 = vunpack.c.l.b16 %v648
      %v681 = vunpack.c.l.b16 %v649
      %v682 = vunpack.c.l.b16 %v650
      %v683 = vunpack.c.l.b16 %v651
      %v684 = vunpack.c.l.b16 %v652
      %v685 = vunpack.c.l.b16 %v653
      %v686 = vunpack.c.l.b16 %v654
      %v687 = vunpack.c.l.b16 %v655
      %v688 = vunpack.c.l.b16 %v656
      %v689 = vunpack.c.l.b16 %v657
      %v690 = vunpack.c.l.b16 %v658
      %v691 = vunpack.c.l.b16 %v659
      %v692 = vpack.c.b16 %v677, %v676
      %v693 = vpack.c.b16 %v679, %v678
      %v694 = vpack.c.b16 %v681, %v680
      %v695 = vpack.c.b16 %v683, %v682
      %v696 = vpack.c.b16 %v685, %v684
      %v697 = vpack.c.b16 %v687, %v686
      %v698 = vpack.c.b16 %v689, %v688
      %v699 = vpack.c.b16 %v691, %v690
      %708 = vmatprep.subr.bf16.mxu0 0
      %709 = vmatpush1.bf16.msra.mxu0 %v692
      %710 = vmatprep.subr.bf16.mxu0 0
      %711 = vmatpush1.bf16.msra.mxu0 %v693
      %712 = vmatprep.subr.bf16.mxu0 0
      %713 = vmatpush1.bf16.msra.mxu0 %v694
      %714 = vmatprep.subr.bf16.mxu0 0
      %715 = vmatpush1.bf16.msra.mxu0 %v695
      %716 = vmatprep.subr.bf16.mxu0 0
      %717 = vmatpush1.bf16.msra.mxu0 %v696
      %718 = vmatprep.subr.bf16.mxu0 0
      %719 = vmatpush1.bf16.msra.mxu0 %v697
      %720 = vmatprep.subr.bf16.mxu0 0
      %721 = vmatpush1.bf16.msra.mxu0 %v698
      %722 = vmatprep.subr.bf16.mxu0 0
      %723 = vmatpush1.bf16.msra.mxu0 %v699
      %724 = vmatprep.subr.bf16.mxu0 0
      %725 = vmatpush1.bf16.msra.mxu0 0
      %726 = vmatprep.subr.bf16.mxu0 0
      %727 = vmatpush1.bf16.msra.mxu0 0
      %728 = vmatprep.subr.bf16.mxu0 0
      %729 = vmatpush1.bf16.msra.mxu0 0
      %730 = vmatprep.subr.bf16.mxu0 0
      %731 = vmatpush1.bf16.msra.mxu0 0
      %732 = vmatprep.subr.bf16.mxu0 0
      %733 = vmatpush1.bf16.msra.mxu0 0
      %734 = vmatprep.subr.bf16.mxu0 0
      %735 = vmatpush1.bf16.msra.mxu0 0
      %736 = vmatprep.subr.bf16.mxu0 0
      %737 = vmatpush1.bf16.msra.mxu0 0
      %738 = vmatprep.subr.bf16.mxu0 0
      %739 = vmatpush1.bf16.msra.mxu0 0
      %740 = vmatprep.mubr.bf16.mxu0 0
      %741 = vmatmul.mubr.bf16.gmra.mrb[0].mxu0 %v627
      %v742 = vpop.f32.mrb[0].mxu0
      %v743 = vadd.f32 0.0, %v742
      %v744 = vpop.f32.mrb[0].mxu0
      %v745 = vpop.f32.mrb[0].mxu0
      %v746 = vadd.f32 0.0, %v745
      %v747 = vpop.f32.mrb[0].mxu0
      %748 = vmatprep.mubr.bf16.mxu0 0
      %749 = vmatmul.mubr.bf16.gmra.mrb[0].mxu0 %v628
      %v750 = vpop.f32.mrb[0].mxu0
      %v751 = vadd.f32 0.0, %v750
      %v752 = vpop.f32.mrb[0].mxu0
      %v753 = vpop.f32.mrb[0].mxu0
      %v754 = vadd.f32 0.0, %v753
      %v755 = vpop.f32.mrb[0].mxu0
      %756 = vmatprep.mubr.bf16.mxu0 0
      %757 = vmatmul.mubr.bf16.gmra.mrb[0].mxu0 %v629
      %v758 = vpop.f32.mrb[0].mxu0
      %v759 = vadd.f32 0.0, %v758
      %v760 = vpop.f32.mrb[0].mxu0
      %v761 = vpop.f32.mrb[0].mxu0
      %v762 = vadd.f32 0.0, %v761
      %v763 = vpop.f32.mrb[0].mxu0
      %764 = vmatprep.mubr.bf16.mxu0 0
      %765 = vmatmul.mubr.bf16.gmra.mrb[0].mxu0 %v630
      %v766 = vpop.f32.mrb[0].mxu0
      %v767 = vadd.f32 0.0, %v766
      %v768 = vpop.f32.mrb[0].mxu0
      %v769 = vpop.f32.mrb[0].mxu0
      %v770 = vadd.f32 0.0, %v769
      %v771 = vpop.f32.mrb[0].mxu0
      %772 = vmatprep.mubr.bf16.mxu0 0
      %773 = vmatmul.mubr.bf16.gmra.mrb[0].mxu0 %v631
      %v774 = vpop.f32.mrb[0].mxu0
      %v775 = vadd.f32 0.0, %v774
      %v776 = vpop.f32.mrb[0].mxu0
      %v777 = vpop.f32.mrb[0].mxu0
      %v778 = vadd.f32 0.0, %v777
      %v779 = vpop.f32.mrb[0].mxu0
      %780 = vmatprep.mubr.bf16.mxu0 0
      %781 = vmatmul.mubr.bf16.gmra.mrb[0].mxu0 %v632
      %v782 = vpop.f32.mrb[0].mxu0
      %v783 = vadd.f32 0.0, %v782
      %v784 = vpop.f32.mrb[0].mxu0
      %v785 = vpop.f32.mrb[0].mxu0
      %v786 = vadd.f32 0.0, %v785
      %v787 = vpop.f32.mrb[0].mxu0
      %788 = vmatprep.mubr.bf16.mxu0 0
      %789 = vmatmul.mubr.bf16.gmra.mrb[0].mxu0 %v633
      %v790 = vpop.f32.mrb[0].mxu0
      %v791 = vadd.f32 0.0, %v790
      %v792 = vpop.f32.mrb[0].mxu0
      %v793 = vpop.f32.mrb[0].mxu0
      %v794 = vadd.f32 0.0, %v793
      %v795 = vpop.f32.mrb[0].mxu0
      %796 = vmatprep.mubr.bf16.mxu0 0
      %797 = vmatmul.mubr.bf16.gmra.mrb[0].mxu0 %v634
      %v798 = vpop.f32.mrb[0].mxu0
      %v799 = vadd.f32 0.0, %v798
      %v800 = vpop.f32.mrb[0].mxu0
      %v801 = vpop.f32.mrb[0].mxu0
      %v802 = vadd.f32 0.0, %v801
      %v803 = vpop.f32.mrb[0].mxu0
      %804 = vmatprep.mubr.bf16.mxu0 0
      %805 = vmatmul.mubr.bf16.gmra.mrb[0].mxu0 %v635
      %v806 = vpop.f32.mrb[0].mxu0
      %v807 = vadd.f32 0.0, %v806
      %v808 = vpop.f32.mrb[0].mxu0
      %v809 = vpop.f32.mrb[0].mxu0
      %v810 = vadd.f32 0.0, %v809
      %v811 = vpop.f32.mrb[0].mxu0
      %812 = vmatprep.mubr.bf16.mxu0 0
      %813 = vmatmul.mubr.bf16.gmra.mrb[0].mxu0 %v636
      %v814 = vpop.f32.mrb[0].mxu0
      %v815 = vadd.f32 0.0, %v814
      %v816 = vpop.f32.mrb[0].mxu0
      %v817 = vpop.f32.mrb[0].mxu0
      %v818 = vadd.f32 0.0, %v817
      %v819 = vpop.f32.mrb[0].mxu0
      %820 = vmatprep.mubr.bf16.mxu0 0
      %821 = vmatmul.mubr.bf16.gmra.mrb[0].mxu0 %v637
      %v822 = vpop.f32.mrb[0].mxu0
      %v823 = vadd.f32 0.0, %v822
      %v824 = vpop.f32.mrb[0].mxu0
      %v825 = vpop.f32.mrb[0].mxu0
      %v826 = vadd.f32 0.0, %v825
      %v827 = vpop.f32.mrb[0].mxu0
      %828 = vmatprep.mubr.bf16.mxu0 0
      %829 = vmatmul.mubr.bf16.gmra.mrb[0].mxu0 %v638
      %v830 = vpop.f32.mrb[0].mxu0
      %v831 = vadd.f32 0.0, %v830
      %v832 = vpop.f32.mrb[0].mxu0
      %v833 = vpop.f32.mrb[0].mxu0
      %v834 = vadd.f32 0.0, %v833
      %v835 = vpop.f32.mrb[0].mxu0
      %836 = vmatprep.mubr.bf16.mxu0 0
      %837 = vmatmul.mubr.bf16.gmra.mrb[0].mxu0 %v639
      %v838 = vpop.f32.mrb[0].mxu0
      %v839 = vadd.f32 0.0, %v838
      %v840 = vpop.f32.mrb[0].mxu0
      %v841 = vpop.f32.mrb[0].mxu0
      %v842 = vadd.f32 0.0, %v841
      %v843 = vpop.f32.mrb[0].mxu0
      %844 = vmatprep.mubr.bf16.mxu0 0
      %845 = vmatmul.mubr.bf16.gmra.mrb[0].mxu0 %v640
      %v846 = vpop.f32.mrb[0].mxu0
      %v847 = vadd.f32 0.0, %v846
      %v848 = vpop.f32.mrb[0].mxu0
      %v849 = vpop.f32.mrb[0].mxu0
      %v850 = vadd.f32 0.0, %v849
      %v851 = vpop.f32.mrb[0].mxu0
      %852 = vmatprep.mubr.bf16.mxu0 0
      %853 = vmatmul.mubr.bf16.gmra.mrb[0].mxu0 %v641
      %v854 = vpop.f32.mrb[0].mxu0
      %v855 = vadd.f32 0.0, %v854
      %v856 = vpop.f32.mrb[0].mxu0
      %v857 = vpop.f32.mrb[0].mxu0
      %v858 = vadd.f32 0.0, %v857
      %v859 = vpop.f32.mrb[0].mxu0
      %860 = vmatprep.mubr.bf16.mxu0 0
      %861 = vmatmul.mubr.bf16.gmra.mrb[0].mxu0 %v642
      %v862 = vpop.f32.mrb[0].mxu0
      %v863 = vadd.f32 0.0, %v862
      %v864 = vpop.f32.mrb[0].mxu0
      %v865 = vpop.f32.mrb[0].mxu0
      %v866 = vadd.f32 0.0, %v865
      %v867 = vpop.f32.mrb[0].mxu0
      %868 = vdwg.mxu0
      %v885 = vunpack.c.l.b16 %v579
      %v886 = vunpack.c.l.b16 %v580
      %v887 = vunpack.c.l.b16 %v581
      %v888 = vunpack.c.l.b16 %v582
      %v889 = vunpack.c.l.b16 %v583
      %v890 = vunpack.c.l.b16 %v584
      %v891 = vunpack.c.l.b16 %v585
      %v892 = vunpack.c.l.b16 %v586
      %v893 = vunpack.c.l.b16 %v587
      %v894 = vunpack.c.l.b16 %v588
      %v895 = vunpack.c.l.b16 %v589
      %v896 = vunpack.c.l.b16 %v590
      %v897 = vunpack.c.l.b16 %v591
      %v898 = vunpack.c.l.b16 %v592
      %v899 = vunpack.c.l.b16 %v593
      %v900 = vunpack.c.l.b16 %v594
      %v901 = vpack.c.b16 %v886, %v885
      %v902 = vpack.c.b16 %v888, %v887
      %v903 = vpack.c.b16 %v890, %v889
      %v904 = vpack.c.b16 %v892, %v891
      %v905 = vpack.c.b16 %v894, %v893
      %v906 = vpack.c.b16 %v896, %v895
      %v907 = vpack.c.b16 %v898, %v897
      %v908 = vpack.c.b16 %v900, %v899
      %917 = vmatprep.subr.bf16.mxu0 0
      %918 = vmatpush1.bf16.msra.mxu0 %v901
      %919 = vmatprep.subr.bf16.mxu0 0
      %920 = vmatpush1.bf16.msra.mxu0 %v902
      %921 = vmatprep.subr.bf16.mxu0 0
      %922 = vmatpush1.bf16.msra.mxu0 %v903
      %923 = vmatprep.subr.bf16.mxu0 0
      %924 = vmatpush1.bf16.msra.mxu0 %v904
      %925 = vmatprep.subr.bf16.mxu0 0
      %926 = vmatpush1.bf16.msra.mxu0 %v905
      %927 = vmatprep.subr.bf16.mxu0 0
      %928 = vmatpush1.bf16.msra.mxu0 %v906
      %929 = vmatprep.subr.bf16.mxu0 0
      %930 = vmatpush1.bf16.msra.mxu0 %v907
      %931 = vmatprep.subr.bf16.mxu0 0
      %932 = vmatpush1.bf16.msra.mxu0 %v908
      %933 = vmatprep.subr.bf16.mxu0 0
      %934 = vmatpush1.bf16.msra.mxu0 0
      %935 = vmatprep.subr.bf16.mxu0 0
      %936 = vmatpush1.bf16.msra.mxu0 0
      %937 = vmatprep.subr.bf16.mxu0 0
      %938 = vmatpush1.bf16.msra.mxu0 0
      %939 = vmatprep.subr.bf16.mxu0 0
      %940 = vmatpush1.bf16.msra.mxu0 0
      %941 = vmatprep.subr.bf16.mxu0 0
      %942 = vmatpush1.bf16.msra.mxu0 0
      %943 = vmatprep.subr.bf16.mxu0 0
      %944 = vmatpush1.bf16.msra.mxu0 0
      %945 = vmatprep.subr.bf16.mxu0 0
      %946 = vmatpush1.bf16.msra.mxu0 0
      %947 = vmatprep.subr.bf16.mxu0 0
      %948 = vmatpush1.bf16.msra.mxu0 0
      %949 = vmatprep.mubr.bf16.mxu0 0
      %950 = vmatmul.mubr.bf16.gmra.mrb[0].mxu0 %v563
      %v951 = vpop.f32.mrb[0].mxu0
      %v952 = vadd.f32 %v743, %v951
      %v953 = vpop.f32.mrb[0].mxu0
      %v954 = vpop.f32.mrb[0].mxu0
      %v955 = vadd.f32 %v746, %v954
      %v956 = vpop.f32.mrb[0].mxu0
      %957 = vmatprep.mubr.bf16.mxu0 0
      %958 = vmatmul.mubr.bf16.gmra.mrb[0].mxu0 %v564
      %v959 = vpop.f32.mrb[0].mxu0
      %v960 = vadd.f32 %v751, %v959
      %v961 = vpop.f32.mrb[0].mxu0
      %v962 = vpop.f32.mrb[0].mxu0
      %v963 = vadd.f32 %v754, %v962
      %v964 = vpop.f32.mrb[0].mxu0
      %965 = vmatprep.mubr.bf16.mxu0 0
      %966 = vmatmul.mubr.bf16.gmra.mrb[0].mxu0 %v565
      %v967 = vpop.f32.mrb[0].mxu0
      %v968 = vadd.f32 %v759, %v967
      %v969 = vpop.f32.mrb[0].mxu0
      %v970 = vpop.f32.mrb[0].mxu0
      %v971 = vadd.f32 %v762, %v970
      %v972 = vpop.f32.mrb[0].mxu0
      %973 = vmatprep.mubr.bf16.mxu0 0
      %974 = vmatmul.mubr.bf16.gmra.mrb[0].mxu0 %v566
      %v975 = vpop.f32.mrb[0].mxu0
      %v976 = vadd.f32 %v767, %v975
      %v977 = vpop.f32.mrb[0].mxu0
      %v978 = vpop.f32.mrb[0].mxu0
      %v979 = vadd.f32 %v770, %v978
      %v980 = vpop.f32.mrb[0].mxu0
      %981 = vmatprep.mubr.bf16.mxu0 0
      %982 = vmatmul.mubr.bf16.gmra.mrb[0].mxu0 %v567
      %v983 = vpop.f32.mrb[0].mxu0
      %v984 = vadd.f32 %v775, %v983
      %v985 = vpop.f32.mrb[0].mxu0
      %v986 = vpop.f32.mrb[0].mxu0
      %v987 = vadd.f32 %v778, %v986
      %v988 = vpop.f32.mrb[0].mxu0
      %989 = vmatprep.mubr.bf16.mxu0 0
      %990 = vmatmul.mubr.bf16.gmra.mrb[0].mxu0 %v568
      %v991 = vpop.f32.mrb[0].mxu0
      %v992 = vadd.f32 %v783, %v991
      %v993 = vpop.f32.mrb[0].mxu0
      %v994 = vpop.f32.mrb[0].mxu0
      %v995 = vadd.f32 %v786, %v994
      %v996 = vpop.f32.mrb[0].mxu0
      %997 = vmatprep.mubr.bf16.mxu0 0
      %998 = vmatmul.mubr.bf16.gmra.mrb[0].mxu0 %v569
      %v999 = vpop.f32.mrb[0].mxu0
      %v1000 = vadd.f32 %v791, %v999
      %v1001 = vpop.f32.mrb[0].mxu0
      %v1002 = vpop.f32.mrb[0].mxu0
      %v1003 = vadd.f32 %v794, %v1002
      %v1004 = vpop.f32.mrb[0].mxu0
      %1005 = vmatprep.mubr.bf16.mxu0 0
      %1006 = vmatmul.mubr.bf16.gmra.mrb[0].mxu0 %v570
      %v1007 = vpop.f32.mrb[0].mxu0
      %v1008 = vadd.f32 %v799, %v1007
      %v1009 = vpop.f32.mrb[0].mxu0
      %v1010 = vpop.f32.mrb[0].mxu0
      %v1011 = vadd.f32 %v802, %v1010
      %v1012 = vpop.f32.mrb[0].mxu0
      %1013 = vmatprep.mubr.bf16.mxu0 0
      %1014 = vmatmul.mubr.bf16.gmra.mrb[0].mxu0 %v571
      %v1015 = vpop.f32.mrb[0].mxu0
      %v1016 = vadd.f32 %v807, %v1015
      %v1017 = vpop.f32.mrb[0].mxu0
      %v1018 = vpop.f32.mrb[0].mxu0
      %v1019 = vadd.f32 %v810, %v1018
      %v1020 = vpop.f32.mrb[0].mxu0
      %1021 = vmatprep.mubr.bf16.mxu0 0
      %1022 = vmatmul.mubr.bf16.gmra.mrb[0].mxu0 %v572
      %v1023 = vpop.f32.mrb[0].mxu0
      %v1024 = vadd.f32 %v815, %v1023
      %v1025 = vpop.f32.mrb[0].mxu0
      %v1026 = vpop.f32.mrb[0].mxu0
      %v1027 = vadd.f32 %v818, %v1026
      %v1028 = vpop.f32.mrb[0].mxu0
      %1029 = vmatprep.mubr.bf16.mxu0 0
      %1030 = vmatmul.mubr.bf16.gmra.mrb[0].mxu0 %v573
      %v1031 = vpop.f32.mrb[0].mxu0
      %v1032 = vadd.f32 %v823, %v1031
      %v1033 = vpop.f32.mrb[0].mxu0
      %v1034 = vpop.f32.mrb[0].mxu0
      %v1035 = vadd.f32 %v826, %v1034
      %v1036 = vpop.f32.mrb[0].mxu0
      %1037 = vmatprep.mubr.bf16.mxu0 0
      %1038 = vmatmul.mubr.bf16.gmra.mrb[0].mxu0 %v574
      %v1039 = vpop.f32.mrb[0].mxu0
      %v1040 = vadd.f32 %v831, %v1039
      %v1041 = vpop.f32.mrb[0].mxu0
      %v1042 = vpop.f32.mrb[0].mxu0
      %v1043 = vadd.f32 %v834, %v1042
      %v1044 = vpop.f32.mrb[0].mxu0
      %1045 = vmatprep.mubr.bf16.mxu0 0
      %1046 = vmatmul.mubr.bf16.gmra.mrb[0].mxu0 %v575
      %v1047 = vpop.f32.mrb[0].mxu0
      %v1048 = vadd.f32 %v839, %v1047
      %v1049 = vpop.f32.mrb[0].mxu0
      %v1050 = vpop.f32.mrb[0].mxu0
      %v1051 = vadd.f32 %v842, %v1050
      %v1052 = vpop.f32.mrb[0].mxu0
      %1053 = vmatprep.mubr.bf16.mxu0 0
      %1054 = vmatmul.mubr.bf16.gmra.mrb[0].mxu0 %v576
      %v1055 = vpop.f32.mrb[0].mxu0
      %v1056 = vadd.f32 %v847, %v1055
      %v1057 = vpop.f32.mrb[0].mxu0
      %v1058 = vpop.f32.mrb[0].mxu0
      %v1059 = vadd.f32 %v850, %v1058
      %v1060 = vpop.f32.mrb[0].mxu0
      %1061 = vmatprep.mubr.bf16.mxu0 0
      %1062 = vmatmul.mubr.bf16.gmra.mrb[0].mxu0 %v577
      %v1063 = vpop.f32.mrb[0].mxu0
      %v1064 = vadd.f32 %v855, %v1063
      %v1065 = vpop.f32.mrb[0].mxu0
      %v1066 = vpop.f32.mrb[0].mxu0
      %v1067 = vadd.f32 %v858, %v1066
      %v1068 = vpop.f32.mrb[0].mxu0
      %1069 = vmatprep.mubr.bf16.mxu0 0
      %1070 = vmatmul.mubr.bf16.gmra.mrb[0].mxu0 %v578
      %v1071 = vpop.f32.mrb[0].mxu0
      %v1072 = vadd.f32 %v863, %v1071
      %v1073 = vpop.f32.mrb[0].mxu0
      %v1074 = vpop.f32.mrb[0].mxu0
      %v1075 = vadd.f32 %v866, %v1074
      %v1076 = vpop.f32.mrb[0].mxu0
      %1077 = vdwg.mxu0
      %v1078 = vld [vmem:[#allocation2 + $0x2] sm:$0xff]
      %v1079 = vld [vmem:[#allocation2 + $0xa] sm:$0xff]
      %v1080 = vld [vmem:[#allocation2 + $0x1a] sm:$0xff]
      %v1081 = vld [vmem:[#allocation2 + $0x22] sm:$0xff]
      %v1082 = vld [vmem:[#allocation2 + $0x32] sm:$0xff]
      %v1083 = vld [vmem:[#allocation2 + $0x3a] sm:$0xff]
      %v1084 = vld [vmem:[#allocation2 + $0x4a] sm:$0xff]
      %v1085 = vld [vmem:[#allocation2 + $0x52] sm:$0xff]
      %v1086 = vld [vmem:[#allocation2 + $0x62] sm:$0xff]
      %v1087 = vld [vmem:[#allocation2 + $0x6a] sm:$0xff]
      %v1088 = vld [vmem:[#allocation2 + $0x7a] sm:$0xff]
      %v1089 = vld [vmem:[#allocation2 + $0x82] sm:$0xff]
      %v1090 = vld [vmem:[#allocation2 + $0x92] sm:$0xff]
      %v1091 = vld [vmem:[#allocation2 + $0x9a] sm:$0xff]
      %v1092 = vld [vmem:[#allocation2 + $0xaa] sm:$0xff]
      %v1093 = vld [vmem:[#allocation2 + $0xb2] sm:$0xff]
      %v1094 = vld [vmem:[#allocation2 + $0xc2] sm:$0xff]
      %v1095 = vld [vmem:[#allocation2 + $0xca] sm:$0xff]
      %v1096 = vld [vmem:[#allocation2 + $0xda] sm:$0xff]
      %v1097 = vld [vmem:[#allocation2 + $0xe2] sm:$0xff]
      %v1098 = vld [vmem:[#allocation2 + $0xf2] sm:$0xff]
      %v1099 = vld [vmem:[#allocation2 + $0xfa] sm:$0xff]
      %v1100 = vld [vmem:[#allocation2 + $0x10a] sm:$0xff]
      %v1101 = vld [vmem:[#allocation2 + $0x112] sm:$0xff]
      %v1102 = vld [vmem:[#allocation2 + $0x122] sm:$0xff]
      %v1103 = vld [vmem:[#allocation2 + $0x12a] sm:$0xff]
      %v1104 = vld [vmem:[#allocation2 + $0x13a] sm:$0xff]
      %v1105 = vld [vmem:[#allocation2 + $0x142] sm:$0xff]
      %v1106 = vld [vmem:[#allocation2 + $0x152] sm:$0xff]
      %v1107 = vld [vmem:[#allocation2 + $0x15a] sm:$0xff]
      %v1108 = vld [vmem:[#allocation2 + $0x16a] sm:$0xff]
      %v1109 = vld [vmem:[#allocation2 + $0x172] sm:$0xff]
      %v1110 = vpack.c.bf16 %v1079, %v1078
      %v1111 = vpack.c.bf16 %v1081, %v1080
      %v1112 = vpack.c.bf16 %v1083, %v1082
      %v1113 = vpack.c.bf16 %v1085, %v1084
      %v1114 = vpack.c.bf16 %v1087, %v1086
      %v1115 = vpack.c.bf16 %v1089, %v1088
      %v1116 = vpack.c.bf16 %v1091, %v1090
      %v1117 = vpack.c.bf16 %v1093, %v1092
      %v1118 = vpack.c.bf16 %v1095, %v1094
      %v1119 = vpack.c.bf16 %v1097, %v1096
      %v1120 = vpack.c.bf16 %v1099, %v1098
      %v1121 = vpack.c.bf16 %v1101, %v1100
      %v1122 = vpack.c.bf16 %v1103, %v1102
      %v1123 = vpack.c.bf16 %v1105, %v1104
      %v1124 = vpack.c.bf16 %v1107, %v1106
      %v1125 = vpack.c.bf16 %v1109, %v1108
      %s1126 = scalar_lea.vmem %s3, 128
      %v1127 = vld [vmem:[%s1126] sm:$0xf]
      %v1128 = vld [vmem:[%s1126 + $0x4] sm:$0xf]
      %v1129 = vld [vmem:[%s1126 + $0x8] sm:$0xf]
      %v1130 = vld [vmem:[%s1126 + $0xc] sm:$0xf]
      %v1131 = vld [vmem:[%s1126 + $0x10] sm:$0xf]
      %v1132 = vld [vmem:[%s1126 + $0x14] sm:$0xf]
      %v1133 = vld [vmem:[%s1126 + $0x18] sm:$0xf]
      %v1134 = vld [vmem:[%s1126 + $0x1c] sm:$0xf]
      %v1135 = vld [vmem:[%s1126 + $0x20] sm:$0xf]
      %v1136 = vld [vmem:[%s1126 + $0x24] sm:$0xf]
      %v1137 = vld [vmem:[%s1126 + $0x28] sm:$0xf]
      %v1138 = vld [vmem:[%s1126 + $0x2c] sm:$0xf]
      %v1139 = vld [vmem:[%s1126 + $0x30] sm:$0xf]
      %v1140 = vld [vmem:[%s1126 + $0x34] sm:$0xf]
      %v1141 = vld [vmem:[%s1126 + $0x38] sm:$0xf]
      %v1142 = vld [vmem:[%s1126 + $0x3c] sm:$0xf]
      %v1159 = vunpack.c.l.b16 %v1127
      %v1160 = vunpack.c.l.b16 %v1128
      %v1161 = vunpack.c.l.b16 %v1129
      %v1162 = vunpack.c.l.b16 %v1130
      %v1163 = vunpack.c.l.b16 %v1131
      %v1164 = vunpack.c.l.b16 %v1132
      %v1165 = vunpack.c.l.b16 %v1133
      %v1166 = vunpack.c.l.b16 %v1134
      %v1167 = vunpack.c.l.b16 %v1135
      %v1168 = vunpack.c.l.b16 %v1136
      %v1169 = vunpack.c.l.b16 %v1137
      %v1170 = vunpack.c.l.b16 %v1138
      %v1171 = vunpack.c.l.b16 %v1139
      %v1172 = vunpack.c.l.b16 %v1140
      %v1173 = vunpack.c.l.b16 %v1141
      %v1174 = vunpack.c.l.b16 %v1142
      %v1175 = vpack.c.b16 %v1160, %v1159
      %v1176 = vpack.c.b16 %v1162, %v1161
      %v1177 = vpack.c.b16 %v1164, %v1163
      %v1178 = vpack.c.b16 %v1166, %v1165
      %v1179 = vpack.c.b16 %v1168, %v1167
      %v1180 = vpack.c.b16 %v1170, %v1169
      %v1181 = vpack.c.b16 %v1172, %v1171
      %v1182 = vpack.c.b16 %v1174, %v1173
      %1191 = vmatprep.subr.bf16.mxu0 0
      %1192 = vmatpush1.bf16.msra.mxu0 %v1175
      %1193 = vmatprep.subr.bf16.mxu0 0
      %1194 = vmatpush1.bf16.msra.mxu0 %v1176
      %1195 = vmatprep.subr.bf16.mxu0 0
      %1196 = vmatpush1.bf16.msra.mxu0 %v1177
      %1197 = vmatprep.subr.bf16.mxu0 0
      %1198 = vmatpush1.bf16.msra.mxu0 %v1178
      %1199 = vmatprep.subr.bf16.mxu0 0
      %1200 = vmatpush1.bf16.msra.mxu0 %v1179
      %1201 = vmatprep.subr.bf16.mxu0 0
      %1202 = vmatpush1.bf16.msra.mxu0 %v1180
      %1203 = vmatprep.subr.bf16.mxu0 0
      %1204 = vmatpush1.bf16.msra.mxu0 %v1181
      %1205 = vmatprep.subr.bf16.mxu0 0
      %1206 = vmatpush1.bf16.msra.mxu0 %v1182
      %1207 = vmatprep.subr.bf16.mxu0 0
      %1208 = vmatpush1.bf16.msra.mxu0 0
      %1209 = vmatprep.subr.bf16.mxu0 0
      %1210 = vmatpush1.bf16.msra.mxu0 0
      %1211 = vmatprep.subr.bf16.mxu0 0
      %1212 = vmatpush1.bf16.msra.mxu0 0
      %1213 = vmatprep.subr.bf16.mxu0 0
      %1214 = vmatpush1.bf16.msra.mxu0 0
      %1215 = vmatprep.subr.bf16.mxu0 0
      %1216 = vmatpush1.bf16.msra.mxu0 0
      %1217 = vmatprep.subr.bf16.mxu0 0
      %1218 = vmatpush1.bf16.msra.mxu0 0
      %1219 = vmatprep.subr.bf16.mxu0 0
      %1220 = vmatpush1.bf16.msra.mxu0 0
      %1221 = vmatprep.subr.bf16.mxu0 0
      %1222 = vmatpush1.bf16.msra.mxu0 0
      %1223 = vmatprep.mubr.bf16.mxu0 0
      %1224 = vmatmul.mubr.bf16.gmra.mrb[0].mxu0 %v1110
      %v1225 = vpop.f32.mrb[0].mxu0
      %v1226 = vadd.f32 0.0, %v1225
      %v1227 = vpop.f32.mrb[0].mxu0
      %v1228 = vpop.f32.mrb[0].mxu0
      %v1229 = vadd.f32 0.0, %v1228
      %v1230 = vpop.f32.mrb[0].mxu0
      %1231 = vmatprep.mubr.bf16.mxu0 0
      %1232 = vmatmul.mubr.bf16.gmra.mrb[0].mxu0 %v1111
      %v1233 = vpop.f32.mrb[0].mxu0
      %v1234 = vadd.f32 0.0, %v1233
      %v1235 = vpop.f32.mrb[0].mxu0
      %v1236 = vpop.f32.mrb[0].mxu0
      %v1237 = vadd.f32 0.0, %v1236
      %v1238 = vpop.f32.mrb[0].mxu0
      %1239 = vmatprep.mubr.bf16.mxu0 0
      %1240 = vmatmul.mubr.bf16.gmra.mrb[0].mxu0 %v1112
      %v1241 = vpop.f32.mrb[0].mxu0
      %v1242 = vadd.f32 0.0, %v1241
      %v1243 = vpop.f32.mrb[0].mxu0
      %v1244 = vpop.f32.mrb[0].mxu0
      %v1245 = vadd.f32 0.0, %v1244
      %v1246 = vpop.f32.mrb[0].mxu0
      %1247 = vmatprep.mubr.bf16.mxu0 0
      %1248 = vmatmul.mubr.bf16.gmra.mrb[0].mxu0 %v1113
      %v1249 = vpop.f32.mrb[0].mxu0
      %v1250 = vadd.f32 0.0, %v1249
      %v1251 = vpop.f32.mrb[0].mxu0
      %v1252 = vpop.f32.mrb[0].mxu0
      %v1253 = vadd.f32 0.0, %v1252
      %v1254 = vpop.f32.mrb[0].mxu0
      %1255 = vmatprep.mubr.bf16.mxu0 0
      %1256 = vmatmul.mubr.bf16.gmra.mrb[0].mxu0 %v1114
      %v1257 = vpop.f32.mrb[0].mxu0
      %v1258 = vadd.f32 0.0, %v1257
      %v1259 = vpop.f32.mrb[0].mxu0
      %v1260 = vpop.f32.mrb[0].mxu0
      %v1261 = vadd.f32 0.0, %v1260
      %v1262 = vpop.f32.mrb[0].mxu0
      %1263 = vmatprep.mubr.bf16.mxu0 0
      %1264 = vmatmul.mubr.bf16.gmra.mrb[0].mxu0 %v1115
      %v1265 = vpop.f32.mrb[0].mxu0
      %v1266 = vadd.f32 0.0, %v1265
      %v1267 = vpop.f32.mrb[0].mxu0
      %v1268 = vpop.f32.mrb[0].mxu0
      %v1269 = vadd.f32 0.0, %v1268
      %v1270 = vpop.f32.mrb[0].mxu0
      %1271 = vmatprep.mubr.bf16.mxu0 0
      %1272 = vmatmul.mubr.bf16.gmra.mrb[0].mxu0 %v1116
      %v1273 = vpop.f32.mrb[0].mxu0
      %v1274 = vadd.f32 0.0, %v1273
      %v1275 = vpop.f32.mrb[0].mxu0
      %v1276 = vpop.f32.mrb[0].mxu0
      %v1277 = vadd.f32 0.0, %v1276
      %v1278 = vpop.f32.mrb[0].mxu0
      %1279 = vmatprep.mubr.bf16.mxu0 0
      %1280 = vmatmul.mubr.bf16.gmra.mrb[0].mxu0 %v1117
      %v1281 = vpop.f32.mrb[0].mxu0
      %v1282 = vadd.f32 0.0, %v1281
      %v1283 = vpop.f32.mrb[0].mxu0
      %v1284 = vpop.f32.mrb[0].mxu0
      %v1285 = vadd.f32 0.0, %v1284
      %v1286 = vpop.f32.mrb[0].mxu0
      %1287 = vmatprep.mubr.bf16.mxu0 0
      %1288 = vmatmul.mubr.bf16.gmra.mrb[0].mxu0 %v1118
      %v1289 = vpop.f32.mrb[0].mxu0
      %v1290 = vadd.f32 0.0, %v1289
      %v1291 = vpop.f32.mrb[0].mxu0
      %v1292 = vpop.f32.mrb[0].mxu0
      %v1293 = vadd.f32 0.0, %v1292
      %v1294 = vpop.f32.mrb[0].mxu0
      %1295 = vmatprep.mubr.bf16.mxu0 0
      %1296 = vmatmul.mubr.bf16.gmra.mrb[0].mxu0 %v1119
      %v1297 = vpop.f32.mrb[0].mxu0
      %v1298 = vadd.f32 0.0, %v1297
      %v1299 = vpop.f32.mrb[0].mxu0
      %v1300 = vpop.f32.mrb[0].mxu0
      %v1301 = vadd.f32 0.0, %v1300
      %v1302 = vpop.f32.mrb[0].mxu0
      %1303 = vmatprep.mubr.bf16.mxu0 0
      %1304 = vmatmul.mubr.bf16.gmra.mrb[0].mxu0 %v1120
      %v1305 = vpop.f32.mrb[0].mxu0
      %v1306 = vadd.f32 0.0, %v1305
      %v1307 = vpop.f32.mrb[0].mxu0
      %v1308 = vpop.f32.mrb[0].mxu0
      %v1309 = vadd.f32 0.0, %v1308
      %v1310 = vpop.f32.mrb[0].mxu0
      %1311 = vmatprep.mubr.bf16.mxu0 0
      %1312 = vmatmul.mubr.bf16.gmra.mrb[0].mxu0 %v1121
      %v1313 = vpop.f32.mrb[0].mxu0
      %v1314 = vadd.f32 0.0, %v1313
      %v1315 = vpop.f32.mrb[0].mxu0
      %v1316 = vpop.f32.mrb[0].mxu0
      %v1317 = vadd.f32 0.0, %v1316
      %v1318 = vpop.f32.mrb[0].mxu0
      %1319 = vmatprep.mubr.bf16.mxu0 0
      %1320 = vmatmul.mubr.bf16.gmra.mrb[0].mxu0 %v1122
      %v1321 = vpop.f32.mrb[0].mxu0
      %v1322 = vadd.f32 0.0, %v1321
      %v1323 = vpop.f32.mrb[0].mxu0
      %v1324 = vpop.f32.mrb[0].mxu0
      %v1325 = vadd.f32 0.0, %v1324
      %v1326 = vpop.f32.mrb[0].mxu0
      %1327 = vmatprep.mubr.bf16.mxu0 0
      %1328 = vmatmul.mubr.bf16.gmra.mrb[0].mxu0 %v1123
      %v1329 = vpop.f32.mrb[0].mxu0
      %v1330 = vadd.f32 0.0, %v1329
      %v1331 = vpop.f32.mrb[0].mxu0
      %v1332 = vpop.f32.mrb[0].mxu0
      %v1333 = vadd.f32 0.0, %v1332
      %v1334 = vpop.f32.mrb[0].mxu0
      %1335 = vmatprep.mubr.bf16.mxu0 0
      %1336 = vmatmul.mubr.bf16.gmra.mrb[0].mxu0 %v1124
      %v1337 = vpop.f32.mrb[0].mxu0
      %v1338 = vadd.f32 0.0, %v1337
      %v1339 = vpop.f32.mrb[0].mxu0
      %v1340 = vpop.f32.mrb[0].mxu0
      %v1341 = vadd.f32 0.0, %v1340
      %v1342 = vpop.f32.mrb[0].mxu0
      %1343 = vmatprep.mubr.bf16.mxu0 0
      %1344 = vmatmul.mubr.bf16.gmra.mrb[0].mxu0 %v1125
      %v1345 = vpop.f32.mrb[0].mxu0
      %v1346 = vadd.f32 0.0, %v1345
      %v1347 = vpop.f32.mrb[0].mxu0
      %v1348 = vpop.f32.mrb[0].mxu0
      %v1349 = vadd.f32 0.0, %v1348
      %v1350 = vpop.f32.mrb[0].mxu0
      %1351 = vdwg.mxu0
      %v1352 = vadd.f32 %v952, %v1226
      %v1353 = vadd.f32 %v955, %v1229
      %v1354 = vadd.f32 %v960, %v1234
      %v1355 = vadd.f32 %v963, %v1237
      %v1356 = vadd.f32 %v968, %v1242
      %v1357 = vadd.f32 %v971, %v1245
      %v1358 = vadd.f32 %v976, %v1250
      %v1359 = vadd.f32 %v979, %v1253
      %v1360 = vadd.f32 %v984, %v1258
      %v1361 = vadd.f32 %v987, %v1261
      %v1362 = vadd.f32 %v992, %v1266
      %v1363 = vadd.f32 %v995, %v1269
      %v1364 = vadd.f32 %v1000, %v1274
      %v1365 = vadd.f32 %v1003, %v1277
      %v1366 = vadd.f32 %v1008, %v1282
      %v1367 = vadd.f32 %v1011, %v1285
      %v1368 = vadd.f32 %v1016, %v1290
      %v1369 = vadd.f32 %v1019, %v1293
      %v1370 = vadd.f32 %v1024, %v1298
      %v1371 = vadd.f32 %v1027, %v1301
      %v1372 = vadd.f32 %v1032, %v1306
      %v1373 = vadd.f32 %v1035, %v1309
      %v1374 = vadd.f32 %v1040, %v1314
      %v1375 = vadd.f32 %v1043, %v1317
      %v1376 = vadd.f32 %v1048, %v1322
      %v1377 = vadd.f32 %v1051, %v1325
      %v1378 = vadd.f32 %v1056, %v1330
      %v1379 = vadd.f32 %v1059, %v1333
      %v1380 = vadd.f32 %v1064, %v1338
      %v1381 = vadd.f32 %v1067, %v1341
      %v1382 = vadd.f32 %v1072, %v1346
      %v1383 = vadd.f32 %v1075, %v1349
      %v1384 = vld [vmem:[%s498] sm:$0xff]
      %v1385 = vld [vmem:[%s498 + $0x8] sm:$0xff]
      %v1386 = vld [vmem:[%s498 + $0x18] sm:$0xff]
      %v1387 = vld [vmem:[%s498 + $0x20] sm:$0xff]
      %v1388 = vld [vmem:[%s498 + $0x30] sm:$0xff]
      %v1389 = vld [vmem:[%s498 + $0x38] sm:$0xff]
      %v1390 = vld [vmem:[%s498 + $0x48] sm:$0xff]
      %v1391 = vld [vmem:[%s498 + $0x50] sm:$0xff]
      %v1392 = vld [vmem:[%s498 + $0x60] sm:$0xff]
      %v1393 = vld [vmem:[%s498 + $0x68] sm:$0xff]
      %v1394 = vld [vmem:[%s498 + $0x78] sm:$0xff]
      %v1395 = vld [vmem:[%s498 + $0x80] sm:$0xff]
      %v1396 = vld [vmem:[%s498 + $0x90] sm:$0xff]
      %v1397 = vld [vmem:[%s498 + $0x98] sm:$0xff]
      %v1398 = vld [vmem:[%s498 + $0xa8] sm:$0xff]
      %v1399 = vld [vmem:[%s498 + $0xb0] sm:$0xff]
      %v1400 = vld [vmem:[%s498 + $0xc0] sm:$0xff]
      %v1401 = vld [vmem:[%s498 + $0xc8] sm:$0xff]
      %v1402 = vld [vmem:[%s498 + $0xd8] sm:$0xff]
      %v1403 = vld [vmem:[%s498 + $0xe0] sm:$0xff]
      %v1404 = vld [vmem:[%s498 + $0xf0] sm:$0xff]
      %v1405 = vld [vmem:[%s498 + $0xf8] sm:$0xff]
      %v1406 = vld [vmem:[%s498 + $0x108] sm:$0xff]
      %v1407 = vld [vmem:[%s498 + $0x110] sm:$0xff]
      %v1408 = vld [vmem:[%s498 + $0x120] sm:$0xff]
      %v1409 = vld [vmem:[%s498 + $0x128] sm:$0xff]
      %v1410 = vld [vmem:[%s498 + $0x138] sm:$0xff]
      %v1411 = vld [vmem:[%s498 + $0x140] sm:$0xff]
      %v1412 = vld [vmem:[%s498 + $0x150] sm:$0xff]
      %v1413 = vld [vmem:[%s498 + $0x158] sm:$0xff]
      %v1414 = vld [vmem:[%s498 + $0x168] sm:$0xff]
      %v1415 = vld [vmem:[%s498 + $0x170] sm:$0xff]
      %v1416 = vpack.c.bf16 %v1385, %v1384
      %v1417 = vpack.c.bf16 %v1387, %v1386
      %v1418 = vpack.c.bf16 %v1389, %v1388
      %v1419 = vpack.c.bf16 %v1391, %v1390
      %v1420 = vpack.c.bf16 %v1393, %v1392
      %v1421 = vpack.c.bf16 %v1395, %v1394
      %v1422 = vpack.c.bf16 %v1397, %v1396
      %v1423 = vpack.c.bf16 %v1399, %v1398
      %v1424 = vpack.c.bf16 %v1401, %v1400
      %v1425 = vpack.c.bf16 %v1403, %v1402
      %v1426 = vpack.c.bf16 %v1405, %v1404
      %v1427 = vpack.c.bf16 %v1407, %v1406
      %v1428 = vpack.c.bf16 %v1409, %v1408
      %v1429 = vpack.c.bf16 %v1411, %v1410
      %v1430 = vpack.c.bf16 %v1413, %v1412
      %v1431 = vpack.c.bf16 %v1415, %v1414
      %s1432 = scalar_lea.vmem %s3, 192
      %v1433 = vld [vmem:[%s1432] sm:$0xf]
      %v1434 = vld [vmem:[%s1432 + $0x4] sm:$0xf]
      %v1435 = vld [vmem:[%s1432 + $0x8] sm:$0xf]
      %v1436 = vld [vmem:[%s1432 + $0xc] sm:$0xf]
      %v1437 = vld [vmem:[%s1432 + $0x10] sm:$0xf]
      %v1438 = vld [vmem:[%s1432 + $0x14] sm:$0xf]
      %v1439 = vld [vmem:[%s1432 + $0x18] sm:$0xf]
      %v1440 = vld [vmem:[%s1432 + $0x1c] sm:$0xf]
      %v1441 = vld [vmem:[%s1432 + $0x20] sm:$0xf]
      %v1442 = vld [vmem:[%s1432 + $0x24] sm:$0xf]
      %v1443 = vld [vmem:[%s1432 + $0x28] sm:$0xf]
      %v1444 = vld [vmem:[%s1432 + $0x2c] sm:$0xf]
      %v1445 = vld [vmem:[%s1432 + $0x30] sm:$0xf]
      %v1446 = vld [vmem:[%s1432 + $0x34] sm:$0xf]
      %v1447 = vld [vmem:[%s1432 + $0x38] sm:$0xf]
      %v1448 = vld [vmem:[%s1432 + $0x3c] sm:$0xf]
      %v1465 = vunpack.c.l.b16 %v1433
      %v1466 = vunpack.c.l.b16 %v1434
      %v1467 = vunpack.c.l.b16 %v1435
      %v1468 = vunpack.c.l.b16 %v1436
      %v1469 = vunpack.c.l.b16 %v1437
      %v1470 = vunpack.c.l.b16 %v1438
      %v1471 = vunpack.c.l.b16 %v1439
      %v1472 = vunpack.c.l.b16 %v1440
      %v1473 = vunpack.c.l.b16 %v1441
      %v1474 = vunpack.c.l.b16 %v1442
      %v1475 = vunpack.c.l.b16 %v1443
      %v1476 = vunpack.c.l.b16 %v1444
      %v1477 = vunpack.c.l.b16 %v1445
      %v1478 = vunpack.c.l.b16 %v1446
      %v1479 = vunpack.c.l.b16 %v1447
      %v1480 = vunpack.c.l.b16 %v1448
      %v1481 = vpack.c.b16 %v1466, %v1465
      %v1482 = vpack.c.b16 %v1468, %v1467
      %v1483 = vpack.c.b16 %v1470, %v1469
      %v1484 = vpack.c.b16 %v1472, %v1471
      %v1485 = vpack.c.b16 %v1474, %v1473
      %v1486 = vpack.c.b16 %v1476, %v1475
      %v1487 = vpack.c.b16 %v1478, %v1477
      %v1488 = vpack.c.b16 %v1480, %v1479
      %1497 = vmatprep.subr.bf16.mxu0 0
      %1498 = vmatpush1.bf16.msra.mxu0 %v1481
      %1499 = vmatprep.subr.bf16.mxu0 0
      %1500 = vmatpush1.bf16.msra.mxu0 %v1482
      %1501 = vmatprep.subr.bf16.mxu0 0
      %1502 = vmatpush1.bf16.msra.mxu0 %v1483
      %1503 = vmatprep.subr.bf16.mxu0 0
      %1504 = vmatpush1.bf16.msra.mxu0 %v1484
      %1505 = vmatprep.subr.bf16.mxu0 0
      %1506 = vmatpush1.bf16.msra.mxu0 %v1485
      %1507 = vmatprep.subr.bf16.mxu0 0
      %1508 = vmatpush1.bf16.msra.mxu0 %v1486
      %1509 = vmatprep.subr.bf16.mxu0 0
      %1510 = vmatpush1.bf16.msra.mxu0 %v1487
      %1511 = vmatprep.subr.bf16.mxu0 0
      %1512 = vmatpush1.bf16.msra.mxu0 %v1488
      %1513 = vmatprep.subr.bf16.mxu0 0
      %1514 = vmatpush1.bf16.msra.mxu0 0
      %1515 = vmatprep.subr.bf16.mxu0 0
      %1516 = vmatpush1.bf16.msra.mxu0 0
      %1517 = vmatprep.subr.bf16.mxu0 0
      %1518 = vmatpush1.bf16.msra.mxu0 0
      %1519 = vmatprep.subr.bf16.mxu0 0
      %1520 = vmatpush1.bf16.msra.mxu0 0
      %1521 = vmatprep.subr.bf16.mxu0 0
      %1522 = vmatpush1.bf16.msra.mxu0 0
      %1523 = vmatprep.subr.bf16.mxu0 0
      %1524 = vmatpush1.bf16.msra.mxu0 0
      %1525 = vmatprep.subr.bf16.mxu0 0
      %1526 = vmatpush1.bf16.msra.mxu0 0
      %1527 = vmatprep.subr.bf16.mxu0 0
      %1528 = vmatpush1.bf16.msra.mxu0 0
      %1529 = vmatprep.mubr.bf16.mxu0 0
      %1530 = vmatmul.mubr.bf16.gmra.mrb[0].mxu0 %v1416
      %v1531 = vpop.f32.mrb[0].mxu0
      %v1532 = vadd.f32 0.0, %v1531
      %v1533 = vpop.f32.mrb[0].mxu0
      %v1534 = vpop.f32.mrb[0].mxu0
      %v1535 = vadd.f32 0.0, %v1534
      %v1536 = vpop.f32.mrb[0].mxu0
      %1537 = vmatprep.mubr.bf16.mxu0 0
      %1538 = vmatmul.mubr.bf16.gmra.mrb[0].mxu0 %v1417
      %v1539 = vpop.f32.mrb[0].mxu0
      %v1540 = vadd.f32 0.0, %v1539
      %v1541 = vpop.f32.mrb[0].mxu0
      %v1542 = vpop.f32.mrb[0].mxu0
      %v1543 = vadd.f32 0.0, %v1542
      %v1544 = vpop.f32.mrb[0].mxu0
      %1545 = vmatprep.mubr.bf16.mxu0 0
      %1546 = vmatmul.mubr.bf16.gmra.mrb[0].mxu0 %v1418
      %v1547 = vpop.f32.mrb[0].mxu0
      %v1548 = vadd.f32 0.0, %v1547
      %v1549 = vpop.f32.mrb[0].mxu0
      %v1550 = vpop.f32.mrb[0].mxu0
      %v1551 = vadd.f32 0.0, %v1550
      %v1552 = vpop.f32.mrb[0].mxu0
      %1553 = vmatprep.mubr.bf16.mxu0 0
      %1554 = vmatmul.mubr.bf16.gmra.mrb[0].mxu0 %v1419
      %v1555 = vpop.f32.mrb[0].mxu0
      %v1556 = vadd.f32 0.0, %v1555
      %v1557 = vpop.f32.mrb[0].mxu0
      %v1558 = vpop.f32.mrb[0].mxu0
      %v1559 = vadd.f32 0.0, %v1558
      %v1560 = vpop.f32.mrb[0].mxu0
      %1561 = vmatprep.mubr.bf16.mxu0 0
      %1562 = vmatmul.mubr.bf16.gmra.mrb[0].mxu0 %v1420
      %v1563 = vpop.f32.mrb[0].mxu0
      %v1564 = vadd.f32 0.0, %v1563
      %v1565 = vpop.f32.mrb[0].mxu0
      %v1566 = vpop.f32.mrb[0].mxu0
      %v1567 = vadd.f32 0.0, %v1566
      %v1568 = vpop.f32.mrb[0].mxu0
      %1569 = vmatprep.mubr.bf16.mxu0 0
      %1570 = vmatmul.mubr.bf16.gmra.mrb[0].mxu0 %v1421
      %v1571 = vpop.f32.mrb[0].mxu0
      %v1572 = vadd.f32 0.0, %v1571
      %v1573 = vpop.f32.mrb[0].mxu0
      %v1574 = vpop.f32.mrb[0].mxu0
      %v1575 = vadd.f32 0.0, %v1574
      %v1576 = vpop.f32.mrb[0].mxu0
      %1577 = vmatprep.mubr.bf16.mxu0 0
      %1578 = vmatmul.mubr.bf16.gmra.mrb[0].mxu0 %v1422
      %v1579 = vpop.f32.mrb[0].mxu0
      %v1580 = vadd.f32 0.0, %v1579
      %v1581 = vpop.f32.mrb[0].mxu0
      %v1582 = vpop.f32.mrb[0].mxu0
      %v1583 = vadd.f32 0.0, %v1582
      %v1584 = vpop.f32.mrb[0].mxu0
      %1585 = vmatprep.mubr.bf16.mxu0 0
      %1586 = vmatmul.mubr.bf16.gmra.mrb[0].mxu0 %v1423
      %v1587 = vpop.f32.mrb[0].mxu0
      %v1588 = vadd.f32 0.0, %v1587
      %v1589 = vpop.f32.mrb[0].mxu0
      %v1590 = vpop.f32.mrb[0].mxu0
      %v1591 = vadd.f32 0.0, %v1590
      %v1592 = vpop.f32.mrb[0].mxu0
      %1593 = vmatprep.mubr.bf16.mxu0 0
      %1594 = vmatmul.mubr.bf16.gmra.mrb[0].mxu0 %v1424
      %v1595 = vpop.f32.mrb[0].mxu0
      %v1596 = vadd.f32 0.0, %v1595
      %v1597 = vpop.f32.mrb[0].mxu0
      %v1598 = vpop.f32.mrb[0].mxu0
      %v1599 = vadd.f32 0.0, %v1598
      %v1600 = vpop.f32.mrb[0].mxu0
      %1601 = vmatprep.mubr.bf16.mxu0 0
      %1602 = vmatmul.mubr.bf16.gmra.mrb[0].mxu0 %v1425
      %v1603 = vpop.f32.mrb[0].mxu0
      %v1604 = vadd.f32 0.0, %v1603
      %v1605 = vpop.f32.mrb[0].mxu0
      %v1606 = vpop.f32.mrb[0].mxu0
      %v1607 = vadd.f32 0.0, %v1606
      %v1608 = vpop.f32.mrb[0].mxu0
      %1609 = vmatprep.mubr.bf16.mxu0 0
      %1610 = vmatmul.mubr.bf16.gmra.mrb[0].mxu0 %v1426
      %v1611 = vpop.f32.mrb[0].mxu0
      %v1612 = vadd.f32 0.0, %v1611
      %v1613 = vpop.f32.mrb[0].mxu0
      %v1614 = vpop.f32.mrb[0].mxu0
      %v1615 = vadd.f32 0.0, %v1614
      %v1616 = vpop.f32.mrb[0].mxu0
      %1617 = vmatprep.mubr.bf16.mxu0 0
      %1618 = vmatmul.mubr.bf16.gmra.mrb[0].mxu0 %v1427
      %v1619 = vpop.f32.mrb[0].mxu0
      %v1620 = vadd.f32 0.0, %v1619
      %v1621 = vpop.f32.mrb[0].mxu0
      %v1622 = vpop.f32.mrb[0].mxu0
      %v1623 = vadd.f32 0.0, %v1622
      %v1624 = vpop.f32.mrb[0].mxu0
      %1625 = vmatprep.mubr.bf16.mxu0 0
      %1626 = vmatmul.mubr.bf16.gmra.mrb[0].mxu0 %v1428
      %v1627 = vpop.f32.mrb[0].mxu0
      %v1628 = vadd.f32 0.0, %v1627
      %v1629 = vpop.f32.mrb[0].mxu0
      %v1630 = vpop.f32.mrb[0].mxu0
      %v1631 = vadd.f32 0.0, %v1630
      %v1632 = vpop.f32.mrb[0].mxu0
      %1633 = vmatprep.mubr.bf16.mxu0 0
      %1634 = vmatmul.mubr.bf16.gmra.mrb[0].mxu0 %v1429
      %v1635 = vpop.f32.mrb[0].mxu0
      %v1636 = vadd.f32 0.0, %v1635
      %v1637 = vpop.f32.mrb[0].mxu0
      %v1638 = vpop.f32.mrb[0].mxu0
      %v1639 = vadd.f32 0.0, %v1638
      %v1640 = vpop.f32.mrb[0].mxu0
      %1641 = vmatprep.mubr.bf16.mxu0 0
      %1642 = vmatmul.mubr.bf16.gmra.mrb[0].mxu0 %v1430
      %v1643 = vpop.f32.mrb[0].mxu0
      %v1644 = vadd.f32 0.0, %v1643
      %v1645 = vpop.f32.mrb[0].mxu0
      %v1646 = vpop.f32.mrb[0].mxu0
      %v1647 = vadd.f32 0.0, %v1646
      %v1648 = vpop.f32.mrb[0].mxu0
      %1649 = vmatprep.mubr.bf16.mxu0 0
      %1650 = vmatmul.mubr.bf16.gmra.mrb[0].mxu0 %v1431
      %v1651 = vpop.f32.mrb[0].mxu0
      %v1652 = vadd.f32 0.0, %v1651
      %v1653 = vpop.f32.mrb[0].mxu0
      %v1654 = vpop.f32.mrb[0].mxu0
      %v1655 = vadd.f32 0.0, %v1654
      %v1656 = vpop.f32.mrb[0].mxu0
      %1657 = vdwg.mxu0
      %v1658 = vadd.f32 %v1352, %v1532
      %v1659 = vadd.f32 %v1353, %v1535
      %v1660 = vadd.f32 %v1354, %v1540
      %v1661 = vadd.f32 %v1355, %v1543
      %v1662 = vadd.f32 %v1356, %v1548
      %v1663 = vadd.f32 %v1357, %v1551
      %v1664 = vadd.f32 %v1358, %v1556
      %v1665 = vadd.f32 %v1359, %v1559
      %v1666 = vadd.f32 %v1360, %v1564
      %v1667 = vadd.f32 %v1361, %v1567
      %v1668 = vadd.f32 %v1362, %v1572
      %v1669 = vadd.f32 %v1363, %v1575
      %v1670 = vadd.f32 %v1364, %v1580
      %v1671 = vadd.f32 %v1365, %v1583
      %v1672 = vadd.f32 %v1366, %v1588
      %v1673 = vadd.f32 %v1367, %v1591
      %v1674 = vadd.f32 %v1368, %v1596
      %v1675 = vadd.f32 %v1369, %v1599
      %v1676 = vadd.f32 %v1370, %v1604
      %v1677 = vadd.f32 %v1371, %v1607
      %v1678 = vadd.f32 %v1372, %v1612
      %v1679 = vadd.f32 %v1373, %v1615
      %v1680 = vadd.f32 %v1374, %v1620
      %v1681 = vadd.f32 %v1375, %v1623
      %v1682 = vadd.f32 %v1376, %v1628
      %v1683 = vadd.f32 %v1377, %v1631
      %v1684 = vadd.f32 %v1378, %v1636
      %v1685 = vadd.f32 %v1379, %v1639
      %v1686 = vadd.f32 %v1380, %v1644
      %v1687 = vadd.f32 %v1381, %v1647
      %v1688 = vadd.f32 %v1382, %v1652
      %v1689 = vadd.f32 %v1383, %v1655
      %v1690 = vld [vmem:[%s498 + $0x1] sm:$0xff]
      %v1691 = vld [vmem:[%s498 + $0x9] sm:$0xff]
      %v1692 = vld [vmem:[%s498 + $0x19] sm:$0xff]
      %v1693 = vld [vmem:[%s498 + $0x21] sm:$0xff]
      %v1694 = vld [vmem:[%s498 + $0x31] sm:$0xff]
      %v1695 = vld [vmem:[%s498 + $0x39] sm:$0xff]
      %v1696 = vld [vmem:[%s498 + $0x49] sm:$0xff]
      %v1697 = vld [vmem:[%s498 + $0x51] sm:$0xff]
      %v1698 = vld [vmem:[%s498 + $0x61] sm:$0xff]
      %v1699 = vld [vmem:[%s498 + $0x69] sm:$0xff]
      %v1700 = vld [vmem:[%s498 + $0x79] sm:$0xff]
      %v1701 = vld [vmem:[%s498 + $0x81] sm:$0xff]
      %v1702 = vld [vmem:[%s498 + $0x91] sm:$0xff]
      %v1703 = vld [vmem:[%s498 + $0x99] sm:$0xff]
      %v1704 = vld [vmem:[%s498 + $0xa9] sm:$0xff]
      %v1705 = vld [vmem:[%s498 + $0xb1] sm:$0xff]
      %v1706 = vld [vmem:[%s498 + $0xc1] sm:$0xff]
      %v1707 = vld [vmem:[%s498 + $0xc9] sm:$0xff]
      %v1708 = vld [vmem:[%s498 + $0xd9] sm:$0xff]
      %v1709 = vld [vmem:[%s498 + $0xe1] sm:$0xff]
      %v1710 = vld [vmem:[%s498 + $0xf1] sm:$0xff]
      %v1711 = vld [vmem:[%s498 + $0xf9] sm:$0xff]
      %v1712 = vld [vmem:[%s498 + $0x109] sm:$0xff]
      %v1713 = vld [vmem:[%s498 + $0x111] sm:$0xff]
      %v1714 = vld [vmem:[%s498 + $0x121] sm:$0xff]
      %v1715 = vld [vmem:[%s498 + $0x129] sm:$0xff]
      %v1716 = vld [vmem:[%s498 + $0x139] sm:$0xff]
      %v1717 = vld [vmem:[%s498 + $0x141] sm:$0xff]
      %v1718 = vld [vmem:[%s498 + $0x151] sm:$0xff]
      %v1719 = vld [vmem:[%s498 + $0x159] sm:$0xff]
      %v1720 = vld [vmem:[%s498 + $0x169] sm:$0xff]
      %v1721 = vld [vmem:[%s498 + $0x171] sm:$0xff]
      %v1722 = vpack.c.bf16 %v1691, %v1690
      %v1723 = vpack.c.bf16 %v1693, %v1692
      %v1724 = vpack.c.bf16 %v1695, %v1694
      %v1725 = vpack.c.bf16 %v1697, %v1696
      %v1726 = vpack.c.bf16 %v1699, %v1698
      %v1727 = vpack.c.bf16 %v1701, %v1700
      %v1728 = vpack.c.bf16 %v1703, %v1702
      %v1729 = vpack.c.bf16 %v1705, %v1704
      %v1730 = vpack.c.bf16 %v1707, %v1706
      %v1731 = vpack.c.bf16 %v1709, %v1708
      %v1732 = vpack.c.bf16 %v1711, %v1710
      %v1733 = vpack.c.bf16 %v1713, %v1712
      %v1734 = vpack.c.bf16 %v1715, %v1714
      %v1735 = vpack.c.bf16 %v1717, %v1716
      %v1736 = vpack.c.bf16 %v1719, %v1718
      %v1737 = vpack.c.bf16 %v1721, %v1720
      %s1738 = scalar_lea.vmem %s3, 256
      %v1739 = vld [vmem:[%s1738] sm:$0xf]
      %v1740 = vld [vmem:[%s1738 + $0x4] sm:$0xf]
      %v1741 = vld [vmem:[%s1738 + $0x8] sm:$0xf]
      %v1742 = vld [vmem:[%s1738 + $0xc] sm:$0xf]
      %v1743 = vld [vmem:[%s1738 + $0x10] sm:$0xf]
      %v1744 = vld [vmem:[%s1738 + $0x14] sm:$0xf]
      %v1745 = vld [vmem:[%s1738 + $0x18] sm:$0xf]
      %v1746 = vld [vmem:[%s1738 + $0x1c] sm:$0xf]
      %v1747 = vld [vmem:[%s1738 + $0x20] sm:$0xf]
      %v1748 = vld [vmem:[%s1738 + $0x24] sm:$0xf]
      %v1749 = vld [vmem:[%s1738 + $0x28] sm:$0xf]
      %v1750 = vld [vmem:[%s1738 + $0x2c] sm:$0xf]
      %v1751 = vld [vmem:[%s1738 + $0x30] sm:$0xf]
      %v1752 = vld [vmem:[%s1738 + $0x34] sm:$0xf]
      %v1753 = vld [vmem:[%s1738 + $0x38] sm:$0xf]
      %v1754 = vld [vmem:[%s1738 + $0x3c] sm:$0xf]
      %v1771 = vunpack.c.l.b16 %v1739
      %v1772 = vunpack.c.l.b16 %v1740
      %v1773 = vunpack.c.l.b16 %v1741
      %v1774 = vunpack.c.l.b16 %v1742
      %v1775 = vunpack.c.l.b16 %v1743
      %v1776 = vunpack.c.l.b16 %v1744
      %v1777 = vunpack.c.l.b16 %v1745
      %v1778 = vunpack.c.l.b16 %v1746
      %v1779 = vunpack.c.l.b16 %v1747
      %v1780 = vunpack.c.l.b16 %v1748
      %v1781 = vunpack.c.l.b16 %v1749
      %v1782 = vunpack.c.l.b16 %v1750
      %v1783 = vunpack.c.l.b16 %v1751
      %v1784 = vunpack.c.l.b16 %v1752
      %v1785 = vunpack.c.l.b16 %v1753
      %v1786 = vunpack.c.l.b16 %v1754
      %v1787 = vpack.c.b16 %v1772, %v1771
      %v1788 = vpack.c.b16 %v1774, %v1773
      %v1789 = vpack.c.b16 %v1776, %v1775
      %v1790 = vpack.c.b16 %v1778, %v1777
      %v1791 = vpack.c.b16 %v1780, %v1779
      %v1792 = vpack.c.b16 %v1782, %v1781
      %v1793 = vpack.c.b16 %v1784, %v1783
      %v1794 = vpack.c.b16 %v1786, %v1785
      %1803 = vmatprep.subr.bf16.mxu0 0
      %1804 = vmatpush1.bf16.msra.mxu0 %v1787
      %1805 = vmatprep.subr.bf16.mxu0 0
      %1806 = vmatpush1.bf16.msra.mxu0 %v1788
      %1807 = vmatprep.subr.bf16.mxu0 0
      %1808 = vmatpush1.bf16.msra.mxu0 %v1789
      %1809 = vmatprep.subr.bf16.mxu0 0
      %1810 = vmatpush1.bf16.msra.mxu0 %v1790
      %1811 = vmatprep.subr.bf16.mxu0 0
      %1812 = vmatpush1.bf16.msra.mxu0 %v1791
      %1813 = vmatprep.subr.bf16.mxu0 0
      %1814 = vmatpush1.bf16.msra.mxu0 %v1792
      %1815 = vmatprep.subr.bf16.mxu0 0
      %1816 = vmatpush1.bf16.msra.mxu0 %v1793
      %1817 = vmatprep.subr.bf16.mxu0 0
      %1818 = vmatpush1.bf16.msra.mxu0 %v1794
      %1819 = vmatprep.subr.bf16.mxu0 0
      %1820 = vmatpush1.bf16.msra.mxu0 0
      %1821 = vmatprep.subr.bf16.mxu0 0
      %1822 = vmatpush1.bf16.msra.mxu0 0
      %1823 = vmatprep.subr.bf16.mxu0 0
      %1824 = vmatpush1.bf16.msra.mxu0 0
      %1825 = vmatprep.subr.bf16.mxu0 0
      %1826 = vmatpush1.bf16.msra.mxu0 0
      %1827 = vmatprep.subr.bf16.mxu0 0
      %1828 = vmatpush1.bf16.msra.mxu0 0
      %1829 = vmatprep.subr.bf16.mxu0 0
      %1830 = vmatpush1.bf16.msra.mxu0 0
      %1831 = vmatprep.subr.bf16.mxu0 0
      %1832 = vmatpush1.bf16.msra.mxu0 0
      %1833 = vmatprep.subr.bf16.mxu0 0
      %1834 = vmatpush1.bf16.msra.mxu0 0
      %1835 = vmatprep.mubr.bf16.mxu0 0
      %1836 = vmatmul.mubr.bf16.gmra.mrb[0].mxu0 %v1722
      %v1837 = vpop.f32.mrb[0].mxu0
      %v1838 = vadd.f32 0.0, %v1837
      %v1839 = vpop.f32.mrb[0].mxu0
      %v1840 = vpop.f32.mrb[0].mxu0
      %v1841 = vadd.f32 0.0, %v1840
      %v1842 = vpop.f32.mrb[0].mxu0
      %1843 = vmatprep.mubr.bf16.mxu0 0
      %1844 = vmatmul.mubr.bf16.gmra.mrb[0].mxu0 %v1723
      %v1845 = vpop.f32.mrb[0].mxu0
      %v1846 = vadd.f32 0.0, %v1845
      %v1847 = vpop.f32.mrb[0].mxu0
      %v1848 = vpop.f32.mrb[0].mxu0
      %v1849 = vadd.f32 0.0, %v1848
      %v1850 = vpop.f32.mrb[0].mxu0
      %1851 = vmatprep.mubr.bf16.mxu0 0
      %1852 = vmatmul.mubr.bf16.gmra.mrb[0].mxu0 %v1724
      %v1853 = vpop.f32.mrb[0].mxu0
      %v1854 = vadd.f32 0.0, %v1853
      %v1855 = vpop.f32.mrb[0].mxu0
      %v1856 = vpop.f32.mrb[0].mxu0
      %v1857 = vadd.f32 0.0, %v1856
      %v1858 = vpop.f32.mrb[0].mxu0
      %1859 = vmatprep.mubr.bf16.mxu0 0
      %1860 = vmatmul.mubr.bf16.gmra.mrb[0].mxu0 %v1725
      %v1861 = vpop.f32.mrb[0].mxu0
      %v1862 = vadd.f32 0.0, %v1861
      %v1863 = vpop.f32.mrb[0].mxu0
      %v1864 = vpop.f32.mrb[0].mxu0
      %v1865 = vadd.f32 0.0, %v1864
      %v1866 = vpop.f32.mrb[0].mxu0
      %1867 = vmatprep.mubr.bf16.mxu0 0
      %1868 = vmatmul.mubr.bf16.gmra.mrb[0].mxu0 %v1726
      %v1869 = vpop.f32.mrb[0].mxu0
      %v1870 = vadd.f32 0.0, %v1869
      %v1871 = vpop.f32.mrb[0].mxu0
      %v1872 = vpop.f32.mrb[0].mxu0
      %v1873 = vadd.f32 0.0, %v1872
      %v1874 = vpop.f32.mrb[0].mxu0
      %1875 = vmatprep.mubr.bf16.mxu0 0
      %1876 = vmatmul.mubr.bf16.gmra.mrb[0].mxu0 %v1727
      %v1877 = vpop.f32.mrb[0].mxu0
      %v1878 = vadd.f32 0.0, %v1877
      %v1879 = vpop.f32.mrb[0].mxu0
      %v1880 = vpop.f32.mrb[0].mxu0
      %v1881 = vadd.f32 0.0, %v1880
      %v1882 = vpop.f32.mrb[0].mxu0
      %1883 = vmatprep.mubr.bf16.mxu0 0
      %1884 = vmatmul.mubr.bf16.gmra.mrb[0].mxu0 %v1728
      %v1885 = vpop.f32.mrb[0].mxu0
      %v1886 = vadd.f32 0.0, %v1885
      %v1887 = vpop.f32.mrb[0].mxu0
      %v1888 = vpop.f32.mrb[0].mxu0
      %v1889 = vadd.f32 0.0, %v1888
      %v1890 = vpop.f32.mrb[0].mxu0
      %1891 = vmatprep.mubr.bf16.mxu0 0
      %1892 = vmatmul.mubr.bf16.gmra.mrb[0].mxu0 %v1729
      %v1893 = vpop.f32.mrb[0].mxu0
      %v1894 = vadd.f32 0.0, %v1893
      %v1895 = vpop.f32.mrb[0].mxu0
      %v1896 = vpop.f32.mrb[0].mxu0
      %v1897 = vadd.f32 0.0, %v1896
      %v1898 = vpop.f32.mrb[0].mxu0
      %1899 = vmatprep.mubr.bf16.mxu0 0
      %1900 = vmatmul.mubr.bf16.gmra.mrb[0].mxu0 %v1730
      %v1901 = vpop.f32.mrb[0].mxu0
      %v1902 = vadd.f32 0.0, %v1901
      %v1903 = vpop.f32.mrb[0].mxu0
      %v1904 = vpop.f32.mrb[0].mxu0
      %v1905 = vadd.f32 0.0, %v1904
      %v1906 = vpop.f32.mrb[0].mxu0
      %1907 = vmatprep.mubr.bf16.mxu0 0
      %1908 = vmatmul.mubr.bf16.gmra.mrb[0].mxu0 %v1731
      %v1909 = vpop.f32.mrb[0].mxu0
      %v1910 = vadd.f32 0.0, %v1909
      %v1911 = vpop.f32.mrb[0].mxu0
      %v1912 = vpop.f32.mrb[0].mxu0
      %v1913 = vadd.f32 0.0, %v1912
      %v1914 = vpop.f32.mrb[0].mxu0
      %1915 = vmatprep.mubr.bf16.mxu0 0
      %1916 = vmatmul.mubr.bf16.gmra.mrb[0].mxu0 %v1732
      %v1917 = vpop.f32.mrb[0].mxu0
      %v1918 = vadd.f32 0.0, %v1917
      %v1919 = vpop.f32.mrb[0].mxu0
      %v1920 = vpop.f32.mrb[0].mxu0
      %v1921 = vadd.f32 0.0, %v1920
      %v1922 = vpop.f32.mrb[0].mxu0
      %1923 = vmatprep.mubr.bf16.mxu0 0
      %1924 = vmatmul.mubr.bf16.gmra.mrb[0].mxu0 %v1733
      %v1925 = vpop.f32.mrb[0].mxu0
      %v1926 = vadd.f32 0.0, %v1925
      %v1927 = vpop.f32.mrb[0].mxu0
      %v1928 = vpop.f32.mrb[0].mxu0
      %v1929 = vadd.f32 0.0, %v1928
      %v1930 = vpop.f32.mrb[0].mxu0
      %1931 = vmatprep.mubr.bf16.mxu0 0
      %1932 = vmatmul.mubr.bf16.gmra.mrb[0].mxu0 %v1734
      %v1933 = vpop.f32.mrb[0].mxu0
      %v1934 = vadd.f32 0.0, %v1933
      %v1935 = vpop.f32.mrb[0].mxu0
      %v1936 = vpop.f32.mrb[0].mxu0
      %v1937 = vadd.f32 0.0, %v1936
      %v1938 = vpop.f32.mrb[0].mxu0
      %1939 = vmatprep.mubr.bf16.mxu0 0
      %1940 = vmatmul.mubr.bf16.gmra.mrb[0].mxu0 %v1735
      %v1941 = vpop.f32.mrb[0].mxu0
      %v1942 = vadd.f32 0.0, %v1941
      %v1943 = vpop.f32.mrb[0].mxu0
      %v1944 = vpop.f32.mrb[0].mxu0
      %v1945 = vadd.f32 0.0, %v1944
      %v1946 = vpop.f32.mrb[0].mxu0
      %1947 = vmatprep.mubr.bf16.mxu0 0
      %1948 = vmatmul.mubr.bf16.gmra.mrb[0].mxu0 %v1736
      %v1949 = vpop.f32.mrb[0].mxu0
      %v1950 = vadd.f32 0.0, %v1949
      %v1951 = vpop.f32.mrb[0].mxu0
      %v1952 = vpop.f32.mrb[0].mxu0
      %v1953 = vadd.f32 0.0, %v1952
      %v1954 = vpop.f32.mrb[0].mxu0
      %1955 = vmatprep.mubr.bf16.mxu0 0
      %1956 = vmatmul.mubr.bf16.gmra.mrb[0].mxu0 %v1737
      %v1957 = vpop.f32.mrb[0].mxu0
      %v1958 = vadd.f32 0.0, %v1957
      %v1959 = vpop.f32.mrb[0].mxu0
      %v1960 = vpop.f32.mrb[0].mxu0
      %v1961 = vadd.f32 0.0, %v1960
      %v1962 = vpop.f32.mrb[0].mxu0
      %1963 = vdwg.mxu0
      %v1964 = vadd.f32 %v1658, %v1838
      %v1965 = vadd.f32 %v1659, %v1841
      %v1966 = vadd.f32 %v1660, %v1846
      %v1967 = vadd.f32 %v1661, %v1849
      %v1968 = vadd.f32 %v1662, %v1854
      %v1969 = vadd.f32 %v1663, %v1857
      %v1970 = vadd.f32 %v1664, %v1862
      %v1971 = vadd.f32 %v1665, %v1865
      %v1972 = vadd.f32 %v1666, %v1870
      %v1973 = vadd.f32 %v1667, %v1873
      %v1974 = vadd.f32 %v1668, %v1878
      %v1975 = vadd.f32 %v1669, %v1881
      %v1976 = vadd.f32 %v1670, %v1886
      %v1977 = vadd.f32 %v1671, %v1889
      %v1978 = vadd.f32 %v1672, %v1894
      %v1979 = vadd.f32 %v1673, %v1897
      %v1980 = vadd.f32 %v1674, %v1902
      %v1981 = vadd.f32 %v1675, %v1905
      %v1982 = vadd.f32 %v1676, %v1910
      %v1983 = vadd.f32 %v1677, %v1913
      %v1984 = vadd.f32 %v1678, %v1918
      %v1985 = vadd.f32 %v1679, %v1921
      %v1986 = vadd.f32 %v1680, %v1926
      %v1987 = vadd.f32 %v1681, %v1929
      %v1988 = vadd.f32 %v1682, %v1934
      %v1989 = vadd.f32 %v1683, %v1937
      %v1990 = vadd.f32 %v1684, %v1942
      %v1991 = vadd.f32 %v1685, %v1945
      %v1992 = vadd.f32 %v1686, %v1950
      %v1993 = vadd.f32 %v1687, %v1953
      %v1994 = vadd.f32 %v1688, %v1958
      %v1995 = vadd.f32 %v1689, %v1961
      %v1996 = vld [vmem:[%s498 + $0x2] sm:$0xff]
      %v1997 = vld [vmem:[%s498 + $0xa] sm:$0xff]
      %v1998 = vld [vmem:[%s498 + $0x1a] sm:$0xff]
      %v1999 = vld [vmem:[%s498 + $0x22] sm:$0xff]
      %v2000 = vld [vmem:[%s498 + $0x32] sm:$0xff]
      %v2001 = vld [vmem:[%s498 + $0x3a] sm:$0xff]
      %v2002 = vld [vmem:[%s498 + $0x4a] sm:$0xff]
      %v2003 = vld [vmem:[%s498 + $0x52] sm:$0xff]
      %v2004 = vld [vmem:[%s498 + $0x62] sm:$0xff]
      %v2005 = vld [vmem:[%s498 + $0x6a] sm:$0xff]
      %v2006 = vld [vmem:[%s498 + $0x7a] sm:$0xff]
      %v2007 = vld [vmem:[%s498 + $0x82] sm:$0xff]
      %v2008 = vld [vmem:[%s498 + $0x92] sm:$0xff]
      %v2009 = vld [vmem:[%s498 + $0x9a] sm:$0xff]
      %v2010 = vld [vmem:[%s498 + $0xaa] sm:$0xff]
      %v2011 = vld [vmem:[%s498 + $0xb2] sm:$0xff]
      %v2012 = vld [vmem:[%s498 + $0xc2] sm:$0xff]
      %v2013 = vld [vmem:[%s498 + $0xca] sm:$0xff]
      %v2014 = vld [vmem:[%s498 + $0xda] sm:$0xff]
      %v2015 = vld [vmem:[%s498 + $0xe2] sm:$0xff]
      %v2016 = vld [vmem:[%s498 + $0xf2] sm:$0xff]
      %v2017 = vld [vmem:[%s498 + $0xfa] sm:$0xff]
      %v2018 = vld [vmem:[%s498 + $0x10a] sm:$0xff]
      %v2019 = vld [vmem:[%s498 + $0x112] sm:$0xff]
      %v2020 = vld [vmem:[%s498 + $0x122] sm:$0xff]
      %v2021 = vld [vmem:[%s498 + $0x12a] sm:$0xff]
      %v2022 = vld [vmem:[%s498 + $0x13a] sm:$0xff]
      %v2023 = vld [vmem:[%s498 + $0x142] sm:$0xff]
      %v2024 = vld [vmem:[%s498 + $0x152] sm:$0xff]
      %v2025 = vld [vmem:[%s498 + $0x15a] sm:$0xff]
      %v2026 = vld [vmem:[%s498 + $0x16a] sm:$0xff]
      %v2027 = vld [vmem:[%s498 + $0x172] sm:$0xff]
      %v2028 = vpack.c.bf16 %v1997, %v1996
      %v2029 = vpack.c.bf16 %v1999, %v1998
      %v2030 = vpack.c.bf16 %v2001, %v2000
      %v2031 = vpack.c.bf16 %v2003, %v2002
      %v2032 = vpack.c.bf16 %v2005, %v2004
      %v2033 = vpack.c.bf16 %v2007, %v2006
      %v2034 = vpack.c.bf16 %v2009, %v2008
      %v2035 = vpack.c.bf16 %v2011, %v2010
      %v2036 = vpack.c.bf16 %v2013, %v2012
      %v2037 = vpack.c.bf16 %v2015, %v2014
      %v2038 = vpack.c.bf16 %v2017, %v2016
      %v2039 = vpack.c.bf16 %v2019, %v2018
      %v2040 = vpack.c.bf16 %v2021, %v2020
      %v2041 = vpack.c.bf16 %v2023, %v2022
      %v2042 = vpack.c.bf16 %v2025, %v2024
      %v2043 = vpack.c.bf16 %v2027, %v2026
      %s2044 = scalar_lea.vmem %s3, 320
      %v2045 = vld [vmem:[%s2044] sm:$0xf]
      %v2046 = vld [vmem:[%s2044 + $0x4] sm:$0xf]
      %v2047 = vld [vmem:[%s2044 + $0x8] sm:$0xf]
      %v2048 = vld [vmem:[%s2044 + $0xc] sm:$0xf]
      %v2049 = vld [vmem:[%s2044 + $0x10] sm:$0xf]
      %v2050 = vld [vmem:[%s2044 + $0x14] sm:$0xf]
      %v2051 = vld [vmem:[%s2044 + $0x18] sm:$0xf]
      %v2052 = vld [vmem:[%s2044 + $0x1c] sm:$0xf]
      %v2053 = vld [vmem:[%s2044 + $0x20] sm:$0xf]
      %v2054 = vld [vmem:[%s2044 + $0x24] sm:$0xf]
      %v2055 = vld [vmem:[%s2044 + $0x28] sm:$0xf]
      %v2056 = vld [vmem:[%s2044 + $0x2c] sm:$0xf]
      %v2057 = vld [vmem:[%s2044 + $0x30] sm:$0xf]
      %v2058 = vld [vmem:[%s2044 + $0x34] sm:$0xf]
      %v2059 = vld [vmem:[%s2044 + $0x38] sm:$0xf]
      %v2060 = vld [vmem:[%s2044 + $0x3c] sm:$0xf]
      %v2077 = vunpack.c.l.b16 %v2045
      %v2078 = vunpack.c.l.b16 %v2046
      %v2079 = vunpack.c.l.b16 %v2047
      %v2080 = vunpack.c.l.b16 %v2048
      %v2081 = vunpack.c.l.b16 %v2049
      %v2082 = vunpack.c.l.b16 %v2050
      %v2083 = vunpack.c.l.b16 %v2051
      %v2084 = vunpack.c.l.b16 %v2052
      %v2085 = vunpack.c.l.b16 %v2053
      %v2086 = vunpack.c.l.b16 %v2054
      %v2087 = vunpack.c.l.b16 %v2055
      %v2088 = vunpack.c.l.b16 %v2056
      %v2089 = vunpack.c.l.b16 %v2057
      %v2090 = vunpack.c.l.b16 %v2058
      %v2091 = vunpack.c.l.b16 %v2059
      %v2092 = vunpack.c.l.b16 %v2060
      %v2093 = vpack.c.b16 %v2078, %v2077
      %v2094 = vpack.c.b16 %v2080, %v2079
      %v2095 = vpack.c.b16 %v2082, %v2081
      %v2096 = vpack.c.b16 %v2084, %v2083
      %v2097 = vpack.c.b16 %v2086, %v2085
      %v2098 = vpack.c.b16 %v2088, %v2087
      %v2099 = vpack.c.b16 %v2090, %v2089
      %v2100 = vpack.c.b16 %v2092, %v2091
      %2109 = vmatprep.subr.bf16.mxu0 0
      %2110 = vmatpush1.bf16.msra.mxu0 %v2093
      %2111 = vmatprep.subr.bf16.mxu0 0
      %2112 = vmatpush1.bf16.msra.mxu0 %v2094
      %2113 = vmatprep.subr.bf16.mxu0 0
      %2114 = vmatpush1.bf16.msra.mxu0 %v2095
      %2115 = vmatprep.subr.bf16.mxu0 0
      %2116 = vmatpush1.bf16.msra.mxu0 %v2096
      %2117 = vmatprep.subr.bf16.mxu0 0
      %2118 = vmatpush1.bf16.msra.mxu0 %v2097
      %2119 = vmatprep.subr.bf16.mxu0 0
      %2120 = vmatpush1.bf16.msra.mxu0 %v2098
      %2121 = vmatprep.subr.bf16.mxu0 0
      %2122 = vmatpush1.bf16.msra.mxu0 %v2099
      %2123 = vmatprep.subr.bf16.mxu0 0
      %2124 = vmatpush1.bf16.msra.mxu0 %v2100
      %2125 = vmatprep.subr.bf16.mxu0 0
      %2126 = vmatpush1.bf16.msra.mxu0 0
      %2127 = vmatprep.subr.bf16.mxu0 0
      %2128 = vmatpush1.bf16.msra.mxu0 0
      %2129 = vmatprep.subr.bf16.mxu0 0
      %2130 = vmatpush1.bf16.msra.mxu0 0
      %2131 = vmatprep.subr.bf16.mxu0 0
      %2132 = vmatpush1.bf16.msra.mxu0 0
      %2133 = vmatprep.subr.bf16.mxu0 0
      %2134 = vmatpush1.bf16.msra.mxu0 0
      %2135 = vmatprep.subr.bf16.mxu0 0
      %2136 = vmatpush1.bf16.msra.mxu0 0
      %2137 = vmatprep.subr.bf16.mxu0 0
      %2138 = vmatpush1.bf16.msra.mxu0 0
      %2139 = vmatprep.subr.bf16.mxu0 0
      %2140 = vmatpush1.bf16.msra.mxu0 0
      %2141 = vmatprep.mubr.bf16.mxu0 0
      %2142 = vmatmul.mubr.bf16.gmra.mrb[0].mxu0 %v2028
      %v2143 = vpop.f32.mrb[0].mxu0
      %v2144 = vadd.f32 0.0, %v2143
      %v2145 = vpop.f32.mrb[0].mxu0
      %v2146 = vpop.f32.mrb[0].mxu0
      %v2147 = vadd.f32 0.0, %v2146
      %v2148 = vpop.f32.mrb[0].mxu0
      %2149 = vmatprep.mubr.bf16.mxu0 0
      %2150 = vmatmul.mubr.bf16.gmra.mrb[0].mxu0 %v2029
      %v2151 = vpop.f32.mrb[0].mxu0
      %v2152 = vadd.f32 0.0, %v2151
      %v2153 = vpop.f32.mrb[0].mxu0
      %v2154 = vpop.f32.mrb[0].mxu0
      %v2155 = vadd.f32 0.0, %v2154
      %v2156 = vpop.f32.mrb[0].mxu0
      %2157 = vmatprep.mubr.bf16.mxu0 0
      %2158 = vmatmul.mubr.bf16.gmra.mrb[0].mxu0 %v2030
      %v2159 = vpop.f32.mrb[0].mxu0
      %v2160 = vadd.f32 0.0, %v2159
      %v2161 = vpop.f32.mrb[0].mxu0
      %v2162 = vpop.f32.mrb[0].mxu0
      %v2163 = vadd.f32 0.0, %v2162
      %v2164 = vpop.f32.mrb[0].mxu0
      %2165 = vmatprep.mubr.bf16.mxu0 0
      %2166 = vmatmul.mubr.bf16.gmra.mrb[0].mxu0 %v2031
      %v2167 = vpop.f32.mrb[0].mxu0
      %v2168 = vadd.f32 0.0, %v2167
      %v2169 = vpop.f32.mrb[0].mxu0
      %v2170 = vpop.f32.mrb[0].mxu0
      %v2171 = vadd.f32 0.0, %v2170
      %v2172 = vpop.f32.mrb[0].mxu0
      %2173 = vmatprep.mubr.bf16.mxu0 0
      %2174 = vmatmul.mubr.bf16.gmra.mrb[0].mxu0 %v2032
      %v2175 = vpop.f32.mrb[0].mxu0
      %v2176 = vadd.f32 0.0, %v2175
      %v2177 = vpop.f32.mrb[0].mxu0
      %v2178 = vpop.f32.mrb[0].mxu0
      %v2179 = vadd.f32 0.0, %v2178
      %v2180 = vpop.f32.mrb[0].mxu0
      %2181 = vmatprep.mubr.bf16.mxu0 0
      %2182 = vmatmul.mubr.bf16.gmra.mrb[0].mxu0 %v2033
      %v2183 = vpop.f32.mrb[0].mxu0
      %v2184 = vadd.f32 0.0, %v2183
      %v2185 = vpop.f32.mrb[0].mxu0
      %v2186 = vpop.f32.mrb[0].mxu0
      %v2187 = vadd.f32 0.0, %v2186
      %v2188 = vpop.f32.mrb[0].mxu0
      %2189 = vmatprep.mubr.bf16.mxu0 0
      %2190 = vmatmul.mubr.bf16.gmra.mrb[0].mxu0 %v2034
      %v2191 = vpop.f32.mrb[0].mxu0
      %v2192 = vadd.f32 0.0, %v2191
      %v2193 = vpop.f32.mrb[0].mxu0
      %v2194 = vpop.f32.mrb[0].mxu0
      %v2195 = vadd.f32 0.0, %v2194
      %v2196 = vpop.f32.mrb[0].mxu0
      %2197 = vmatprep.mubr.bf16.mxu0 0
      %2198 = vmatmul.mubr.bf16.gmra.mrb[0].mxu0 %v2035
      %v2199 = vpop.f32.mrb[0].mxu0
      %v2200 = vadd.f32 0.0, %v2199
      %v2201 = vpop.f32.mrb[0].mxu0
      %v2202 = vpop.f32.mrb[0].mxu0
      %v2203 = vadd.f32 0.0, %v2202
      %v2204 = vpop.f32.mrb[0].mxu0
      %2205 = vmatprep.mubr.bf16.mxu0 0
      %2206 = vmatmul.mubr.bf16.gmra.mrb[0].mxu0 %v2036
      %v2207 = vpop.f32.mrb[0].mxu0
      %v2208 = vadd.f32 0.0, %v2207
      %v2209 = vpop.f32.mrb[0].mxu0
      %v2210 = vpop.f32.mrb[0].mxu0
      %v2211 = vadd.f32 0.0, %v2210
      %v2212 = vpop.f32.mrb[0].mxu0
      %2213 = vmatprep.mubr.bf16.mxu0 0
      %2214 = vmatmul.mubr.bf16.gmra.mrb[0].mxu0 %v2037
      %v2215 = vpop.f32.mrb[0].mxu0
      %v2216 = vadd.f32 0.0, %v2215
      %v2217 = vpop.f32.mrb[0].mxu0
      %v2218 = vpop.f32.mrb[0].mxu0
      %v2219 = vadd.f32 0.0, %v2218
      %v2220 = vpop.f32.mrb[0].mxu0
      %2221 = vmatprep.mubr.bf16.mxu0 0
      %2222 = vmatmul.mubr.bf16.gmra.mrb[0].mxu0 %v2038
      %v2223 = vpop.f32.mrb[0].mxu0
      %v2224 = vadd.f32 0.0, %v2223
      %v2225 = vpop.f32.mrb[0].mxu0
      %v2226 = vpop.f32.mrb[0].mxu0
      %v2227 = vadd.f32 0.0, %v2226
      %v2228 = vpop.f32.mrb[0].mxu0
      %2229 = vmatprep.mubr.bf16.mxu0 0
      %2230 = vmatmul.mubr.bf16.gmra.mrb[0].mxu0 %v2039
      %v2231 = vpop.f32.mrb[0].mxu0
      %v2232 = vadd.f32 0.0, %v2231
      %v2233 = vpop.f32.mrb[0].mxu0
      %v2234 = vpop.f32.mrb[0].mxu0
      %v2235 = vadd.f32 0.0, %v2234
      %v2236 = vpop.f32.mrb[0].mxu0
      %2237 = vmatprep.mubr.bf16.mxu0 0
      %2238 = vmatmul.mubr.bf16.gmra.mrb[0].mxu0 %v2040
      %v2239 = vpop.f32.mrb[0].mxu0
      %v2240 = vadd.f32 0.0, %v2239
      %v2241 = vpop.f32.mrb[0].mxu0
      %v2242 = vpop.f32.mrb[0].mxu0
      %v2243 = vadd.f32 0.0, %v2242
      %v2244 = vpop.f32.mrb[0].mxu0
      %2245 = vmatprep.mubr.bf16.mxu0 0
      %2246 = vmatmul.mubr.bf16.gmra.mrb[0].mxu0 %v2041
      %v2247 = vpop.f32.mrb[0].mxu0
      %v2248 = vadd.f32 0.0, %v2247
      %v2249 = vpop.f32.mrb[0].mxu0
      %v2250 = vpop.f32.mrb[0].mxu0
      %v2251 = vadd.f32 0.0, %v2250
      %v2252 = vpop.f32.mrb[0].mxu0
      %2253 = vmatprep.mubr.bf16.mxu0 0
      %2254 = vmatmul.mubr.bf16.gmra.mrb[0].mxu0 %v2042
      %v2255 = vpop.f32.mrb[0].mxu0
      %v2256 = vadd.f32 0.0, %v2255
      %v2257 = vpop.f32.mrb[0].mxu0
      %v2258 = vpop.f32.mrb[0].mxu0
      %v2259 = vadd.f32 0.0, %v2258
      %v2260 = vpop.f32.mrb[0].mxu0
      %2261 = vmatprep.mubr.bf16.mxu0 0
      %2262 = vmatmul.mubr.bf16.gmra.mrb[0].mxu0 %v2043
      %v2263 = vpop.f32.mrb[0].mxu0
      %v2264 = vadd.f32 0.0, %v2263
      %v2265 = vpop.f32.mrb[0].mxu0
      %v2266 = vpop.f32.mrb[0].mxu0
      %v2267 = vadd.f32 0.0, %v2266
      %v2268 = vpop.f32.mrb[0].mxu0
      %2269 = vdwg.mxu0
      %v2270 = vadd.f32 %v1964, %v2144
      %v2271 = vadd.f32 %v1965, %v2147
      %v2272 = vadd.f32 %v1966, %v2152
      %v2273 = vadd.f32 %v1967, %v2155
      %v2274 = vadd.f32 %v1968, %v2160
      %v2275 = vadd.f32 %v1969, %v2163
      %v2276 = vadd.f32 %v1970, %v2168
      %v2277 = vadd.f32 %v1971, %v2171
      %v2278 = vadd.f32 %v1972, %v2176
      %v2279 = vadd.f32 %v1973, %v2179
      %v2280 = vadd.f32 %v1974, %v2184
      %v2281 = vadd.f32 %v1975, %v2187
      %v2282 = vadd.f32 %v1976, %v2192
      %v2283 = vadd.f32 %v1977, %v2195
      %v2284 = vadd.f32 %v1978, %v2200
      %v2285 = vadd.f32 %v1979, %v2203
      %v2286 = vadd.f32 %v1980, %v2208
      %v2287 = vadd.f32 %v1981, %v2211
      %v2288 = vadd.f32 %v1982, %v2216
      %v2289 = vadd.f32 %v1983, %v2219
      %v2290 = vadd.f32 %v1984, %v2224
      %v2291 = vadd.f32 %v1985, %v2227
      %v2292 = vadd.f32 %v1986, %v2232
      %v2293 = vadd.f32 %v1987, %v2235
      %v2294 = vadd.f32 %v1988, %v2240
      %v2295 = vadd.f32 %v1989, %v2243
      %v2296 = vadd.f32 %v1990, %v2248
      %v2297 = vadd.f32 %v1991, %v2251
      %v2298 = vadd.f32 %v1992, %v2256
      %v2299 = vadd.f32 %v1993, %v2259
      %v2300 = vadd.f32 %v1994, %v2264
      %v2301 = vadd.f32 %v1995, %v2267
      %s2302 = scalar_lea.vmem [#allocation2], 48
      %v2303 = vld [vmem:[%s2302] sm:$0xff]
      %v2304 = vld [vmem:[%s2302 + $0x8] sm:$0xff]
      %v2305 = vld [vmem:[%s2302 + $0x18] sm:$0xff]
      %v2306 = vld [vmem:[%s2302 + $0x20] sm:$0xff]
      %v2307 = vld [vmem:[%s2302 + $0x30] sm:$0xff]
      %v2308 = vld [vmem:[%s2302 + $0x38] sm:$0xff]
      %v2309 = vld [vmem:[%s2302 + $0x48] sm:$0xff]
      %v2310 = vld [vmem:[%s2302 + $0x50] sm:$0xff]
      %v2311 = vld [vmem:[%s2302 + $0x60] sm:$0xff]
      %v2312 = vld [vmem:[%s2302 + $0x68] sm:$0xff]
      %v2313 = vld [vmem:[%s2302 + $0x78] sm:$0xff]
      %v2314 = vld [vmem:[%s2302 + $0x80] sm:$0xff]
      %v2315 = vld [vmem:[%s2302 + $0x90] sm:$0xff]
      %v2316 = vld [vmem:[%s2302 + $0x98] sm:$0xff]
      %v2317 = vld [vmem:[%s2302 + $0xa8] sm:$0xff]
      %v2318 = vld [vmem:[%s2302 + $0xb0] sm:$0xff]
      %v2319 = vld [vmem:[%s2302 + $0xc0] sm:$0xff]
      %v2320 = vld [vmem:[%s2302 + $0xc8] sm:$0xff]
      %v2321 = vld [vmem:[%s2302 + $0xd8] sm:$0xff]
      %v2322 = vld [vmem:[%s2302 + $0xe0] sm:$0xff]
      %v2323 = vld [vmem:[%s2302 + $0xf0] sm:$0xff]
      %v2324 = vld [vmem:[%s2302 + $0xf8] sm:$0xff]
      %v2325 = vld [vmem:[%s2302 + $0x108] sm:$0xff]
      %v2326 = vld [vmem:[%s2302 + $0x110] sm:$0xff]
      %v2327 = vld [vmem:[%s2302 + $0x120] sm:$0xff]
      %v2328 = vld [vmem:[%s2302 + $0x128] sm:$0xff]
      %v2329 = vld [vmem:[%s2302 + $0x138] sm:$0xff]
      %v2330 = vld [vmem:[%s2302 + $0x140] sm:$0xff]
      %v2331 = vld [vmem:[%s2302 + $0x150] sm:$0xff]
      %v2332 = vld [vmem:[%s2302 + $0x158] sm:$0xff]
      %v2333 = vld [vmem:[%s2302 + $0x168] sm:$0xff]
      %v2334 = vld [vmem:[%s2302 + $0x170] sm:$0xff]
      %v2335 = vpack.c.bf16 %v2304, %v2303
      %v2336 = vpack.c.bf16 %v2306, %v2305
      %v2337 = vpack.c.bf16 %v2308, %v2307
      %v2338 = vpack.c.bf16 %v2310, %v2309
      %v2339 = vpack.c.bf16 %v2312, %v2311
      %v2340 = vpack.c.bf16 %v2314, %v2313
      %v2341 = vpack.c.bf16 %v2316, %v2315
      %v2342 = vpack.c.bf16 %v2318, %v2317
      %v2343 = vpack.c.bf16 %v2320, %v2319
      %v2344 = vpack.c.bf16 %v2322, %v2321
      %v2345 = vpack.c.bf16 %v2324, %v2323
      %v2346 = vpack.c.bf16 %v2326, %v2325
      %v2347 = vpack.c.bf16 %v2328, %v2327
      %v2348 = vpack.c.bf16 %v2330, %v2329
      %v2349 = vpack.c.bf16 %v2332, %v2331
      %v2350 = vpack.c.bf16 %v2334, %v2333
      %s2351 = scalar_lea.vmem %s3, 384
      %v2352 = vld [vmem:[%s2351] sm:$0xf]
      %v2353 = vld [vmem:[%s2351 + $0x4] sm:$0xf]
      %v2354 = vld [vmem:[%s2351 + $0x8] sm:$0xf]
      %v2355 = vld [vmem:[%s2351 + $0xc] sm:$0xf]
      %v2356 = vld [vmem:[%s2351 + $0x10] sm:$0xf]
      %v2357 = vld [vmem:[%s2351 + $0x14] sm:$0xf]
      %v2358 = vld [vmem:[%s2351 + $0x18] sm:$0xf]
      %v2359 = vld [vmem:[%s2351 + $0x1c] sm:$0xf]
      %v2360 = vld [vmem:[%s2351 + $0x20] sm:$0xf]
      %v2361 = vld [vmem:[%s2351 + $0x24] sm:$0xf]
      %v2362 = vld [vmem:[%s2351 + $0x28] sm:$0xf]
      %v2363 = vld [vmem:[%s2351 + $0x2c] sm:$0xf]
      %v2364 = vld [vmem:[%s2351 + $0x30] sm:$0xf]
      %v2365 = vld [vmem:[%s2351 + $0x34] sm:$0xf]
      %v2366 = vld [vmem:[%s2351 + $0x38] sm:$0xf]
      %v2367 = vld [vmem:[%s2351 + $0x3c] sm:$0xf]
      %v2384 = vunpack.c.l.b16 %v2352
      %v2385 = vunpack.c.l.b16 %v2353
      %v2386 = vunpack.c.l.b16 %v2354
      %v2387 = vunpack.c.l.b16 %v2355
      %v2388 = vunpack.c.l.b16 %v2356
      %v2389 = vunpack.c.l.b16 %v2357
      %v2390 = vunpack.c.l.b16 %v2358
      %v2391 = vunpack.c.l.b16 %v2359
      %v2392 = vunpack.c.l.b16 %v2360
      %v2393 = vunpack.c.l.b16 %v2361
      %v2394 = vunpack.c.l.b16 %v2362
      %v2395 = vunpack.c.l.b16 %v2363
      %v2396 = vunpack.c.l.b16 %v2364
      %v2397 = vunpack.c.l.b16 %v2365
      %v2398 = vunpack.c.l.b16 %v2366
      %v2399 = vunpack.c.l.b16 %v2367
      %v2400 = vpack.c.b16 %v2385, %v2384
      %v2401 = vpack.c.b16 %v2387, %v2386
      %v2402 = vpack.c.b16 %v2389, %v2388
      %v2403 = vpack.c.b16 %v2391, %v2390
      %v2404 = vpack.c.b16 %v2393, %v2392
      %v2405 = vpack.c.b16 %v2395, %v2394
      %v2406 = vpack.c.b16 %v2397, %v2396
      %v2407 = vpack.c.b16 %v2399, %v2398
      %2416 = vmatprep.subr.bf16.mxu0 0
      %2417 = vmatpush1.bf16.msra.mxu0 %v2400
      %2418 = vmatprep.subr.bf16.mxu0 0
      %2419 = vmatpush1.bf16.msra.mxu0 %v2401
      %2420 = vmatprep.subr.bf16.mxu0 0
      %2421 = vmatpush1.bf16.msra.mxu0 %v2402
      %2422 = vmatprep.subr.bf16.mxu0 0
      %2423 = vmatpush1.bf16.msra.mxu0 %v2403
      %2424 = vmatprep.subr.bf16.mxu0 0
      %2425 = vmatpush1.bf16.msra.mxu0 %v2404
      %2426 = vmatprep.subr.bf16.mxu0 0
      %2427 = vmatpush1.bf16.msra.mxu0 %v2405
      %2428 = vmatprep.subr.bf16.mxu0 0
      %2429 = vmatpush1.bf16.msra.mxu0 %v2406
      %2430 = vmatprep.subr.bf16.mxu0 0
      %2431 = vmatpush1.bf16.msra.mxu0 %v2407
      %2432 = vmatprep.subr.bf16.mxu0 0
      %2433 = vmatpush1.bf16.msra.mxu0 0
      %2434 = vmatprep.subr.bf16.mxu0 0
      %2435 = vmatpush1.bf16.msra.mxu0 0
      %2436 = vmatprep.subr.bf16.mxu0 0
      %2437 = vmatpush1.bf16.msra.mxu0 0
      %2438 = vmatprep.subr.bf16.mxu0 0
      %2439 = vmatpush1.bf16.msra.mxu0 0
      %2440 = vmatprep.subr.bf16.mxu0 0
      %2441 = vmatpush1.bf16.msra.mxu0 0
      %2442 = vmatprep.subr.bf16.mxu0 0
      %2443 = vmatpush1.bf16.msra.mxu0 0
      %2444 = vmatprep.subr.bf16.mxu0 0
      %2445 = vmatpush1.bf16.msra.mxu0 0
      %2446 = vmatprep.subr.bf16.mxu0 0
      %2447 = vmatpush1.bf16.msra.mxu0 0
      %2448 = vmatprep.mubr.bf16.mxu0 0
      %2449 = vmatmul.mubr.bf16.gmra.mrb[0].mxu0 %v2335
      %v2450 = vpop.f32.mrb[0].mxu0
      %v2451 = vadd.f32 0.0, %v2450
      %v2452 = vpop.f32.mrb[0].mxu0
      %v2453 = vpop.f32.mrb[0].mxu0
      %v2454 = vadd.f32 0.0, %v2453
      %v2455 = vpop.f32.mrb[0].mxu0
      %2456 = vmatprep.mubr.bf16.mxu0 0
      %2457 = vmatmul.mubr.bf16.gmra.mrb[0].mxu0 %v2336
      %v2458 = vpop.f32.mrb[0].mxu0
      %v2459 = vadd.f32 0.0, %v2458
      %v2460 = vpop.f32.mrb[0].mxu0
      %v2461 = vpop.f32.mrb[0].mxu0
      %v2462 = vadd.f32 0.0, %v2461
      %v2463 = vpop.f32.mrb[0].mxu0
      %2464 = vmatprep.mubr.bf16.mxu0 0
      %2465 = vmatmul.mubr.bf16.gmra.mrb[0].mxu0 %v2337
      %v2466 = vpop.f32.mrb[0].mxu0
      %v2467 = vadd.f32 0.0, %v2466
      %v2468 = vpop.f32.mrb[0].mxu0
      %v2469 = vpop.f32.mrb[0].mxu0
      %v2470 = vadd.f32 0.0, %v2469
      %v2471 = vpop.f32.mrb[0].mxu0
      %2472 = vmatprep.mubr.bf16.mxu0 0
      %2473 = vmatmul.mubr.bf16.gmra.mrb[0].mxu0 %v2338
      %v2474 = vpop.f32.mrb[0].mxu0
      %v2475 = vadd.f32 0.0, %v2474
      %v2476 = vpop.f32.mrb[0].mxu0
      %v2477 = vpop.f32.mrb[0].mxu0
      %v2478 = vadd.f32 0.0, %v2477
      %v2479 = vpop.f32.mrb[0].mxu0
      %2480 = vmatprep.mubr.bf16.mxu0 0
      %2481 = vmatmul.mubr.bf16.gmra.mrb[0].mxu0 %v2339
      %v2482 = vpop.f32.mrb[0].mxu0
      %v2483 = vadd.f32 0.0, %v2482
      %v2484 = vpop.f32.mrb[0].mxu0
      %v2485 = vpop.f32.mrb[0].mxu0
      %v2486 = vadd.f32 0.0, %v2485
      %v2487 = vpop.f32.mrb[0].mxu0
      %2488 = vmatprep.mubr.bf16.mxu0 0
      %2489 = vmatmul.mubr.bf16.gmra.mrb[0].mxu0 %v2340
      %v2490 = vpop.f32.mrb[0].mxu0
      %v2491 = vadd.f32 0.0, %v2490
      %v2492 = vpop.f32.mrb[0].mxu0
      %v2493 = vpop.f32.mrb[0].mxu0
      %v2494 = vadd.f32 0.0, %v2493
      %v2495 = vpop.f32.mrb[0].mxu0
      %2496 = vmatprep.mubr.bf16.mxu0 0
      %2497 = vmatmul.mubr.bf16.gmra.mrb[0].mxu0 %v2341
      %v2498 = vpop.f32.mrb[0].mxu0
      %v2499 = vadd.f32 0.0, %v2498
      %v2500 = vpop.f32.mrb[0].mxu0
      %v2501 = vpop.f32.mrb[0].mxu0
      %v2502 = vadd.f32 0.0, %v2501
      %v2503 = vpop.f32.mrb[0].mxu0
      %2504 = vmatprep.mubr.bf16.mxu0 0
      %2505 = vmatmul.mubr.bf16.gmra.mrb[0].mxu0 %v2342
      %v2506 = vpop.f32.mrb[0].mxu0
      %v2507 = vadd.f32 0.0, %v2506
      %v2508 = vpop.f32.mrb[0].mxu0
      %v2509 = vpop.f32.mrb[0].mxu0
      %v2510 = vadd.f32 0.0, %v2509
      %v2511 = vpop.f32.mrb[0].mxu0
      %2512 = vmatprep.mubr.bf16.mxu0 0
      %2513 = vmatmul.mubr.bf16.gmra.mrb[0].mxu0 %v2343
      %v2514 = vpop.f32.mrb[0].mxu0
      %v2515 = vadd.f32 0.0, %v2514
      %v2516 = vpop.f32.mrb[0].mxu0
      %v2517 = vpop.f32.mrb[0].mxu0
      %v2518 = vadd.f32 0.0, %v2517
      %v2519 = vpop.f32.mrb[0].mxu0
      %2520 = vmatprep.mubr.bf16.mxu0 0
      %2521 = vmatmul.mubr.bf16.gmra.mrb[0].mxu0 %v2344
      %v2522 = vpop.f32.mrb[0].mxu0
      %v2523 = vadd.f32 0.0, %v2522
      %v2524 = vpop.f32.mrb[0].mxu0
      %v2525 = vpop.f32.mrb[0].mxu0
      %v2526 = vadd.f32 0.0, %v2525
      %v2527 = vpop.f32.mrb[0].mxu0
      %2528 = vmatprep.mubr.bf16.mxu0 0
      %2529 = vmatmul.mubr.bf16.gmra.mrb[0].mxu0 %v2345
      %v2530 = vpop.f32.mrb[0].mxu0
      %v2531 = vadd.f32 0.0, %v2530
      %v2532 = vpop.f32.mrb[0].mxu0
      %v2533 = vpop.f32.mrb[0].mxu0
      %v2534 = vadd.f32 0.0, %v2533
      %v2535 = vpop.f32.mrb[0].mxu0
      %2536 = vmatprep.mubr.bf16.mxu0 0
      %2537 = vmatmul.mubr.bf16.gmra.mrb[0].mxu0 %v2346
      %v2538 = vpop.f32.mrb[0].mxu0
      %v2539 = vadd.f32 0.0, %v2538
      %v2540 = vpop.f32.mrb[0].mxu0
      %v2541 = vpop.f32.mrb[0].mxu0
      %v2542 = vadd.f32 0.0, %v2541
      %v2543 = vpop.f32.mrb[0].mxu0
      %2544 = vmatprep.mubr.bf16.mxu0 0
      %2545 = vmatmul.mubr.bf16.gmra.mrb[0].mxu0 %v2347
      %v2546 = vpop.f32.mrb[0].mxu0
      %v2547 = vadd.f32 0.0, %v2546
      %v2548 = vpop.f32.mrb[0].mxu0
      %v2549 = vpop.f32.mrb[0].mxu0
      %v2550 = vadd.f32 0.0, %v2549
      %v2551 = vpop.f32.mrb[0].mxu0
      %2552 = vmatprep.mubr.bf16.mxu0 0
      %2553 = vmatmul.mubr.bf16.gmra.mrb[0].mxu0 %v2348
      %v2554 = vpop.f32.mrb[0].mxu0
      %v2555 = vadd.f32 0.0, %v2554
      %v2556 = vpop.f32.mrb[0].mxu0
      %v2557 = vpop.f32.mrb[0].mxu0
      %v2558 = vadd.f32 0.0, %v2557
      %v2559 = vpop.f32.mrb[0].mxu0
      %2560 = vmatprep.mubr.bf16.mxu0 0
      %2561 = vmatmul.mubr.bf16.gmra.mrb[0].mxu0 %v2349
      %v2562 = vpop.f32.mrb[0].mxu0
      %v2563 = vadd.f32 0.0, %v2562
      %v2564 = vpop.f32.mrb[0].mxu0
      %v2565 = vpop.f32.mrb[0].mxu0
      %v2566 = vadd.f32 0.0, %v2565
      %v2567 = vpop.f32.mrb[0].mxu0
      %2568 = vmatprep.mubr.bf16.mxu0 0
      %2569 = vmatmul.mubr.bf16.gmra.mrb[0].mxu0 %v2350
      %v2570 = vpop.f32.mrb[0].mxu0
      %v2571 = vadd.f32 0.0, %v2570
      %v2572 = vpop.f32.mrb[0].mxu0
      %v2573 = vpop.f32.mrb[0].mxu0
      %v2574 = vadd.f32 0.0, %v2573
      %v2575 = vpop.f32.mrb[0].mxu0
      %2576 = vdwg.mxu0
      %v2577 = vadd.f32 %v2270, %v2451
      %v2578 = vadd.f32 %v2271, %v2454
      %v2579 = vadd.f32 %v2272, %v2459
      %v2580 = vadd.f32 %v2273, %v2462
      %v2581 = vadd.f32 %v2274, %v2467
      %v2582 = vadd.f32 %v2275, %v2470
      %v2583 = vadd.f32 %v2276, %v2475
      %v2584 = vadd.f32 %v2277, %v2478
      %v2585 = vadd.f32 %v2278, %v2483
      %v2586 = vadd.f32 %v2279, %v2486
      %v2587 = vadd.f32 %v2280, %v2491
      %v2588 = vadd.f32 %v2281, %v2494
      %v2589 = vadd.f32 %v2282, %v2499
      %v2590 = vadd.f32 %v2283, %v2502
      %v2591 = vadd.f32 %v2284, %v2507
      %v2592 = vadd.f32 %v2285, %v2510
      %v2593 = vadd.f32 %v2286, %v2515
      %v2594 = vadd.f32 %v2287, %v2518
      %v2595 = vadd.f32 %v2288, %v2523
      %v2596 = vadd.f32 %v2289, %v2526
      %v2597 = vadd.f32 %v2290, %v2531
      %v2598 = vadd.f32 %v2291, %v2534
      %v2599 = vadd.f32 %v2292, %v2539
      %v2600 = vadd.f32 %v2293, %v2542
      %v2601 = vadd.f32 %v2294, %v2547
      %v2602 = vadd.f32 %v2295, %v2550
      %v2603 = vadd.f32 %v2296, %v2555
      %v2604 = vadd.f32 %v2297, %v2558
      %v2605 = vadd.f32 %v2298, %v2563
      %v2606 = vadd.f32 %v2299, %v2566
      %v2607 = vadd.f32 %v2300, %v2571
      %v2608 = vadd.f32 %v2301, %v2574
      %v2609 = vld [vmem:[%s2302 + $0x1] sm:$0xff]
      %v2610 = vld [vmem:[%s2302 + $0x9] sm:$0xff]
      %v2611 = vld [vmem:[%s2302 + $0x19] sm:$0xff]
      %v2612 = vld [vmem:[%s2302 + $0x21] sm:$0xff]
      %v2613 = vld [vmem:[%s2302 + $0x31] sm:$0xff]
      %v2614 = vld [vmem:[%s2302 + $0x39] sm:$0xff]
      %v2615 = vld [vmem:[%s2302 + $0x49] sm:$0xff]
      %v2616 = vld [vmem:[%s2302 + $0x51] sm:$0xff]
      %v2617 = vld [vmem:[%s2302 + $0x61] sm:$0xff]
      %v2618 = vld [vmem:[%s2302 + $0x69] sm:$0xff]
      %v2619 = vld [vmem:[%s2302 + $0x79] sm:$0xff]
      %v2620 = vld [vmem:[%s2302 + $0x81] sm:$0xff]
      %v2621 = vld [vmem:[%s2302 + $0x91] sm:$0xff]
      %v2622 = vld [vmem:[%s2302 + $0x99] sm:$0xff]
      %v2623 = vld [vmem:[%s2302 + $0xa9] sm:$0xff]
      %v2624 = vld [vmem:[%s2302 + $0xb1] sm:$0xff]
      %v2625 = vld [vmem:[%s2302 + $0xc1] sm:$0xff]
      %v2626 = vld [vmem:[%s2302 + $0xc9] sm:$0xff]
      %v2627 = vld [vmem:[%s2302 + $0xd9] sm:$0xff]
      %v2628 = vld [vmem:[%s2302 + $0xe1] sm:$0xff]
      %v2629 = vld [vmem:[%s2302 + $0xf1] sm:$0xff]
      %v2630 = vld [vmem:[%s2302 + $0xf9] sm:$0xff]
      %v2631 = vld [vmem:[%s2302 + $0x109] sm:$0xff]
      %v2632 = vld [vmem:[%s2302 + $0x111] sm:$0xff]
      %v2633 = vld [vmem:[%s2302 + $0x121] sm:$0xff]
      %v2634 = vld [vmem:[%s2302 + $0x129] sm:$0xff]
      %v2635 = vld [vmem:[%s2302 + $0x139] sm:$0xff]
      %v2636 = vld [vmem:[%s2302 + $0x141] sm:$0xff]
      %v2637 = vld [vmem:[%s2302 + $0x151] sm:$0xff]
      %v2638 = vld [vmem:[%s2302 + $0x159] sm:$0xff]
      %v2639 = vld [vmem:[%s2302 + $0x169] sm:$0xff]
      %v2640 = vld [vmem:[%s2302 + $0x171] sm:$0xff]
      %v2641 = vpack.c.bf16 %v2610, %v2609
      %v2642 = vpack.c.bf16 %v2612, %v2611
      %v2643 = vpack.c.bf16 %v2614, %v2613
      %v2644 = vpack.c.bf16 %v2616, %v2615
      %v2645 = vpack.c.bf16 %v2618, %v2617
      %v2646 = vpack.c.bf16 %v2620, %v2619
      %v2647 = vpack.c.bf16 %v2622, %v2621
      %v2648 = vpack.c.bf16 %v2624, %v2623
      %v2649 = vpack.c.bf16 %v2626, %v2625
      %v2650 = vpack.c.bf16 %v2628, %v2627
      %v2651 = vpack.c.bf16 %v2630, %v2629
      %v2652 = vpack.c.bf16 %v2632, %v2631
      %v2653 = vpack.c.bf16 %v2634, %v2633
      %v2654 = vpack.c.bf16 %v2636, %v2635
      %v2655 = vpack.c.bf16 %v2638, %v2637
      %v2656 = vpack.c.bf16 %v2640, %v2639
      %s2657 = scalar_lea.vmem %s3, 448
      %v2658 = vld [vmem:[%s2657] sm:$0xf]
      %v2659 = vld [vmem:[%s2657 + $0x4] sm:$0xf]
      %v2660 = vld [vmem:[%s2657 + $0x8] sm:$0xf]
      %v2661 = vld [vmem:[%s2657 + $0xc] sm:$0xf]
      %v2662 = vld [vmem:[%s2657 + $0x10] sm:$0xf]
      %v2663 = vld [vmem:[%s2657 + $0x14] sm:$0xf]
      %v2664 = vld [vmem:[%s2657 + $0x18] sm:$0xf]
      %v2665 = vld [vmem:[%s2657 + $0x1c] sm:$0xf]
      %v2666 = vld [vmem:[%s2657 + $0x20] sm:$0xf]
      %v2667 = vld [vmem:[%s2657 + $0x24] sm:$0xf]
      %v2668 = vld [vmem:[%s2657 + $0x28] sm:$0xf]
      %v2669 = vld [vmem:[%s2657 + $0x2c] sm:$0xf]
      %v2670 = vld [vmem:[%s2657 + $0x30] sm:$0xf]
      %v2671 = vld [vmem:[%s2657 + $0x34] sm:$0xf]
      %v2672 = vld [vmem:[%s2657 + $0x38] sm:$0xf]
      %v2673 = vld [vmem:[%s2657 + $0x3c] sm:$0xf]
      %v2690 = vunpack.c.l.b16 %v2658
      %v2691 = vunpack.c.l.b16 %v2659
      %v2692 = vunpack.c.l.b16 %v2660
      %v2693 = vunpack.c.l.b16 %v2661
      %v2694 = vunpack.c.l.b16 %v2662
      %v2695 = vunpack.c.l.b16 %v2663
      %v2696 = vunpack.c.l.b16 %v2664
      %v2697 = vunpack.c.l.b16 %v2665
      %v2698 = vunpack.c.l.b16 %v2666
      %v2699 = vunpack.c.l.b16 %v2667
      %v2700 = vunpack.c.l.b16 %v2668
      %v2701 = vunpack.c.l.b16 %v2669
      %v2702 = vunpack.c.l.b16 %v2670
      %v2703 = vunpack.c.l.b16 %v2671
      %v2704 = vunpack.c.l.b16 %v2672
      %v2705 = vunpack.c.l.b16 %v2673
      %v2706 = vpack.c.b16 %v2691, %v2690
      %v2707 = vpack.c.b16 %v2693, %v2692
      %v2708 = vpack.c.b16 %v2695, %v2694
      %v2709 = vpack.c.b16 %v2697, %v2696
      %v2710 = vpack.c.b16 %v2699, %v2698
      %v2711 = vpack.c.b16 %v2701, %v2700
      %v2712 = vpack.c.b16 %v2703, %v2702
      %v2713 = vpack.c.b16 %v2705, %v2704
      %2722 = vmatprep.subr.bf16.mxu0 0
      %2723 = vmatpush1.bf16.msra.mxu0 %v2706
      %2724 = vmatprep.subr.bf16.mxu0 0
      %2725 = vmatpush1.bf16.msra.mxu0 %v2707
      %2726 = vmatprep.subr.bf16.mxu0 0
      %2727 = vmatpush1.bf16.msra.mxu0 %v2708
      %2728 = vmatprep.subr.bf16.mxu0 0
      %2729 = vmatpush1.bf16.msra.mxu0 %v2709
      %2730 = vmatprep.subr.bf16.mxu0 0
      %2731 = vmatpush1.bf16.msra.mxu0 %v2710
      %2732 = vmatprep.subr.bf16.mxu0 0
      %2733 = vmatpush1.bf16.msra.mxu0 %v2711
      %2734 = vmatprep.subr.bf16.mxu0 0
      %2735 = vmatpush1.bf16.msra.mxu0 %v2712
      %2736 = vmatprep.subr.bf16.mxu0 0
      %2737 = vmatpush1.bf16.msra.mxu0 %v2713
      %2738 = vmatprep.subr.bf16.mxu0 0
      %2739 = vmatpush1.bf16.msra.mxu0 0
      %2740 = vmatprep.subr.bf16.mxu0 0
      %2741 = vmatpush1.bf16.msra.mxu0 0
      %2742 = vmatprep.subr.bf16.mxu0 0
      %2743 = vmatpush1.bf16.msra.mxu0 0
      %2744 = vmatprep.subr.bf16.mxu0 0
      %2745 = vmatpush1.bf16.msra.mxu0 0
      %2746 = vmatprep.subr.bf16.mxu0 0
      %2747 = vmatpush1.bf16.msra.mxu0 0
      %2748 = vmatprep.subr.bf16.mxu0 0
      %2749 = vmatpush1.bf16.msra.mxu0 0
      %2750 = vmatprep.subr.bf16.mxu0 0
      %2751 = vmatpush1.bf16.msra.mxu0 0
      %2752 = vmatprep.subr.bf16.mxu0 0
      %2753 = vmatpush1.bf16.msra.mxu0 0
      %2754 = vmatprep.mubr.bf16.mxu0 0
      %2755 = vmatmul.mubr.bf16.gmra.mrb[0].mxu0 %v2641
      %v2756 = vpop.f32.mrb[0].mxu0
      %v2757 = vadd.f32 0.0, %v2756
      %v2758 = vpop.f32.mrb[0].mxu0
      %v2759 = vpop.f32.mrb[0].mxu0
      %v2760 = vadd.f32 0.0, %v2759
      %v2761 = vpop.f32.mrb[0].mxu0
      %2762 = vmatprep.mubr.bf16.mxu0 0
      %2763 = vmatmul.mubr.bf16.gmra.mrb[0].mxu0 %v2642
      %v2764 = vpop.f32.mrb[0].mxu0
      %v2765 = vadd.f32 0.0, %v2764
      %v2766 = vpop.f32.mrb[0].mxu0
      %v2767 = vpop.f32.mrb[0].mxu0
      %v2768 = vadd.f32 0.0, %v2767
      %v2769 = vpop.f32.mrb[0].mxu0
      %2770 = vmatprep.mubr.bf16.mxu0 0
      %2771 = vmatmul.mubr.bf16.gmra.mrb[0].mxu0 %v2643
      %v2772 = vpop.f32.mrb[0].mxu0
      %v2773 = vadd.f32 0.0, %v2772
      %v2774 = vpop.f32.mrb[0].mxu0
      %v2775 = vpop.f32.mrb[0].mxu0
      %v2776 = vadd.f32 0.0, %v2775
      %v2777 = vpop.f32.mrb[0].mxu0
      %2778 = vmatprep.mubr.bf16.mxu0 0
      %2779 = vmatmul.mubr.bf16.gmra.mrb[0].mxu0 %v2644
      %v2780 = vpop.f32.mrb[0].mxu0
      %v2781 = vadd.f32 0.0, %v2780
      %v2782 = vpop.f32.mrb[0].mxu0
      %v2783 = vpop.f32.mrb[0].mxu0
      %v2784 = vadd.f32 0.0, %v2783
      %v2785 = vpop.f32.mrb[0].mxu0
      %2786 = vmatprep.mubr.bf16.mxu0 0
      %2787 = vmatmul.mubr.bf16.gmra.mrb[0].mxu0 %v2645
      %v2788 = vpop.f32.mrb[0].mxu0
      %v2789 = vadd.f32 0.0, %v2788
      %v2790 = vpop.f32.mrb[0].mxu0
      %v2791 = vpop.f32.mrb[0].mxu0
      %v2792 = vadd.f32 0.0, %v2791
      %v2793 = vpop.f32.mrb[0].mxu0
      %2794 = vmatprep.mubr.bf16.mxu0 0
      %2795 = vmatmul.mubr.bf16.gmra.mrb[0].mxu0 %v2646
      %v2796 = vpop.f32.mrb[0].mxu0
      %v2797 = vadd.f32 0.0, %v2796
      %v2798 = vpop.f32.mrb[0].mxu0
      %v2799 = vpop.f32.mrb[0].mxu0
      %v2800 = vadd.f32 0.0, %v2799
      %v2801 = vpop.f32.mrb[0].mxu0
      %2802 = vmatprep.mubr.bf16.mxu0 0
      %2803 = vmatmul.mubr.bf16.gmra.mrb[0].mxu0 %v2647
      %v2804 = vpop.f32.mrb[0].mxu0
      %v2805 = vadd.f32 0.0, %v2804
      %v2806 = vpop.f32.mrb[0].mxu0
      %v2807 = vpop.f32.mrb[0].mxu0
      %v2808 = vadd.f32 0.0, %v2807
      %v2809 = vpop.f32.mrb[0].mxu0
      %2810 = vmatprep.mubr.bf16.mxu0 0
      %2811 = vmatmul.mubr.bf16.gmra.mrb[0].mxu0 %v2648
      %v2812 = vpop.f32.mrb[0].mxu0
      %v2813 = vadd.f32 0.0, %v2812
      %v2814 = vpop.f32.mrb[0].mxu0
      %v2815 = vpop.f32.mrb[0].mxu0
      %v2816 = vadd.f32 0.0, %v2815
      %v2817 = vpop.f32.mrb[0].mxu0
      %2818 = vmatprep.mubr.bf16.mxu0 0
      %2819 = vmatmul.mubr.bf16.gmra.mrb[0].mxu0 %v2649
      %v2820 = vpop.f32.mrb[0].mxu0
      %v2821 = vadd.f32 0.0, %v2820
      %v2822 = vpop.f32.mrb[0].mxu0
      %v2823 = vpop.f32.mrb[0].mxu0
      %v2824 = vadd.f32 0.0, %v2823
      %v2825 = vpop.f32.mrb[0].mxu0
      %2826 = vmatprep.mubr.bf16.mxu0 0
      %2827 = vmatmul.mubr.bf16.gmra.mrb[0].mxu0 %v2650
      %v2828 = vpop.f32.mrb[0].mxu0
      %v2829 = vadd.f32 0.0, %v2828
      %v2830 = vpop.f32.mrb[0].mxu0
      %v2831 = vpop.f32.mrb[0].mxu0
      %v2832 = vadd.f32 0.0, %v2831
      %v2833 = vpop.f32.mrb[0].mxu0
      %2834 = vmatprep.mubr.bf16.mxu0 0
      %2835 = vmatmul.mubr.bf16.gmra.mrb[0].mxu0 %v2651
      %v2836 = vpop.f32.mrb[0].mxu0
      %v2837 = vadd.f32 0.0, %v2836
      %v2838 = vpop.f32.mrb[0].mxu0
      %v2839 = vpop.f32.mrb[0].mxu0
      %v2840 = vadd.f32 0.0, %v2839
      %v2841 = vpop.f32.mrb[0].mxu0
      %2842 = vmatprep.mubr.bf16.mxu0 0
      %2843 = vmatmul.mubr.bf16.gmra.mrb[0].mxu0 %v2652
      %v2844 = vpop.f32.mrb[0].mxu0
      %v2845 = vadd.f32 0.0, %v2844
      %v2846 = vpop.f32.mrb[0].mxu0
      %v2847 = vpop.f32.mrb[0].mxu0
      %v2848 = vadd.f32 0.0, %v2847
      %v2849 = vpop.f32.mrb[0].mxu0
      %2850 = vmatprep.mubr.bf16.mxu0 0
      %2851 = vmatmul.mubr.bf16.gmra.mrb[0].mxu0 %v2653
      %v2852 = vpop.f32.mrb[0].mxu0
      %v2853 = vadd.f32 0.0, %v2852
      %v2854 = vpop.f32.mrb[0].mxu0
      %v2855 = vpop.f32.mrb[0].mxu0
      %v2856 = vadd.f32 0.0, %v2855
      %v2857 = vpop.f32.mrb[0].mxu0
      %2858 = vmatprep.mubr.bf16.mxu0 0
      %2859 = vmatmul.mubr.bf16.gmra.mrb[0].mxu0 %v2654
      %v2860 = vpop.f32.mrb[0].mxu0
      %v2861 = vadd.f32 0.0, %v2860
      %v2862 = vpop.f32.mrb[0].mxu0
      %v2863 = vpop.f32.mrb[0].mxu0
      %v2864 = vadd.f32 0.0, %v2863
      %v2865 = vpop.f32.mrb[0].mxu0
      %2866 = vmatprep.mubr.bf16.mxu0 0
      %2867 = vmatmul.mubr.bf16.gmra.mrb[0].mxu0 %v2655
      %v2868 = vpop.f32.mrb[0].mxu0
      %v2869 = vadd.f32 0.0, %v2868
      %v2870 = vpop.f32.mrb[0].mxu0
      %v2871 = vpop.f32.mrb[0].mxu0
      %v2872 = vadd.f32 0.0, %v2871
      %v2873 = vpop.f32.mrb[0].mxu0
      %2874 = vmatprep.mubr.bf16.mxu0 0
      %2875 = vmatmul.mubr.bf16.gmra.mrb[0].mxu0 %v2656
      %v2876 = vpop.f32.mrb[0].mxu0
      %v2877 = vadd.f32 0.0, %v2876
      %v2878 = vpop.f32.mrb[0].mxu0
      %v2879 = vpop.f32.mrb[0].mxu0
      %v2880 = vadd.f32 0.0, %v2879
      %v2881 = vpop.f32.mrb[0].mxu0
      %2882 = vdwg.mxu0
      %v2883 = vadd.f32 %v2577, %v2757
      %v2884 = vadd.f32 %v2578, %v2760
      %v2885 = vadd.f32 %v2579, %v2765
      %v2886 = vadd.f32 %v2580, %v2768
      %v2887 = vadd.f32 %v2581, %v2773
      %v2888 = vadd.f32 %v2582, %v2776
      %v2889 = vadd.f32 %v2583, %v2781
      %v2890 = vadd.f32 %v2584, %v2784
      %v2891 = vadd.f32 %v2585, %v2789
      %v2892 = vadd.f32 %v2586, %v2792
      %v2893 = vadd.f32 %v2587, %v2797
      %v2894 = vadd.f32 %v2588, %v2800
      %v2895 = vadd.f32 %v2589, %v2805
      %v2896 = vadd.f32 %v2590, %v2808
      %v2897 = vadd.f32 %v2591, %v2813
      %v2898 = vadd.f32 %v2592, %v2816
      %v2899 = vadd.f32 %v2593, %v2821
      %v2900 = vadd.f32 %v2594, %v2824
      %v2901 = vadd.f32 %v2595, %v2829
      %v2902 = vadd.f32 %v2596, %v2832
      %v2903 = vadd.f32 %v2597, %v2837
      %v2904 = vadd.f32 %v2598, %v2840
      %v2905 = vadd.f32 %v2599, %v2845
      %v2906 = vadd.f32 %v2600, %v2848
      %v2907 = vadd.f32 %v2601, %v2853
      %v2908 = vadd.f32 %v2602, %v2856
      %v2909 = vadd.f32 %v2603, %v2861
      %v2910 = vadd.f32 %v2604, %v2864
      %v2911 = vadd.f32 %v2605, %v2869
      %v2912 = vadd.f32 %v2606, %v2872
      %v2913 = vadd.f32 %v2607, %v2877
      %v2914 = vadd.f32 %v2608, %v2880
      %v2915 = vld [vmem:[%s2302 + $0x2] sm:$0xff]
      %v2916 = vld [vmem:[%s2302 + $0xa] sm:$0xff]
      %v2917 = vld [vmem:[%s2302 + $0x1a] sm:$0xff]
      %v2918 = vld [vmem:[%s2302 + $0x22] sm:$0xff]
      %v2919 = vld [vmem:[%s2302 + $0x32] sm:$0xff]
      %v2920 = vld [vmem:[%s2302 + $0x3a] sm:$0xff]
      %v2921 = vld [vmem:[%s2302 + $0x4a] sm:$0xff]
      %v2922 = vld [vmem:[%s2302 + $0x52] sm:$0xff]
      %v2923 = vld [vmem:[%s2302 + $0x62] sm:$0xff]
      %v2924 = vld [vmem:[%s2302 + $0x6a] sm:$0xff]
      %v2925 = vld [vmem:[%s2302 + $0x7a] sm:$0xff]
      %v2926 = vld [vmem:[%s2302 + $0x82] sm:$0xff]
      %v2927 = vld [vmem:[%s2302 + $0x92] sm:$0xff]
      %v2928 = vld [vmem:[%s2302 + $0x9a] sm:$0xff]
      %v2929 = vld [vmem:[%s2302 + $0xaa] sm:$0xff]
      %v2930 = vld [vmem:[%s2302 + $0xb2] sm:$0xff]
      %v2931 = vld [vmem:[%s2302 + $0xc2] sm:$0xff]
      %v2932 = vld [vmem:[%s2302 + $0xca] sm:$0xff]
      %v2933 = vld [vmem:[%s2302 + $0xda] sm:$0xff]
      %v2934 = vld [vmem:[%s2302 + $0xe2] sm:$0xff]
      %v2935 = vld [vmem:[%s2302 + $0xf2] sm:$0xff]
      %v2936 = vld [vmem:[%s2302 + $0xfa] sm:$0xff]
      %v2937 = vld [vmem:[%s2302 + $0x10a] sm:$0xff]
      %v2938 = vld [vmem:[%s2302 + $0x112] sm:$0xff]
      %v2939 = vld [vmem:[%s2302 + $0x122] sm:$0xff]
      %v2940 = vld [vmem:[%s2302 + $0x12a] sm:$0xff]
      %v2941 = vld [vmem:[%s2302 + $0x13a] sm:$0xff]
      %v2942 = vld [vmem:[%s2302 + $0x142] sm:$0xff]
      %v2943 = vld [vmem:[%s2302 + $0x152] sm:$0xff]
      %v2944 = vld [vmem:[%s2302 + $0x15a] sm:$0xff]
      %v2945 = vld [vmem:[%s2302 + $0x16a] sm:$0xff]
      %v2946 = vld [vmem:[%s2302 + $0x172] sm:$0xff]
      %v2947 = vpack.c.bf16 %v2916, %v2915
      %v2948 = vpack.c.bf16 %v2918, %v2917
      %v2949 = vpack.c.bf16 %v2920, %v2919
      %v2950 = vpack.c.bf16 %v2922, %v2921
      %v2951 = vpack.c.bf16 %v2924, %v2923
      %v2952 = vpack.c.bf16 %v2926, %v2925
      %v2953 = vpack.c.bf16 %v2928, %v2927
      %v2954 = vpack.c.bf16 %v2930, %v2929
      %v2955 = vpack.c.bf16 %v2932, %v2931
      %v2956 = vpack.c.bf16 %v2934, %v2933
      %v2957 = vpack.c.bf16 %v2936, %v2935
      %v2958 = vpack.c.bf16 %v2938, %v2937
      %v2959 = vpack.c.bf16 %v2940, %v2939
      %v2960 = vpack.c.bf16 %v2942, %v2941
      %v2961 = vpack.c.bf16 %v2944, %v2943
      %v2962 = vpack.c.bf16 %v2946, %v2945
      %s2963 = scalar_lea.vmem %s3, 512
      %v2964 = vld [vmem:[%s2963] sm:$0xf]
      %v2965 = vld [vmem:[%s2963 + $0x4] sm:$0xf]
      %v2966 = vld [vmem:[%s2963 + $0x8] sm:$0xf]
      %v2967 = vld [vmem:[%s2963 + $0xc] sm:$0xf]
      %v2968 = vld [vmem:[%s2963 + $0x10] sm:$0xf]
      %v2969 = vld [vmem:[%s2963 + $0x14] sm:$0xf]
      %v2970 = vld [vmem:[%s2963 + $0x18] sm:$0xf]
      %v2971 = vld [vmem:[%s2963 + $0x1c] sm:$0xf]
      %v2972 = vld [vmem:[%s2963 + $0x20] sm:$0xf]
      %v2973 = vld [vmem:[%s2963 + $0x24] sm:$0xf]
      %v2974 = vld [vmem:[%s2963 + $0x28] sm:$0xf]
      %v2975 = vld [vmem:[%s2963 + $0x2c] sm:$0xf]
      %v2976 = vld [vmem:[%s2963 + $0x30] sm:$0xf]
      %v2977 = vld [vmem:[%s2963 + $0x34] sm:$0xf]
      %v2978 = vld [vmem:[%s2963 + $0x38] sm:$0xf]
      %v2979 = vld [vmem:[%s2963 + $0x3c] sm:$0xf]
      %v2996 = vunpack.c.l.b16 %v2964
      %v2997 = vunpack.c.l.b16 %v2965
      %v2998 = vunpack.c.l.b16 %v2966
      %v2999 = vunpack.c.l.b16 %v2967
      %v3000 = vunpack.c.l.b16 %v2968
      %v3001 = vunpack.c.l.b16 %v2969
      %v3002 = vunpack.c.l.b16 %v2970
      %v3003 = vunpack.c.l.b16 %v2971
      %v3004 = vunpack.c.l.b16 %v2972
      %v3005 = vunpack.c.l.b16 %v2973
      %v3006 = vunpack.c.l.b16 %v2974
      %v3007 = vunpack.c.l.b16 %v2975
      %v3008 = vunpack.c.l.b16 %v2976
      %v3009 = vunpack.c.l.b16 %v2977
      %v3010 = vunpack.c.l.b16 %v2978
      %v3011 = vunpack.c.l.b16 %v2979
      %v3012 = vpack.c.b16 %v2997, %v2996
      %v3013 = vpack.c.b16 %v2999, %v2998
      %v3014 = vpack.c.b16 %v3001, %v3000
      %v3015 = vpack.c.b16 %v3003, %v3002
      %v3016 = vpack.c.b16 %v3005, %v3004
      %v3017 = vpack.c.b16 %v3007, %v3006
      %v3018 = vpack.c.b16 %v3009, %v3008
      %v3019 = vpack.c.b16 %v3011, %v3010
      %3028 = vmatprep.subr.bf16.mxu0 0
      %3029 = vmatpush1.bf16.msra.mxu0 %v3012
      %3030 = vmatprep.subr.bf16.mxu0 0
      %3031 = vmatpush1.bf16.msra.mxu0 %v3013
      %3032 = vmatprep.subr.bf16.mxu0 0
      %3033 = vmatpush1.bf16.msra.mxu0 %v3014
      %3034 = vmatprep.subr.bf16.mxu0 0
      %3035 = vmatpush1.bf16.msra.mxu0 %v3015
      %3036 = vmatprep.subr.bf16.mxu0 0
      %3037 = vmatpush1.bf16.msra.mxu0 %v3016
      %3038 = vmatprep.subr.bf16.mxu0 0
      %3039 = vmatpush1.bf16.msra.mxu0 %v3017
      %3040 = vmatprep.subr.bf16.mxu0 0
      %3041 = vmatpush1.bf16.msra.mxu0 %v3018
      %3042 = vmatprep.subr.bf16.mxu0 0
      %3043 = vmatpush1.bf16.msra.mxu0 %v3019
      %3044 = vmatprep.subr.bf16.mxu0 0
      %3045 = vmatpush1.bf16.msra.mxu0 0
      %3046 = vmatprep.subr.bf16.mxu0 0
      %3047 = vmatpush1.bf16.msra.mxu0 0
      %3048 = vmatprep.subr.bf16.mxu0 0
      %3049 = vmatpush1.bf16.msra.mxu0 0
      %3050 = vmatprep.subr.bf16.mxu0 0
      %3051 = vmatpush1.bf16.msra.mxu0 0
      %3052 = vmatprep.subr.bf16.mxu0 0
      %3053 = vmatpush1.bf16.msra.mxu0 0
      %3054 = vmatprep.subr.bf16.mxu0 0
      %3055 = vmatpush1.bf16.msra.mxu0 0
      %3056 = vmatprep.subr.bf16.mxu0 0
      %3057 = vmatpush1.bf16.msra.mxu0 0
      %3058 = vmatprep.subr.bf16.mxu0 0
      %3059 = vmatpush1.bf16.msra.mxu0 0
      %3060 = vmatprep.mubr.bf16.mxu0 0
      %3061 = vmatmul.mubr.bf16.gmra.mrb[0].mxu0 %v2947
      %v3062 = vpop.f32.mrb[0].mxu0
      %v3063 = vadd.f32 0.0, %v3062
      %v3064 = vpop.f32.mrb[0].mxu0
      %v3065 = vpop.f32.mrb[0].mxu0
      %v3066 = vadd.f32 0.0, %v3065
      %v3067 = vpop.f32.mrb[0].mxu0
      %3068 = vmatprep.mubr.bf16.mxu0 0
      %3069 = vmatmul.mubr.bf16.gmra.mrb[0].mxu0 %v2948
      %v3070 = vpop.f32.mrb[0].mxu0
      %v3071 = vadd.f32 0.0, %v3070
      %v3072 = vpop.f32.mrb[0].mxu0
      %v3073 = vpop.f32.mrb[0].mxu0
      %v3074 = vadd.f32 0.0, %v3073
      %v3075 = vpop.f32.mrb[0].mxu0
      %3076 = vmatprep.mubr.bf16.mxu0 0
      %3077 = vmatmul.mubr.bf16.gmra.mrb[0].mxu0 %v2949
      %v3078 = vpop.f32.mrb[0].mxu0
      %v3079 = vadd.f32 0.0, %v3078
      %v3080 = vpop.f32.mrb[0].mxu0
      %v3081 = vpop.f32.mrb[0].mxu0
      %v3082 = vadd.f32 0.0, %v3081
      %v3083 = vpop.f32.mrb[0].mxu0
      %3084 = vmatprep.mubr.bf16.mxu0 0
      %3085 = vmatmul.mubr.bf16.gmra.mrb[0].mxu0 %v2950
      %v3086 = vpop.f32.mrb[0].mxu0
      %v3087 = vadd.f32 0.0, %v3086
      %v3088 = vpop.f32.mrb[0].mxu0
      %v3089 = vpop.f32.mrb[0].mxu0
      %v3090 = vadd.f32 0.0, %v3089
      %v3091 = vpop.f32.mrb[0].mxu0
      %3092 = vmatprep.mubr.bf16.mxu0 0
      %3093 = vmatmul.mubr.bf16.gmra.mrb[0].mxu0 %v2951
      %v3094 = vpop.f32.mrb[0].mxu0
      %v3095 = vadd.f32 0.0, %v3094
      %v3096 = vpop.f32.mrb[0].mxu0
      %v3097 = vpop.f32.mrb[0].mxu0
      %v3098 = vadd.f32 0.0, %v3097
      %v3099 = vpop.f32.mrb[0].mxu0
      %3100 = vmatprep.mubr.bf16.mxu0 0
      %3101 = vmatmul.mubr.bf16.gmra.mrb[0].mxu0 %v2952
      %v3102 = vpop.f32.mrb[0].mxu0
      %v3103 = vadd.f32 0.0, %v3102
      %v3104 = vpop.f32.mrb[0].mxu0
      %v3105 = vpop.f32.mrb[0].mxu0
      %v3106 = vadd.f32 0.0, %v3105
      %v3107 = vpop.f32.mrb[0].mxu0
      %3108 = vmatprep.mubr.bf16.mxu0 0
      %3109 = vmatmul.mubr.bf16.gmra.mrb[0].mxu0 %v2953
      %v3110 = vpop.f32.mrb[0].mxu0
      %v3111 = vadd.f32 0.0, %v3110
      %v3112 = vpop.f32.mrb[0].mxu0
      %v3113 = vpop.f32.mrb[0].mxu0
      %v3114 = vadd.f32 0.0, %v3113
      %v3115 = vpop.f32.mrb[0].mxu0
      %3116 = vmatprep.mubr.bf16.mxu0 0
      %3117 = vmatmul.mubr.bf16.gmra.mrb[0].mxu0 %v2954
      %v3118 = vpop.f32.mrb[0].mxu0
      %v3119 = vadd.f32 0.0, %v3118
      %v3120 = vpop.f32.mrb[0].mxu0
      %v3121 = vpop.f32.mrb[0].mxu0
      %v3122 = vadd.f32 0.0, %v3121
      %v3123 = vpop.f32.mrb[0].mxu0
      %3124 = vmatprep.mubr.bf16.mxu0 0
      %3125 = vmatmul.mubr.bf16.gmra.mrb[0].mxu0 %v2955
      %v3126 = vpop.f32.mrb[0].mxu0
      %v3127 = vadd.f32 0.0, %v3126
      %v3128 = vpop.f32.mrb[0].mxu0
      %v3129 = vpop.f32.mrb[0].mxu0
      %v3130 = vadd.f32 0.0, %v3129
      %v3131 = vpop.f32.mrb[0].mxu0
      %3132 = vmatprep.mubr.bf16.mxu0 0
      %3133 = vmatmul.mubr.bf16.gmra.mrb[0].mxu0 %v2956
      %v3134 = vpop.f32.mrb[0].mxu0
      %v3135 = vadd.f32 0.0, %v3134
      %v3136 = vpop.f32.mrb[0].mxu0
      %v3137 = vpop.f32.mrb[0].mxu0
      %v3138 = vadd.f32 0.0, %v3137
      %v3139 = vpop.f32.mrb[0].mxu0
      %3140 = vmatprep.mubr.bf16.mxu0 0
      %3141 = vmatmul.mubr.bf16.gmra.mrb[0].mxu0 %v2957
      %v3142 = vpop.f32.mrb[0].mxu0
      %v3143 = vadd.f32 0.0, %v3142
      %v3144 = vpop.f32.mrb[0].mxu0
      %v3145 = vpop.f32.mrb[0].mxu0
      %v3146 = vadd.f32 0.0, %v3145
      %v3147 = vpop.f32.mrb[0].mxu0
      %3148 = vmatprep.mubr.bf16.mxu0 0
      %3149 = vmatmul.mubr.bf16.gmra.mrb[0].mxu0 %v2958
      %v3150 = vpop.f32.mrb[0].mxu0
      %v3151 = vadd.f32 0.0, %v3150
      %v3152 = vpop.f32.mrb[0].mxu0
      %v3153 = vpop.f32.mrb[0].mxu0
      %v3154 = vadd.f32 0.0, %v3153
      %v3155 = vpop.f32.mrb[0].mxu0
      %3156 = vmatprep.mubr.bf16.mxu0 0
      %3157 = vmatmul.mubr.bf16.gmra.mrb[0].mxu0 %v2959
      %v3158 = vpop.f32.mrb[0].mxu0
      %v3159 = vadd.f32 0.0, %v3158
      %v3160 = vpop.f32.mrb[0].mxu0
      %v3161 = vpop.f32.mrb[0].mxu0
      %v3162 = vadd.f32 0.0, %v3161
      %v3163 = vpop.f32.mrb[0].mxu0
      %3164 = vmatprep.mubr.bf16.mxu0 0
      %3165 = vmatmul.mubr.bf16.gmra.mrb[0].mxu0 %v2960
      %v3166 = vpop.f32.mrb[0].mxu0
      %v3167 = vadd.f32 0.0, %v3166
      %v3168 = vpop.f32.mrb[0].mxu0
      %v3169 = vpop.f32.mrb[0].mxu0
      %v3170 = vadd.f32 0.0, %v3169
      %v3171 = vpop.f32.mrb[0].mxu0
      %3172 = vmatprep.mubr.bf16.mxu0 0
      %3173 = vmatmul.mubr.bf16.gmra.mrb[0].mxu0 %v2961
      %v3174 = vpop.f32.mrb[0].mxu0
      %v3175 = vadd.f32 0.0, %v3174
      %v3176 = vpop.f32.mrb[0].mxu0
      %v3177 = vpop.f32.mrb[0].mxu0
      %v3178 = vadd.f32 0.0, %v3177
      %v3179 = vpop.f32.mrb[0].mxu0
      %3180 = vmatprep.mubr.bf16.mxu0 0
      %3181 = vmatmul.mubr.bf16.gmra.mrb[0].mxu0 %v2962
      %v3182 = vpop.f32.mrb[0].mxu0
      %v3183 = vadd.f32 0.0, %v3182
      %v3184 = vpop.f32.mrb[0].mxu0
      %v3185 = vpop.f32.mrb[0].mxu0
      %v3186 = vadd.f32 0.0, %v3185
      %v3187 = vpop.f32.mrb[0].mxu0
      %3188 = vdwg.mxu0
      %v3189 = vadd.f32 %v2883, %v3063
      %v3190 = vadd.f32 %v2884, %v3066
      %v3191 = vadd.f32 %v2885, %v3071
      %v3192 = vadd.f32 %v2886, %v3074
      %v3193 = vadd.f32 %v2887, %v3079
      %v3194 = vadd.f32 %v2888, %v3082
      %v3195 = vadd.f32 %v2889, %v3087
      %v3196 = vadd.f32 %v2890, %v3090
      %v3197 = vadd.f32 %v2891, %v3095
      %v3198 = vadd.f32 %v2892, %v3098
      %v3199 = vadd.f32 %v2893, %v3103
      %v3200 = vadd.f32 %v2894, %v3106
      %v3201 = vadd.f32 %v2895, %v3111
      %v3202 = vadd.f32 %v2896, %v3114
      %v3203 = vadd.f32 %v2897, %v3119
      %v3204 = vadd.f32 %v2898, %v3122
      %v3205 = vadd.f32 %v2899, %v3127
      %v3206 = vadd.f32 %v2900, %v3130
      %v3207 = vadd.f32 %v2901, %v3135
      %v3208 = vadd.f32 %v2902, %v3138
      %v3209 = vadd.f32 %v2903, %v3143
      %v3210 = vadd.f32 %v2904, %v3146
      %v3211 = vadd.f32 %v2905, %v3151
      %v3212 = vadd.f32 %v2906, %v3154
      %v3213 = vadd.f32 %v2907, %v3159
      %v3214 = vadd.f32 %v2908, %v3162
      %v3215 = vadd.f32 %v2909, %v3167
      %v3216 = vadd.f32 %v2910, %v3170
      %v3217 = vadd.f32 %v2911, %v3175
      %v3218 = vadd.f32 %v2912, %v3178
      %v3219 = vadd.f32 %v2913, %v3183
      %v3220 = vadd.f32 %v2914, %v3186
      %v3221 = vpack.c.bf16 %v3190, %v3189
      %v3222 = vpack.c.bf16 %v3192, %v3191
      %v3223 = vpack.c.bf16 %v3194, %v3193
      %v3224 = vpack.c.bf16 %v3196, %v3195
      %v3225 = vpack.c.bf16 %v3198, %v3197
      %v3226 = vpack.c.bf16 %v3200, %v3199
      %v3227 = vpack.c.bf16 %v3202, %v3201
      %v3228 = vpack.c.bf16 %v3204, %v3203
      %v3229 = vpack.c.bf16 %v3206, %v3205
      %v3230 = vpack.c.bf16 %v3208, %v3207
      %v3231 = vpack.c.bf16 %v3210, %v3209
      %v3232 = vpack.c.bf16 %v3212, %v3211
      %v3233 = vpack.c.bf16 %v3214, %v3213
      %v3234 = vpack.c.bf16 %v3216, %v3215
      %v3235 = vpack.c.bf16 %v3218, %v3217
      %v3236 = vpack.c.bf16 %v3220, %v3219
      %v3253 = vunpack.c.l.b16 %v3221
      %v3254 = vunpack.c.h.b16 %v3221
      %v3255 = vunpack.c.l.b16 %v3222
      %v3256 = vunpack.c.h.b16 %v3222
      %v3257 = vunpack.c.l.b16 %v3223
      %v3258 = vunpack.c.h.b16 %v3223
      %v3259 = vunpack.c.l.b16 %v3224
      %v3260 = vunpack.c.h.b16 %v3224
      %v3261 = vunpack.c.l.b16 %v3225
      %v3262 = vunpack.c.h.b16 %v3225
      %v3263 = vunpack.c.l.b16 %v3226
      %v3264 = vunpack.c.h.b16 %v3226
      %v3265 = vunpack.c.l.b16 %v3227
      %v3266 = vunpack.c.h.b16 %v3227
      %v3267 = vunpack.c.l.b16 %v3228
      %v3268 = vunpack.c.h.b16 %v3228
      %v3269 = vunpack.c.l.b16 %v3229
      %v3270 = vunpack.c.h.b16 %v3229
      %v3271 = vunpack.c.l.b16 %v3230
      %v3272 = vunpack.c.h.b16 %v3230
      %v3273 = vunpack.c.l.b16 %v3231
      %v3274 = vunpack.c.h.b16 %v3231
      %v3275 = vunpack.c.l.b16 %v3232
      %v3276 = vunpack.c.h.b16 %v3232
      %v3277 = vunpack.c.l.b16 %v3233
      %v3278 = vunpack.c.h.b16 %v3233
      %v3279 = vunpack.c.l.b16 %v3234
      %v3280 = vunpack.c.h.b16 %v3234
      %v3281 = vunpack.c.l.b16 %v3235
      %v3282 = vunpack.c.h.b16 %v3235
      %v3283 = vunpack.c.l.b16 %v3236
      %v3284 = vunpack.c.h.b16 %v3236
      %v3285 = vpack.c.b16 %v3253, %v3253
      %v3286 = vpack.c.b16 %v3254, %v3254
      %v3287 = vpack.c.b16 %v3255, %v3255
      %v3288 = vpack.c.b16 %v3256, %v3256
      %v3289 = vpack.c.b16 %v3257, %v3257
      %v3290 = vpack.c.b16 %v3258, %v3258
      %v3291 = vpack.c.b16 %v3259, %v3259
      %v3292 = vpack.c.b16 %v3260, %v3260
      %v3293 = vpack.c.b16 %v3261, %v3261
      %v3294 = vpack.c.b16 %v3262, %v3262
      %v3295 = vpack.c.b16 %v3263, %v3263
      %v3296 = vpack.c.b16 %v3264, %v3264
      %v3297 = vpack.c.b16 %v3265, %v3265
      %v3298 = vpack.c.b16 %v3266, %v3266
      %v3299 = vpack.c.b16 %v3267, %v3267
      %v3300 = vpack.c.b16 %v3268, %v3268
      %v3301 = vpack.c.b16 %v3269, %v3269
      %v3302 = vpack.c.b16 %v3270, %v3270
      %v3303 = vpack.c.b16 %v3271, %v3271
      %v3304 = vpack.c.b16 %v3272, %v3272
      %v3305 = vpack.c.b16 %v3273, %v3273
      %v3306 = vpack.c.b16 %v3274, %v3274
      %v3307 = vpack.c.b16 %v3275, %v3275
      %v3308 = vpack.c.b16 %v3276, %v3276
      %v3309 = vpack.c.b16 %v3277, %v3277
      %v3310 = vpack.c.b16 %v3278, %v3278
      %v3311 = vpack.c.b16 %v3279, %v3279
      %v3312 = vpack.c.b16 %v3280, %v3280
      %v3313 = vpack.c.b16 %v3281, %v3281
      %v3314 = vpack.c.b16 %v3282, %v3282
      %v3315 = vpack.c.b16 %v3283, %v3283
      %v3316 = vpack.c.b16 %v3284, %v3284
      %3349 = vst [vmem:[%s262] sm:$0xf] %v3285
      %3350 = vst [vmem:[%s262 + $0x4] sm:$0xf] %v3286
      %3351 = vst [vmem:[%s262 + $0x8] sm:$0xf] %v3287
      %3352 = vst [vmem:[%s262 + $0xc] sm:$0xf] %v3288
      %3353 = vst [vmem:[%s262 + $0x10] sm:$0xf] %v3289
      %3354 = vst [vmem:[%s262 + $0x14] sm:$0xf] %v3290
      %3355 = vst [vmem:[%s262 + $0x18] sm:$0xf] %v3291
      %3356 = vst [vmem:[%s262 + $0x1c] sm:$0xf] %v3292
      %3357 = vst [vmem:[%s262 + $0x20] sm:$0xf] %v3293
      %3358 = vst [vmem:[%s262 + $0x24] sm:$0xf] %v3294
      %3359 = vst [vmem:[%s262 + $0x28] sm:$0xf] %v3295
      %3360 = vst [vmem:[%s262 + $0x2c] sm:$0xf] %v3296
      %3361 = vst [vmem:[%s262 + $0x30] sm:$0xf] %v3297
      %3362 = vst [vmem:[%s262 + $0x34] sm:$0xf] %v3298
      %3363 = vst [vmem:[%s262 + $0x38] sm:$0xf] %v3299
      %3364 = vst [vmem:[%s262 + $0x3c] sm:$0xf] %v3300
      %3365 = vst [vmem:[%s262 + $0x40] sm:$0xf] %v3301
      %3366 = vst [vmem:[%s262 + $0x44] sm:$0xf] %v3302
      %3367 = vst [vmem:[%s262 + $0x48] sm:$0xf] %v3303
      %3368 = vst [vmem:[%s262 + $0x4c] sm:$0xf] %v3304
      %3369 = vst [vmem:[%s262 + $0x50] sm:$0xf] %v3305
      %3370 = vst [vmem:[%s262 + $0x54] sm:$0xf] %v3306
      %3371 = vst [vmem:[%s262 + $0x58] sm:$0xf] %v3307
      %3372 = vst [vmem:[%s262 + $0x5c] sm:$0xf] %v3308
      %3373 = vst [vmem:[%s262 + $0x60] sm:$0xf] %v3309
      %3374 = vst [vmem:[%s262 + $0x64] sm:$0xf] %v3310
      %3375 = vst [vmem:[%s262 + $0x68] sm:$0xf] %v3311
      %3376 = vst [vmem:[%s262 + $0x6c] sm:$0xf] %v3312
      %3377 = vst [vmem:[%s262 + $0x70] sm:$0xf] %v3313
      %3378 = vst [vmem:[%s262 + $0x74] sm:$0xf] %v3314
      %3379 = vst [vmem:[%s262 + $0x78] sm:$0xf] %v3315
      %3380 = vst [vmem:[%s262 + $0x7c] sm:$0xf] %v3316
      %v3381 = vadd.f32 %v3189, %v3190
      %v3382 = vadd.f32 %v3381, %v3191
      %v3383 = vadd.f32 %v3382, %v3192
      %v3384 = vadd.f32 %v3383, %v3193
      %v3385 = vadd.f32 %v3384, %v3194
      %v3386 = vadd.f32 %v3385, %v3195
      %v3387 = vadd.f32 %v3386, %v3196
      %v3388 = vadd.f32 %v3387, %v3197
      %v3389 = vadd.f32 %v3388, %v3198
      %v3390 = vadd.f32 %v3389, %v3199
      %v3391 = vadd.f32 %v3390, %v3200
      %v3392 = vadd.f32 %v3391, %v3201
      %v3393 = vadd.f32 %v3392, %v3202
      %v3394 = vadd.f32 %v3393, %v3203
      %v3395 = vadd.f32 %v3394, %v3204
      %v3396 = vadd.f32 %v3395, %v3205
      %v3397 = vadd.f32 %v3396, %v3206
      %v3398 = vadd.f32 %v3397, %v3207
      %v3399 = vadd.f32 %v3398, %v3208
      %v3400 = vadd.f32 %v3399, %v3209
      %v3401 = vadd.f32 %v3400, %v3210
      %v3402 = vadd.f32 %v3401, %v3211
      %v3403 = vadd.f32 %v3402, %v3212
      %v3404 = vadd.f32 %v3403, %v3213
      %v3405 = vadd.f32 %v3404, %v3214
      %v3406 = vadd.f32 %v3405, %v3215
      %v3407 = vadd.f32 %v3406, %v3216
      %v3408 = vadd.f32 %v3407, %v3217
      %v3409 = vadd.f32 %v3408, %v3218
      %v3410 = vadd.f32 %v3409, %v3219
      %v3411 = vadd.f32 %v3410, %v3220
      %v3412 = vrot.slane %v3411, 4
      %v3413 = vadd.f32 %v3411, %v3412
      %v3414 = vrot.slane %v3413, 2
      %v3415 = vadd.f32 %v3413, %v3414
      %v3416 = vrot.slane %v3415, 1
      %v3417 = vadd.f32 %v3415, %v3416
      %3418 = vst [vmem:[%s265] sm:$0x1] %v3417
      %v3419 = vmul.f32 %v3189, %v3189
      %v3420 = vmul.f32 %v3190, %v3190
      %v3421 = vmul.f32 %v3191, %v3191
      %v3422 = vmul.f32 %v3192, %v3192
      %v3423 = vmul.f32 %v3193, %v3193
      %v3424 = vmul.f32 %v3194, %v3194
      %v3425 = vmul.f32 %v3195, %v3195
      %v3426 = vmul.f32 %v3196, %v3196
      %v3427 = vmul.f32 %v3197, %v3197
      %v3428 = vmul.f32 %v3198, %v3198
      %v3429 = vmul.f32 %v3199, %v3199
      %v3430 = vmul.f32 %v3200, %v3200
      %v3431 = vmul.f32 %v3201, %v3201
      %v3432 = vmul.f32 %v3202, %v3202
      %v3433 = vmul.f32 %v3203, %v3203
      %v3434 = vmul.f32 %v3204, %v3204
      %v3435 = vmul.f32 %v3205, %v3205
      %v3436 = vmul.f32 %v3206, %v3206
      %v3437 = vmul.f32 %v3207, %v3207
      %v3438 = vmul.f32 %v3208, %v3208
      %v3439 = vmul.f32 %v3209, %v3209
      %v3440 = vmul.f32 %v3210, %v3210
      %v3441 = vmul.f32 %v3211, %v3211
      %v3442 = vmul.f32 %v3212, %v3212
      %v3443 = vmul.f32 %v3213, %v3213
      %v3444 = vmul.f32 %v3214, %v3214
      %v3445 = vmul.f32 %v3215, %v3215
      %v3446 = vmul.f32 %v3216, %v3216
      %v3447 = vmul.f32 %v3217, %v3217
      %v3448 = vmul.f32 %v3218, %v3218
      %v3449 = vmul.f32 %v3219, %v3219
      %v3450 = vmul.f32 %v3220, %v3220
      %v3451 = vadd.f32 %v3419, %v3420
      %v3452 = vadd.f32 %v3451, %v3421
      %v3453 = vadd.f32 %v3452, %v3422
      %v3454 = vadd.f32 %v3453, %v3423
      %v3455 = vadd.f32 %v3454, %v3424
      %v3456 = vadd.f32 %v3455, %v3425
      %v3457 = vadd.f32 %v3456, %v3426
      %v3458 = vadd.f32 %v3457, %v3427
      %v3459 = vadd.f32 %v3458, %v3428
      %v3460 = vadd.f32 %v3459, %v3429
      %v3461 = vadd.f32 %v3460, %v3430
      %v3462 = vadd.f32 %v3461, %v3431
      %v3463 = vadd.f32 %v3462, %v3432
      %v3464 = vadd.f32 %v3463, %v3433
      %v3465 = vadd.f32 %v3464, %v3434
      %v3466 = vadd.f32 %v3465, %v3435
      %v3467 = vadd.f32 %v3466, %v3436
      %v3468 = vadd.f32 %v3467, %v3437
      %v3469 = vadd.f32 %v3468, %v3438
      %v3470 = vadd.f32 %v3469, %v3439
      %v3471 = vadd.f32 %v3470, %v3440
      %v3472 = vadd.f32 %v3471, %v3441
      %v3473 = vadd.f32 %v3472, %v3442
      %v3474 = vadd.f32 %v3473, %v3443
      %v3475 = vadd.f32 %v3474, %v3444
      %v3476 = vadd.f32 %v3475, %v3445
      %v3477 = vadd.f32 %v3476, %v3446
      %v3478 = vadd.f32 %v3477, %v3447
      %v3479 = vadd.f32 %v3478, %v3448
      %v3480 = vadd.f32 %v3479, %v3449
      %v3481 = vadd.f32 %v3480, %v3450
      %v3482 = vrot.slane %v3481, 4
      %v3483 = vadd.f32 %v3481, %v3482
      %v3484 = vrot.slane %v3483, 2
      %v3485 = vadd.f32 %v3483, %v3484
      %v3486 = vrot.slane %v3485, 1
      %v3487 = vadd.f32 %v3485, %v3486
      %3488 = vst [vmem:[%s268] sm:$0x1] %v3487
      %p3489 = scmp.lt.s32.totalorder %s18, 1
      %s3490 = scalar_select %p3489, %s18, 1
      %s3491 = smul.addr %s3490, 32
      %s3492 = smul.addr %s3491, 4
      %s3493 = scalar_lea.vmem %s4, %s3492
      %p3494 = scmp.lt.s32.totalorder %s18, 1
      %s3495 = scalar_select %p3494, %s18, 1
      %s3496 = scalar_lea.vmem %s5, %s3495
      %p3497 = scmp.lt.s32.totalorder %s18, 1
      %s3498 = scalar_select %p3497, %s18, 1
      %s3499 = scalar_lea.vmem %s6, %s3498
      // Predicated region
      $region37: #{basic_block_forward.4} parent=35 // pred_check
        %p3500 = pneg %p125
      $region38: #{basic_block_forward.4} parent=35 // pred_check_branch
        %3502 = sbr.rel (%p3500) target = $region40
      $region39: #{basic_block_forward.4} parent=35 // pred_region
        _
      $region40: #{basic_block_forward.4} parent=35 // pred_fallthru
        _
      // Predicated region
      $region41: #{basic_block_forward.4} parent=35 // pred_check
        %p3503 = pneg %p151
      $region42: #{basic_block_forward.4} parent=35 // pred_check_branch
        %3505 = sbr.rel (%p3503) target = $region44
      $region43: #{basic_block_forward.4} parent=35 // pred_region
        _
      $region44: #{basic_block_forward.4} parent=35 // pred_fallthru
        _
      // Predicated region
      $region45: #{basic_block_forward.4} parent=35 // pred_check
        %p3506 = pneg %p177
      $region46: #{basic_block_forward.4} parent=35 // pred_check_branch
        %3508 = sbr.rel (%p3506) target = $region48
      $region47: #{basic_block_forward.4} parent=35 // pred_region
        _
      $region48: #{basic_block_forward.4} parent=35 // pred_fallthru
        _
    $region36: #{basic_block_forward.4} parent=5 // pred_fallthru
      _
    %p3509 = scmp.le.s32.totalorder 2, %s13
    // Predicated region
    $region49: #{basic_block_forward.4} parent=5 // pred_check
      %p3510 = pneg %p3509
    $region50: #{basic_block_forward.4} parent=5 // pred_check_branch
      %3512 = sbr.rel (%p3510) target = $region52
    $region51: #{basic_block_forward.4} parent=5 // pred_region
      %s3513 = ssub.s32 %s13, 2
      // Predicated region
      $region53: #{basic_block_forward.4} parent=51 // pred_check
        %p3514 = pneg %p131
      $region54: #{basic_block_forward.4} parent=51 // pred_check_branch
        %3516 = sbr.rel (%p3514) target = $region56
      $region55: #{basic_block_forward.4} parent=51 // pred_region
        %p3517 = scmp.lt.s32.totalorder %s19, 1
        %s3518 = scalar_select %p3517, %s19, 1
        %s3519 = smul.addr %s3518, 32
        %s3520 = smul.addr %s3519, 4
        %s3521 = scalar_lea.vmem %s4, %s3520
      $region56: #{basic_block_forward.4} parent=51 // pred_fallthru
        _
      // Predicated region
      $region57: #{basic_block_forward.4} parent=51 // pred_check
        %p3522 = pneg %p157
      $region58: #{basic_block_forward.4} parent=51 // pred_check_branch
        %3524 = sbr.rel (%p3522) target = $region60
      $region59: #{basic_block_forward.4} parent=51 // pred_region
        %p3525 = scmp.lt.s32.totalorder %s19, 1
        %s3526 = scalar_select %p3525, %s19, 1
        %s3527 = scalar_lea.vmem %s5, %s3526
      $region60: #{basic_block_forward.4} parent=51 // pred_fallthru
        _
      // Predicated region
      $region61: #{basic_block_forward.4} parent=51 // pred_check
        %p3528 = pneg %p183
      $region62: #{basic_block_forward.4} parent=51 // pred_check_branch
        %3530 = sbr.rel (%p3528) target = $region64
      $region63: #{basic_block_forward.4} parent=51 // pred_region
        %p3531 = scmp.lt.s32.totalorder %s19, 1
        %s3532 = scalar_select %p3531, %s19, 1
        %s3533 = scalar_lea.vmem %s6, %s3532
      $region64: #{basic_block_forward.4} parent=51 // pred_fallthru
        _
    $region52: #{basic_block_forward.4} parent=5 // pred_fallthru
      _
  $region6: #{basic_block_forward.4} parent=0 // loop_footer
    %s17 = sadd.s32 1, %s13
  $region7: #{basic_block_forward.4} parent=0 // loop_footer_branch
    %12 = sbr.rel target = $region3
  $region8: #{basic_block_forward.4} parent=0 // loop_exit
    _

// kernel: basic_block_forward.3
$region0: #{basic_block_forward.3}
  #allocation0 [shape = 'u32[]', space=smem, size = 0x4, offset = 0x4, fixed_abs, tag = 'smem constant byte address 0x4 - core index']
  #allocation1 [shape = 'u32[144,128]{1,0:T(1,128)}', space=vmem, size = 0x12000, scoped, tag = 'internal scratch']
  #allocation2 [shape = 'f32[1,18,18,128]{3,2,1,0:T(8,128)}', space=vmem, size = 0x36000, scoped, tag = 'scratch operand']
  %s0 = inlined_call_operand.vmem [shape: bf16[2,18,18,128], index: 0, kind: input, shape index: {}]
  %s1 = inlined_call_operand.vmem [shape: bf16[9,128,128], index: 1, kind: input, shape index: {}]
  %s2 = inlined_call_operand.vmem [shape: bf16[2,16,16,128], index: 2, kind: output, shape index: {0}]
  %s3 = inlined_call_operand.vmem [shape: f32[2,1,128], index: 3, kind: output, shape index: {1}]
  %s4 = inlined_call_operand.vmem [shape: f32[2,1,128], index: 4, kind: output, shape index: {2}]
  %5 = xla_tuple %s2, %s3, %s4
  %s6 = sld [smem:[#allocation0]]
  $region57: #{basic_block_forward.3} parent=0
    _
  %s8 = ssub.s32 1, %s6
  %s9 = scalar_select 0, %s8, %s6
  loop: start=0, step=1, limit=4
  $region2: #{basic_block_forward.3} parent=0 // loop_pre_header
    _
  $region3: #{basic_block_forward.3} parent=0 // loop_header
    %s11 = sphi 0, %s15
    %p12 = scmp.ge.s32.totalorder %s11, 4
    %s21 = sphi 0, %s23
    %s24 = sphi 0, %s21
    %s25 = sphi 0, %s24
    %s41 = sphi 0, %s25
    %s45 = sphi 0, %s45
    %s47 = sphi 0, %s45
    %s48 = sphi 0, %s47
    %s62 = sphi 0, %s48
    %s68 = sphi 0, %s70
    %s71 = sphi 0, %s68
    %s72 = sphi 0, %s71
    %s88 = sphi 0, %s72
    %s94 = sphi 0, %s96
    %s97 = sphi 0, %s94
    %s98 = sphi 0, %s97
    %s114 = sphi 0, %s98
    %s120 = sphi 0, %s122
    %s123 = sphi 0, %s120
    %s124 = sphi 0, %s123
    %s140 = sphi 0, %s124
  $region4: #{basic_block_forward.3} parent=0 // loop_header_branch
    %14 = sbr.rel (%p12) target = $region8
  $region5: #{basic_block_forward.3} parent=0 // loop_body
    %s16 = ssub.s32 %s11, 1
    %s17 = ssub.s32 %s11, 2
    %s18 = sadd.s32 %s11, 1
    %s19 = ssub.s32 %s11, %s18
    %p20 = scmp.eq.s32.totalorder %s19, 0
    %s22 = sadd.s32 %s21, 1
    %s23 = scalar_select %p20, %s21, %s22
    %p26 = pneg %p20
    %p27 = scmp.eq.s32.totalorder %s11, 1
    %p28 = por %p26, %p27
    %p29 = scmp.ne.s32.totalorder %s21, %s24
    %p30 = scmp.eq.s32.totalorder %s11, 0
    %p31 = por %p29, %p30
    %p32 = scmp.ne.s32.totalorder %s21, %s24
    %p33 = scmp.eq.s32.totalorder %s16, 1
    %p34 = por %p32, %p33
    %p35 = scmp.ne.s32.totalorder %s24, %s25
    %p36 = scmp.eq.s32.totalorder %s16, 0
    %p37 = por %p35, %p36
    %p38 = scmp.ne.s32.totalorder %s24, %s25
    %p39 = scmp.eq.s32.totalorder %s17, 1
    %p40 = por %p38, %p39
    %p42 = scmp.ne.s32.totalorder %s25, %s41
    %p43 = scmp.eq.s32.totalorder %s17, 0
    %p44 = por %p42, %p43
    %s46 = sadd.s32 %s45, 1
    %p49 = scmp.eq.s32.totalorder %s11, 1
    %p50 = scmp.ne.s32.totalorder %s45, %s47
    %p51 = scmp.eq.s32.totalorder %s11, 0
    %p52 = por %p50, %p51
    %p53 = scmp.ne.s32.totalorder %s45, %s47
    %p54 = scmp.eq.s32.totalorder %s16, 1
    %p55 = por %p53, %p54
    %p56 = scmp.ne.s32.totalorder %s47, %s48
    %p57 = scmp.eq.s32.totalorder %s16, 0
    %p58 = por %p56, %p57
    %p59 = scmp.ne.s32.totalorder %s47, %s48
    %p60 = scmp.eq.s32.totalorder %s17, 1
    %p61 = por %p59, %p60
    %p63 = scmp.ne.s32.totalorder %s48, %s62
    %p64 = scmp.eq.s32.totalorder %s17, 0
    %p65 = por %p63, %p64
    %s66 = ssub.s32 %s11, %s18
    %p67 = scmp.eq.s32.totalorder %s66, 0
    %s69 = sadd.s32 %s68, 1
    %s70 = scalar_select %p67, %s68, %s69
    %p73 = pneg %p67
    %p74 = scmp.eq.s32.totalorder %s11, 1
    %p75 = por %p73, %p74
    %p76 = scmp.ne.s32.totalorder %s68, %s71
    %p77 = scmp.eq.s32.totalorder %s11, 0
    %p78 = por %p76, %p77
    %p79 = scmp.ne.s32.totalorder %s68, %s71
    %p80 = scmp.eq.s32.totalorder %s16, 1
    %p81 = por %p79, %p80
    %p82 = scmp.ne.s32.totalorder %s71, %s72
    %p83 = scmp.eq.s32.totalorder %s16, 0
    %p84 = por %p82, %p83
    %p85 = scmp.ne.s32.totalorder %s71, %s72
    %p86 = scmp.eq.s32.totalorder %s17, 1
    %p87 = por %p85, %p86
    %p89 = scmp.ne.s32.totalorder %s72, %s88
    %p90 = scmp.eq.s32.totalorder %s17, 0
    %p91 = por %p89, %p90
    %s92 = ssub.s32 %s11, %s18
    %p93 = scmp.eq.s32.totalorder %s92, 0
    %s95 = sadd.s32 %s94, 1
    %s96 = scalar_select %p93, %s94, %s95
    %p99 = pneg %p93
    %p100 = scmp.eq.s32.totalorder %s11, 1
    %p101 = por %p99, %p100
    %p102 = scmp.ne.s32.totalorder %s94, %s97
    %p103 = scmp.eq.s32.totalorder %s11, 0
    %p104 = por %p102, %p103
    %p105 = scmp.ne.s32.totalorder %s94, %s97
    %p106 = scmp.eq.s32.totalorder %s16, 1
    %p107 = por %p105, %p106
    %p108 = scmp.ne.s32.totalorder %s97, %s98
    %p109 = scmp.eq.s32.totalorder %s16, 0
    %p110 = por %p108, %p109
    %p111 = scmp.ne.s32.totalorder %s97, %s98
    %p112 = scmp.eq.s32.totalorder %s17, 1
    %p113 = por %p111, %p112
    %p115 = scmp.ne.s32.totalorder %s98, %s114
    %p116 = scmp.eq.s32.totalorder %s17, 0
    %p117 = por %p115, %p116
    %s118 = ssub.s32 %s11, %s18
    %p119 = scmp.eq.s32.totalorder %s118, 0
    %s121 = sadd.s32 %s120, 1
    %s122 = scalar_select %p119, %s120, %s121
    %p125 = pneg %p119
    %p126 = scmp.eq.s32.totalorder %s11, 1
    %p127 = por %p125, %p126
    %p128 = scmp.ne.s32.totalorder %s120, %s123
    %p129 = scmp.eq.s32.totalorder %s11, 0
    %p130 = por %p128, %p129
    %p131 = scmp.ne.s32.totalorder %s120, %s123
    %p132 = scmp.eq.s32.totalorder %s16, 1
    %p133 = por %p131, %p132
    %p134 = scmp.ne.s32.totalorder %s123, %s124
    %p135 = scmp.eq.s32.totalorder %s16, 0
    %p136 = por %p134, %p135
    %p137 = scmp.ne.s32.totalorder %s123, %s124
    %p138 = scmp.eq.s32.totalorder %s17, 1
    %p139 = por %p137, %p138
    %p141 = scmp.ne.s32.totalorder %s124, %s140
    %p142 = scmp.eq.s32.totalorder %s17, 0
    %p143 = por %p141, %p142
    %p144 = scmp.le.s32.totalorder 1, %s11
    %p145 = scmp.lt.s32.totalorder %s11, 3
    %p146 = pnand %p144, %p145
    %p147 = pneg %p146
    // Predicated region
    $region9: #{basic_block_forward.3} parent=5 // pred_check
      _
    $region10: #{basic_block_forward.3} parent=5 // pred_check_branch
      %149 = sbr.rel (%p146) target = $region12
    $region11: #{basic_block_forward.3} parent=5 // pred_region
      %s150 = ssub.s32 %s11, 1
      // Predicated region
      $region13: #{basic_block_forward.3} parent=11 // pred_check
        %p151 = pneg %p58
      $region14: #{basic_block_forward.3} parent=11 // pred_check_branch
        %153 = sbr.rel (%p151) target = $region16
      $region15: #{basic_block_forward.3} parent=11 // pred_region
        _
      $region16: #{basic_block_forward.3} parent=11 // pred_fallthru
        _
    $region12: #{basic_block_forward.3} parent=5 // pred_fallthru
      _
    %p154 = scmp.lt.s32.totalorder %s11, 2
    // Predicated region
    $region17: #{basic_block_forward.3} parent=5 // pred_check
      %p155 = pneg %p154
    $region18: #{basic_block_forward.3} parent=5 // pred_check_branch
      %157 = sbr.rel (%p155) target = $region20
    $region19: #{basic_block_forward.3} parent=5 // pred_region
      // Predicated region
      $region21: #{basic_block_forward.3} parent=19 // pred_check
        %p158 = pneg %p31
      $region22: #{basic_block_forward.3} parent=19 // pred_check_branch
        %160 = sbr.rel (%p158) target = $region24
      $region23: #{basic_block_forward.3} parent=19 // pred_region
        %p161 = scmp.lt.s32.totalorder %s11, 1
        %s162 = scalar_select %p161, %s11, 1
        %s163 = smul.addr %s162, 54
        %s164 = smul.addr %s163, 4
        %s165 = scalar_lea.vmem %s0, %s164
      $region24: #{basic_block_forward.3} parent=19 // pred_fallthru
        _
    $region20: #{basic_block_forward.3} parent=5 // pred_fallthru
      _
    %p166 = scmp.le.s32.totalorder 1, %s11
    %p167 = scmp.lt.s32.totalorder %s11, 3
    %p168 = pnand %p166, %p167
    %p169 = pneg %p168
    // Predicated region
    $region25: #{basic_block_forward.3} parent=5 // pred_check
      _
    $region26: #{basic_block_forward.3} parent=5 // pred_check_branch
      %171 = sbr.rel (%p168) target = $region28
    $region27: #{basic_block_forward.3} parent=5 // pred_region
      %s172 = ssub.s32 %s11, 1
      %p173 = scmp.lt.s32.totalorder %s16, 1
      %s174 = scalar_select %p173, %s16, 1
      %s175 = smul.addr %s174, 54
      %s176 = smul.addr %s175, 4
      %s177 = scalar_lea.vmem %s0, %s176
      %p178 = pneg %p37
      %p179 = pneg %p34
      %p180 = pneg %p58
      %p181 = pneg %p55
      %p182 = pneg %p84
      %p183 = pneg %p81
      %p184 = scmp.lt.s32.totalorder %s16, 1
      %s185 = scalar_select %p184, %s16, 1
      %s186 = smul.addr %s185, 32
      %s187 = smul.addr %s186, 4
      %s188 = scalar_lea.vmem %s2, %s187
      %p189 = pneg %p110
      %p190 = pneg %p107
      %p191 = scmp.lt.s32.totalorder %s16, 1
      %s192 = scalar_select %p191, %s16, 1
      %s193 = scalar_lea.vmem %s3, %s192
      %p194 = pneg %p136
      %p195 = pneg %p133
      %p196 = scmp.lt.s32.totalorder %s16, 1
      %s197 = scalar_select %p196, %s16, 1
      %s198 = scalar_lea.vmem %s4, %s197
      %p199 = scmp.lt.s32.totalorder %s16, 1
      %s200 = scalar_select %p199, %s16, 1
      %s201 = smul.addr %s200, 54
      %s202 = smul.addr %s201, 4
      %s203 = scalar_lea.vmem %s0, %s202
      %p204 = scmp.lt.s32.totalorder %s16, 1
      %s205 = scalar_select %p204, %s16, 1
      %s206 = smul.addr %s205, 32
      %s207 = smul.addr %s206, 4
      %s208 = scalar_lea.vmem %s2, %s207
      %p209 = scmp.lt.s32.totalorder %s16, 1
      %s210 = scalar_select %p209, %s16, 1
      %s211 = scalar_lea.vmem %s3, %s210
      %p212 = scmp.lt.s32.totalorder %s16, 1
      %s213 = scalar_select %p212, %s16, 1
      %s214 = scalar_lea.vmem %s4, %s213
      %v216 = vld [vmem:[%s203] sm:$0xf]
      %v217 = vld [vmem:[%s203 + $0x4] sm:$0xf]
      %v218 = vld [vmem:[%s203 + $0x8] sm:$0x1]
      %v219 = vld [vmem:[%s203 + $0xc] sm:$0xf]
      %v220 = vld [vmem:[%s203 + $0x10] sm:$0xf]
      %v221 = vld [vmem:[%s203 + $0x14] sm:$0x1]
      %v222 = vld [vmem:[%s203 + $0x18] sm:$0xf]
      %v223 = vld [vmem:[%s203 + $0x1c] sm:$0xf]
      %v224 = vld [vmem:[%s203 + $0x20] sm:$0x1]
      %v225 = vld [vmem:[%s203 + $0x24] sm:$0xf]
      %v226 = vld [vmem:[%s203 + $0x28] sm:$0xf]
      %v227 = vld [vmem:[%s203 + $0x2c] sm:$0x1]
      %v228 = vld [vmem:[%s203 + $0x30] sm:$0xf]
      %v229 = vld [vmem:[%s203 + $0x34] sm:$0xf]
      %v230 = vld [vmem:[%s203 + $0x38] sm:$0x1]
      %v231 = vld [vmem:[%s203 + $0x3c] sm:$0xf]
      %v232 = vld [vmem:[%s203 + $0x40] sm:$0xf]
      %v233 = vld [vmem:[%s203 + $0x44] sm:$0x1]
      %v234 = vld [vmem:[%s203 + $0x48] sm:$0xf]
      %v235 = vld [vmem:[%s203 + $0x4c] sm:$0xf]
      %v236 = vld [vmem:[%s203 + $0x50] sm:$0x1]
      %v237 = vld [vmem:[%s203 + $0x54] sm:$0xf]
      %v238 = vld [vmem:[%s203 + $0x58] sm:$0xf]
      %v239 = vld [vmem:[%s203 + $0x5c] sm:$0x1]
      %v240 = vld [vmem:[%s203 + $0x60] sm:$0xf]
      %v241 = vld [vmem:[%s203 + $0x64] sm:$0xf]
      %v242 = vld [vmem:[%s203 + $0x68] sm:$0x1]
      %v243 = vld [vmem:[%s203 + $0x6c] sm:$0xf]
      %v244 = vld [vmem:[%s203 + $0x70] sm:$0xf]
      %v245 = vld [vmem:[%s203 + $0x74] sm:$0x1]
      %v246 = vld [vmem:[%s203 + $0x78] sm:$0xf]
      %v247 = vld [vmem:[%s203 + $0x7c] sm:$0xf]
      %v248 = vld [vmem:[%s203 + $0x80] sm:$0x1]
      %v249 = vld [vmem:[%s203 + $0x84] sm:$0xf]
      %v250 = vld [vmem:[%s203 + $0x88] sm:$0xf]
      %v251 = vld [vmem:[%s203 + $0x8c] sm:$0x1]
      %v252 = vld [vmem:[%s203 + $0x90] sm:$0xf]
      %v253 = vld [vmem:[%s203 + $0x94] sm:$0xf]
      %v254 = vld [vmem:[%s203 + $0x98] sm:$0x1]
      %v255 = vld [vmem:[%s203 + $0x9c] sm:$0xf]
      %v256 = vld [vmem:[%s203 + $0xa0] sm:$0xf]
      %v257 = vld [vmem:[%s203 + $0xa4] sm:$0x1]
      %v258 = vld [vmem:[%s203 + $0xa8] sm:$0xf]
      %v259 = vld [vmem:[%s203 + $0xac] sm:$0xf]
      %v260 = vld [vmem:[%s203 + $0xb0] sm:$0x1]
      %v261 = vld [vmem:[%s203 + $0xb4] sm:$0xf]
      %v262 = vld [vmem:[%s203 + $0xb8] sm:$0xf]
      %v263 = vld [vmem:[%s203 + $0xbc] sm:$0x1]
      %v264 = vld [vmem:[%s203 + $0xc0] sm:$0xf]
      %v265 = vld [vmem:[%s203 + $0xc4] sm:$0xf]
      %v266 = vld [vmem:[%s203 + $0xc8] sm:$0x1]
      %v267 = vld [vmem:[%s203 + $0xcc] sm:$0xf]
      %v268 = vld [vmem:[%s203 + $0xd0] sm:$0xf]
      %v269 = vld [vmem:[%s203 + $0xd4] sm:$0x1]
      %v270 = vunpack.c.l.bf16 %v216
      %v271 = vunpack.c.l.bf16 %v217
      %v272 = vunpack.c.l.bf16 %v218
      %v273 = vunpack.c.l.bf16 %v219
      %v274 = vunpack.c.l.bf16 %v220
      %v275 = vunpack.c.l.bf16 %v221
      %v276 = vunpack.c.l.bf16 %v222
      %v277 = vunpack.c.l.bf16 %v223
      %v278 = vunpack.c.l.bf16 %v224
      %v279 = vunpack.c.l.bf16 %v225
      %v280 = vunpack.c.l.bf16 %v226
      %v281 = vunpack.c.l.bf16 %v227
      %v282 = vunpack.c.l.bf16 %v228
      %v283 = vunpack.c.l.bf16 %v229
      %v284 = vunpack.c.l.bf16 %v230
      %v285 = vunpack.c.l.bf16 %v231
      %v286 = vunpack.c.l.bf16 %v232
      %v287 = vunpack.c.l.bf16 %v233
      %v288 = vunpack.c.l.bf16 %v234
      %v289 = vunpack.c.l.bf16 %v235
      %v290 = vunpack.c.l.bf16 %v236
      %v291 = vunpack.c.l.bf16 %v237
      %v292 = vunpack.c.l.bf16 %v238
      %v293 = vunpack.c.l.bf16 %v239
      %v294 = vunpack.c.l.bf16 %v240
      %v295 = vunpack.c.l.bf16 %v241
      %v296 = vunpack.c.l.bf16 %v242
      %v297 = vunpack.c.l.bf16 %v243
      %v298 = vunpack.c.l.bf16 %v244
      %v299 = vunpack.c.l.bf16 %v245
      %v300 = vunpack.c.l.bf16 %v246
      %v301 = vunpack.c.l.bf16 %v247
      %v302 = vunpack.c.l.bf16 %v248
      %v303 = vunpack.c.l.bf16 %v249
      %v304 = vunpack.c.l.bf16 %v250
      %v305 = vunpack.c.l.bf16 %v251
      %v306 = vunpack.c.l.bf16 %v252
      %v307 = vunpack.c.l.bf16 %v253
      %v308 = vunpack.c.l.bf16 %v254
      %v309 = vunpack.c.l.bf16 %v255
      %v310 = vunpack.c.l.bf16 %v256
      %v311 = vunpack.c.l.bf16 %v257
      %v312 = vunpack.c.l.bf16 %v258
      %v313 = vunpack.c.l.bf16 %v259
      %v314 = vunpack.c.l.bf16 %v260
      %v315 = vunpack.c.l.bf16 %v261
      %v316 = vunpack.c.l.bf16 %v262
      %v317 = vunpack.c.l.bf16 %v263
      %v318 = vunpack.c.l.bf16 %v264
      %v319 = vunpack.c.l.bf16 %v265
      %v320 = vunpack.c.l.bf16 %v266
      %v321 = vunpack.c.l.bf16 %v267
      %v322 = vunpack.c.l.bf16 %v268
      %v323 = vunpack.c.l.bf16 %v269
      %324 = vst [vmem:[#allocation2] sm:$0xff] %v270
      %325 = vst [vmem:[#allocation2 + $0x8] sm:$0xff] %v271
      %326 = vst [vmem:[#allocation2 + $0x10] sm:$0x3] %v272
      %327 = vst [vmem:[#allocation2 + $0x18] sm:$0xff] %v273
      %328 = vst [vmem:[#allocation2 + $0x20] sm:$0xff] %v274
      %329 = vst [vmem:[#allocation2 + $0x28] sm:$0x3] %v275
      %330 = vst [vmem:[#allocation2 + $0x30] sm:$0xff] %v276
      %331 = vst [vmem:[#allocation2 + $0x38] sm:$0xff] %v277
      %332 = vst [vmem:[#allocation2 + $0x40] sm:$0x3] %v278
      %333 = vst [vmem:[#allocation2 + $0x48] sm:$0xff] %v279
      %334 = vst [vmem:[#allocation2 + $0x50] sm:$0xff] %v280
      %335 = vst [vmem:[#allocation2 + $0x58] sm:$0x3] %v281
      %336 = vst [vmem:[#allocation2 + $0x60] sm:$0xff] %v282
      %337 = vst [vmem:[#allocation2 + $0x68] sm:$0xff] %v283
      %338 = vst [vmem:[#allocation2 + $0x70] sm:$0x3] %v284
      %339 = vst [vmem:[#allocation2 + $0x78] sm:$0xff] %v285
      %340 = vst [vmem:[#allocation2 + $0x80] sm:$0xff] %v286
      %341 = vst [vmem:[#allocation2 + $0x88] sm:$0x3] %v287
      %342 = vst [vmem:[#allocation2 + $0x90] sm:$0xff] %v288
      %343 = vst [vmem:[#allocation2 + $0x98] sm:$0xff] %v289
      %344 = vst [vmem:[#allocation2 + $0xa0] sm:$0x3] %v290
      %345 = vst [vmem:[#allocation2 + $0xa8] sm:$0xff] %v291
      %346 = vst [vmem:[#allocation2 + $0xb0] sm:$0xff] %v292
      %347 = vst [vmem:[#allocation2 + $0xb8] sm:$0x3] %v293
      %348 = vst [vmem:[#allocation2 + $0xc0] sm:$0xff] %v294
      %349 = vst [vmem:[#allocation2 + $0xc8] sm:$0xff] %v295
      %350 = vst [vmem:[#allocation2 + $0xd0] sm:$0x3] %v296
      %351 = vst [vmem:[#allocation2 + $0xd8] sm:$0xff] %v297
      %352 = vst [vmem:[#allocation2 + $0xe0] sm:$0xff] %v298
      %353 = vst [vmem:[#allocation2 + $0xe8] sm:$0x3] %v299
      %354 = vst [vmem:[#allocation2 + $0xf0] sm:$0xff] %v300
      %355 = vst [vmem:[#allocation2 + $0xf8] sm:$0xff] %v301
      %356 = vst [vmem:[#allocation2 + $0x100] sm:$0x3] %v302
      %357 = vst [vmem:[#allocation2 + $0x108] sm:$0xff] %v303
      %358 = vst [vmem:[#allocation2 + $0x110] sm:$0xff] %v304
      %359 = vst [vmem:[#allocation2 + $0x118] sm:$0x3] %v305
      %360 = vst [vmem:[#allocation2 + $0x120] sm:$0xff] %v306
      %361 = vst [vmem:[#allocation2 + $0x128] sm:$0xff] %v307
      %362 = vst [vmem:[#allocation2 + $0x130] sm:$0x3] %v308
      %363 = vst [vmem:[#allocation2 + $0x138] sm:$0xff] %v309
      %364 = vst [vmem:[#allocation2 + $0x140] sm:$0xff] %v310
      %365 = vst [vmem:[#allocation2 + $0x148] sm:$0x3] %v311
      %366 = vst [vmem:[#allocation2 + $0x150] sm:$0xff] %v312
      %367 = vst [vmem:[#allocation2 + $0x158] sm:$0xff] %v313
      %368 = vst [vmem:[#allocation2 + $0x160] sm:$0x3] %v314
      %369 = vst [vmem:[#allocation2 + $0x168] sm:$0xff] %v315
      %370 = vst [vmem:[#allocation2 + $0x170] sm:$0xff] %v316
      %371 = vst [vmem:[#allocation2 + $0x178] sm:$0x3] %v317
      %372 = vst [vmem:[#allocation2 + $0x180] sm:$0xff] %v318
      %373 = vst [vmem:[#allocation2 + $0x188] sm:$0xff] %v319
      %374 = vst [vmem:[#allocation2 + $0x190] sm:$0x3] %v320
      %375 = vst [vmem:[#allocation2 + $0x198] sm:$0xff] %v321
      %376 = vst [vmem:[#allocation2 + $0x1a0] sm:$0xff] %v322
      %377 = vst [vmem:[#allocation2 + $0x1a8] sm:$0x3] %v323
      %v378 = vld [vmem:[#allocation2] sm:$0xff]
      %v379 = vld [vmem:[#allocation2 + $0x8] sm:$0xff]
      %v380 = vld [vmem:[#allocation2 + $0x18] sm:$0xff]
      %v381 = vld [vmem:[#allocation2 + $0x20] sm:$0xff]
      %v382 = vld [vmem:[#allocation2 + $0x30] sm:$0xff]
      %v383 = vld [vmem:[#allocation2 + $0x38] sm:$0xff]
      %v384 = vld [vmem:[#allocation2 + $0x48] sm:$0xff]
      %v385 = vld [vmem:[#allocation2 + $0x50] sm:$0xff]
      %v386 = vld [vmem:[#allocation2 + $0x60] sm:$0xff]
      %v387 = vld [vmem:[#allocation2 + $0x68] sm:$0xff]
      %v388 = vld [vmem:[#allocation2 + $0x78] sm:$0xff]
      %v389 = vld [vmem:[#allocation2 + $0x80] sm:$0xff]
      %v390 = vld [vmem:[#allocation2 + $0x90] sm:$0xff]
      %v391 = vld [vmem:[#allocation2 + $0x98] sm:$0xff]
      %v392 = vld [vmem:[#allocation2 + $0xa8] sm:$0xff]
      %v393 = vld [vmem:[#allocation2 + $0xb0] sm:$0xff]
      %v394 = vld [vmem:[#allocation2 + $0xc0] sm:$0xff]
      %v395 = vld [vmem:[#allocation2 + $0xc8] sm:$0xff]
      %v396 = vld [vmem:[#allocation2 + $0xd8] sm:$0xff]
      %v397 = vld [vmem:[#allocation2 + $0xe0] sm:$0xff]
      %v398 = vld [vmem:[#allocation2 + $0xf0] sm:$0xff]
      %v399 = vld [vmem:[#allocation2 + $0xf8] sm:$0xff]
      %v400 = vld [vmem:[#allocation2 + $0x108] sm:$0xff]
      %v401 = vld [vmem:[#allocation2 + $0x110] sm:$0xff]
      %v402 = vld [vmem:[#allocation2 + $0x120] sm:$0xff]
      %v403 = vld [vmem:[#allocation2 + $0x128] sm:$0xff]
      %v404 = vld [vmem:[#allocation2 + $0x138] sm:$0xff]
      %v405 = vld [vmem:[#allocation2 + $0x140] sm:$0xff]
      %v406 = vld [vmem:[#allocation2 + $0x150] sm:$0xff]
      %v407 = vld [vmem:[#allocation2 + $0x158] sm:$0xff]
      %v408 = vld [vmem:[#allocation2 + $0x168] sm:$0xff]
      %v409 = vld [vmem:[#allocation2 + $0x170] sm:$0xff]
      %v410 = vpack.c.bf16 %v379, %v378
      %v411 = vpack.c.bf16 %v381, %v380
      %v412 = vpack.c.bf16 %v383, %v382
      %v413 = vpack.c.bf16 %v385, %v384
      %v414 = vpack.c.bf16 %v387, %v386
      %v415 = vpack.c.bf16 %v389, %v388
      %v416 = vpack.c.bf16 %v391, %v390
      %v417 = vpack.c.bf16 %v393, %v392
      %v418 = vpack.c.bf16 %v395, %v394
      %v419 = vpack.c.bf16 %v397, %v396
      %v420 = vpack.c.bf16 %v399, %v398
      %v421 = vpack.c.bf16 %v401, %v400
      %v422 = vpack.c.bf16 %v403, %v402
      %v423 = vpack.c.bf16 %v405, %v404
      %v424 = vpack.c.bf16 %v407, %v406
      %v425 = vpack.c.bf16 %v409, %v408
      %v426 = vld [vmem:[%s1] sm:$0xf]
      %v427 = vld [vmem:[%s1 + $0x4] sm:$0xf]
      %v428 = vld [vmem:[%s1 + $0x8] sm:$0xf]
      %v429 = vld [vmem:[%s1 + $0xc] sm:$0xf]
      %v430 = vld [vmem:[%s1 + $0x10] sm:$0xf]
      %v431 = vld [vmem:[%s1 + $0x14] sm:$0xf]
      %v432 = vld [vmem:[%s1 + $0x18] sm:$0xf]
      %v433 = vld [vmem:[%s1 + $0x1c] sm:$0xf]
      %v434 = vld [vmem:[%s1 + $0x20] sm:$0xf]
      %v435 = vld [vmem:[%s1 + $0x24] sm:$0xf]
      %v436 = vld [vmem:[%s1 + $0x28] sm:$0xf]
      %v437 = vld [vmem:[%s1 + $0x2c] sm:$0xf]
      %v438 = vld [vmem:[%s1 + $0x30] sm:$0xf]
      %v439 = vld [vmem:[%s1 + $0x34] sm:$0xf]
      %v440 = vld [vmem:[%s1 + $0x38] sm:$0xf]
      %v441 = vld [vmem:[%s1 + $0x3c] sm:$0xf]
      %v442 = vld [vmem:[#allocation2 + $0x1] sm:$0xff]
      %v443 = vld [vmem:[#allocation2 + $0x9] sm:$0xff]
      %v444 = vld [vmem:[#allocation2 + $0x19] sm:$0xff]
      %v445 = vld [vmem:[#allocation2 + $0x21] sm:$0xff]
      %v446 = vld [vmem:[#allocation2 + $0x31] sm:$0xff]
      %v447 = vld [vmem:[#allocation2 + $0x39] sm:$0xff]
      %v448 = vld [vmem:[#allocation2 + $0x49] sm:$0xff]
      %v449 = vld [vmem:[#allocation2 + $0x51] sm:$0xff]
      %v450 = vld [vmem:[#allocation2 + $0x61] sm:$0xff]
      %v451 = vld [vmem:[#allocation2 + $0x69] sm:$0xff]
      %v452 = vld [vmem:[#allocation2 + $0x79] sm:$0xff]
      %v453 = vld [vmem:[#allocation2 + $0x81] sm:$0xff]
      %v454 = vld [vmem:[#allocation2 + $0x91] sm:$0xff]
      %v455 = vld [vmem:[#allocation2 + $0x99] sm:$0xff]
      %v456 = vld [vmem:[#allocation2 + $0xa9] sm:$0xff]
      %v457 = vld [vmem:[#allocation2 + $0xb1] sm:$0xff]
      %v458 = vld [vmem:[#allocation2 + $0xc1] sm:$0xff]
      %v459 = vld [vmem:[#allocation2 + $0xc9] sm:$0xff]
      %v460 = vld [vmem:[#allocation2 + $0xd9] sm:$0xff]
      %v461 = vld [vmem:[#allocation2 + $0xe1] sm:$0xff]
      %v462 = vld [vmem:[#allocation2 + $0xf1] sm:$0xff]
      %v463 = vld [vmem:[#allocation2 + $0xf9] sm:$0xff]
      %v464 = vld [vmem:[#allocation2 + $0x109] sm:$0xff]
      %v465 = vld [vmem:[#allocation2 + $0x111] sm:$0xff]
      %v466 = vld [vmem:[#allocation2 + $0x121] sm:$0xff]
      %v467 = vld [vmem:[#allocation2 + $0x129] sm:$0xff]
      %v468 = vld [vmem:[#allocation2 + $0x139] sm:$0xff]
      %v469 = vld [vmem:[#allocation2 + $0x141] sm:$0xff]
      %v470 = vld [vmem:[#allocation2 + $0x151] sm:$0xff]
      %v471 = vld [vmem:[#allocation2 + $0x159] sm:$0xff]
      %v472 = vld [vmem:[#allocation2 + $0x169] sm:$0xff]
      %v473 = vld [vmem:[#allocation2 + $0x171] sm:$0xff]
      %v474 = vpack.c.bf16 %v443, %v442
      %v475 = vpack.c.bf16 %v445, %v444
      %v476 = vpack.c.bf16 %v447, %v446
      %v477 = vpack.c.bf16 %v449, %v448
      %v478 = vpack.c.bf16 %v451, %v450
      %v479 = vpack.c.bf16 %v453, %v452
      %v480 = vpack.c.bf16 %v455, %v454
      %v481 = vpack.c.bf16 %v457, %v456
      %v482 = vpack.c.bf16 %v459, %v458
      %v483 = vpack.c.bf16 %v461, %v460
      %v484 = vpack.c.bf16 %v463, %v462
      %v485 = vpack.c.bf16 %v465, %v464
      %v486 = vpack.c.bf16 %v467, %v466
      %v487 = vpack.c.bf16 %v469, %v468
      %v488 = vpack.c.bf16 %v471, %v470
      %v489 = vpack.c.bf16 %v473, %v472
      %s490 = scalar_lea.vmem %s1, 64
      %v491 = vld [vmem:[%s490] sm:$0xf]
      %v492 = vld [vmem:[%s490 + $0x4] sm:$0xf]
      %v493 = vld [vmem:[%s490 + $0x8] sm:$0xf]
      %v494 = vld [vmem:[%s490 + $0xc] sm:$0xf]
      %v495 = vld [vmem:[%s490 + $0x10] sm:$0xf]
      %v496 = vld [vmem:[%s490 + $0x14] sm:$0xf]
      %v497 = vld [vmem:[%s490 + $0x18] sm:$0xf]
      %v498 = vld [vmem:[%s490 + $0x1c] sm:$0xf]
      %v499 = vld [vmem:[%s490 + $0x20] sm:$0xf]
      %v500 = vld [vmem:[%s490 + $0x24] sm:$0xf]
      %v501 = vld [vmem:[%s490 + $0x28] sm:$0xf]
      %v502 = vld [vmem:[%s490 + $0x2c] sm:$0xf]
      %v503 = vld [vmem:[%s490 + $0x30] sm:$0xf]
      %v504 = vld [vmem:[%s490 + $0x34] sm:$0xf]
      %v505 = vld [vmem:[%s490 + $0x38] sm:$0xf]
      %v506 = vld [vmem:[%s490 + $0x3c] sm:$0xf]
      %v523 = vunpack.c.l.b16 %v491
      %v524 = vunpack.c.l.b16 %v492
      %v525 = vunpack.c.l.b16 %v493
      %v526 = vunpack.c.l.b16 %v494
      %v527 = vunpack.c.l.b16 %v495
      %v528 = vunpack.c.l.b16 %v496
      %v529 = vunpack.c.l.b16 %v497
      %v530 = vunpack.c.l.b16 %v498
      %v531 = vunpack.c.l.b16 %v499
      %v532 = vunpack.c.l.b16 %v500
      %v533 = vunpack.c.l.b16 %v501
      %v534 = vunpack.c.l.b16 %v502
      %v535 = vunpack.c.l.b16 %v503
      %v536 = vunpack.c.l.b16 %v504
      %v537 = vunpack.c.l.b16 %v505
      %v538 = vunpack.c.l.b16 %v506
      %v539 = vpack.c.b16 %v524, %v523
      %v540 = vpack.c.b16 %v526, %v525
      %v541 = vpack.c.b16 %v528, %v527
      %v542 = vpack.c.b16 %v530, %v529
      %v543 = vpack.c.b16 %v532, %v531
      %v544 = vpack.c.b16 %v534, %v533
      %v545 = vpack.c.b16 %v536, %v535
      %v546 = vpack.c.b16 %v538, %v537
      %555 = vmatprep.subr.bf16.mxu0 0
      %556 = vmatpush1.bf16.msra.mxu0 %v539
      %557 = vmatprep.subr.bf16.mxu0 0
      %558 = vmatpush1.bf16.msra.mxu0 %v540
      %559 = vmatprep.subr.bf16.mxu0 0
      %560 = vmatpush1.bf16.msra.mxu0 %v541
      %561 = vmatprep.subr.bf16.mxu0 0
      %562 = vmatpush1.bf16.msra.mxu0 %v542
      %563 = vmatprep.subr.bf16.mxu0 0
      %564 = vmatpush1.bf16.msra.mxu0 %v543
      %565 = vmatprep.subr.bf16.mxu0 0
      %566 = vmatpush1.bf16.msra.mxu0 %v544
      %567 = vmatprep.subr.bf16.mxu0 0
      %568 = vmatpush1.bf16.msra.mxu0 %v545
      %569 = vmatprep.subr.bf16.mxu0 0
      %570 = vmatpush1.bf16.msra.mxu0 %v546
      %571 = vmatprep.subr.bf16.mxu0 0
      %572 = vmatpush1.bf16.msra.mxu0 0
      %573 = vmatprep.subr.bf16.mxu0 0
      %574 = vmatpush1.bf16.msra.mxu0 0
      %575 = vmatprep.subr.bf16.mxu0 0
      %576 = vmatpush1.bf16.msra.mxu0 0
      %577 = vmatprep.subr.bf16.mxu0 0
      %578 = vmatpush1.bf16.msra.mxu0 0
      %579 = vmatprep.subr.bf16.mxu0 0
      %580 = vmatpush1.bf16.msra.mxu0 0
      %581 = vmatprep.subr.bf16.mxu0 0
      %582 = vmatpush1.bf16.msra.mxu0 0
      %583 = vmatprep.subr.bf16.mxu0 0
      %584 = vmatpush1.bf16.msra.mxu0 0
      %585 = vmatprep.subr.bf16.mxu0 0
      %586 = vmatpush1.bf16.msra.mxu0 0
      %587 = vmatprep.mubr.bf16.mxu0 0
      %588 = vmatmul.mubr.bf16.gmra.mrb[0].mxu0 %v474
      %v589 = vpop.f32.mrb[0].mxu0
      %v590 = vadd.f32 0.0, %v589
      %v591 = vpop.f32.mrb[0].mxu0
      %v592 = vpop.f32.mrb[0].mxu0
      %v593 = vadd.f32 0.0, %v592
      %v594 = vpop.f32.mrb[0].mxu0
      %595 = vmatprep.mubr.bf16.mxu0 0
      %596 = vmatmul.mubr.bf16.gmra.mrb[0].mxu0 %v475
      %v597 = vpop.f32.mrb[0].mxu0
      %v598 = vadd.f32 0.0, %v597
      %v599 = vpop.f32.mrb[0].mxu0
      %v600 = vpop.f32.mrb[0].mxu0
      %v601 = vadd.f32 0.0, %v600
      %v602 = vpop.f32.mrb[0].mxu0
      %603 = vmatprep.mubr.bf16.mxu0 0
      %604 = vmatmul.mubr.bf16.gmra.mrb[0].mxu0 %v476
      %v605 = vpop.f32.mrb[0].mxu0
      %v606 = vadd.f32 0.0, %v605
      %v607 = vpop.f32.mrb[0].mxu0
      %v608 = vpop.f32.mrb[0].mxu0
      %v609 = vadd.f32 0.0, %v608
      %v610 = vpop.f32.mrb[0].mxu0
      %611 = vmatprep.mubr.bf16.mxu0 0
      %612 = vmatmul.mubr.bf16.gmra.mrb[0].mxu0 %v477
      %v613 = vpop.f32.mrb[0].mxu0
      %v614 = vadd.f32 0.0, %v613
      %v615 = vpop.f32.mrb[0].mxu0
      %v616 = vpop.f32.mrb[0].mxu0
      %v617 = vadd.f32 0.0, %v616
      %v618 = vpop.f32.mrb[0].mxu0
      %619 = vmatprep.mubr.bf16.mxu0 0
      %620 = vmatmul.mubr.bf16.gmra.mrb[0].mxu0 %v478
      %v621 = vpop.f32.mrb[0].mxu0
      %v622 = vadd.f32 0.0, %v621
      %v623 = vpop.f32.mrb[0].mxu0
      %v624 = vpop.f32.mrb[0].mxu0
      %v625 = vadd.f32 0.0, %v624
      %v626 = vpop.f32.mrb[0].mxu0
      %627 = vmatprep.mubr.bf16.mxu0 0
      %628 = vmatmul.mubr.bf16.gmra.mrb[0].mxu0 %v479
      %v629 = vpop.f32.mrb[0].mxu0
      %v630 = vadd.f32 0.0, %v629
      %v631 = vpop.f32.mrb[0].mxu0
      %v632 = vpop.f32.mrb[0].mxu0
      %v633 = vadd.f32 0.0, %v632
      %v634 = vpop.f32.mrb[0].mxu0
      %635 = vmatprep.mubr.bf16.mxu0 0
      %636 = vmatmul.mubr.bf16.gmra.mrb[0].mxu0 %v480
      %v637 = vpop.f32.mrb[0].mxu0
      %v638 = vadd.f32 0.0, %v637
      %v639 = vpop.f32.mrb[0].mxu0
      %v640 = vpop.f32.mrb[0].mxu0
      %v641 = vadd.f32 0.0, %v640
      %v642 = vpop.f32.mrb[0].mxu0
      %643 = vmatprep.mubr.bf16.mxu0 0
      %644 = vmatmul.mubr.bf16.gmra.mrb[0].mxu0 %v481
      %v645 = vpop.f32.mrb[0].mxu0
      %v646 = vadd.f32 0.0, %v645
      %v647 = vpop.f32.mrb[0].mxu0
      %v648 = vpop.f32.mrb[0].mxu0
      %v649 = vadd.f32 0.0, %v648
      %v650 = vpop.f32.mrb[0].mxu0
      %651 = vmatprep.mubr.bf16.mxu0 0
      %652 = vmatmul.mubr.bf16.gmra.mrb[0].mxu0 %v482
      %v653 = vpop.f32.mrb[0].mxu0
      %v654 = vadd.f32 0.0, %v653
      %v655 = vpop.f32.mrb[0].mxu0
      %v656 = vpop.f32.mrb[0].mxu0
      %v657 = vadd.f32 0.0, %v656
      %v658 = vpop.f32.mrb[0].mxu0
      %659 = vmatprep.mubr.bf16.mxu0 0
      %660 = vmatmul.mubr.bf16.gmra.mrb[0].mxu0 %v483
      %v661 = vpop.f32.mrb[0].mxu0
      %v662 = vadd.f32 0.0, %v661
      %v663 = vpop.f32.mrb[0].mxu0
      %v664 = vpop.f32.mrb[0].mxu0
      %v665 = vadd.f32 0.0, %v664
      %v666 = vpop.f32.mrb[0].mxu0
      %667 = vmatprep.mubr.bf16.mxu0 0
      %668 = vmatmul.mubr.bf16.gmra.mrb[0].mxu0 %v484
      %v669 = vpop.f32.mrb[0].mxu0
      %v670 = vadd.f32 0.0, %v669
      %v671 = vpop.f32.mrb[0].mxu0
      %v672 = vpop.f32.mrb[0].mxu0
      %v673 = vadd.f32 0.0, %v672
      %v674 = vpop.f32.mrb[0].mxu0
      %675 = vmatprep.mubr.bf16.mxu0 0
      %676 = vmatmul.mubr.bf16.gmra.mrb[0].mxu0 %v485
      %v677 = vpop.f32.mrb[0].mxu0
      %v678 = vadd.f32 0.0, %v677
      %v679 = vpop.f32.mrb[0].mxu0
      %v680 = vpop.f32.mrb[0].mxu0
      %v681 = vadd.f32 0.0, %v680
      %v682 = vpop.f32.mrb[0].mxu0
      %683 = vmatprep.mubr.bf16.mxu0 0
      %684 = vmatmul.mubr.bf16.gmra.mrb[0].mxu0 %v486
      %v685 = vpop.f32.mrb[0].mxu0
      %v686 = vadd.f32 0.0, %v685
      %v687 = vpop.f32.mrb[0].mxu0
      %v688 = vpop.f32.mrb[0].mxu0
      %v689 = vadd.f32 0.0, %v688
      %v690 = vpop.f32.mrb[0].mxu0
      %691 = vmatprep.mubr.bf16.mxu0 0
      %692 = vmatmul.mubr.bf16.gmra.mrb[0].mxu0 %v487
      %v693 = vpop.f32.mrb[0].mxu0
      %v694 = vadd.f32 0.0, %v693
      %v695 = vpop.f32.mrb[0].mxu0
      %v696 = vpop.f32.mrb[0].mxu0
      %v697 = vadd.f32 0.0, %v696
      %v698 = vpop.f32.mrb[0].mxu0
      %699 = vmatprep.mubr.bf16.mxu0 0
      %700 = vmatmul.mubr.bf16.gmra.mrb[0].mxu0 %v488
      %v701 = vpop.f32.mrb[0].mxu0
      %v702 = vadd.f32 0.0, %v701
      %v703 = vpop.f32.mrb[0].mxu0
      %v704 = vpop.f32.mrb[0].mxu0
      %v705 = vadd.f32 0.0, %v704
      %v706 = vpop.f32.mrb[0].mxu0
      %707 = vmatprep.mubr.bf16.mxu0 0
      %708 = vmatmul.mubr.bf16.gmra.mrb[0].mxu0 %v489
      %v709 = vpop.f32.mrb[0].mxu0
      %v710 = vadd.f32 0.0, %v709
      %v711 = vpop.f32.mrb[0].mxu0
      %v712 = vpop.f32.mrb[0].mxu0
      %v713 = vadd.f32 0.0, %v712
      %v714 = vpop.f32.mrb[0].mxu0
      %715 = vdwg.mxu0
      %v732 = vunpack.c.l.b16 %v426
      %v733 = vunpack.c.l.b16 %v427
      %v734 = vunpack.c.l.b16 %v428
      %v735 = vunpack.c.l.b16 %v429
      %v736 = vunpack.c.l.b16 %v430
      %v737 = vunpack.c.l.b16 %v431
      %v738 = vunpack.c.l.b16 %v432
      %v739 = vunpack.c.l.b16 %v433
      %v740 = vunpack.c.l.b16 %v434
      %v741 = vunpack.c.l.b16 %v435
      %v742 = vunpack.c.l.b16 %v436
      %v743 = vunpack.c.l.b16 %v437
      %v744 = vunpack.c.l.b16 %v438
      %v745 = vunpack.c.l.b16 %v439
      %v746 = vunpack.c.l.b16 %v440
      %v747 = vunpack.c.l.b16 %v441
      %v748 = vpack.c.b16 %v733, %v732
      %v749 = vpack.c.b16 %v735, %v734
      %v750 = vpack.c.b16 %v737, %v736
      %v751 = vpack.c.b16 %v739, %v738
      %v752 = vpack.c.b16 %v741, %v740
      %v753 = vpack.c.b16 %v743, %v742
      %v754 = vpack.c.b16 %v745, %v744
      %v755 = vpack.c.b16 %v747, %v746
      %764 = vmatprep.subr.bf16.mxu0 0
      %765 = vmatpush1.bf16.msra.mxu0 %v748
      %766 = vmatprep.subr.bf16.mxu0 0
      %767 = vmatpush1.bf16.msra.mxu0 %v749
      %768 = vmatprep.subr.bf16.mxu0 0
      %769 = vmatpush1.bf16.msra.mxu0 %v750
      %770 = vmatprep.subr.bf16.mxu0 0
      %771 = vmatpush1.bf16.msra.mxu0 %v751
      %772 = vmatprep.subr.bf16.mxu0 0
      %773 = vmatpush1.bf16.msra.mxu0 %v752
      %774 = vmatprep.subr.bf16.mxu0 0
      %775 = vmatpush1.bf16.msra.mxu0 %v753
      %776 = vmatprep.subr.bf16.mxu0 0
      %777 = vmatpush1.bf16.msra.mxu0 %v754
      %778 = vmatprep.subr.bf16.mxu0 0
      %779 = vmatpush1.bf16.msra.mxu0 %v755
      %780 = vmatprep.subr.bf16.mxu0 0
      %781 = vmatpush1.bf16.msra.mxu0 0
      %782 = vmatprep.subr.bf16.mxu0 0
      %783 = vmatpush1.bf16.msra.mxu0 0
      %784 = vmatprep.subr.bf16.mxu0 0
      %785 = vmatpush1.bf16.msra.mxu0 0
      %786 = vmatprep.subr.bf16.mxu0 0
      %787 = vmatpush1.bf16.msra.mxu0 0
      %788 = vmatprep.subr.bf16.mxu0 0
      %789 = vmatpush1.bf16.msra.mxu0 0
      %790 = vmatprep.subr.bf16.mxu0 0
      %791 = vmatpush1.bf16.msra.mxu0 0
      %792 = vmatprep.subr.bf16.mxu0 0
      %793 = vmatpush1.bf16.msra.mxu0 0
      %794 = vmatprep.subr.bf16.mxu0 0
      %795 = vmatpush1.bf16.msra.mxu0 0
      %796 = vmatprep.mubr.bf16.mxu0 0
      %797 = vmatmul.mubr.bf16.gmra.mrb[0].mxu0 %v410
      %v798 = vpop.f32.mrb[0].mxu0
      %v799 = vadd.f32 %v590, %v798
      %v800 = vpop.f32.mrb[0].mxu0
      %v801 = vpop.f32.mrb[0].mxu0
      %v802 = vadd.f32 %v593, %v801
      %v803 = vpop.f32.mrb[0].mxu0
      %804 = vmatprep.mubr.bf16.mxu0 0
      %805 = vmatmul.mubr.bf16.gmra.mrb[0].mxu0 %v411
      %v806 = vpop.f32.mrb[0].mxu0
      %v807 = vadd.f32 %v598, %v806
      %v808 = vpop.f32.mrb[0].mxu0
      %v809 = vpop.f32.mrb[0].mxu0
      %v810 = vadd.f32 %v601, %v809
      %v811 = vpop.f32.mrb[0].mxu0
      %812 = vmatprep.mubr.bf16.mxu0 0
      %813 = vmatmul.mubr.bf16.gmra.mrb[0].mxu0 %v412
      %v814 = vpop.f32.mrb[0].mxu0
      %v815 = vadd.f32 %v606, %v814
      %v816 = vpop.f32.mrb[0].mxu0
      %v817 = vpop.f32.mrb[0].mxu0
      %v818 = vadd.f32 %v609, %v817
      %v819 = vpop.f32.mrb[0].mxu0
      %820 = vmatprep.mubr.bf16.mxu0 0
      %821 = vmatmul.mubr.bf16.gmra.mrb[0].mxu0 %v413
      %v822 = vpop.f32.mrb[0].mxu0
      %v823 = vadd.f32 %v614, %v822
      %v824 = vpop.f32.mrb[0].mxu0
      %v825 = vpop.f32.mrb[0].mxu0
      %v826 = vadd.f32 %v617, %v825
      %v827 = vpop.f32.mrb[0].mxu0
      %828 = vmatprep.mubr.bf16.mxu0 0
      %829 = vmatmul.mubr.bf16.gmra.mrb[0].mxu0 %v414
      %v830 = vpop.f32.mrb[0].mxu0
      %v831 = vadd.f32 %v622, %v830
      %v832 = vpop.f32.mrb[0].mxu0
      %v833 = vpop.f32.mrb[0].mxu0
      %v834 = vadd.f32 %v625, %v833
      %v835 = vpop.f32.mrb[0].mxu0
      %836 = vmatprep.mubr.bf16.mxu0 0
      %837 = vmatmul.mubr.bf16.gmra.mrb[0].mxu0 %v415
      %v838 = vpop.f32.mrb[0].mxu0
      %v839 = vadd.f32 %v630, %v838
      %v840 = vpop.f32.mrb[0].mxu0
      %v841 = vpop.f32.mrb[0].mxu0
      %v842 = vadd.f32 %v633, %v841
      %v843 = vpop.f32.mrb[0].mxu0
      %844 = vmatprep.mubr.bf16.mxu0 0
      %845 = vmatmul.mubr.bf16.gmra.mrb[0].mxu0 %v416
      %v846 = vpop.f32.mrb[0].mxu0
      %v847 = vadd.f32 %v638, %v846
      %v848 = vpop.f32.mrb[0].mxu0
      %v849 = vpop.f32.mrb[0].mxu0
      %v850 = vadd.f32 %v641, %v849
      %v851 = vpop.f32.mrb[0].mxu0
      %852 = vmatprep.mubr.bf16.mxu0 0
      %853 = vmatmul.mubr.bf16.gmra.mrb[0].mxu0 %v417
      %v854 = vpop.f32.mrb[0].mxu0
      %v855 = vadd.f32 %v646, %v854
      %v856 = vpop.f32.mrb[0].mxu0
      %v857 = vpop.f32.mrb[0].mxu0
      %v858 = vadd.f32 %v649, %v857
      %v859 = vpop.f32.mrb[0].mxu0
      %860 = vmatprep.mubr.bf16.mxu0 0
      %861 = vmatmul.mubr.bf16.gmra.mrb[0].mxu0 %v418
      %v862 = vpop.f32.mrb[0].mxu0
      %v863 = vadd.f32 %v654, %v862
      %v864 = vpop.f32.mrb[0].mxu0
      %v865 = vpop.f32.mrb[0].mxu0
      %v866 = vadd.f32 %v657, %v865
      %v867 = vpop.f32.mrb[0].mxu0
      %868 = vmatprep.mubr.bf16.mxu0 0
      %869 = vmatmul.mubr.bf16.gmra.mrb[0].mxu0 %v419
      %v870 = vpop.f32.mrb[0].mxu0
      %v871 = vadd.f32 %v662, %v870
      %v872 = vpop.f32.mrb[0].mxu0
      %v873 = vpop.f32.mrb[0].mxu0
      %v874 = vadd.f32 %v665, %v873
      %v875 = vpop.f32.mrb[0].mxu0
      %876 = vmatprep.mubr.bf16.mxu0 0
      %877 = vmatmul.mubr.bf16.gmra.mrb[0].mxu0 %v420
      %v878 = vpop.f32.mrb[0].mxu0
      %v879 = vadd.f32 %v670, %v878
      %v880 = vpop.f32.mrb[0].mxu0
      %v881 = vpop.f32.mrb[0].mxu0
      %v882 = vadd.f32 %v673, %v881
      %v883 = vpop.f32.mrb[0].mxu0
      %884 = vmatprep.mubr.bf16.mxu0 0
      %885 = vmatmul.mubr.bf16.gmra.mrb[0].mxu0 %v421
      %v886 = vpop.f32.mrb[0].mxu0
      %v887 = vadd.f32 %v678, %v886
      %v888 = vpop.f32.mrb[0].mxu0
      %v889 = vpop.f32.mrb[0].mxu0
      %v890 = vadd.f32 %v681, %v889
      %v891 = vpop.f32.mrb[0].mxu0
      %892 = vmatprep.mubr.bf16.mxu0 0
      %893 = vmatmul.mubr.bf16.gmra.mrb[0].mxu0 %v422
      %v894 = vpop.f32.mrb[0].mxu0
      %v895 = vadd.f32 %v686, %v894
      %v896 = vpop.f32.mrb[0].mxu0
      %v897 = vpop.f32.mrb[0].mxu0
      %v898 = vadd.f32 %v689, %v897
      %v899 = vpop.f32.mrb[0].mxu0
      %900 = vmatprep.mubr.bf16.mxu0 0
      %901 = vmatmul.mubr.bf16.gmra.mrb[0].mxu0 %v423
      %v902 = vpop.f32.mrb[0].mxu0
      %v903 = vadd.f32 %v694, %v902
      %v904 = vpop.f32.mrb[0].mxu0
      %v905 = vpop.f32.mrb[0].mxu0
      %v906 = vadd.f32 %v697, %v905
      %v907 = vpop.f32.mrb[0].mxu0
      %908 = vmatprep.mubr.bf16.mxu0 0
      %909 = vmatmul.mubr.bf16.gmra.mrb[0].mxu0 %v424
      %v910 = vpop.f32.mrb[0].mxu0
      %v911 = vadd.f32 %v702, %v910
      %v912 = vpop.f32.mrb[0].mxu0
      %v913 = vpop.f32.mrb[0].mxu0
      %v914 = vadd.f32 %v705, %v913
      %v915 = vpop.f32.mrb[0].mxu0
      %916 = vmatprep.mubr.bf16.mxu0 0
      %917 = vmatmul.mubr.bf16.gmra.mrb[0].mxu0 %v425
      %v918 = vpop.f32.mrb[0].mxu0
      %v919 = vadd.f32 %v710, %v918
      %v920 = vpop.f32.mrb[0].mxu0
      %v921 = vpop.f32.mrb[0].mxu0
      %v922 = vadd.f32 %v713, %v921
      %v923 = vpop.f32.mrb[0].mxu0
      %924 = vdwg.mxu0
      %v925 = vld [vmem:[#allocation2 + $0x2] sm:$0xff]
      %v926 = vld [vmem:[#allocation2 + $0xa] sm:$0xff]
      %v927 = vld [vmem:[#allocation2 + $0x1a] sm:$0xff]
      %v928 = vld [vmem:[#allocation2 + $0x22] sm:$0xff]
      %v929 = vld [vmem:[#allocation2 + $0x32] sm:$0xff]
      %v930 = vld [vmem:[#allocation2 + $0x3a] sm:$0xff]
      %v931 = vld [vmem:[#allocation2 + $0x4a] sm:$0xff]
      %v932 = vld [vmem:[#allocation2 + $0x52] sm:$0xff]
      %v933 = vld [vmem:[#allocation2 + $0x62] sm:$0xff]
      %v934 = vld [vmem:[#allocation2 + $0x6a] sm:$0xff]
      %v935 = vld [vmem:[#allocation2 + $0x7a] sm:$0xff]
      %v936 = vld [vmem:[#allocation2 + $0x82] sm:$0xff]
      %v937 = vld [vmem:[#allocation2 + $0x92] sm:$0xff]
      %v938 = vld [vmem:[#allocation2 + $0x9a] sm:$0xff]
      %v939 = vld [vmem:[#allocation2 + $0xaa] sm:$0xff]
      %v940 = vld [vmem:[#allocation2 + $0xb2] sm:$0xff]
      %v941 = vld [vmem:[#allocation2 + $0xc2] sm:$0xff]
      %v942 = vld [vmem:[#allocation2 + $0xca] sm:$0xff]
      %v943 = vld [vmem:[#allocation2 + $0xda] sm:$0xff]
      %v944 = vld [vmem:[#allocation2 + $0xe2] sm:$0xff]
      %v945 = vld [vmem:[#allocation2 + $0xf2] sm:$0xff]
      %v946 = vld [vmem:[#allocation2 + $0xfa] sm:$0xff]
      %v947 = vld [vmem:[#allocation2 + $0x10a] sm:$0xff]
      %v948 = vld [vmem:[#allocation2 + $0x112] sm:$0xff]
      %v949 = vld [vmem:[#allocation2 + $0x122] sm:$0xff]
      %v950 = vld [vmem:[#allocation2 + $0x12a] sm:$0xff]
      %v951 = vld [vmem:[#allocation2 + $0x13a] sm:$0xff]
      %v952 = vld [vmem:[#allocation2 + $0x142] sm:$0xff]
      %v953 = vld [vmem:[#allocation2 + $0x152] sm:$0xff]
      %v954 = vld [vmem:[#allocation2 + $0x15a] sm:$0xff]
      %v955 = vld [vmem:[#allocation2 + $0x16a] sm:$0xff]
      %v956 = vld [vmem:[#allocation2 + $0x172] sm:$0xff]
      %v957 = vpack.c.bf16 %v926, %v925
      %v958 = vpack.c.bf16 %v928, %v927
      %v959 = vpack.c.bf16 %v930, %v929
      %v960 = vpack.c.bf16 %v932, %v931
      %v961 = vpack.c.bf16 %v934, %v933
      %v962 = vpack.c.bf16 %v936, %v935
      %v963 = vpack.c.bf16 %v938, %v937
      %v964 = vpack.c.bf16 %v940, %v939
      %v965 = vpack.c.bf16 %v942, %v941
      %v966 = vpack.c.bf16 %v944, %v943
      %v967 = vpack.c.bf16 %v946, %v945
      %v968 = vpack.c.bf16 %v948, %v947
      %v969 = vpack.c.bf16 %v950, %v949
      %v970 = vpack.c.bf16 %v952, %v951
      %v971 = vpack.c.bf16 %v954, %v953
      %v972 = vpack.c.bf16 %v956, %v955
      %s973 = scalar_lea.vmem %s1, 128
      %v974 = vld [vmem:[%s973] sm:$0xf]
      %v975 = vld [vmem:[%s973 + $0x4] sm:$0xf]
      %v976 = vld [vmem:[%s973 + $0x8] sm:$0xf]
      %v977 = vld [vmem:[%s973 + $0xc] sm:$0xf]
      %v978 = vld [vmem:[%s973 + $0x10] sm:$0xf]
      %v979 = vld [vmem:[%s973 + $0x14] sm:$0xf]
      %v980 = vld [vmem:[%s973 + $0x18] sm:$0xf]
      %v981 = vld [vmem:[%s973 + $0x1c] sm:$0xf]
      %v982 = vld [vmem:[%s973 + $0x20] sm:$0xf]
      %v983 = vld [vmem:[%s973 + $0x24] sm:$0xf]
      %v984 = vld [vmem:[%s973 + $0x28] sm:$0xf]
      %v985 = vld [vmem:[%s973 + $0x2c] sm:$0xf]
      %v986 = vld [vmem:[%s973 + $0x30] sm:$0xf]
      %v987 = vld [vmem:[%s973 + $0x34] sm:$0xf]
      %v988 = vld [vmem:[%s973 + $0x38] sm:$0xf]
      %v989 = vld [vmem:[%s973 + $0x3c] sm:$0xf]
      %v1006 = vunpack.c.l.b16 %v974
      %v1007 = vunpack.c.l.b16 %v975
      %v1008 = vunpack.c.l.b16 %v976
      %v1009 = vunpack.c.l.b16 %v977
      %v1010 = vunpack.c.l.b16 %v978
      %v1011 = vunpack.c.l.b16 %v979
      %v1012 = vunpack.c.l.b16 %v980
      %v1013 = vunpack.c.l.b16 %v981
      %v1014 = vunpack.c.l.b16 %v982
      %v1015 = vunpack.c.l.b16 %v983
      %v1016 = vunpack.c.l.b16 %v984
      %v1017 = vunpack.c.l.b16 %v985
      %v1018 = vunpack.c.l.b16 %v986
      %v1019 = vunpack.c.l.b16 %v987
      %v1020 = vunpack.c.l.b16 %v988
      %v1021 = vunpack.c.l.b16 %v989
      %v1022 = vpack.c.b16 %v1007, %v1006
      %v1023 = vpack.c.b16 %v1009, %v1008
      %v1024 = vpack.c.b16 %v1011, %v1010
      %v1025 = vpack.c.b16 %v1013, %v1012
      %v1026 = vpack.c.b16 %v1015, %v1014
      %v1027 = vpack.c.b16 %v1017, %v1016
      %v1028 = vpack.c.b16 %v1019, %v1018
      %v1029 = vpack.c.b16 %v1021, %v1020
      %1038 = vmatprep.subr.bf16.mxu0 0
      %1039 = vmatpush1.bf16.msra.mxu0 %v1022
      %1040 = vmatprep.subr.bf16.mxu0 0
      %1041 = vmatpush1.bf16.msra.mxu0 %v1023
      %1042 = vmatprep.subr.bf16.mxu0 0
      %1043 = vmatpush1.bf16.msra.mxu0 %v1024
      %1044 = vmatprep.subr.bf16.mxu0 0
      %1045 = vmatpush1.bf16.msra.mxu0 %v1025
      %1046 = vmatprep.subr.bf16.mxu0 0
      %1047 = vmatpush1.bf16.msra.mxu0 %v1026
      %1048 = vmatprep.subr.bf16.mxu0 0
      %1049 = vmatpush1.bf16.msra.mxu0 %v1027
      %1050 = vmatprep.subr.bf16.mxu0 0
      %1051 = vmatpush1.bf16.msra.mxu0 %v1028
      %1052 = vmatprep.subr.bf16.mxu0 0
      %1053 = vmatpush1.bf16.msra.mxu0 %v1029
      %1054 = vmatprep.subr.bf16.mxu0 0
      %1055 = vmatpush1.bf16.msra.mxu0 0
      %1056 = vmatprep.subr.bf16.mxu0 0
      %1057 = vmatpush1.bf16.msra.mxu0 0
      %1058 = vmatprep.subr.bf16.mxu0 0
      %1059 = vmatpush1.bf16.msra.mxu0 0
      %1060 = vmatprep.subr.bf16.mxu0 0
      %1061 = vmatpush1.bf16.msra.mxu0 0
      %1062 = vmatprep.subr.bf16.mxu0 0
      %1063 = vmatpush1.bf16.msra.mxu0 0
      %1064 = vmatprep.subr.bf16.mxu0 0
      %1065 = vmatpush1.bf16.msra.mxu0 0
      %1066 = vmatprep.subr.bf16.mxu0 0
      %1067 = vmatpush1.bf16.msra.mxu0 0
      %1068 = vmatprep.subr.bf16.mxu0 0
      %1069 = vmatpush1.bf16.msra.mxu0 0
      %1070 = vmatprep.mubr.bf16.mxu0 0
      %1071 = vmatmul.mubr.bf16.gmra.mrb[0].mxu0 %v957
      %v1072 = vpop.f32.mrb[0].mxu0
      %v1073 = vadd.f32 0.0, %v1072
      %v1074 = vpop.f32.mrb[0].mxu0
      %v1075 = vpop.f32.mrb[0].mxu0
      %v1076 = vadd.f32 0.0, %v1075
      %v1077 = vpop.f32.mrb[0].mxu0
      %1078 = vmatprep.mubr.bf16.mxu0 0
      %1079 = vmatmul.mubr.bf16.gmra.mrb[0].mxu0 %v958
      %v1080 = vpop.f32.mrb[0].mxu0
      %v1081 = vadd.f32 0.0, %v1080
      %v1082 = vpop.f32.mrb[0].mxu0
      %v1083 = vpop.f32.mrb[0].mxu0
      %v1084 = vadd.f32 0.0, %v1083
      %v1085 = vpop.f32.mrb[0].mxu0
      %1086 = vmatprep.mubr.bf16.mxu0 0
      %1087 = vmatmul.mubr.bf16.gmra.mrb[0].mxu0 %v959
      %v1088 = vpop.f32.mrb[0].mxu0
      %v1089 = vadd.f32 0.0, %v1088
      %v1090 = vpop.f32.mrb[0].mxu0
      %v1091 = vpop.f32.mrb[0].mxu0
      %v1092 = vadd.f32 0.0, %v1091
      %v1093 = vpop.f32.mrb[0].mxu0
      %1094 = vmatprep.mubr.bf16.mxu0 0
      %1095 = vmatmul.mubr.bf16.gmra.mrb[0].mxu0 %v960
      %v1096 = vpop.f32.mrb[0].mxu0
      %v1097 = vadd.f32 0.0, %v1096
      %v1098 = vpop.f32.mrb[0].mxu0
      %v1099 = vpop.f32.mrb[0].mxu0
      %v1100 = vadd.f32 0.0, %v1099
      %v1101 = vpop.f32.mrb[0].mxu0
      %1102 = vmatprep.mubr.bf16.mxu0 0
      %1103 = vmatmul.mubr.bf16.gmra.mrb[0].mxu0 %v961
      %v1104 = vpop.f32.mrb[0].mxu0
      %v1105 = vadd.f32 0.0, %v1104
      %v1106 = vpop.f32.mrb[0].mxu0
      %v1107 = vpop.f32.mrb[0].mxu0
      %v1108 = vadd.f32 0.0, %v1107
      %v1109 = vpop.f32.mrb[0].mxu0
      %1110 = vmatprep.mubr.bf16.mxu0 0
      %1111 = vmatmul.mubr.bf16.gmra.mrb[0].mxu0 %v962
      %v1112 = vpop.f32.mrb[0].mxu0
      %v1113 = vadd.f32 0.0, %v1112
      %v1114 = vpop.f32.mrb[0].mxu0
      %v1115 = vpop.f32.mrb[0].mxu0
      %v1116 = vadd.f32 0.0, %v1115
      %v1117 = vpop.f32.mrb[0].mxu0
      %1118 = vmatprep.mubr.bf16.mxu0 0
      %1119 = vmatmul.mubr.bf16.gmra.mrb[0].mxu0 %v963
      %v1120 = vpop.f32.mrb[0].mxu0
      %v1121 = vadd.f32 0.0, %v1120
      %v1122 = vpop.f32.mrb[0].mxu0
      %v1123 = vpop.f32.mrb[0].mxu0
      %v1124 = vadd.f32 0.0, %v1123
      %v1125 = vpop.f32.mrb[0].mxu0
      %1126 = vmatprep.mubr.bf16.mxu0 0
      %1127 = vmatmul.mubr.bf16.gmra.mrb[0].mxu0 %v964
      %v1128 = vpop.f32.mrb[0].mxu0
      %v1129 = vadd.f32 0.0, %v1128
      %v1130 = vpop.f32.mrb[0].mxu0
      %v1131 = vpop.f32.mrb[0].mxu0
      %v1132 = vadd.f32 0.0, %v1131
      %v1133 = vpop.f32.mrb[0].mxu0
      %1134 = vmatprep.mubr.bf16.mxu0 0
      %1135 = vmatmul.mubr.bf16.gmra.mrb[0].mxu0 %v965
      %v1136 = vpop.f32.mrb[0].mxu0
      %v1137 = vadd.f32 0.0, %v1136
      %v1138 = vpop.f32.mrb[0].mxu0
      %v1139 = vpop.f32.mrb[0].mxu0
      %v1140 = vadd.f32 0.0, %v1139
      %v1141 = vpop.f32.mrb[0].mxu0
      %1142 = vmatprep.mubr.bf16.mxu0 0
      %1143 = vmatmul.mubr.bf16.gmra.mrb[0].mxu0 %v966
      %v1144 = vpop.f32.mrb[0].mxu0
      %v1145 = vadd.f32 0.0, %v1144
      %v1146 = vpop.f32.mrb[0].mxu0
      %v1147 = vpop.f32.mrb[0].mxu0
      %v1148 = vadd.f32 0.0, %v1147
      %v1149 = vpop.f32.mrb[0].mxu0
      %1150 = vmatprep.mubr.bf16.mxu0 0
      %1151 = vmatmul.mubr.bf16.gmra.mrb[0].mxu0 %v967
      %v1152 = vpop.f32.mrb[0].mxu0
      %v1153 = vadd.f32 0.0, %v1152
      %v1154 = vpop.f32.mrb[0].mxu0
      %v1155 = vpop.f32.mrb[0].mxu0
      %v1156 = vadd.f32 0.0, %v1155
      %v1157 = vpop.f32.mrb[0].mxu0
      %1158 = vmatprep.mubr.bf16.mxu0 0
      %1159 = vmatmul.mubr.bf16.gmra.mrb[0].mxu0 %v968
      %v1160 = vpop.f32.mrb[0].mxu0
      %v1161 = vadd.f32 0.0, %v1160
      %v1162 = vpop.f32.mrb[0].mxu0
      %v1163 = vpop.f32.mrb[0].mxu0
      %v1164 = vadd.f32 0.0, %v1163
      %v1165 = vpop.f32.mrb[0].mxu0
      %1166 = vmatprep.mubr.bf16.mxu0 0
      %1167 = vmatmul.mubr.bf16.gmra.mrb[0].mxu0 %v969
      %v1168 = vpop.f32.mrb[0].mxu0
      %v1169 = vadd.f32 0.0, %v1168
      %v1170 = vpop.f32.mrb[0].mxu0
      %v1171 = vpop.f32.mrb[0].mxu0
      %v1172 = vadd.f32 0.0, %v1171
      %v1173 = vpop.f32.mrb[0].mxu0
      %1174 = vmatprep.mubr.bf16.mxu0 0
      %1175 = vmatmul.mubr.bf16.gmra.mrb[0].mxu0 %v970
      %v1176 = vpop.f32.mrb[0].mxu0
      %v1177 = vadd.f32 0.0, %v1176
      %v1178 = vpop.f32.mrb[0].mxu0
      %v1179 = vpop.f32.mrb[0].mxu0
      %v1180 = vadd.f32 0.0, %v1179
      %v1181 = vpop.f32.mrb[0].mxu0
      %1182 = vmatprep.mubr.bf16.mxu0 0
      %1183 = vmatmul.mubr.bf16.gmra.mrb[0].mxu0 %v971
      %v1184 = vpop.f32.mrb[0].mxu0
      %v1185 = vadd.f32 0.0, %v1184
      %v1186 = vpop.f32.mrb[0].mxu0
      %v1187 = vpop.f32.mrb[0].mxu0
      %v1188 = vadd.f32 0.0, %v1187
      %v1189 = vpop.f32.mrb[0].mxu0
      %1190 = vmatprep.mubr.bf16.mxu0 0
      %1191 = vmatmul.mubr.bf16.gmra.mrb[0].mxu0 %v972
      %v1192 = vpop.f32.mrb[0].mxu0
      %v1193 = vadd.f32 0.0, %v1192
      %v1194 = vpop.f32.mrb[0].mxu0
      %v1195 = vpop.f32.mrb[0].mxu0
      %v1196 = vadd.f32 0.0, %v1195
      %v1197 = vpop.f32.mrb[0].mxu0
      %1198 = vdwg.mxu0
      %v1199 = vadd.f32 %v799, %v1073
      %v1200 = vadd.f32 %v802, %v1076
      %v1201 = vadd.f32 %v807, %v1081
      %v1202 = vadd.f32 %v810, %v1084
      %v1203 = vadd.f32 %v815, %v1089
      %v1204 = vadd.f32 %v818, %v1092
      %v1205 = vadd.f32 %v823, %v1097
      %v1206 = vadd.f32 %v826, %v1100
      %v1207 = vadd.f32 %v831, %v1105
      %v1208 = vadd.f32 %v834, %v1108
      %v1209 = vadd.f32 %v839, %v1113
      %v1210 = vadd.f32 %v842, %v1116
      %v1211 = vadd.f32 %v847, %v1121
      %v1212 = vadd.f32 %v850, %v1124
      %v1213 = vadd.f32 %v855, %v1129
      %v1214 = vadd.f32 %v858, %v1132
      %v1215 = vadd.f32 %v863, %v1137
      %v1216 = vadd.f32 %v866, %v1140
      %v1217 = vadd.f32 %v871, %v1145
      %v1218 = vadd.f32 %v874, %v1148
      %v1219 = vadd.f32 %v879, %v1153
      %v1220 = vadd.f32 %v882, %v1156
      %v1221 = vadd.f32 %v887, %v1161
      %v1222 = vadd.f32 %v890, %v1164
      %v1223 = vadd.f32 %v895, %v1169
      %v1224 = vadd.f32 %v898, %v1172
      %v1225 = vadd.f32 %v903, %v1177
      %v1226 = vadd.f32 %v906, %v1180
      %v1227 = vadd.f32 %v911, %v1185
      %v1228 = vadd.f32 %v914, %v1188
      %v1229 = vadd.f32 %v919, %v1193
      %v1230 = vadd.f32 %v922, %v1196
      %s1231 = scalar_lea.vmem [#allocation2], 24
      %v1232 = vld [vmem:[%s1231] sm:$0xff]
      %v1233 = vld [vmem:[%s1231 + $0x8] sm:$0xff]
      %v1234 = vld [vmem:[%s1231 + $0x18] sm:$0xff]
      %v1235 = vld [vmem:[%s1231 + $0x20] sm:$0xff]
      %v1236 = vld [vmem:[%s1231 + $0x30] sm:$0xff]
      %v1237 = vld [vmem:[%s1231 + $0x38] sm:$0xff]
      %v1238 = vld [vmem:[%s1231 + $0x48] sm:$0xff]
      %v1239 = vld [vmem:[%s1231 + $0x50] sm:$0xff]
      %v1240 = vld [vmem:[%s1231 + $0x60] sm:$0xff]
      %v1241 = vld [vmem:[%s1231 + $0x68] sm:$0xff]
      %v1242 = vld [vmem:[%s1231 + $0x78] sm:$0xff]
      %v1243 = vld [vmem:[%s1231 + $0x80] sm:$0xff]
      %v1244 = vld [vmem:[%s1231 + $0x90] sm:$0xff]
      %v1245 = vld [vmem:[%s1231 + $0x98] sm:$0xff]
      %v1246 = vld [vmem:[%s1231 + $0xa8] sm:$0xff]
      %v1247 = vld [vmem:[%s1231 + $0xb0] sm:$0xff]
      %v1248 = vld [vmem:[%s1231 + $0xc0] sm:$0xff]
      %v1249 = vld [vmem:[%s1231 + $0xc8] sm:$0xff]
      %v1250 = vld [vmem:[%s1231 + $0xd8] sm:$0xff]
      %v1251 = vld [vmem:[%s1231 + $0xe0] sm:$0xff]
      %v1252 = vld [vmem:[%s1231 + $0xf0] sm:$0xff]
      %v1253 = vld [vmem:[%s1231 + $0xf8] sm:$0xff]
      %v1254 = vld [vmem:[%s1231 + $0x108] sm:$0xff]
      %v1255 = vld [vmem:[%s1231 + $0x110] sm:$0xff]
      %v1256 = vld [vmem:[%s1231 + $0x120] sm:$0xff]
      %v1257 = vld [vmem:[%s1231 + $0x128] sm:$0xff]
      %v1258 = vld [vmem:[%s1231 + $0x138] sm:$0xff]
      %v1259 = vld [vmem:[%s1231 + $0x140] sm:$0xff]
      %v1260 = vld [vmem:[%s1231 + $0x150] sm:$0xff]
      %v1261 = vld [vmem:[%s1231 + $0x158] sm:$0xff]
      %v1262 = vld [vmem:[%s1231 + $0x168] sm:$0xff]
      %v1263 = vld [vmem:[%s1231 + $0x170] sm:$0xff]
      %v1264 = vpack.c.bf16 %v1233, %v1232
      %v1265 = vpack.c.bf16 %v1235, %v1234
      %v1266 = vpack.c.bf16 %v1237, %v1236
      %v1267 = vpack.c.bf16 %v1239, %v1238
      %v1268 = vpack.c.bf16 %v1241, %v1240
      %v1269 = vpack.c.bf16 %v1243, %v1242
      %v1270 = vpack.c.bf16 %v1245, %v1244
      %v1271 = vpack.c.bf16 %v1247, %v1246
      %v1272 = vpack.c.bf16 %v1249, %v1248
      %v1273 = vpack.c.bf16 %v1251, %v1250
      %v1274 = vpack.c.bf16 %v1253, %v1252
      %v1275 = vpack.c.bf16 %v1255, %v1254
      %v1276 = vpack.c.bf16 %v1257, %v1256
      %v1277 = vpack.c.bf16 %v1259, %v1258
      %v1278 = vpack.c.bf16 %v1261, %v1260
      %v1279 = vpack.c.bf16 %v1263, %v1262
      %s1280 = scalar_lea.vmem %s1, 192
      %v1281 = vld [vmem:[%s1280] sm:$0xf]
      %v1282 = vld [vmem:[%s1280 + $0x4] sm:$0xf]
      %v1283 = vld [vmem:[%s1280 + $0x8] sm:$0xf]
      %v1284 = vld [vmem:[%s1280 + $0xc] sm:$0xf]
      %v1285 = vld [vmem:[%s1280 + $0x10] sm:$0xf]
      %v1286 = vld [vmem:[%s1280 + $0x14] sm:$0xf]
      %v1287 = vld [vmem:[%s1280 + $0x18] sm:$0xf]
      %v1288 = vld [vmem:[%s1280 + $0x1c] sm:$0xf]
      %v1289 = vld [vmem:[%s1280 + $0x20] sm:$0xf]
      %v1290 = vld [vmem:[%s1280 + $0x24] sm:$0xf]
      %v1291 = vld [vmem:[%s1280 + $0x28] sm:$0xf]
      %v1292 = vld [vmem:[%s1280 + $0x2c] sm:$0xf]
      %v1293 = vld [vmem:[%s1280 + $0x30] sm:$0xf]
      %v1294 = vld [vmem:[%s1280 + $0x34] sm:$0xf]
      %v1295 = vld [vmem:[%s1280 + $0x38] sm:$0xf]
      %v1296 = vld [vmem:[%s1280 + $0x3c] sm:$0xf]
      %v1313 = vunpack.c.l.b16 %v1281
      %v1314 = vunpack.c.l.b16 %v1282
      %v1315 = vunpack.c.l.b16 %v1283
      %v1316 = vunpack.c.l.b16 %v1284
      %v1317 = vunpack.c.l.b16 %v1285
      %v1318 = vunpack.c.l.b16 %v1286
      %v1319 = vunpack.c.l.b16 %v1287
      %v1320 = vunpack.c.l.b16 %v1288
      %v1321 = vunpack.c.l.b16 %v1289
      %v1322 = vunpack.c.l.b16 %v1290
      %v1323 = vunpack.c.l.b16 %v1291
      %v1324 = vunpack.c.l.b16 %v1292
      %v1325 = vunpack.c.l.b16 %v1293
      %v1326 = vunpack.c.l.b16 %v1294
      %v1327 = vunpack.c.l.b16 %v1295
      %v1328 = vunpack.c.l.b16 %v1296
      %v1329 = vpack.c.b16 %v1314, %v1313
      %v1330 = vpack.c.b16 %v1316, %v1315
      %v1331 = vpack.c.b16 %v1318, %v1317
      %v1332 = vpack.c.b16 %v1320, %v1319
      %v1333 = vpack.c.b16 %v1322, %v1321
      %v1334 = vpack.c.b16 %v1324, %v1323
      %v1335 = vpack.c.b16 %v1326, %v1325
      %v1336 = vpack.c.b16 %v1328, %v1327
      %1345 = vmatprep.subr.bf16.mxu0 0
      %1346 = vmatpush1.bf16.msra.mxu0 %v1329
      %1347 = vmatprep.subr.bf16.mxu0 0
      %1348 = vmatpush1.bf16.msra.mxu0 %v1330
      %1349 = vmatprep.subr.bf16.mxu0 0
      %1350 = vmatpush1.bf16.msra.mxu0 %v1331
      %1351 = vmatprep.subr.bf16.mxu0 0
      %1352 = vmatpush1.bf16.msra.mxu0 %v1332
      %1353 = vmatprep.subr.bf16.mxu0 0
      %1354 = vmatpush1.bf16.msra.mxu0 %v1333
      %1355 = vmatprep.subr.bf16.mxu0 0
      %1356 = vmatpush1.bf16.msra.mxu0 %v1334
      %1357 = vmatprep.subr.bf16.mxu0 0
      %1358 = vmatpush1.bf16.msra.mxu0 %v1335
      %1359 = vmatprep.subr.bf16.mxu0 0
      %1360 = vmatpush1.bf16.msra.mxu0 %v1336
      %1361 = vmatprep.subr.bf16.mxu0 0
      %1362 = vmatpush1.bf16.msra.mxu0 0
      %1363 = vmatprep.subr.bf16.mxu0 0
      %1364 = vmatpush1.bf16.msra.mxu0 0
      %1365 = vmatprep.subr.bf16.mxu0 0
      %1366 = vmatpush1.bf16.msra.mxu0 0
      %1367 = vmatprep.subr.bf16.mxu0 0
      %1368 = vmatpush1.bf16.msra.mxu0 0
      %1369 = vmatprep.subr.bf16.mxu0 0
      %1370 = vmatpush1.bf16.msra.mxu0 0
      %1371 = vmatprep.subr.bf16.mxu0 0
      %1372 = vmatpush1.bf16.msra.mxu0 0
      %1373 = vmatprep.subr.bf16.mxu0 0
      %1374 = vmatpush1.bf16.msra.mxu0 0
      %1375 = vmatprep.subr.bf16.mxu0 0
      %1376 = vmatpush1.bf16.msra.mxu0 0
      %1377 = vmatprep.mubr.bf16.mxu0 0
      %1378 = vmatmul.mubr.bf16.gmra.mrb[0].mxu0 %v1264
      %v1379 = vpop.f32.mrb[0].mxu0
      %v1380 = vadd.f32 0.0, %v1379
      %v1381 = vpop.f32.mrb[0].mxu0
      %v1382 = vpop.f32.mrb[0].mxu0
      %v1383 = vadd.f32 0.0, %v1382
      %v1384 = vpop.f32.mrb[0].mxu0
      %1385 = vmatprep.mubr.bf16.mxu0 0
      %1386 = vmatmul.mubr.bf16.gmra.mrb[0].mxu0 %v1265
      %v1387 = vpop.f32.mrb[0].mxu0
      %v1388 = vadd.f32 0.0, %v1387
      %v1389 = vpop.f32.mrb[0].mxu0
      %v1390 = vpop.f32.mrb[0].mxu0
      %v1391 = vadd.f32 0.0, %v1390
      %v1392 = vpop.f32.mrb[0].mxu0
      %1393 = vmatprep.mubr.bf16.mxu0 0
      %1394 = vmatmul.mubr.bf16.gmra.mrb[0].mxu0 %v1266
      %v1395 = vpop.f32.mrb[0].mxu0
      %v1396 = vadd.f32 0.0, %v1395
      %v1397 = vpop.f32.mrb[0].mxu0
      %v1398 = vpop.f32.mrb[0].mxu0
      %v1399 = vadd.f32 0.0, %v1398
      %v1400 = vpop.f32.mrb[0].mxu0
      %1401 = vmatprep.mubr.bf16.mxu0 0
      %1402 = vmatmul.mubr.bf16.gmra.mrb[0].mxu0 %v1267
      %v1403 = vpop.f32.mrb[0].mxu0
      %v1404 = vadd.f32 0.0, %v1403
      %v1405 = vpop.f32.mrb[0].mxu0
      %v1406 = vpop.f32.mrb[0].mxu0
      %v1407 = vadd.f32 0.0, %v1406
      %v1408 = vpop.f32.mrb[0].mxu0
      %1409 = vmatprep.mubr.bf16.mxu0 0
      %1410 = vmatmul.mubr.bf16.gmra.mrb[0].mxu0 %v1268
      %v1411 = vpop.f32.mrb[0].mxu0
      %v1412 = vadd.f32 0.0, %v1411
      %v1413 = vpop.f32.mrb[0].mxu0
      %v1414 = vpop.f32.mrb[0].mxu0
      %v1415 = vadd.f32 0.0, %v1414
      %v1416 = vpop.f32.mrb[0].mxu0
      %1417 = vmatprep.mubr.bf16.mxu0 0
      %1418 = vmatmul.mubr.bf16.gmra.mrb[0].mxu0 %v1269
      %v1419 = vpop.f32.mrb[0].mxu0
      %v1420 = vadd.f32 0.0, %v1419
      %v1421 = vpop.f32.mrb[0].mxu0
      %v1422 = vpop.f32.mrb[0].mxu0
      %v1423 = vadd.f32 0.0, %v1422
      %v1424 = vpop.f32.mrb[0].mxu0
      %1425 = vmatprep.mubr.bf16.mxu0 0
      %1426 = vmatmul.mubr.bf16.gmra.mrb[0].mxu0 %v1270
      %v1427 = vpop.f32.mrb[0].mxu0
      %v1428 = vadd.f32 0.0, %v1427
      %v1429 = vpop.f32.mrb[0].mxu0
      %v1430 = vpop.f32.mrb[0].mxu0
      %v1431 = vadd.f32 0.0, %v1430
      %v1432 = vpop.f32.mrb[0].mxu0
      %1433 = vmatprep.mubr.bf16.mxu0 0
      %1434 = vmatmul.mubr.bf16.gmra.mrb[0].mxu0 %v1271
      %v1435 = vpop.f32.mrb[0].mxu0
      %v1436 = vadd.f32 0.0, %v1435
      %v1437 = vpop.f32.mrb[0].mxu0
      %v1438 = vpop.f32.mrb[0].mxu0
      %v1439 = vadd.f32 0.0, %v1438
      %v1440 = vpop.f32.mrb[0].mxu0
      %1441 = vmatprep.mubr.bf16.mxu0 0
      %1442 = vmatmul.mubr.bf16.gmra.mrb[0].mxu0 %v1272
      %v1443 = vpop.f32.mrb[0].mxu0
      %v1444 = vadd.f32 0.0, %v1443
      %v1445 = vpop.f32.mrb[0].mxu0
      %v1446 = vpop.f32.mrb[0].mxu0
      %v1447 = vadd.f32 0.0, %v1446
      %v1448 = vpop.f32.mrb[0].mxu0
      %1449 = vmatprep.mubr.bf16.mxu0 0
      %1450 = vmatmul.mubr.bf16.gmra.mrb[0].mxu0 %v1273
      %v1451 = vpop.f32.mrb[0].mxu0
      %v1452 = vadd.f32 0.0, %v1451
      %v1453 = vpop.f32.mrb[0].mxu0
      %v1454 = vpop.f32.mrb[0].mxu0
      %v1455 = vadd.f32 0.0, %v1454
      %v1456 = vpop.f32.mrb[0].mxu0
      %1457 = vmatprep.mubr.bf16.mxu0 0
      %1458 = vmatmul.mubr.bf16.gmra.mrb[0].mxu0 %v1274
      %v1459 = vpop.f32.mrb[0].mxu0
      %v1460 = vadd.f32 0.0, %v1459
      %v1461 = vpop.f32.mrb[0].mxu0
      %v1462 = vpop.f32.mrb[0].mxu0
      %v1463 = vadd.f32 0.0, %v1462
      %v1464 = vpop.f32.mrb[0].mxu0
      %1465 = vmatprep.mubr.bf16.mxu0 0
      %1466 = vmatmul.mubr.bf16.gmra.mrb[0].mxu0 %v1275
      %v1467 = vpop.f32.mrb[0].mxu0
      %v1468 = vadd.f32 0.0, %v1467
      %v1469 = vpop.f32.mrb[0].mxu0
      %v1470 = vpop.f32.mrb[0].mxu0
      %v1471 = vadd.f32 0.0, %v1470
      %v1472 = vpop.f32.mrb[0].mxu0
      %1473 = vmatprep.mubr.bf16.mxu0 0
      %1474 = vmatmul.mubr.bf16.gmra.mrb[0].mxu0 %v1276
      %v1475 = vpop.f32.mrb[0].mxu0
      %v1476 = vadd.f32 0.0, %v1475
      %v1477 = vpop.f32.mrb[0].mxu0
      %v1478 = vpop.f32.mrb[0].mxu0
      %v1479 = vadd.f32 0.0, %v1478
      %v1480 = vpop.f32.mrb[0].mxu0
      %1481 = vmatprep.mubr.bf16.mxu0 0
      %1482 = vmatmul.mubr.bf16.gmra.mrb[0].mxu0 %v1277
      %v1483 = vpop.f32.mrb[0].mxu0
      %v1484 = vadd.f32 0.0, %v1483
      %v1485 = vpop.f32.mrb[0].mxu0
      %v1486 = vpop.f32.mrb[0].mxu0
      %v1487 = vadd.f32 0.0, %v1486
      %v1488 = vpop.f32.mrb[0].mxu0
      %1489 = vmatprep.mubr.bf16.mxu0 0
      %1490 = vmatmul.mubr.bf16.gmra.mrb[0].mxu0 %v1278
      %v1491 = vpop.f32.mrb[0].mxu0
      %v1492 = vadd.f32 0.0, %v1491
      %v1493 = vpop.f32.mrb[0].mxu0
      %v1494 = vpop.f32.mrb[0].mxu0
      %v1495 = vadd.f32 0.0, %v1494
      %v1496 = vpop.f32.mrb[0].mxu0
      %1497 = vmatprep.mubr.bf16.mxu0 0
      %1498 = vmatmul.mubr.bf16.gmra.mrb[0].mxu0 %v1279
      %v1499 = vpop.f32.mrb[0].mxu0
      %v1500 = vadd.f32 0.0, %v1499
      %v1501 = vpop.f32.mrb[0].mxu0
      %v1502 = vpop.f32.mrb[0].mxu0
      %v1503 = vadd.f32 0.0, %v1502
      %v1504 = vpop.f32.mrb[0].mxu0
      %1505 = vdwg.mxu0
      %v1506 = vadd.f32 %v1199, %v1380
      %v1507 = vadd.f32 %v1200, %v1383
      %v1508 = vadd.f32 %v1201, %v1388
      %v1509 = vadd.f32 %v1202, %v1391
      %v1510 = vadd.f32 %v1203, %v1396
      %v1511 = vadd.f32 %v1204, %v1399
      %v1512 = vadd.f32 %v1205, %v1404
      %v1513 = vadd.f32 %v1206, %v1407
      %v1514 = vadd.f32 %v1207, %v1412
      %v1515 = vadd.f32 %v1208, %v1415
      %v1516 = vadd.f32 %v1209, %v1420
      %v1517 = vadd.f32 %v1210, %v1423
      %v1518 = vadd.f32 %v1211, %v1428
      %v1519 = vadd.f32 %v1212, %v1431
      %v1520 = vadd.f32 %v1213, %v1436
      %v1521 = vadd.f32 %v1214, %v1439
      %v1522 = vadd.f32 %v1215, %v1444
      %v1523 = vadd.f32 %v1216, %v1447
      %v1524 = vadd.f32 %v1217, %v1452
      %v1525 = vadd.f32 %v1218, %v1455
      %v1526 = vadd.f32 %v1219, %v1460
      %v1527 = vadd.f32 %v1220, %v1463
      %v1528 = vadd.f32 %v1221, %v1468
      %v1529 = vadd.f32 %v1222, %v1471
      %v1530 = vadd.f32 %v1223, %v1476
      %v1531 = vadd.f32 %v1224, %v1479
      %v1532 = vadd.f32 %v1225, %v1484
      %v1533 = vadd.f32 %v1226, %v1487
      %v1534 = vadd.f32 %v1227, %v1492
      %v1535 = vadd.f32 %v1228, %v1495
      %v1536 = vadd.f32 %v1229, %v1500
      %v1537 = vadd.f32 %v1230, %v1503
      %v1538 = vld [vmem:[%s1231 + $0x1] sm:$0xff]
      %v1539 = vld [vmem:[%s1231 + $0x9] sm:$0xff]
      %v1540 = vld [vmem:[%s1231 + $0x19] sm:$0xff]
      %v1541 = vld [vmem:[%s1231 + $0x21] sm:$0xff]
      %v1542 = vld [vmem:[%s1231 + $0x31] sm:$0xff]
      %v1543 = vld [vmem:[%s1231 + $0x39] sm:$0xff]
      %v1544 = vld [vmem:[%s1231 + $0x49] sm:$0xff]
      %v1545 = vld [vmem:[%s1231 + $0x51] sm:$0xff]
      %v1546 = vld [vmem:[%s1231 + $0x61] sm:$0xff]
      %v1547 = vld [vmem:[%s1231 + $0x69] sm:$0xff]
      %v1548 = vld [vmem:[%s1231 + $0x79] sm:$0xff]
      %v1549 = vld [vmem:[%s1231 + $0x81] sm:$0xff]
      %v1550 = vld [vmem:[%s1231 + $0x91] sm:$0xff]
      %v1551 = vld [vmem:[%s1231 + $0x99] sm:$0xff]
      %v1552 = vld [vmem:[%s1231 + $0xa9] sm:$0xff]
      %v1553 = vld [vmem:[%s1231 + $0xb1] sm:$0xff]
      %v1554 = vld [vmem:[%s1231 + $0xc1] sm:$0xff]
      %v1555 = vld [vmem:[%s1231 + $0xc9] sm:$0xff]
      %v1556 = vld [vmem:[%s1231 + $0xd9] sm:$0xff]
      %v1557 = vld [vmem:[%s1231 + $0xe1] sm:$0xff]
      %v1558 = vld [vmem:[%s1231 + $0xf1] sm:$0xff]
      %v1559 = vld [vmem:[%s1231 + $0xf9] sm:$0xff]
      %v1560 = vld [vmem:[%s1231 + $0x109] sm:$0xff]
      %v1561 = vld [vmem:[%s1231 + $0x111] sm:$0xff]
      %v1562 = vld [vmem:[%s1231 + $0x121] sm:$0xff]
      %v1563 = vld [vmem:[%s1231 + $0x129] sm:$0xff]
      %v1564 = vld [vmem:[%s1231 + $0x139] sm:$0xff]
      %v1565 = vld [vmem:[%s1231 + $0x141] sm:$0xff]
      %v1566 = vld [vmem:[%s1231 + $0x151] sm:$0xff]
      %v1567 = vld [vmem:[%s1231 + $0x159] sm:$0xff]
      %v1568 = vld [vmem:[%s1231 + $0x169] sm:$0xff]
      %v1569 = vld [vmem:[%s1231 + $0x171] sm:$0xff]
      %v1570 = vpack.c.bf16 %v1539, %v1538
      %v1571 = vpack.c.bf16 %v1541, %v1540
      %v1572 = vpack.c.bf16 %v1543, %v1542
      %v1573 = vpack.c.bf16 %v1545, %v1544
      %v1574 = vpack.c.bf16 %v1547, %v1546
      %v1575 = vpack.c.bf16 %v1549, %v1548
      %v1576 = vpack.c.bf16 %v1551, %v1550
      %v1577 = vpack.c.bf16 %v1553, %v1552
      %v1578 = vpack.c.bf16 %v1555, %v1554
      %v1579 = vpack.c.bf16 %v1557, %v1556
      %v1580 = vpack.c.bf16 %v1559, %v1558
      %v1581 = vpack.c.bf16 %v1561, %v1560
      %v1582 = vpack.c.bf16 %v1563, %v1562
      %v1583 = vpack.c.bf16 %v1565, %v1564
      %v1584 = vpack.c.bf16 %v1567, %v1566
      %v1585 = vpack.c.bf16 %v1569, %v1568
      %s1586 = scalar_lea.vmem %s1, 256
      %v1587 = vld [vmem:[%s1586] sm:$0xf]
      %v1588 = vld [vmem:[%s1586 + $0x4] sm:$0xf]
      %v1589 = vld [vmem:[%s1586 + $0x8] sm:$0xf]
      %v1590 = vld [vmem:[%s1586 + $0xc] sm:$0xf]
      %v1591 = vld [vmem:[%s1586 + $0x10] sm:$0xf]
      %v1592 = vld [vmem:[%s1586 + $0x14] sm:$0xf]
      %v1593 = vld [vmem:[%s1586 + $0x18] sm:$0xf]
      %v1594 = vld [vmem:[%s1586 + $0x1c] sm:$0xf]
      %v1595 = vld [vmem:[%s1586 + $0x20] sm:$0xf]
      %v1596 = vld [vmem:[%s1586 + $0x24] sm:$0xf]
      %v1597 = vld [vmem:[%s1586 + $0x28] sm:$0xf]
      %v1598 = vld [vmem:[%s1586 + $0x2c] sm:$0xf]
      %v1599 = vld [vmem:[%s1586 + $0x30] sm:$0xf]
      %v1600 = vld [vmem:[%s1586 + $0x34] sm:$0xf]
      %v1601 = vld [vmem:[%s1586 + $0x38] sm:$0xf]
      %v1602 = vld [vmem:[%s1586 + $0x3c] sm:$0xf]
      %v1619 = vunpack.c.l.b16 %v1587
      %v1620 = vunpack.c.l.b16 %v1588
      %v1621 = vunpack.c.l.b16 %v1589
      %v1622 = vunpack.c.l.b16 %v1590
      %v1623 = vunpack.c.l.b16 %v1591
      %v1624 = vunpack.c.l.b16 %v1592
      %v1625 = vunpack.c.l.b16 %v1593
      %v1626 = vunpack.c.l.b16 %v1594
      %v1627 = vunpack.c.l.b16 %v1595
      %v1628 = vunpack.c.l.b16 %v1596
      %v1629 = vunpack.c.l.b16 %v1597
      %v1630 = vunpack.c.l.b16 %v1598
      %v1631 = vunpack.c.l.b16 %v1599
      %v1632 = vunpack.c.l.b16 %v1600
      %v1633 = vunpack.c.l.b16 %v1601
      %v1634 = vunpack.c.l.b16 %v1602
      %v1635 = vpack.c.b16 %v1620, %v1619
      %v1636 = vpack.c.b16 %v1622, %v1621
      %v1637 = vpack.c.b16 %v1624, %v1623
      %v1638 = vpack.c.b16 %v1626, %v1625
      %v1639 = vpack.c.b16 %v1628, %v1627
      %v1640 = vpack.c.b16 %v1630, %v1629
      %v1641 = vpack.c.b16 %v1632, %v1631
      %v1642 = vpack.c.b16 %v1634, %v1633
      %1651 = vmatprep.subr.bf16.mxu0 0
      %1652 = vmatpush1.bf16.msra.mxu0 %v1635
      %1653 = vmatprep.subr.bf16.mxu0 0
      %1654 = vmatpush1.bf16.msra.mxu0 %v1636
      %1655 = vmatprep.subr.bf16.mxu0 0
      %1656 = vmatpush1.bf16.msra.mxu0 %v1637
      %1657 = vmatprep.subr.bf16.mxu0 0
      %1658 = vmatpush1.bf16.msra.mxu0 %v1638
      %1659 = vmatprep.subr.bf16.mxu0 0
      %1660 = vmatpush1.bf16.msra.mxu0 %v1639
      %1661 = vmatprep.subr.bf16.mxu0 0
      %1662 = vmatpush1.bf16.msra.mxu0 %v1640
      %1663 = vmatprep.subr.bf16.mxu0 0
      %1664 = vmatpush1.bf16.msra.mxu0 %v1641
      %1665 = vmatprep.subr.bf16.mxu0 0
      %1666 = vmatpush1.bf16.msra.mxu0 %v1642
      %1667 = vmatprep.subr.bf16.mxu0 0
      %1668 = vmatpush1.bf16.msra.mxu0 0
      %1669 = vmatprep.subr.bf16.mxu0 0
      %1670 = vmatpush1.bf16.msra.mxu0 0
      %1671 = vmatprep.subr.bf16.mxu0 0
      %1672 = vmatpush1.bf16.msra.mxu0 0
      %1673 = vmatprep.subr.bf16.mxu0 0
      %1674 = vmatpush1.bf16.msra.mxu0 0
      %1675 = vmatprep.subr.bf16.mxu0 0
      %1676 = vmatpush1.bf16.msra.mxu0 0
      %1677 = vmatprep.subr.bf16.mxu0 0
      %1678 = vmatpush1.bf16.msra.mxu0 0
      %1679 = vmatprep.subr.bf16.mxu0 0
      %1680 = vmatpush1.bf16.msra.mxu0 0
      %1681 = vmatprep.subr.bf16.mxu0 0
      %1682 = vmatpush1.bf16.msra.mxu0 0
      %1683 = vmatprep.mubr.bf16.mxu0 0
      %1684 = vmatmul.mubr.bf16.gmra.mrb[0].mxu0 %v1570
      %v1685 = vpop.f32.mrb[0].mxu0
      %v1686 = vadd.f32 0.0, %v1685
      %v1687 = vpop.f32.mrb[0].mxu0
      %v1688 = vpop.f32.mrb[0].mxu0
      %v1689 = vadd.f32 0.0, %v1688
      %v1690 = vpop.f32.mrb[0].mxu0
      %1691 = vmatprep.mubr.bf16.mxu0 0
      %1692 = vmatmul.mubr.bf16.gmra.mrb[0].mxu0 %v1571
      %v1693 = vpop.f32.mrb[0].mxu0
      %v1694 = vadd.f32 0.0, %v1693
      %v1695 = vpop.f32.mrb[0].mxu0
      %v1696 = vpop.f32.mrb[0].mxu0
      %v1697 = vadd.f32 0.0, %v1696
      %v1698 = vpop.f32.mrb[0].mxu0
      %1699 = vmatprep.mubr.bf16.mxu0 0
      %1700 = vmatmul.mubr.bf16.gmra.mrb[0].mxu0 %v1572
      %v1701 = vpop.f32.mrb[0].mxu0
      %v1702 = vadd.f32 0.0, %v1701
      %v1703 = vpop.f32.mrb[0].mxu0
      %v1704 = vpop.f32.mrb[0].mxu0
      %v1705 = vadd.f32 0.0, %v1704
      %v1706 = vpop.f32.mrb[0].mxu0
      %1707 = vmatprep.mubr.bf16.mxu0 0
      %1708 = vmatmul.mubr.bf16.gmra.mrb[0].mxu0 %v1573
      %v1709 = vpop.f32.mrb[0].mxu0
      %v1710 = vadd.f32 0.0, %v1709
      %v1711 = vpop.f32.mrb[0].mxu0
      %v1712 = vpop.f32.mrb[0].mxu0
      %v1713 = vadd.f32 0.0, %v1712
      %v1714 = vpop.f32.mrb[0].mxu0
      %1715 = vmatprep.mubr.bf16.mxu0 0
      %1716 = vmatmul.mubr.bf16.gmra.mrb[0].mxu0 %v1574
      %v1717 = vpop.f32.mrb[0].mxu0
      %v1718 = vadd.f32 0.0, %v1717
      %v1719 = vpop.f32.mrb[0].mxu0
      %v1720 = vpop.f32.mrb[0].mxu0
      %v1721 = vadd.f32 0.0, %v1720
      %v1722 = vpop.f32.mrb[0].mxu0
      %1723 = vmatprep.mubr.bf16.mxu0 0
      %1724 = vmatmul.mubr.bf16.gmra.mrb[0].mxu0 %v1575
      %v1725 = vpop.f32.mrb[0].mxu0
      %v1726 = vadd.f32 0.0, %v1725
      %v1727 = vpop.f32.mrb[0].mxu0
      %v1728 = vpop.f32.mrb[0].mxu0
      %v1729 = vadd.f32 0.0, %v1728
      %v1730 = vpop.f32.mrb[0].mxu0
      %1731 = vmatprep.mubr.bf16.mxu0 0
      %1732 = vmatmul.mubr.bf16.gmra.mrb[0].mxu0 %v1576
      %v1733 = vpop.f32.mrb[0].mxu0
      %v1734 = vadd.f32 0.0, %v1733
      %v1735 = vpop.f32.mrb[0].mxu0
      %v1736 = vpop.f32.mrb[0].mxu0
      %v1737 = vadd.f32 0.0, %v1736
      %v1738 = vpop.f32.mrb[0].mxu0
      %1739 = vmatprep.mubr.bf16.mxu0 0
      %1740 = vmatmul.mubr.bf16.gmra.mrb[0].mxu0 %v1577
      %v1741 = vpop.f32.mrb[0].mxu0
      %v1742 = vadd.f32 0.0, %v1741
      %v1743 = vpop.f32.mrb[0].mxu0
      %v1744 = vpop.f32.mrb[0].mxu0
      %v1745 = vadd.f32 0.0, %v1744
      %v1746 = vpop.f32.mrb[0].mxu0
      %1747 = vmatprep.mubr.bf16.mxu0 0
      %1748 = vmatmul.mubr.bf16.gmra.mrb[0].mxu0 %v1578
      %v1749 = vpop.f32.mrb[0].mxu0
      %v1750 = vadd.f32 0.0, %v1749
      %v1751 = vpop.f32.mrb[0].mxu0
      %v1752 = vpop.f32.mrb[0].mxu0
      %v1753 = vadd.f32 0.0, %v1752
      %v1754 = vpop.f32.mrb[0].mxu0
      %1755 = vmatprep.mubr.bf16.mxu0 0
      %1756 = vmatmul.mubr.bf16.gmra.mrb[0].mxu0 %v1579
      %v1757 = vpop.f32.mrb[0].mxu0
      %v1758 = vadd.f32 0.0, %v1757
      %v1759 = vpop.f32.mrb[0].mxu0
      %v1760 = vpop.f32.mrb[0].mxu0
      %v1761 = vadd.f32 0.0, %v1760
      %v1762 = vpop.f32.mrb[0].mxu0
      %1763 = vmatprep.mubr.bf16.mxu0 0
      %1764 = vmatmul.mubr.bf16.gmra.mrb[0].mxu0 %v1580
      %v1765 = vpop.f32.mrb[0].mxu0
      %v1766 = vadd.f32 0.0, %v1765
      %v1767 = vpop.f32.mrb[0].mxu0
      %v1768 = vpop.f32.mrb[0].mxu0
      %v1769 = vadd.f32 0.0, %v1768
      %v1770 = vpop.f32.mrb[0].mxu0
      %1771 = vmatprep.mubr.bf16.mxu0 0
      %1772 = vmatmul.mubr.bf16.gmra.mrb[0].mxu0 %v1581
      %v1773 = vpop.f32.mrb[0].mxu0
      %v1774 = vadd.f32 0.0, %v1773
      %v1775 = vpop.f32.mrb[0].mxu0
      %v1776 = vpop.f32.mrb[0].mxu0
      %v1777 = vadd.f32 0.0, %v1776
      %v1778 = vpop.f32.mrb[0].mxu0
      %1779 = vmatprep.mubr.bf16.mxu0 0
      %1780 = vmatmul.mubr.bf16.gmra.mrb[0].mxu0 %v1582
      %v1781 = vpop.f32.mrb[0].mxu0
      %v1782 = vadd.f32 0.0, %v1781
      %v1783 = vpop.f32.mrb[0].mxu0
      %v1784 = vpop.f32.mrb[0].mxu0
      %v1785 = vadd.f32 0.0, %v1784
      %v1786 = vpop.f32.mrb[0].mxu0
      %1787 = vmatprep.mubr.bf16.mxu0 0
      %1788 = vmatmul.mubr.bf16.gmra.mrb[0].mxu0 %v1583
      %v1789 = vpop.f32.mrb[0].mxu0
      %v1790 = vadd.f32 0.0, %v1789
      %v1791 = vpop.f32.mrb[0].mxu0
      %v1792 = vpop.f32.mrb[0].mxu0
      %v1793 = vadd.f32 0.0, %v1792
      %v1794 = vpop.f32.mrb[0].mxu0
      %1795 = vmatprep.mubr.bf16.mxu0 0
      %1796 = vmatmul.mubr.bf16.gmra.mrb[0].mxu0 %v1584
      %v1797 = vpop.f32.mrb[0].mxu0
      %v1798 = vadd.f32 0.0, %v1797
      %v1799 = vpop.f32.mrb[0].mxu0
      %v1800 = vpop.f32.mrb[0].mxu0
      %v1801 = vadd.f32 0.0, %v1800
      %v1802 = vpop.f32.mrb[0].mxu0
      %1803 = vmatprep.mubr.bf16.mxu0 0
      %1804 = vmatmul.mubr.bf16.gmra.mrb[0].mxu0 %v1585
      %v1805 = vpop.f32.mrb[0].mxu0
      %v1806 = vadd.f32 0.0, %v1805
      %v1807 = vpop.f32.mrb[0].mxu0
      %v1808 = vpop.f32.mrb[0].mxu0
      %v1809 = vadd.f32 0.0, %v1808
      %v1810 = vpop.f32.mrb[0].mxu0
      %1811 = vdwg.mxu0
      %v1812 = vadd.f32 %v1506, %v1686
      %v1813 = vadd.f32 %v1507, %v1689
      %v1814 = vadd.f32 %v1508, %v1694
      %v1815 = vadd.f32 %v1509, %v1697
      %v1816 = vadd.f32 %v1510, %v1702
      %v1817 = vadd.f32 %v1511, %v1705
      %v1818 = vadd.f32 %v1512, %v1710
      %v1819 = vadd.f32 %v1513, %v1713
      %v1820 = vadd.f32 %v1514, %v1718
      %v1821 = vadd.f32 %v1515, %v1721
      %v1822 = vadd.f32 %v1516, %v1726
      %v1823 = vadd.f32 %v1517, %v1729
      %v1824 = vadd.f32 %v1518, %v1734
      %v1825 = vadd.f32 %v1519, %v1737
      %v1826 = vadd.f32 %v1520, %v1742
      %v1827 = vadd.f32 %v1521, %v1745
      %v1828 = vadd.f32 %v1522, %v1750
      %v1829 = vadd.f32 %v1523, %v1753
      %v1830 = vadd.f32 %v1524, %v1758
      %v1831 = vadd.f32 %v1525, %v1761
      %v1832 = vadd.f32 %v1526, %v1766
      %v1833 = vadd.f32 %v1527, %v1769
      %v1834 = vadd.f32 %v1528, %v1774
      %v1835 = vadd.f32 %v1529, %v1777
      %v1836 = vadd.f32 %v1530, %v1782
      %v1837 = vadd.f32 %v1531, %v1785
      %v1838 = vadd.f32 %v1532, %v1790
      %v1839 = vadd.f32 %v1533, %v1793
      %v1840 = vadd.f32 %v1534, %v1798
      %v1841 = vadd.f32 %v1535, %v1801
      %v1842 = vadd.f32 %v1536, %v1806
      %v1843 = vadd.f32 %v1537, %v1809
      %v1844 = vld [vmem:[%s1231 + $0x2] sm:$0xff]
      %v1845 = vld [vmem:[%s1231 + $0xa] sm:$0xff]
      %v1846 = vld [vmem:[%s1231 + $0x1a] sm:$0xff]
      %v1847 = vld [vmem:[%s1231 + $0x22] sm:$0xff]
      %v1848 = vld [vmem:[%s1231 + $0x32] sm:$0xff]
      %v1849 = vld [vmem:[%s1231 + $0x3a] sm:$0xff]
      %v1850 = vld [vmem:[%s1231 + $0x4a] sm:$0xff]
      %v1851 = vld [vmem:[%s1231 + $0x52] sm:$0xff]
      %v1852 = vld [vmem:[%s1231 + $0x62] sm:$0xff]
      %v1853 = vld [vmem:[%s1231 + $0x6a] sm:$0xff]
      %v1854 = vld [vmem:[%s1231 + $0x7a] sm:$0xff]
      %v1855 = vld [vmem:[%s1231 + $0x82] sm:$0xff]
      %v1856 = vld [vmem:[%s1231 + $0x92] sm:$0xff]
      %v1857 = vld [vmem:[%s1231 + $0x9a] sm:$0xff]
      %v1858 = vld [vmem:[%s1231 + $0xaa] sm:$0xff]
      %v1859 = vld [vmem:[%s1231 + $0xb2] sm:$0xff]
      %v1860 = vld [vmem:[%s1231 + $0xc2] sm:$0xff]
      %v1861 = vld [vmem:[%s1231 + $0xca] sm:$0xff]
      %v1862 = vld [vmem:[%s1231 + $0xda] sm:$0xff]
      %v1863 = vld [vmem:[%s1231 + $0xe2] sm:$0xff]
      %v1864 = vld [vmem:[%s1231 + $0xf2] sm:$0xff]
      %v1865 = vld [vmem:[%s1231 + $0xfa] sm:$0xff]
      %v1866 = vld [vmem:[%s1231 + $0x10a] sm:$0xff]
      %v1867 = vld [vmem:[%s1231 + $0x112] sm:$0xff]
      %v1868 = vld [vmem:[%s1231 + $0x122] sm:$0xff]
      %v1869 = vld [vmem:[%s1231 + $0x12a] sm:$0xff]
      %v1870 = vld [vmem:[%s1231 + $0x13a] sm:$0xff]
      %v1871 = vld [vmem:[%s1231 + $0x142] sm:$0xff]
      %v1872 = vld [vmem:[%s1231 + $0x152] sm:$0xff]
      %v1873 = vld [vmem:[%s1231 + $0x15a] sm:$0xff]
      %v1874 = vld [vmem:[%s1231 + $0x16a] sm:$0xff]
      %v1875 = vld [vmem:[%s1231 + $0x172] sm:$0xff]
      %v1876 = vpack.c.bf16 %v1845, %v1844
      %v1877 = vpack.c.bf16 %v1847, %v1846
      %v1878 = vpack.c.bf16 %v1849, %v1848
      %v1879 = vpack.c.bf16 %v1851, %v1850
      %v1880 = vpack.c.bf16 %v1853, %v1852
      %v1881 = vpack.c.bf16 %v1855, %v1854
      %v1882 = vpack.c.bf16 %v1857, %v1856
      %v1883 = vpack.c.bf16 %v1859, %v1858
      %v1884 = vpack.c.bf16 %v1861, %v1860
      %v1885 = vpack.c.bf16 %v1863, %v1862
      %v1886 = vpack.c.bf16 %v1865, %v1864
      %v1887 = vpack.c.bf16 %v1867, %v1866
      %v1888 = vpack.c.bf16 %v1869, %v1868
      %v1889 = vpack.c.bf16 %v1871, %v1870
      %v1890 = vpack.c.bf16 %v1873, %v1872
      %v1891 = vpack.c.bf16 %v1875, %v1874
      %s1892 = scalar_lea.vmem %s1, 320
      %v1893 = vld [vmem:[%s1892] sm:$0xf]
      %v1894 = vld [vmem:[%s1892 + $0x4] sm:$0xf]
      %v1895 = vld [vmem:[%s1892 + $0x8] sm:$0xf]
      %v1896 = vld [vmem:[%s1892 + $0xc] sm:$0xf]
      %v1897 = vld [vmem:[%s1892 + $0x10] sm:$0xf]
      %v1898 = vld [vmem:[%s1892 + $0x14] sm:$0xf]
      %v1899 = vld [vmem:[%s1892 + $0x18] sm:$0xf]
      %v1900 = vld [vmem:[%s1892 + $0x1c] sm:$0xf]
      %v1901 = vld [vmem:[%s1892 + $0x20] sm:$0xf]
      %v1902 = vld [vmem:[%s1892 + $0x24] sm:$0xf]
      %v1903 = vld [vmem:[%s1892 + $0x28] sm:$0xf]
      %v1904 = vld [vmem:[%s1892 + $0x2c] sm:$0xf]
      %v1905 = vld [vmem:[%s1892 + $0x30] sm:$0xf]
      %v1906 = vld [vmem:[%s1892 + $0x34] sm:$0xf]
      %v1907 = vld [vmem:[%s1892 + $0x38] sm:$0xf]
      %v1908 = vld [vmem:[%s1892 + $0x3c] sm:$0xf]
      %v1925 = vunpack.c.l.b16 %v1893
      %v1926 = vunpack.c.l.b16 %v1894
      %v1927 = vunpack.c.l.b16 %v1895
      %v1928 = vunpack.c.l.b16 %v1896
      %v1929 = vunpack.c.l.b16 %v1897
      %v1930 = vunpack.c.l.b16 %v1898
      %v1931 = vunpack.c.l.b16 %v1899
      %v1932 = vunpack.c.l.b16 %v1900
      %v1933 = vunpack.c.l.b16 %v1901
      %v1934 = vunpack.c.l.b16 %v1902
      %v1935 = vunpack.c.l.b16 %v1903
      %v1936 = vunpack.c.l.b16 %v1904
      %v1937 = vunpack.c.l.b16 %v1905
      %v1938 = vunpack.c.l.b16 %v1906
      %v1939 = vunpack.c.l.b16 %v1907
      %v1940 = vunpack.c.l.b16 %v1908
      %v1941 = vpack.c.b16 %v1926, %v1925
      %v1942 = vpack.c.b16 %v1928, %v1927
      %v1943 = vpack.c.b16 %v1930, %v1929
      %v1944 = vpack.c.b16 %v1932, %v1931
      %v1945 = vpack.c.b16 %v1934, %v1933
      %v1946 = vpack.c.b16 %v1936, %v1935
      %v1947 = vpack.c.b16 %v1938, %v1937
      %v1948 = vpack.c.b16 %v1940, %v1939
      %1957 = vmatprep.subr.bf16.mxu0 0
      %1958 = vmatpush1.bf16.msra.mxu0 %v1941
      %1959 = vmatprep.subr.bf16.mxu0 0
      %1960 = vmatpush1.bf16.msra.mxu0 %v1942
      %1961 = vmatprep.subr.bf16.mxu0 0
      %1962 = vmatpush1.bf16.msra.mxu0 %v1943
      %1963 = vmatprep.subr.bf16.mxu0 0
      %1964 = vmatpush1.bf16.msra.mxu0 %v1944
      %1965 = vmatprep.subr.bf16.mxu0 0
      %1966 = vmatpush1.bf16.msra.mxu0 %v1945
      %1967 = vmatprep.subr.bf16.mxu0 0
      %1968 = vmatpush1.bf16.msra.mxu0 %v1946
      %1969 = vmatprep.subr.bf16.mxu0 0
      %1970 = vmatpush1.bf16.msra.mxu0 %v1947
      %1971 = vmatprep.subr.bf16.mxu0 0
      %1972 = vmatpush1.bf16.msra.mxu0 %v1948
      %1973 = vmatprep.subr.bf16.mxu0 0
      %1974 = vmatpush1.bf16.msra.mxu0 0
      %1975 = vmatprep.subr.bf16.mxu0 0
      %1976 = vmatpush1.bf16.msra.mxu0 0
      %1977 = vmatprep.subr.bf16.mxu0 0
      %1978 = vmatpush1.bf16.msra.mxu0 0
      %1979 = vmatprep.subr.bf16.mxu0 0
      %1980 = vmatpush1.bf16.msra.mxu0 0
      %1981 = vmatprep.subr.bf16.mxu0 0
      %1982 = vmatpush1.bf16.msra.mxu0 0
      %1983 = vmatprep.subr.bf16.mxu0 0
      %1984 = vmatpush1.bf16.msra.mxu0 0
      %1985 = vmatprep.subr.bf16.mxu0 0
      %1986 = vmatpush1.bf16.msra.mxu0 0
      %1987 = vmatprep.subr.bf16.mxu0 0
      %1988 = vmatpush1.bf16.msra.mxu0 0
      %1989 = vmatprep.mubr.bf16.mxu0 0
      %1990 = vmatmul.mubr.bf16.gmra.mrb[0].mxu0 %v1876
      %v1991 = vpop.f32.mrb[0].mxu0
      %v1992 = vadd.f32 0.0, %v1991
      %v1993 = vpop.f32.mrb[0].mxu0
      %v1994 = vpop.f32.mrb[0].mxu0
      %v1995 = vadd.f32 0.0, %v1994
      %v1996 = vpop.f32.mrb[0].mxu0
      %1997 = vmatprep.mubr.bf16.mxu0 0
      %1998 = vmatmul.mubr.bf16.gmra.mrb[0].mxu0 %v1877
      %v1999 = vpop.f32.mrb[0].mxu0
      %v2000 = vadd.f32 0.0, %v1999
      %v2001 = vpop.f32.mrb[0].mxu0
      %v2002 = vpop.f32.mrb[0].mxu0
      %v2003 = vadd.f32 0.0, %v2002
      %v2004 = vpop.f32.mrb[0].mxu0
      %2005 = vmatprep.mubr.bf16.mxu0 0
      %2006 = vmatmul.mubr.bf16.gmra.mrb[0].mxu0 %v1878
      %v2007 = vpop.f32.mrb[0].mxu0
      %v2008 = vadd.f32 0.0, %v2007
      %v2009 = vpop.f32.mrb[0].mxu0
      %v2010 = vpop.f32.mrb[0].mxu0
      %v2011 = vadd.f32 0.0, %v2010
      %v2012 = vpop.f32.mrb[0].mxu0
      %2013 = vmatprep.mubr.bf16.mxu0 0
      %2014 = vmatmul.mubr.bf16.gmra.mrb[0].mxu0 %v1879
      %v2015 = vpop.f32.mrb[0].mxu0
      %v2016 = vadd.f32 0.0, %v2015
      %v2017 = vpop.f32.mrb[0].mxu0
      %v2018 = vpop.f32.mrb[0].mxu0
      %v2019 = vadd.f32 0.0, %v2018
      %v2020 = vpop.f32.mrb[0].mxu0
      %2021 = vmatprep.mubr.bf16.mxu0 0
      %2022 = vmatmul.mubr.bf16.gmra.mrb[0].mxu0 %v1880
      %v2023 = vpop.f32.mrb[0].mxu0
      %v2024 = vadd.f32 0.0, %v2023
      %v2025 = vpop.f32.mrb[0].mxu0
      %v2026 = vpop.f32.mrb[0].mxu0
      %v2027 = vadd.f32 0.0, %v2026
      %v2028 = vpop.f32.mrb[0].mxu0
      %2029 = vmatprep.mubr.bf16.mxu0 0
      %2030 = vmatmul.mubr.bf16.gmra.mrb[0].mxu0 %v1881
      %v2031 = vpop.f32.mrb[0].mxu0
      %v2032 = vadd.f32 0.0, %v2031
      %v2033 = vpop.f32.mrb[0].mxu0
      %v2034 = vpop.f32.mrb[0].mxu0
      %v2035 = vadd.f32 0.0, %v2034
      %v2036 = vpop.f32.mrb[0].mxu0
      %2037 = vmatprep.mubr.bf16.mxu0 0
      %2038 = vmatmul.mubr.bf16.gmra.mrb[0].mxu0 %v1882
      %v2039 = vpop.f32.mrb[0].mxu0
      %v2040 = vadd.f32 0.0, %v2039
      %v2041 = vpop.f32.mrb[0].mxu0
      %v2042 = vpop.f32.mrb[0].mxu0
      %v2043 = vadd.f32 0.0, %v2042
      %v2044 = vpop.f32.mrb[0].mxu0
      %2045 = vmatprep.mubr.bf16.mxu0 0
      %2046 = vmatmul.mubr.bf16.gmra.mrb[0].mxu0 %v1883
      %v2047 = vpop.f32.mrb[0].mxu0
      %v2048 = vadd.f32 0.0, %v2047
      %v2049 = vpop.f32.mrb[0].mxu0
      %v2050 = vpop.f32.mrb[0].mxu0
      %v2051 = vadd.f32 0.0, %v2050
      %v2052 = vpop.f32.mrb[0].mxu0
      %2053 = vmatprep.mubr.bf16.mxu0 0
      %2054 = vmatmul.mubr.bf16.gmra.mrb[0].mxu0 %v1884
      %v2055 = vpop.f32.mrb[0].mxu0
      %v2056 = vadd.f32 0.0, %v2055
      %v2057 = vpop.f32.mrb[0].mxu0
      %v2058 = vpop.f32.mrb[0].mxu0
      %v2059 = vadd.f32 0.0, %v2058
      %v2060 = vpop.f32.mrb[0].mxu0
      %2061 = vmatprep.mubr.bf16.mxu0 0
      %2062 = vmatmul.mubr.bf16.gmra.mrb[0].mxu0 %v1885
      %v2063 = vpop.f32.mrb[0].mxu0
      %v2064 = vadd.f32 0.0, %v2063
      %v2065 = vpop.f32.mrb[0].mxu0
      %v2066 = vpop.f32.mrb[0].mxu0
      %v2067 = vadd.f32 0.0, %v2066
      %v2068 = vpop.f32.mrb[0].mxu0
      %2069 = vmatprep.mubr.bf16.mxu0 0
      %2070 = vmatmul.mubr.bf16.gmra.mrb[0].mxu0 %v1886
      %v2071 = vpop.f32.mrb[0].mxu0
      %v2072 = vadd.f32 0.0, %v2071
      %v2073 = vpop.f32.mrb[0].mxu0
      %v2074 = vpop.f32.mrb[0].mxu0
      %v2075 = vadd.f32 0.0, %v2074
      %v2076 = vpop.f32.mrb[0].mxu0
      %2077 = vmatprep.mubr.bf16.mxu0 0
      %2078 = vmatmul.mubr.bf16.gmra.mrb[0].mxu0 %v1887
      %v2079 = vpop.f32.mrb[0].mxu0
      %v2080 = vadd.f32 0.0, %v2079
      %v2081 = vpop.f32.mrb[0].mxu0
      %v2082 = vpop.f32.mrb[0].mxu0
      %v2083 = vadd.f32 0.0, %v2082
      %v2084 = vpop.f32.mrb[0].mxu0
      %2085 = vmatprep.mubr.bf16.mxu0 0
      %2086 = vmatmul.mubr.bf16.gmra.mrb[0].mxu0 %v1888
      %v2087 = vpop.f32.mrb[0].mxu0
      %v2088 = vadd.f32 0.0, %v2087
      %v2089 = vpop.f32.mrb[0].mxu0
      %v2090 = vpop.f32.mrb[0].mxu0
      %v2091 = vadd.f32 0.0, %v2090
      %v2092 = vpop.f32.mrb[0].mxu0
      %2093 = vmatprep.mubr.bf16.mxu0 0
      %2094 = vmatmul.mubr.bf16.gmra.mrb[0].mxu0 %v1889
      %v2095 = vpop.f32.mrb[0].mxu0
      %v2096 = vadd.f32 0.0, %v2095
      %v2097 = vpop.f32.mrb[0].mxu0
      %v2098 = vpop.f32.mrb[0].mxu0
      %v2099 = vadd.f32 0.0, %v2098
      %v2100 = vpop.f32.mrb[0].mxu0
      %2101 = vmatprep.mubr.bf16.mxu0 0
      %2102 = vmatmul.mubr.bf16.gmra.mrb[0].mxu0 %v1890
      %v2103 = vpop.f32.mrb[0].mxu0
      %v2104 = vadd.f32 0.0, %v2103
      %v2105 = vpop.f32.mrb[0].mxu0
      %v2106 = vpop.f32.mrb[0].mxu0
      %v2107 = vadd.f32 0.0, %v2106
      %v2108 = vpop.f32.mrb[0].mxu0
      %2109 = vmatprep.mubr.bf16.mxu0 0
      %2110 = vmatmul.mubr.bf16.gmra.mrb[0].mxu0 %v1891
      %v2111 = vpop.f32.mrb[0].mxu0
      %v2112 = vadd.f32 0.0, %v2111
      %v2113 = vpop.f32.mrb[0].mxu0
      %v2114 = vpop.f32.mrb[0].mxu0
      %v2115 = vadd.f32 0.0, %v2114
      %v2116 = vpop.f32.mrb[0].mxu0
      %2117 = vdwg.mxu0
      %v2118 = vadd.f32 %v1812, %v1992
      %v2119 = vadd.f32 %v1813, %v1995
      %v2120 = vadd.f32 %v1814, %v2000
      %v2121 = vadd.f32 %v1815, %v2003
      %v2122 = vadd.f32 %v1816, %v2008
      %v2123 = vadd.f32 %v1817, %v2011
      %v2124 = vadd.f32 %v1818, %v2016
      %v2125 = vadd.f32 %v1819, %v2019
      %v2126 = vadd.f32 %v1820, %v2024
      %v2127 = vadd.f32 %v1821, %v2027
      %v2128 = vadd.f32 %v1822, %v2032
      %v2129 = vadd.f32 %v1823, %v2035
      %v2130 = vadd.f32 %v1824, %v2040
      %v2131 = vadd.f32 %v1825, %v2043
      %v2132 = vadd.f32 %v1826, %v2048
      %v2133 = vadd.f32 %v1827, %v2051
      %v2134 = vadd.f32 %v1828, %v2056
      %v2135 = vadd.f32 %v1829, %v2059
      %v2136 = vadd.f32 %v1830, %v2064
      %v2137 = vadd.f32 %v1831, %v2067
      %v2138 = vadd.f32 %v1832, %v2072
      %v2139 = vadd.f32 %v1833, %v2075
      %v2140 = vadd.f32 %v1834, %v2080
      %v2141 = vadd.f32 %v1835, %v2083
      %v2142 = vadd.f32 %v1836, %v2088
      %v2143 = vadd.f32 %v1837, %v2091
      %v2144 = vadd.f32 %v1838, %v2096
      %v2145 = vadd.f32 %v1839, %v2099
      %v2146 = vadd.f32 %v1840, %v2104
      %v2147 = vadd.f32 %v1841, %v2107
      %v2148 = vadd.f32 %v1842, %v2112
      %v2149 = vadd.f32 %v1843, %v2115
      %s2150 = scalar_lea.vmem [#allocation2], 48
      %v2151 = vld [vmem:[%s2150] sm:$0xff]
      %v2152 = vld [vmem:[%s2150 + $0x8] sm:$0xff]
      %v2153 = vld [vmem:[%s2150 + $0x18] sm:$0xff]
      %v2154 = vld [vmem:[%s2150 + $0x20] sm:$0xff]
      %v2155 = vld [vmem:[%s2150 + $0x30] sm:$0xff]
      %v2156 = vld [vmem:[%s2150 + $0x38] sm:$0xff]
      %v2157 = vld [vmem:[%s2150 + $0x48] sm:$0xff]
      %v2158 = vld [vmem:[%s2150 + $0x50] sm:$0xff]
      %v2159 = vld [vmem:[%s2150 + $0x60] sm:$0xff]
      %v2160 = vld [vmem:[%s2150 + $0x68] sm:$0xff]
      %v2161 = vld [vmem:[%s2150 + $0x78] sm:$0xff]
      %v2162 = vld [vmem:[%s2150 + $0x80] sm:$0xff]
      %v2163 = vld [vmem:[%s2150 + $0x90] sm:$0xff]
      %v2164 = vld [vmem:[%s2150 + $0x98] sm:$0xff]
      %v2165 = vld [vmem:[%s2150 + $0xa8] sm:$0xff]
      %v2166 = vld [vmem:[%s2150 + $0xb0] sm:$0xff]
      %v2167 = vld [vmem:[%s2150 + $0xc0] sm:$0xff]
      %v2168 = vld [vmem:[%s2150 + $0xc8] sm:$0xff]
      %v2169 = vld [vmem:[%s2150 + $0xd8] sm:$0xff]
      %v2170 = vld [vmem:[%s2150 + $0xe0] sm:$0xff]
      %v2171 = vld [vmem:[%s2150 + $0xf0] sm:$0xff]
      %v2172 = vld [vmem:[%s2150 + $0xf8] sm:$0xff]
      %v2173 = vld [vmem:[%s2150 + $0x108] sm:$0xff]
      %v2174 = vld [vmem:[%s2150 + $0x110] sm:$0xff]
      %v2175 = vld [vmem:[%s2150 + $0x120] sm:$0xff]
      %v2176 = vld [vmem:[%s2150 + $0x128] sm:$0xff]
      %v2177 = vld [vmem:[%s2150 + $0x138] sm:$0xff]
      %v2178 = vld [vmem:[%s2150 + $0x140] sm:$0xff]
      %v2179 = vld [vmem:[%s2150 + $0x150] sm:$0xff]
      %v2180 = vld [vmem:[%s2150 + $0x158] sm:$0xff]
      %v2181 = vld [vmem:[%s2150 + $0x168] sm:$0xff]
      %v2182 = vld [vmem:[%s2150 + $0x170] sm:$0xff]
      %v2183 = vpack.c.bf16 %v2152, %v2151
      %v2184 = vpack.c.bf16 %v2154, %v2153
      %v2185 = vpack.c.bf16 %v2156, %v2155
      %v2186 = vpack.c.bf16 %v2158, %v2157
      %v2187 = vpack.c.bf16 %v2160, %v2159
      %v2188 = vpack.c.bf16 %v2162, %v2161
      %v2189 = vpack.c.bf16 %v2164, %v2163
      %v2190 = vpack.c.bf16 %v2166, %v2165
      %v2191 = vpack.c.bf16 %v2168, %v2167
      %v2192 = vpack.c.bf16 %v2170, %v2169
      %v2193 = vpack.c.bf16 %v2172, %v2171
      %v2194 = vpack.c.bf16 %v2174, %v2173
      %v2195 = vpack.c.bf16 %v2176, %v2175
      %v2196 = vpack.c.bf16 %v2178, %v2177
      %v2197 = vpack.c.bf16 %v2180, %v2179
      %v2198 = vpack.c.bf16 %v2182, %v2181
      %s2199 = scalar_lea.vmem %s1, 384
      %v2200 = vld [vmem:[%s2199] sm:$0xf]
      %v2201 = vld [vmem:[%s2199 + $0x4] sm:$0xf]
      %v2202 = vld [vmem:[%s2199 + $0x8] sm:$0xf]
      %v2203 = vld [vmem:[%s2199 + $0xc] sm:$0xf]
      %v2204 = vld [vmem:[%s2199 + $0x10] sm:$0xf]
      %v2205 = vld [vmem:[%s2199 + $0x14] sm:$0xf]
      %v2206 = vld [vmem:[%s2199 + $0x18] sm:$0xf]
      %v2207 = vld [vmem:[%s2199 + $0x1c] sm:$0xf]
      %v2208 = vld [vmem:[%s2199 + $0x20] sm:$0xf]
      %v2209 = vld [vmem:[%s2199 + $0x24] sm:$0xf]
      %v2210 = vld [vmem:[%s2199 + $0x28] sm:$0xf]
      %v2211 = vld [vmem:[%s2199 + $0x2c] sm:$0xf]
      %v2212 = vld [vmem:[%s2199 + $0x30] sm:$0xf]
      %v2213 = vld [vmem:[%s2199 + $0x34] sm:$0xf]
      %v2214 = vld [vmem:[%s2199 + $0x38] sm:$0xf]
      %v2215 = vld [vmem:[%s2199 + $0x3c] sm:$0xf]
      %v2232 = vunpack.c.l.b16 %v2200
      %v2233 = vunpack.c.l.b16 %v2201
      %v2234 = vunpack.c.l.b16 %v2202
      %v2235 = vunpack.c.l.b16 %v2203
      %v2236 = vunpack.c.l.b16 %v2204
      %v2237 = vunpack.c.l.b16 %v2205
      %v2238 = vunpack.c.l.b16 %v2206
      %v2239 = vunpack.c.l.b16 %v2207
      %v2240 = vunpack.c.l.b16 %v2208
      %v2241 = vunpack.c.l.b16 %v2209
      %v2242 = vunpack.c.l.b16 %v2210
      %v2243 = vunpack.c.l.b16 %v2211
      %v2244 = vunpack.c.l.b16 %v2212
      %v2245 = vunpack.c.l.b16 %v2213
      %v2246 = vunpack.c.l.b16 %v2214
      %v2247 = vunpack.c.l.b16 %v2215
      %v2248 = vpack.c.b16 %v2233, %v2232
      %v2249 = vpack.c.b16 %v2235, %v2234
      %v2250 = vpack.c.b16 %v2237, %v2236
      %v2251 = vpack.c.b16 %v2239, %v2238
      %v2252 = vpack.c.b16 %v2241, %v2240
      %v2253 = vpack.c.b16 %v2243, %v2242
      %v2254 = vpack.c.b16 %v2245, %v2244
      %v2255 = vpack.c.b16 %v2247, %v2246
      %2264 = vmatprep.subr.bf16.mxu0 0
      %2265 = vmatpush1.bf16.msra.mxu0 %v2248
      %2266 = vmatprep.subr.bf16.mxu0 0
      %2267 = vmatpush1.bf16.msra.mxu0 %v2249
      %2268 = vmatprep.subr.bf16.mxu0 0
      %2269 = vmatpush1.bf16.msra.mxu0 %v2250
      %2270 = vmatprep.subr.bf16.mxu0 0
      %2271 = vmatpush1.bf16.msra.mxu0 %v2251
      %2272 = vmatprep.subr.bf16.mxu0 0
      %2273 = vmatpush1.bf16.msra.mxu0 %v2252
      %2274 = vmatprep.subr.bf16.mxu0 0
      %2275 = vmatpush1.bf16.msra.mxu0 %v2253
      %2276 = vmatprep.subr.bf16.mxu0 0
      %2277 = vmatpush1.bf16.msra.mxu0 %v2254
      %2278 = vmatprep.subr.bf16.mxu0 0
      %2279 = vmatpush1.bf16.msra.mxu0 %v2255
      %2280 = vmatprep.subr.bf16.mxu0 0
      %2281 = vmatpush1.bf16.msra.mxu0 0
      %2282 = vmatprep.subr.bf16.mxu0 0
      %2283 = vmatpush1.bf16.msra.mxu0 0
      %2284 = vmatprep.subr.bf16.mxu0 0
      %2285 = vmatpush1.bf16.msra.mxu0 0
      %2286 = vmatprep.subr.bf16.mxu0 0
      %2287 = vmatpush1.bf16.msra.mxu0 0
      %2288 = vmatprep.subr.bf16.mxu0 0
      %2289 = vmatpush1.bf16.msra.mxu0 0
      %2290 = vmatprep.subr.bf16.mxu0 0
      %2291 = vmatpush1.bf16.msra.mxu0 0
      %2292 = vmatprep.subr.bf16.mxu0 0
      %2293 = vmatpush1.bf16.msra.mxu0 0
      %2294 = vmatprep.subr.bf16.mxu0 0
      %2295 = vmatpush1.bf16.msra.mxu0 0
      %2296 = vmatprep.mubr.bf16.mxu0 0
      %2297 = vmatmul.mubr.bf16.gmra.mrb[0].mxu0 %v2183
      %v2298 = vpop.f32.mrb[0].mxu0
      %v2299 = vadd.f32 0.0, %v2298
      %v2300 = vpop.f32.mrb[0].mxu0
      %v2301 = vpop.f32.mrb[0].mxu0
      %v2302 = vadd.f32 0.0, %v2301
      %v2303 = vpop.f32.mrb[0].mxu0
      %2304 = vmatprep.mubr.bf16.mxu0 0
      %2305 = vmatmul.mubr.bf16.gmra.mrb[0].mxu0 %v2184
      %v2306 = vpop.f32.mrb[0].mxu0
      %v2307 = vadd.f32 0.0, %v2306
      %v2308 = vpop.f32.mrb[0].mxu0
      %v2309 = vpop.f32.mrb[0].mxu0
      %v2310 = vadd.f32 0.0, %v2309
      %v2311 = vpop.f32.mrb[0].mxu0
      %2312 = vmatprep.mubr.bf16.mxu0 0
      %2313 = vmatmul.mubr.bf16.gmra.mrb[0].mxu0 %v2185
      %v2314 = vpop.f32.mrb[0].mxu0
      %v2315 = vadd.f32 0.0, %v2314
      %v2316 = vpop.f32.mrb[0].mxu0
      %v2317 = vpop.f32.mrb[0].mxu0
      %v2318 = vadd.f32 0.0, %v2317
      %v2319 = vpop.f32.mrb[0].mxu0
      %2320 = vmatprep.mubr.bf16.mxu0 0
      %2321 = vmatmul.mubr.bf16.gmra.mrb[0].mxu0 %v2186
      %v2322 = vpop.f32.mrb[0].mxu0
      %v2323 = vadd.f32 0.0, %v2322
      %v2324 = vpop.f32.mrb[0].mxu0
      %v2325 = vpop.f32.mrb[0].mxu0
      %v2326 = vadd.f32 0.0, %v2325
      %v2327 = vpop.f32.mrb[0].mxu0
      %2328 = vmatprep.mubr.bf16.mxu0 0
      %2329 = vmatmul.mubr.bf16.gmra.mrb[0].mxu0 %v2187
      %v2330 = vpop.f32.mrb[0].mxu0
      %v2331 = vadd.f32 0.0, %v2330
      %v2332 = vpop.f32.mrb[0].mxu0
      %v2333 = vpop.f32.mrb[0].mxu0
      %v2334 = vadd.f32 0.0, %v2333
      %v2335 = vpop.f32.mrb[0].mxu0
      %2336 = vmatprep.mubr.bf16.mxu0 0
      %2337 = vmatmul.mubr.bf16.gmra.mrb[0].mxu0 %v2188
      %v2338 = vpop.f32.mrb[0].mxu0
      %v2339 = vadd.f32 0.0, %v2338
      %v2340 = vpop.f32.mrb[0].mxu0
      %v2341 = vpop.f32.mrb[0].mxu0
      %v2342 = vadd.f32 0.0, %v2341
      %v2343 = vpop.f32.mrb[0].mxu0
      %2344 = vmatprep.mubr.bf16.mxu0 0
      %2345 = vmatmul.mubr.bf16.gmra.mrb[0].mxu0 %v2189
      %v2346 = vpop.f32.mrb[0].mxu0
      %v2347 = vadd.f32 0.0, %v2346
      %v2348 = vpop.f32.mrb[0].mxu0
      %v2349 = vpop.f32.mrb[0].mxu0
      %v2350 = vadd.f32 0.0, %v2349
      %v2351 = vpop.f32.mrb[0].mxu0
      %2352 = vmatprep.mubr.bf16.mxu0 0
      %2353 = vmatmul.mubr.bf16.gmra.mrb[0].mxu0 %v2190
      %v2354 = vpop.f32.mrb[0].mxu0
      %v2355 = vadd.f32 0.0, %v2354
      %v2356 = vpop.f32.mrb[0].mxu0
      %v2357 = vpop.f32.mrb[0].mxu0
      %v2358 = vadd.f32 0.0, %v2357
      %v2359 = vpop.f32.mrb[0].mxu0
      %2360 = vmatprep.mubr.bf16.mxu0 0
      %2361 = vmatmul.mubr.bf16.gmra.mrb[0].mxu0 %v2191
      %v2362 = vpop.f32.mrb[0].mxu0
      %v2363 = vadd.f32 0.0, %v2362
      %v2364 = vpop.f32.mrb[0].mxu0
      %v2365 = vpop.f32.mrb[0].mxu0
      %v2366 = vadd.f32 0.0, %v2365
      %v2367 = vpop.f32.mrb[0].mxu0
      %2368 = vmatprep.mubr.bf16.mxu0 0
      %2369 = vmatmul.mubr.bf16.gmra.mrb[0].mxu0 %v2192
      %v2370 = vpop.f32.mrb[0].mxu0
      %v2371 = vadd.f32 0.0, %v2370
      %v2372 = vpop.f32.mrb[0].mxu0
      %v2373 = vpop.f32.mrb[0].mxu0
      %v2374 = vadd.f32 0.0, %v2373
      %v2375 = vpop.f32.mrb[0].mxu0
      %2376 = vmatprep.mubr.bf16.mxu0 0
      %2377 = vmatmul.mubr.bf16.gmra.mrb[0].mxu0 %v2193
      %v2378 = vpop.f32.mrb[0].mxu0
      %v2379 = vadd.f32 0.0, %v2378
      %v2380 = vpop.f32.mrb[0].mxu0
      %v2381 = vpop.f32.mrb[0].mxu0
      %v2382 = vadd.f32 0.0, %v2381
      %v2383 = vpop.f32.mrb[0].mxu0
      %2384 = vmatprep.mubr.bf16.mxu0 0
      %2385 = vmatmul.mubr.bf16.gmra.mrb[0].mxu0 %v2194
      %v2386 = vpop.f32.mrb[0].mxu0
      %v2387 = vadd.f32 0.0, %v2386
      %v2388 = vpop.f32.mrb[0].mxu0
      %v2389 = vpop.f32.mrb[0].mxu0
      %v2390 = vadd.f32 0.0, %v2389
      %v2391 = vpop.f32.mrb[0].mxu0
      %2392 = vmatprep.mubr.bf16.mxu0 0
      %2393 = vmatmul.mubr.bf16.gmra.mrb[0].mxu0 %v2195
      %v2394 = vpop.f32.mrb[0].mxu0
      %v2395 = vadd.f32 0.0, %v2394
      %v2396 = vpop.f32.mrb[0].mxu0
      %v2397 = vpop.f32.mrb[0].mxu0
      %v2398 = vadd.f32 0.0, %v2397
      %v2399 = vpop.f32.mrb[0].mxu0
      %2400 = vmatprep.mubr.bf16.mxu0 0
      %2401 = vmatmul.mubr.bf16.gmra.mrb[0].mxu0 %v2196
      %v2402 = vpop.f32.mrb[0].mxu0
      %v2403 = vadd.f32 0.0, %v2402
      %v2404 = vpop.f32.mrb[0].mxu0
      %v2405 = vpop.f32.mrb[0].mxu0
      %v2406 = vadd.f32 0.0, %v2405
      %v2407 = vpop.f32.mrb[0].mxu0
      %2408 = vmatprep.mubr.bf16.mxu0 0
      %2409 = vmatmul.mubr.bf16.gmra.mrb[0].mxu0 %v2197
      %v2410 = vpop.f32.mrb[0].mxu0
      %v2411 = vadd.f32 0.0, %v2410
      %v2412 = vpop.f32.mrb[0].mxu0
      %v2413 = vpop.f32.mrb[0].mxu0
      %v2414 = vadd.f32 0.0, %v2413
      %v2415 = vpop.f32.mrb[0].mxu0
      %2416 = vmatprep.mubr.bf16.mxu0 0
      %2417 = vmatmul.mubr.bf16.gmra.mrb[0].mxu0 %v2198
      %v2418 = vpop.f32.mrb[0].mxu0
      %v2419 = vadd.f32 0.0, %v2418
      %v2420 = vpop.f32.mrb[0].mxu0
      %v2421 = vpop.f32.mrb[0].mxu0
      %v2422 = vadd.f32 0.0, %v2421
      %v2423 = vpop.f32.mrb[0].mxu0
      %2424 = vdwg.mxu0
      %v2425 = vadd.f32 %v2118, %v2299
      %v2426 = vadd.f32 %v2119, %v2302
      %v2427 = vadd.f32 %v2120, %v2307
      %v2428 = vadd.f32 %v2121, %v2310
      %v2429 = vadd.f32 %v2122, %v2315
      %v2430 = vadd.f32 %v2123, %v2318
      %v2431 = vadd.f32 %v2124, %v2323
      %v2432 = vadd.f32 %v2125, %v2326
      %v2433 = vadd.f32 %v2126, %v2331
      %v2434 = vadd.f32 %v2127, %v2334
      %v2435 = vadd.f32 %v2128, %v2339
      %v2436 = vadd.f32 %v2129, %v2342
      %v2437 = vadd.f32 %v2130, %v2347
      %v2438 = vadd.f32 %v2131, %v2350
      %v2439 = vadd.f32 %v2132, %v2355
      %v2440 = vadd.f32 %v2133, %v2358
      %v2441 = vadd.f32 %v2134, %v2363
      %v2442 = vadd.f32 %v2135, %v2366
      %v2443 = vadd.f32 %v2136, %v2371
      %v2444 = vadd.f32 %v2137, %v2374
      %v2445 = vadd.f32 %v2138, %v2379
      %v2446 = vadd.f32 %v2139, %v2382
      %v2447 = vadd.f32 %v2140, %v2387
      %v2448 = vadd.f32 %v2141, %v2390
      %v2449 = vadd.f32 %v2142, %v2395
      %v2450 = vadd.f32 %v2143, %v2398
      %v2451 = vadd.f32 %v2144, %v2403
      %v2452 = vadd.f32 %v2145, %v2406
      %v2453 = vadd.f32 %v2146, %v2411
      %v2454 = vadd.f32 %v2147, %v2414
      %v2455 = vadd.f32 %v2148, %v2419
      %v2456 = vadd.f32 %v2149, %v2422
      %v2457 = vld [vmem:[%s2150 + $0x1] sm:$0xff]
      %v2458 = vld [vmem:[%s2150 + $0x9] sm:$0xff]
      %v2459 = vld [vmem:[%s2150 + $0x19] sm:$0xff]
      %v2460 = vld [vmem:[%s2150 + $0x21] sm:$0xff]
      %v2461 = vld [vmem:[%s2150 + $0x31] sm:$0xff]
      %v2462 = vld [vmem:[%s2150 + $0x39] sm:$0xff]
      %v2463 = vld [vmem:[%s2150 + $0x49] sm:$0xff]
      %v2464 = vld [vmem:[%s2150 + $0x51] sm:$0xff]
      %v2465 = vld [vmem:[%s2150 + $0x61] sm:$0xff]
      %v2466 = vld [vmem:[%s2150 + $0x69] sm:$0xff]
      %v2467 = vld [vmem:[%s2150 + $0x79] sm:$0xff]
      %v2468 = vld [vmem:[%s2150 + $0x81] sm:$0xff]
      %v2469 = vld [vmem:[%s2150 + $0x91] sm:$0xff]
      %v2470 = vld [vmem:[%s2150 + $0x99] sm:$0xff]
      %v2471 = vld [vmem:[%s2150 + $0xa9] sm:$0xff]
      %v2472 = vld [vmem:[%s2150 + $0xb1] sm:$0xff]
      %v2473 = vld [vmem:[%s2150 + $0xc1] sm:$0xff]
      %v2474 = vld [vmem:[%s2150 + $0xc9] sm:$0xff]
      %v2475 = vld [vmem:[%s2150 + $0xd9] sm:$0xff]
      %v2476 = vld [vmem:[%s2150 + $0xe1] sm:$0xff]
      %v2477 = vld [vmem:[%s2150 + $0xf1] sm:$0xff]
      %v2478 = vld [vmem:[%s2150 + $0xf9] sm:$0xff]
      %v2479 = vld [vmem:[%s2150 + $0x109] sm:$0xff]
      %v2480 = vld [vmem:[%s2150 + $0x111] sm:$0xff]
      %v2481 = vld [vmem:[%s2150 + $0x121] sm:$0xff]
      %v2482 = vld [vmem:[%s2150 + $0x129] sm:$0xff]
      %v2483 = vld [vmem:[%s2150 + $0x139] sm:$0xff]
      %v2484 = vld [vmem:[%s2150 + $0x141] sm:$0xff]
      %v2485 = vld [vmem:[%s2150 + $0x151] sm:$0xff]
      %v2486 = vld [vmem:[%s2150 + $0x159] sm:$0xff]
      %v2487 = vld [vmem:[%s2150 + $0x169] sm:$0xff]
      %v2488 = vld [vmem:[%s2150 + $0x171] sm:$0xff]
      %v2489 = vpack.c.bf16 %v2458, %v2457
      %v2490 = vpack.c.bf16 %v2460, %v2459
      %v2491 = vpack.c.bf16 %v2462, %v2461
      %v2492 = vpack.c.bf16 %v2464, %v2463
      %v2493 = vpack.c.bf16 %v2466, %v2465
      %v2494 = vpack.c.bf16 %v2468, %v2467
      %v2495 = vpack.c.bf16 %v2470, %v2469
      %v2496 = vpack.c.bf16 %v2472, %v2471
      %v2497 = vpack.c.bf16 %v2474, %v2473
      %v2498 = vpack.c.bf16 %v2476, %v2475
      %v2499 = vpack.c.bf16 %v2478, %v2477
      %v2500 = vpack.c.bf16 %v2480, %v2479
      %v2501 = vpack.c.bf16 %v2482, %v2481
      %v2502 = vpack.c.bf16 %v2484, %v2483
      %v2503 = vpack.c.bf16 %v2486, %v2485
      %v2504 = vpack.c.bf16 %v2488, %v2487
      %s2505 = scalar_lea.vmem %s1, 448
      %v2506 = vld [vmem:[%s2505] sm:$0xf]
      %v2507 = vld [vmem:[%s2505 + $0x4] sm:$0xf]
      %v2508 = vld [vmem:[%s2505 + $0x8] sm:$0xf]
      %v2509 = vld [vmem:[%s2505 + $0xc] sm:$0xf]
      %v2510 = vld [vmem:[%s2505 + $0x10] sm:$0xf]
      %v2511 = vld [vmem:[%s2505 + $0x14] sm:$0xf]
      %v2512 = vld [vmem:[%s2505 + $0x18] sm:$0xf]
      %v2513 = vld [vmem:[%s2505 + $0x1c] sm:$0xf]
      %v2514 = vld [vmem:[%s2505 + $0x20] sm:$0xf]
      %v2515 = vld [vmem:[%s2505 + $0x24] sm:$0xf]
      %v2516 = vld [vmem:[%s2505 + $0x28] sm:$0xf]
      %v2517 = vld [vmem:[%s2505 + $0x2c] sm:$0xf]
      %v2518 = vld [vmem:[%s2505 + $0x30] sm:$0xf]
      %v2519 = vld [vmem:[%s2505 + $0x34] sm:$0xf]
      %v2520 = vld [vmem:[%s2505 + $0x38] sm:$0xf]
      %v2521 = vld [vmem:[%s2505 + $0x3c] sm:$0xf]
      %v2538 = vunpack.c.l.b16 %v2506
      %v2539 = vunpack.c.l.b16 %v2507
      %v2540 = vunpack.c.l.b16 %v2508
      %v2541 = vunpack.c.l.b16 %v2509
      %v2542 = vunpack.c.l.b16 %v2510
      %v2543 = vunpack.c.l.b16 %v2511
      %v2544 = vunpack.c.l.b16 %v2512
      %v2545 = vunpack.c.l.b16 %v2513
      %v2546 = vunpack.c.l.b16 %v2514
      %v2547 = vunpack.c.l.b16 %v2515
      %v2548 = vunpack.c.l.b16 %v2516
      %v2549 = vunpack.c.l.b16 %v2517
      %v2550 = vunpack.c.l.b16 %v2518
      %v2551 = vunpack.c.l.b16 %v2519
      %v2552 = vunpack.c.l.b16 %v2520
      %v2553 = vunpack.c.l.b16 %v2521
      %v2554 = vpack.c.b16 %v2539, %v2538
      %v2555 = vpack.c.b16 %v2541, %v2540
      %v2556 = vpack.c.b16 %v2543, %v2542
      %v2557 = vpack.c.b16 %v2545, %v2544
      %v2558 = vpack.c.b16 %v2547, %v2546
      %v2559 = vpack.c.b16 %v2549, %v2548
      %v2560 = vpack.c.b16 %v2551, %v2550
      %v2561 = vpack.c.b16 %v2553, %v2552
      %2570 = vmatprep.subr.bf16.mxu0 0
      %2571 = vmatpush1.bf16.msra.mxu0 %v2554
      %2572 = vmatprep.subr.bf16.mxu0 0
      %2573 = vmatpush1.bf16.msra.mxu0 %v2555
      %2574 = vmatprep.subr.bf16.mxu0 0
      %2575 = vmatpush1.bf16.msra.mxu0 %v2556
      %2576 = vmatprep.subr.bf16.mxu0 0
      %2577 = vmatpush1.bf16.msra.mxu0 %v2557
      %2578 = vmatprep.subr.bf16.mxu0 0
      %2579 = vmatpush1.bf16.msra.mxu0 %v2558
      %2580 = vmatprep.subr.bf16.mxu0 0
      %2581 = vmatpush1.bf16.msra.mxu0 %v2559
      %2582 = vmatprep.subr.bf16.mxu0 0
      %2583 = vmatpush1.bf16.msra.mxu0 %v2560
      %2584 = vmatprep.subr.bf16.mxu0 0
      %2585 = vmatpush1.bf16.msra.mxu0 %v2561
      %2586 = vmatprep.subr.bf16.mxu0 0
      %2587 = vmatpush1.bf16.msra.mxu0 0
      %2588 = vmatprep.subr.bf16.mxu0 0
      %2589 = vmatpush1.bf16.msra.mxu0 0
      %2590 = vmatprep.subr.bf16.mxu0 0
      %2591 = vmatpush1.bf16.msra.mxu0 0
      %2592 = vmatprep.subr.bf16.mxu0 0
      %2593 = vmatpush1.bf16.msra.mxu0 0
      %2594 = vmatprep.subr.bf16.mxu0 0
      %2595 = vmatpush1.bf16.msra.mxu0 0
      %2596 = vmatprep.subr.bf16.mxu0 0
      %2597 = vmatpush1.bf16.msra.mxu0 0
      %2598 = vmatprep.subr.bf16.mxu0 0
      %2599 = vmatpush1.bf16.msra.mxu0 0
      %2600 = vmatprep.subr.bf16.mxu0 0
      %2601 = vmatpush1.bf16.msra.mxu0 0
      %2602 = vmatprep.mubr.bf16.mxu0 0
      %2603 = vmatmul.mubr.bf16.gmra.mrb[0].mxu0 %v2489
      %v2604 = vpop.f32.mrb[0].mxu0
      %v2605 = vadd.f32 0.0, %v2604
      %v2606 = vpop.f32.mrb[0].mxu0
      %v2607 = vpop.f32.mrb[0].mxu0
      %v2608 = vadd.f32 0.0, %v2607
      %v2609 = vpop.f32.mrb[0].mxu0
      %2610 = vmatprep.mubr.bf16.mxu0 0
      %2611 = vmatmul.mubr.bf16.gmra.mrb[0].mxu0 %v2490
      %v2612 = vpop.f32.mrb[0].mxu0
      %v2613 = vadd.f32 0.0, %v2612
      %v2614 = vpop.f32.mrb[0].mxu0
      %v2615 = vpop.f32.mrb[0].mxu0
      %v2616 = vadd.f32 0.0, %v2615
      %v2617 = vpop.f32.mrb[0].mxu0
      %2618 = vmatprep.mubr.bf16.mxu0 0
      %2619 = vmatmul.mubr.bf16.gmra.mrb[0].mxu0 %v2491
      %v2620 = vpop.f32.mrb[0].mxu0
      %v2621 = vadd.f32 0.0, %v2620
      %v2622 = vpop.f32.mrb[0].mxu0
      %v2623 = vpop.f32.mrb[0].mxu0
      %v2624 = vadd.f32 0.0, %v2623
      %v2625 = vpop.f32.mrb[0].mxu0
      %2626 = vmatprep.mubr.bf16.mxu0 0
      %2627 = vmatmul.mubr.bf16.gmra.mrb[0].mxu0 %v2492
      %v2628 = vpop.f32.mrb[0].mxu0
      %v2629 = vadd.f32 0.0, %v2628
      %v2630 = vpop.f32.mrb[0].mxu0
      %v2631 = vpop.f32.mrb[0].mxu0
      %v2632 = vadd.f32 0.0, %v2631
      %v2633 = vpop.f32.mrb[0].mxu0
      %2634 = vmatprep.mubr.bf16.mxu0 0
      %2635 = vmatmul.mubr.bf16.gmra.mrb[0].mxu0 %v2493
      %v2636 = vpop.f32.mrb[0].mxu0
      %v2637 = vadd.f32 0.0, %v2636
      %v2638 = vpop.f32.mrb[0].mxu0
      %v2639 = vpop.f32.mrb[0].mxu0
      %v2640 = vadd.f32 0.0, %v2639
      %v2641 = vpop.f32.mrb[0].mxu0
      %2642 = vmatprep.mubr.bf16.mxu0 0
      %2643 = vmatmul.mubr.bf16.gmra.mrb[0].mxu0 %v2494
      %v2644 = vpop.f32.mrb[0].mxu0
      %v2645 = vadd.f32 0.0, %v2644
      %v2646 = vpop.f32.mrb[0].mxu0
      %v2647 = vpop.f32.mrb[0].mxu0
      %v2648 = vadd.f32 0.0, %v2647
      %v2649 = vpop.f32.mrb[0].mxu0
      %2650 = vmatprep.mubr.bf16.mxu0 0
      %2651 = vmatmul.mubr.bf16.gmra.mrb[0].mxu0 %v2495
      %v2652 = vpop.f32.mrb[0].mxu0
      %v2653 = vadd.f32 0.0, %v2652
      %v2654 = vpop.f32.mrb[0].mxu0
      %v2655 = vpop.f32.mrb[0].mxu0
      %v2656 = vadd.f32 0.0, %v2655
      %v2657 = vpop.f32.mrb[0].mxu0
      %2658 = vmatprep.mubr.bf16.mxu0 0
      %2659 = vmatmul.mubr.bf16.gmra.mrb[0].mxu0 %v2496
      %v2660 = vpop.f32.mrb[0].mxu0
      %v2661 = vadd.f32 0.0, %v2660
      %v2662 = vpop.f32.mrb[0].mxu0
      %v2663 = vpop.f32.mrb[0].mxu0
      %v2664 = vadd.f32 0.0, %v2663
      %v2665 = vpop.f32.mrb[0].mxu0
      %2666 = vmatprep.mubr.bf16.mxu0 0
      %2667 = vmatmul.mubr.bf16.gmra.mrb[0].mxu0 %v2497
      %v2668 = vpop.f32.mrb[0].mxu0
      %v2669 = vadd.f32 0.0, %v2668
      %v2670 = vpop.f32.mrb[0].mxu0
      %v2671 = vpop.f32.mrb[0].mxu0
      %v2672 = vadd.f32 0.0, %v2671
      %v2673 = vpop.f32.mrb[0].mxu0
      %2674 = vmatprep.mubr.bf16.mxu0 0
      %2675 = vmatmul.mubr.bf16.gmra.mrb[0].mxu0 %v2498
      %v2676 = vpop.f32.mrb[0].mxu0
      %v2677 = vadd.f32 0.0, %v2676
      %v2678 = vpop.f32.mrb[0].mxu0
      %v2679 = vpop.f32.mrb[0].mxu0
      %v2680 = vadd.f32 0.0, %v2679
      %v2681 = vpop.f32.mrb[0].mxu0
      %2682 = vmatprep.mubr.bf16.mxu0 0
      %2683 = vmatmul.mubr.bf16.gmra.mrb[0].mxu0 %v2499
      %v2684 = vpop.f32.mrb[0].mxu0
      %v2685 = vadd.f32 0.0, %v2684
      %v2686 = vpop.f32.mrb[0].mxu0
      %v2687 = vpop.f32.mrb[0].mxu0
      %v2688 = vadd.f32 0.0, %v2687
      %v2689 = vpop.f32.mrb[0].mxu0
      %2690 = vmatprep.mubr.bf16.mxu0 0
      %2691 = vmatmul.mubr.bf16.gmra.mrb[0].mxu0 %v2500
      %v2692 = vpop.f32.mrb[0].mxu0
      %v2693 = vadd.f32 0.0, %v2692
      %v2694 = vpop.f32.mrb[0].mxu0
      %v2695 = vpop.f32.mrb[0].mxu0
      %v2696 = vadd.f32 0.0, %v2695
      %v2697 = vpop.f32.mrb[0].mxu0
      %2698 = vmatprep.mubr.bf16.mxu0 0
      %2699 = vmatmul.mubr.bf16.gmra.mrb[0].mxu0 %v2501
      %v2700 = vpop.f32.mrb[0].mxu0
      %v2701 = vadd.f32 0.0, %v2700
      %v2702 = vpop.f32.mrb[0].mxu0
      %v2703 = vpop.f32.mrb[0].mxu0
      %v2704 = vadd.f32 0.0, %v2703
      %v2705 = vpop.f32.mrb[0].mxu0
      %2706 = vmatprep.mubr.bf16.mxu0 0
      %2707 = vmatmul.mubr.bf16.gmra.mrb[0].mxu0 %v2502
      %v2708 = vpop.f32.mrb[0].mxu0
      %v2709 = vadd.f32 0.0, %v2708
      %v2710 = vpop.f32.mrb[0].mxu0
      %v2711 = vpop.f32.mrb[0].mxu0
      %v2712 = vadd.f32 0.0, %v2711
      %v2713 = vpop.f32.mrb[0].mxu0
      %2714 = vmatprep.mubr.bf16.mxu0 0
      %2715 = vmatmul.mubr.bf16.gmra.mrb[0].mxu0 %v2503
      %v2716 = vpop.f32.mrb[0].mxu0
      %v2717 = vadd.f32 0.0, %v2716
      %v2718 = vpop.f32.mrb[0].mxu0
      %v2719 = vpop.f32.mrb[0].mxu0
      %v2720 = vadd.f32 0.0, %v2719
      %v2721 = vpop.f32.mrb[0].mxu0
      %2722 = vmatprep.mubr.bf16.mxu0 0
      %2723 = vmatmul.mubr.bf16.gmra.mrb[0].mxu0 %v2504
      %v2724 = vpop.f32.mrb[0].mxu0
      %v2725 = vadd.f32 0.0, %v2724
      %v2726 = vpop.f32.mrb[0].mxu0
      %v2727 = vpop.f32.mrb[0].mxu0
      %v2728 = vadd.f32 0.0, %v2727
      %v2729 = vpop.f32.mrb[0].mxu0
      %2730 = vdwg.mxu0
      %v2731 = vadd.f32 %v2425, %v2605
      %v2732 = vadd.f32 %v2426, %v2608
      %v2733 = vadd.f32 %v2427, %v2613
      %v2734 = vadd.f32 %v2428, %v2616
      %v2735 = vadd.f32 %v2429, %v2621
      %v2736 = vadd.f32 %v2430, %v2624
      %v2737 = vadd.f32 %v2431, %v2629
      %v2738 = vadd.f32 %v2432, %v2632
      %v2739 = vadd.f32 %v2433, %v2637
      %v2740 = vadd.f32 %v2434, %v2640
      %v2741 = vadd.f32 %v2435, %v2645
      %v2742 = vadd.f32 %v2436, %v2648
      %v2743 = vadd.f32 %v2437, %v2653
      %v2744 = vadd.f32 %v2438, %v2656
      %v2745 = vadd.f32 %v2439, %v2661
      %v2746 = vadd.f32 %v2440, %v2664
      %v2747 = vadd.f32 %v2441, %v2669
      %v2748 = vadd.f32 %v2442, %v2672
      %v2749 = vadd.f32 %v2443, %v2677
      %v2750 = vadd.f32 %v2444, %v2680
      %v2751 = vadd.f32 %v2445, %v2685
      %v2752 = vadd.f32 %v2446, %v2688
      %v2753 = vadd.f32 %v2447, %v2693
      %v2754 = vadd.f32 %v2448, %v2696
      %v2755 = vadd.f32 %v2449, %v2701
      %v2756 = vadd.f32 %v2450, %v2704
      %v2757 = vadd.f32 %v2451, %v2709
      %v2758 = vadd.f32 %v2452, %v2712
      %v2759 = vadd.f32 %v2453, %v2717
      %v2760 = vadd.f32 %v2454, %v2720
      %v2761 = vadd.f32 %v2455, %v2725
      %v2762 = vadd.f32 %v2456, %v2728
      %v2763 = vld [vmem:[%s2150 + $0x2] sm:$0xff]
      %v2764 = vld [vmem:[%s2150 + $0xa] sm:$0xff]
      %v2765 = vld [vmem:[%s2150 + $0x1a] sm:$0xff]
      %v2766 = vld [vmem:[%s2150 + $0x22] sm:$0xff]
      %v2767 = vld [vmem:[%s2150 + $0x32] sm:$0xff]
      %v2768 = vld [vmem:[%s2150 + $0x3a] sm:$0xff]
      %v2769 = vld [vmem:[%s2150 + $0x4a] sm:$0xff]
      %v2770 = vld [vmem:[%s2150 + $0x52] sm:$0xff]
      %v2771 = vld [vmem:[%s2150 + $0x62] sm:$0xff]
      %v2772 = vld [vmem:[%s2150 + $0x6a] sm:$0xff]
      %v2773 = vld [vmem:[%s2150 + $0x7a] sm:$0xff]
      %v2774 = vld [vmem:[%s2150 + $0x82] sm:$0xff]
      %v2775 = vld [vmem:[%s2150 + $0x92] sm:$0xff]
      %v2776 = vld [vmem:[%s2150 + $0x9a] sm:$0xff]
      %v2777 = vld [vmem:[%s2150 + $0xaa] sm:$0xff]
      %v2778 = vld [vmem:[%s2150 + $0xb2] sm:$0xff]
      %v2779 = vld [vmem:[%s2150 + $0xc2] sm:$0xff]
      %v2780 = vld [vmem:[%s2150 + $0xca] sm:$0xff]
      %v2781 = vld [vmem:[%s2150 + $0xda] sm:$0xff]
      %v2782 = vld [vmem:[%s2150 + $0xe2] sm:$0xff]
      %v2783 = vld [vmem:[%s2150 + $0xf2] sm:$0xff]
      %v2784 = vld [vmem:[%s2150 + $0xfa] sm:$0xff]
      %v2785 = vld [vmem:[%s2150 + $0x10a] sm:$0xff]
      %v2786 = vld [vmem:[%s2150 + $0x112] sm:$0xff]
      %v2787 = vld [vmem:[%s2150 + $0x122] sm:$0xff]
      %v2788 = vld [vmem:[%s2150 + $0x12a] sm:$0xff]
      %v2789 = vld [vmem:[%s2150 + $0x13a] sm:$0xff]
      %v2790 = vld [vmem:[%s2150 + $0x142] sm:$0xff]
      %v2791 = vld [vmem:[%s2150 + $0x152] sm:$0xff]
      %v2792 = vld [vmem:[%s2150 + $0x15a] sm:$0xff]
      %v2793 = vld [vmem:[%s2150 + $0x16a] sm:$0xff]
      %v2794 = vld [vmem:[%s2150 + $0x172] sm:$0xff]
      %v2795 = vpack.c.bf16 %v2764, %v2763
      %v2796 = vpack.c.bf16 %v2766, %v2765
      %v2797 = vpack.c.bf16 %v2768, %v2767
      %v2798 = vpack.c.bf16 %v2770, %v2769
      %v2799 = vpack.c.bf16 %v2772, %v2771
      %v2800 = vpack.c.bf16 %v2774, %v2773
      %v2801 = vpack.c.bf16 %v2776, %v2775
      %v2802 = vpack.c.bf16 %v2778, %v2777
      %v2803 = vpack.c.bf16 %v2780, %v2779
      %v2804 = vpack.c.bf16 %v2782, %v2781
      %v2805 = vpack.c.bf16 %v2784, %v2783
      %v2806 = vpack.c.bf16 %v2786, %v2785
      %v2807 = vpack.c.bf16 %v2788, %v2787
      %v2808 = vpack.c.bf16 %v2790, %v2789
      %v2809 = vpack.c.bf16 %v2792, %v2791
      %v2810 = vpack.c.bf16 %v2794, %v2793
      %s2811 = scalar_lea.vmem %s1, 512
      %v2812 = vld [vmem:[%s2811] sm:$0xf]
      %v2813 = vld [vmem:[%s2811 + $0x4] sm:$0xf]
      %v2814 = vld [vmem:[%s2811 + $0x8] sm:$0xf]
      %v2815 = vld [vmem:[%s2811 + $0xc] sm:$0xf]
      %v2816 = vld [vmem:[%s2811 + $0x10] sm:$0xf]
      %v2817 = vld [vmem:[%s2811 + $0x14] sm:$0xf]
      %v2818 = vld [vmem:[%s2811 + $0x18] sm:$0xf]
      %v2819 = vld [vmem:[%s2811 + $0x1c] sm:$0xf]
      %v2820 = vld [vmem:[%s2811 + $0x20] sm:$0xf]
      %v2821 = vld [vmem:[%s2811 + $0x24] sm:$0xf]
      %v2822 = vld [vmem:[%s2811 + $0x28] sm:$0xf]
      %v2823 = vld [vmem:[%s2811 + $0x2c] sm:$0xf]
      %v2824 = vld [vmem:[%s2811 + $0x30] sm:$0xf]
      %v2825 = vld [vmem:[%s2811 + $0x34] sm:$0xf]
      %v2826 = vld [vmem:[%s2811 + $0x38] sm:$0xf]
      %v2827 = vld [vmem:[%s2811 + $0x3c] sm:$0xf]
      %v2844 = vunpack.c.l.b16 %v2812
      %v2845 = vunpack.c.l.b16 %v2813
      %v2846 = vunpack.c.l.b16 %v2814
      %v2847 = vunpack.c.l.b16 %v2815
      %v2848 = vunpack.c.l.b16 %v2816
      %v2849 = vunpack.c.l.b16 %v2817
      %v2850 = vunpack.c.l.b16 %v2818
      %v2851 = vunpack.c.l.b16 %v2819
      %v2852 = vunpack.c.l.b16 %v2820
      %v2853 = vunpack.c.l.b16 %v2821
      %v2854 = vunpack.c.l.b16 %v2822
      %v2855 = vunpack.c.l.b16 %v2823
      %v2856 = vunpack.c.l.b16 %v2824
      %v2857 = vunpack.c.l.b16 %v2825
      %v2858 = vunpack.c.l.b16 %v2826
      %v2859 = vunpack.c.l.b16 %v2827
      %v2860 = vpack.c.b16 %v2845, %v2844
      %v2861 = vpack.c.b16 %v2847, %v2846
      %v2862 = vpack.c.b16 %v2849, %v2848
      %v2863 = vpack.c.b16 %v2851, %v2850
      %v2864 = vpack.c.b16 %v2853, %v2852
      %v2865 = vpack.c.b16 %v2855, %v2854
      %v2866 = vpack.c.b16 %v2857, %v2856
      %v2867 = vpack.c.b16 %v2859, %v2858
      %2876 = vmatprep.subr.bf16.mxu0 0
      %2877 = vmatpush1.bf16.msra.mxu0 %v2860
      %2878 = vmatprep.subr.bf16.mxu0 0
      %2879 = vmatpush1.bf16.msra.mxu0 %v2861
      %2880 = vmatprep.subr.bf16.mxu0 0
      %2881 = vmatpush1.bf16.msra.mxu0 %v2862
      %2882 = vmatprep.subr.bf16.mxu0 0
      %2883 = vmatpush1.bf16.msra.mxu0 %v2863
      %2884 = vmatprep.subr.bf16.mxu0 0
      %2885 = vmatpush1.bf16.msra.mxu0 %v2864
      %2886 = vmatprep.subr.bf16.mxu0 0
      %2887 = vmatpush1.bf16.msra.mxu0 %v2865
      %2888 = vmatprep.subr.bf16.mxu0 0
      %2889 = vmatpush1.bf16.msra.mxu0 %v2866
      %2890 = vmatprep.subr.bf16.mxu0 0
      %2891 = vmatpush1.bf16.msra.mxu0 %v2867
      %2892 = vmatprep.subr.bf16.mxu0 0
      %2893 = vmatpush1.bf16.msra.mxu0 0
      %2894 = vmatprep.subr.bf16.mxu0 0
      %2895 = vmatpush1.bf16.msra.mxu0 0
      %2896 = vmatprep.subr.bf16.mxu0 0
      %2897 = vmatpush1.bf16.msra.mxu0 0
      %2898 = vmatprep.subr.bf16.mxu0 0
      %2899 = vmatpush1.bf16.msra.mxu0 0
      %2900 = vmatprep.subr.bf16.mxu0 0
      %2901 = vmatpush1.bf16.msra.mxu0 0
      %2902 = vmatprep.subr.bf16.mxu0 0
      %2903 = vmatpush1.bf16.msra.mxu0 0
      %2904 = vmatprep.subr.bf16.mxu0 0
      %2905 = vmatpush1.bf16.msra.mxu0 0
      %2906 = vmatprep.subr.bf16.mxu0 0
      %2907 = vmatpush1.bf16.msra.mxu0 0
      %2908 = vmatprep.mubr.bf16.mxu0 0
      %2909 = vmatmul.mubr.bf16.gmra.mrb[0].mxu0 %v2795
      %v2910 = vpop.f32.mrb[0].mxu0
      %v2911 = vadd.f32 0.0, %v2910
      %v2912 = vpop.f32.mrb[0].mxu0
      %v2913 = vpop.f32.mrb[0].mxu0
      %v2914 = vadd.f32 0.0, %v2913
      %v2915 = vpop.f32.mrb[0].mxu0
      %2916 = vmatprep.mubr.bf16.mxu0 0
      %2917 = vmatmul.mubr.bf16.gmra.mrb[0].mxu0 %v2796
      %v2918 = vpop.f32.mrb[0].mxu0
      %v2919 = vadd.f32 0.0, %v2918
      %v2920 = vpop.f32.mrb[0].mxu0
      %v2921 = vpop.f32.mrb[0].mxu0
      %v2922 = vadd.f32 0.0, %v2921
      %v2923 = vpop.f32.mrb[0].mxu0
      %2924 = vmatprep.mubr.bf16.mxu0 0
      %2925 = vmatmul.mubr.bf16.gmra.mrb[0].mxu0 %v2797
      %v2926 = vpop.f32.mrb[0].mxu0
      %v2927 = vadd.f32 0.0, %v2926
      %v2928 = vpop.f32.mrb[0].mxu0
      %v2929 = vpop.f32.mrb[0].mxu0
      %v2930 = vadd.f32 0.0, %v2929
      %v2931 = vpop.f32.mrb[0].mxu0
      %2932 = vmatprep.mubr.bf16.mxu0 0
      %2933 = vmatmul.mubr.bf16.gmra.mrb[0].mxu0 %v2798
      %v2934 = vpop.f32.mrb[0].mxu0
      %v2935 = vadd.f32 0.0, %v2934
      %v2936 = vpop.f32.mrb[0].mxu0
      %v2937 = vpop.f32.mrb[0].mxu0
      %v2938 = vadd.f32 0.0, %v2937
      %v2939 = vpop.f32.mrb[0].mxu0
      %2940 = vmatprep.mubr.bf16.mxu0 0
      %2941 = vmatmul.mubr.bf16.gmra.mrb[0].mxu0 %v2799
      %v2942 = vpop.f32.mrb[0].mxu0
      %v2943 = vadd.f32 0.0, %v2942
      %v2944 = vpop.f32.mrb[0].mxu0
      %v2945 = vpop.f32.mrb[0].mxu0
      %v2946 = vadd.f32 0.0, %v2945
      %v2947 = vpop.f32.mrb[0].mxu0
      %2948 = vmatprep.mubr.bf16.mxu0 0
      %2949 = vmatmul.mubr.bf16.gmra.mrb[0].mxu0 %v2800
      %v2950 = vpop.f32.mrb[0].mxu0
      %v2951 = vadd.f32 0.0, %v2950
      %v2952 = vpop.f32.mrb[0].mxu0
      %v2953 = vpop.f32.mrb[0].mxu0
      %v2954 = vadd.f32 0.0, %v2953
      %v2955 = vpop.f32.mrb[0].mxu0
      %2956 = vmatprep.mubr.bf16.mxu0 0
      %2957 = vmatmul.mubr.bf16.gmra.mrb[0].mxu0 %v2801
      %v2958 = vpop.f32.mrb[0].mxu0
      %v2959 = vadd.f32 0.0, %v2958
      %v2960 = vpop.f32.mrb[0].mxu0
      %v2961 = vpop.f32.mrb[0].mxu0
      %v2962 = vadd.f32 0.0, %v2961
      %v2963 = vpop.f32.mrb[0].mxu0
      %2964 = vmatprep.mubr.bf16.mxu0 0
      %2965 = vmatmul.mubr.bf16.gmra.mrb[0].mxu0 %v2802
      %v2966 = vpop.f32.mrb[0].mxu0
      %v2967 = vadd.f32 0.0, %v2966
      %v2968 = vpop.f32.mrb[0].mxu0
      %v2969 = vpop.f32.mrb[0].mxu0
      %v2970 = vadd.f32 0.0, %v2969
      %v2971 = vpop.f32.mrb[0].mxu0
      %2972 = vmatprep.mubr.bf16.mxu0 0
      %2973 = vmatmul.mubr.bf16.gmra.mrb[0].mxu0 %v2803
      %v2974 = vpop.f32.mrb[0].mxu0
      %v2975 = vadd.f32 0.0, %v2974
      %v2976 = vpop.f32.mrb[0].mxu0
      %v2977 = vpop.f32.mrb[0].mxu0
      %v2978 = vadd.f32 0.0, %v2977
      %v2979 = vpop.f32.mrb[0].mxu0
      %2980 = vmatprep.mubr.bf16.mxu0 0
      %2981 = vmatmul.mubr.bf16.gmra.mrb[0].mxu0 %v2804
      %v2982 = vpop.f32.mrb[0].mxu0
      %v2983 = vadd.f32 0.0, %v2982
      %v2984 = vpop.f32.mrb[0].mxu0
      %v2985 = vpop.f32.mrb[0].mxu0
      %v2986 = vadd.f32 0.0, %v2985
      %v2987 = vpop.f32.mrb[0].mxu0
      %2988 = vmatprep.mubr.bf16.mxu0 0
      %2989 = vmatmul.mubr.bf16.gmra.mrb[0].mxu0 %v2805
      %v2990 = vpop.f32.mrb[0].mxu0
      %v2991 = vadd.f32 0.0, %v2990
      %v2992 = vpop.f32.mrb[0].mxu0
      %v2993 = vpop.f32.mrb[0].mxu0
      %v2994 = vadd.f32 0.0, %v2993
      %v2995 = vpop.f32.mrb[0].mxu0
      %2996 = vmatprep.mubr.bf16.mxu0 0
      %2997 = vmatmul.mubr.bf16.gmra.mrb[0].mxu0 %v2806
      %v2998 = vpop.f32.mrb[0].mxu0
      %v2999 = vadd.f32 0.0, %v2998
      %v3000 = vpop.f32.mrb[0].mxu0
      %v3001 = vpop.f32.mrb[0].mxu0
      %v3002 = vadd.f32 0.0, %v3001
      %v3003 = vpop.f32.mrb[0].mxu0
      %3004 = vmatprep.mubr.bf16.mxu0 0
      %3005 = vmatmul.mubr.bf16.gmra.mrb[0].mxu0 %v2807
      %v3006 = vpop.f32.mrb[0].mxu0
      %v3007 = vadd.f32 0.0, %v3006
      %v3008 = vpop.f32.mrb[0].mxu0
      %v3009 = vpop.f32.mrb[0].mxu0
      %v3010 = vadd.f32 0.0, %v3009
      %v3011 = vpop.f32.mrb[0].mxu0
      %3012 = vmatprep.mubr.bf16.mxu0 0
      %3013 = vmatmul.mubr.bf16.gmra.mrb[0].mxu0 %v2808
      %v3014 = vpop.f32.mrb[0].mxu0
      %v3015 = vadd.f32 0.0, %v3014
      %v3016 = vpop.f32.mrb[0].mxu0
      %v3017 = vpop.f32.mrb[0].mxu0
      %v3018 = vadd.f32 0.0, %v3017
      %v3019 = vpop.f32.mrb[0].mxu0
      %3020 = vmatprep.mubr.bf16.mxu0 0
      %3021 = vmatmul.mubr.bf16.gmra.mrb[0].mxu0 %v2809
      %v3022 = vpop.f32.mrb[0].mxu0
      %v3023 = vadd.f32 0.0, %v3022
      %v3024 = vpop.f32.mrb[0].mxu0
      %v3025 = vpop.f32.mrb[0].mxu0
      %v3026 = vadd.f32 0.0, %v3025
      %v3027 = vpop.f32.mrb[0].mxu0
      %3028 = vmatprep.mubr.bf16.mxu0 0
      %3029 = vmatmul.mubr.bf16.gmra.mrb[0].mxu0 %v2810
      %v3030 = vpop.f32.mrb[0].mxu0
      %v3031 = vadd.f32 0.0, %v3030
      %v3032 = vpop.f32.mrb[0].mxu0
      %v3033 = vpop.f32.mrb[0].mxu0
      %v3034 = vadd.f32 0.0, %v3033
      %v3035 = vpop.f32.mrb[0].mxu0
      %3036 = vdwg.mxu0
      %v3037 = vadd.f32 %v2731, %v2911
      %v3038 = vadd.f32 %v2732, %v2914
      %v3039 = vadd.f32 %v2733, %v2919
      %v3040 = vadd.f32 %v2734, %v2922
      %v3041 = vadd.f32 %v2735, %v2927
      %v3042 = vadd.f32 %v2736, %v2930
      %v3043 = vadd.f32 %v2737, %v2935
      %v3044 = vadd.f32 %v2738, %v2938
      %v3045 = vadd.f32 %v2739, %v2943
      %v3046 = vadd.f32 %v2740, %v2946
      %v3047 = vadd.f32 %v2741, %v2951
      %v3048 = vadd.f32 %v2742, %v2954
      %v3049 = vadd.f32 %v2743, %v2959
      %v3050 = vadd.f32 %v2744, %v2962
      %v3051 = vadd.f32 %v2745, %v2967
      %v3052 = vadd.f32 %v2746, %v2970
      %v3053 = vadd.f32 %v2747, %v2975
      %v3054 = vadd.f32 %v2748, %v2978
      %v3055 = vadd.f32 %v2749, %v2983
      %v3056 = vadd.f32 %v2750, %v2986
      %v3057 = vadd.f32 %v2751, %v2991
      %v3058 = vadd.f32 %v2752, %v2994
      %v3059 = vadd.f32 %v2753, %v2999
      %v3060 = vadd.f32 %v2754, %v3002
      %v3061 = vadd.f32 %v2755, %v3007
      %v3062 = vadd.f32 %v2756, %v3010
      %v3063 = vadd.f32 %v2757, %v3015
      %v3064 = vadd.f32 %v2758, %v3018
      %v3065 = vadd.f32 %v2759, %v3023
      %v3066 = vadd.f32 %v2760, %v3026
      %v3067 = vadd.f32 %v2761, %v3031
      %v3068 = vadd.f32 %v2762, %v3034
      %v3069 = vpack.c.bf16 %v3038, %v3037
      %v3070 = vpack.c.bf16 %v3040, %v3039
      %v3071 = vpack.c.bf16 %v3042, %v3041
      %v3072 = vpack.c.bf16 %v3044, %v3043
      %v3073 = vpack.c.bf16 %v3046, %v3045
      %v3074 = vpack.c.bf16 %v3048, %v3047
      %v3075 = vpack.c.bf16 %v3050, %v3049
      %v3076 = vpack.c.bf16 %v3052, %v3051
      %v3077 = vpack.c.bf16 %v3054, %v3053
      %v3078 = vpack.c.bf16 %v3056, %v3055
      %v3079 = vpack.c.bf16 %v3058, %v3057
      %v3080 = vpack.c.bf16 %v3060, %v3059
      %v3081 = vpack.c.bf16 %v3062, %v3061
      %v3082 = vpack.c.bf16 %v3064, %v3063
      %v3083 = vpack.c.bf16 %v3066, %v3065
      %v3084 = vpack.c.bf16 %v3068, %v3067
      %v3101 = vunpack.c.l.b16 %v3069
      %v3102 = vunpack.c.h.b16 %v3069
      %v3103 = vunpack.c.l.b16 %v3070
      %v3104 = vunpack.c.h.b16 %v3070
      %v3105 = vunpack.c.l.b16 %v3071
      %v3106 = vunpack.c.h.b16 %v3071
      %v3107 = vunpack.c.l.b16 %v3072
      %v3108 = vunpack.c.h.b16 %v3072
      %v3109 = vunpack.c.l.b16 %v3073
      %v3110 = vunpack.c.h.b16 %v3073
      %v3111 = vunpack.c.l.b16 %v3074
      %v3112 = vunpack.c.h.b16 %v3074
      %v3113 = vunpack.c.l.b16 %v3075
      %v3114 = vunpack.c.h.b16 %v3075
      %v3115 = vunpack.c.l.b16 %v3076
      %v3116 = vunpack.c.h.b16 %v3076
      %v3117 = vunpack.c.l.b16 %v3077
      %v3118 = vunpack.c.h.b16 %v3077
      %v3119 = vunpack.c.l.b16 %v3078
      %v3120 = vunpack.c.h.b16 %v3078
      %v3121 = vunpack.c.l.b16 %v3079
      %v3122 = vunpack.c.h.b16 %v3079
      %v3123 = vunpack.c.l.b16 %v3080
      %v3124 = vunpack.c.h.b16 %v3080
      %v3125 = vunpack.c.l.b16 %v3081
      %v3126 = vunpack.c.h.b16 %v3081
      %v3127 = vunpack.c.l.b16 %v3082
      %v3128 = vunpack.c.h.b16 %v3082
      %v3129 = vunpack.c.l.b16 %v3083
      %v3130 = vunpack.c.h.b16 %v3083
      %v3131 = vunpack.c.l.b16 %v3084
      %v3132 = vunpack.c.h.b16 %v3084
      %v3133 = vpack.c.b16 %v3101, %v3101
      %v3134 = vpack.c.b16 %v3102, %v3102
      %v3135 = vpack.c.b16 %v3103, %v3103
      %v3136 = vpack.c.b16 %v3104, %v3104
      %v3137 = vpack.c.b16 %v3105, %v3105
      %v3138 = vpack.c.b16 %v3106, %v3106
      %v3139 = vpack.c.b16 %v3107, %v3107
      %v3140 = vpack.c.b16 %v3108, %v3108
      %v3141 = vpack.c.b16 %v3109, %v3109
      %v3142 = vpack.c.b16 %v3110, %v3110
      %v3143 = vpack.c.b16 %v3111, %v3111
      %v3144 = vpack.c.b16 %v3112, %v3112
      %v3145 = vpack.c.b16 %v3113, %v3113
      %v3146 = vpack.c.b16 %v3114, %v3114
      %v3147 = vpack.c.b16 %v3115, %v3115
      %v3148 = vpack.c.b16 %v3116, %v3116
      %v3149 = vpack.c.b16 %v3117, %v3117
      %v3150 = vpack.c.b16 %v3118, %v3118
      %v3151 = vpack.c.b16 %v3119, %v3119
      %v3152 = vpack.c.b16 %v3120, %v3120
      %v3153 = vpack.c.b16 %v3121, %v3121
      %v3154 = vpack.c.b16 %v3122, %v3122
      %v3155 = vpack.c.b16 %v3123, %v3123
      %v3156 = vpack.c.b16 %v3124, %v3124
      %v3157 = vpack.c.b16 %v3125, %v3125
      %v3158 = vpack.c.b16 %v3126, %v3126
      %v3159 = vpack.c.b16 %v3127, %v3127
      %v3160 = vpack.c.b16 %v3128, %v3128
      %v3161 = vpack.c.b16 %v3129, %v3129
      %v3162 = vpack.c.b16 %v3130, %v3130
      %v3163 = vpack.c.b16 %v3131, %v3131
      %v3164 = vpack.c.b16 %v3132, %v3132
      %3197 = vst [vmem:[%s208] sm:$0xf] %v3133
      %3198 = vst [vmem:[%s208 + $0x4] sm:$0xf] %v3134
      %3199 = vst [vmem:[%s208 + $0x8] sm:$0xf] %v3135
      %3200 = vst [vmem:[%s208 + $0xc] sm:$0xf] %v3136
      %3201 = vst [vmem:[%s208 + $0x10] sm:$0xf] %v3137
      %3202 = vst [vmem:[%s208 + $0x14] sm:$0xf] %v3138
      %3203 = vst [vmem:[%s208 + $0x18] sm:$0xf] %v3139
      %3204 = vst [vmem:[%s208 + $0x1c] sm:$0xf] %v3140
      %3205 = vst [vmem:[%s208 + $0x20] sm:$0xf] %v3141
      %3206 = vst [vmem:[%s208 + $0x24] sm:$0xf] %v3142
      %3207 = vst [vmem:[%s208 + $0x28] sm:$0xf] %v3143
      %3208 = vst [vmem:[%s208 + $0x2c] sm:$0xf] %v3144
      %3209 = vst [vmem:[%s208 + $0x30] sm:$0xf] %v3145
      %3210 = vst [vmem:[%s208 + $0x34] sm:$0xf] %v3146
      %3211 = vst [vmem:[%s208 + $0x38] sm:$0xf] %v3147
      %3212 = vst [vmem:[%s208 + $0x3c] sm:$0xf] %v3148
      %3213 = vst [vmem:[%s208 + $0x40] sm:$0xf] %v3149
      %3214 = vst [vmem:[%s208 + $0x44] sm:$0xf] %v3150
      %3215 = vst [vmem:[%s208 + $0x48] sm:$0xf] %v3151
      %3216 = vst [vmem:[%s208 + $0x4c] sm:$0xf] %v3152
      %3217 = vst [vmem:[%s208 + $0x50] sm:$0xf] %v3153
      %3218 = vst [vmem:[%s208 + $0x54] sm:$0xf] %v3154
      %3219 = vst [vmem:[%s208 + $0x58] sm:$0xf] %v3155
      %3220 = vst [vmem:[%s208 + $0x5c] sm:$0xf] %v3156
      %3221 = vst [vmem:[%s208 + $0x60] sm:$0xf] %v3157
      %3222 = vst [vmem:[%s208 + $0x64] sm:$0xf] %v3158
      %3223 = vst [vmem:[%s208 + $0x68] sm:$0xf] %v3159
      %3224 = vst [vmem:[%s208 + $0x6c] sm:$0xf] %v3160
      %3225 = vst [vmem:[%s208 + $0x70] sm:$0xf] %v3161
      %3226 = vst [vmem:[%s208 + $0x74] sm:$0xf] %v3162
      %3227 = vst [vmem:[%s208 + $0x78] sm:$0xf] %v3163
      %3228 = vst [vmem:[%s208 + $0x7c] sm:$0xf] %v3164
      %v3229 = vadd.f32 %v3037, %v3038
      %v3230 = vadd.f32 %v3229, %v3039
      %v3231 = vadd.f32 %v3230, %v3040
      %v3232 = vadd.f32 %v3231, %v3041
      %v3233 = vadd.f32 %v3232, %v3042
      %v3234 = vadd.f32 %v3233, %v3043
      %v3235 = vadd.f32 %v3234, %v3044
      %v3236 = vadd.f32 %v3235, %v3045
      %v3237 = vadd.f32 %v3236, %v3046
      %v3238 = vadd.f32 %v3237, %v3047
      %v3239 = vadd.f32 %v3238, %v3048
      %v3240 = vadd.f32 %v3239, %v3049
      %v3241 = vadd.f32 %v3240, %v3050
      %v3242 = vadd.f32 %v3241, %v3051
      %v3243 = vadd.f32 %v3242, %v3052
      %v3244 = vadd.f32 %v3243, %v3053
      %v3245 = vadd.f32 %v3244, %v3054
      %v3246 = vadd.f32 %v3245, %v3055
      %v3247 = vadd.f32 %v3246, %v3056
      %v3248 = vadd.f32 %v3247, %v3057
      %v3249 = vadd.f32 %v3248, %v3058
      %v3250 = vadd.f32 %v3249, %v3059
      %v3251 = vadd.f32 %v3250, %v3060
      %v3252 = vadd.f32 %v3251, %v3061
      %v3253 = vadd.f32 %v3252, %v3062
      %v3254 = vadd.f32 %v3253, %v3063
      %v3255 = vadd.f32 %v3254, %v3064
      %v3256 = vadd.f32 %v3255, %v3065
      %v3257 = vadd.f32 %v3256, %v3066
      %v3258 = vadd.f32 %v3257, %v3067
      %v3259 = vadd.f32 %v3258, %v3068
      %v3260 = vrot.slane %v3259, 4
      %v3261 = vadd.f32 %v3259, %v3260
      %v3262 = vrot.slane %v3261, 2
      %v3263 = vadd.f32 %v3261, %v3262
      %v3264 = vrot.slane %v3263, 1
      %v3265 = vadd.f32 %v3263, %v3264
      %3266 = vst [vmem:[%s211] sm:$0x1] %v3265
      %v3267 = vmul.f32 %v3037, %v3037
      %v3268 = vmul.f32 %v3038, %v3038
      %v3269 = vmul.f32 %v3039, %v3039
      %v3270 = vmul.f32 %v3040, %v3040
      %v3271 = vmul.f32 %v3041, %v3041
      %v3272 = vmul.f32 %v3042, %v3042
      %v3273 = vmul.f32 %v3043, %v3043
      %v3274 = vmul.f32 %v3044, %v3044
      %v3275 = vmul.f32 %v3045, %v3045
      %v3276 = vmul.f32 %v3046, %v3046
      %v3277 = vmul.f32 %v3047, %v3047
      %v3278 = vmul.f32 %v3048, %v3048
      %v3279 = vmul.f32 %v3049, %v3049
      %v3280 = vmul.f32 %v3050, %v3050
      %v3281 = vmul.f32 %v3051, %v3051
      %v3282 = vmul.f32 %v3052, %v3052
      %v3283 = vmul.f32 %v3053, %v3053
      %v3284 = vmul.f32 %v3054, %v3054
      %v3285 = vmul.f32 %v3055, %v3055
      %v3286 = vmul.f32 %v3056, %v3056
      %v3287 = vmul.f32 %v3057, %v3057
      %v3288 = vmul.f32 %v3058, %v3058
      %v3289 = vmul.f32 %v3059, %v3059
      %v3290 = vmul.f32 %v3060, %v3060
      %v3291 = vmul.f32 %v3061, %v3061
      %v3292 = vmul.f32 %v3062, %v3062
      %v3293 = vmul.f32 %v3063, %v3063
      %v3294 = vmul.f32 %v3064, %v3064
      %v3295 = vmul.f32 %v3065, %v3065
      %v3296 = vmul.f32 %v3066, %v3066
      %v3297 = vmul.f32 %v3067, %v3067
      %v3298 = vmul.f32 %v3068, %v3068
      %v3299 = vadd.f32 %v3267, %v3268
      %v3300 = vadd.f32 %v3299, %v3269
      %v3301 = vadd.f32 %v3300, %v3270
      %v3302 = vadd.f32 %v3301, %v3271
      %v3303 = vadd.f32 %v3302, %v3272
      %v3304 = vadd.f32 %v3303, %v3273
      %v3305 = vadd.f32 %v3304, %v3274
      %v3306 = vadd.f32 %v3305, %v3275
      %v3307 = vadd.f32 %v3306, %v3276
      %v3308 = vadd.f32 %v3307, %v3277
      %v3309 = vadd.f32 %v3308, %v3278
      %v3310 = vadd.f32 %v3309, %v3279
      %v3311 = vadd.f32 %v3310, %v3280
      %v3312 = vadd.f32 %v3311, %v3281
      %v3313 = vadd.f32 %v3312, %v3282
      %v3314 = vadd.f32 %v3313, %v3283
      %v3315 = vadd.f32 %v3314, %v3284
      %v3316 = vadd.f32 %v3315, %v3285
      %v3317 = vadd.f32 %v3316, %v3286
      %v3318 = vadd.f32 %v3317, %v3287
      %v3319 = vadd.f32 %v3318, %v3288
      %v3320 = vadd.f32 %v3319, %v3289
      %v3321 = vadd.f32 %v3320, %v3290
      %v3322 = vadd.f32 %v3321, %v3291
      %v3323 = vadd.f32 %v3322, %v3292
      %v3324 = vadd.f32 %v3323, %v3293
      %v3325 = vadd.f32 %v3324, %v3294
      %v3326 = vadd.f32 %v3325, %v3295
      %v3327 = vadd.f32 %v3326, %v3296
      %v3328 = vadd.f32 %v3327, %v3297
      %v3329 = vadd.f32 %v3328, %v3298
      %v3330 = vrot.slane %v3329, 4
      %v3331 = vadd.f32 %v3329, %v3330
      %v3332 = vrot.slane %v3331, 2
      %v3333 = vadd.f32 %v3331, %v3332
      %v3334 = vrot.slane %v3333, 1
      %v3335 = vadd.f32 %v3333, %v3334
      %3336 = vst [vmem:[%s214] sm:$0x1] %v3335
      %p3337 = scmp.lt.s32.totalorder %s16, 1
      %s3338 = scalar_select %p3337, %s16, 1
      %s3339 = smul.addr %s3338, 32
      %s3340 = smul.addr %s3339, 4
      %s3341 = scalar_lea.vmem %s2, %s3340
      %p3342 = scmp.lt.s32.totalorder %s16, 1
      %s3343 = scalar_select %p3342, %s16, 1
      %s3344 = scalar_lea.vmem %s3, %s3343
      %p3345 = scmp.lt.s32.totalorder %s16, 1
      %s3346 = scalar_select %p3345, %s16, 1
      %s3347 = scalar_lea.vmem %s4, %s3346
      // Predicated region
      $region29: #{basic_block_forward.3} parent=27 // pred_check
        %p3348 = pneg %p81
      $region30: #{basic_block_forward.3} parent=27 // pred_check_branch
        %3350 = sbr.rel (%p3348) target = $region32
      $region31: #{basic_block_forward.3} parent=27 // pred_region
        _
      $region32: #{basic_block_forward.3} parent=27 // pred_fallthru
        _
      // Predicated region
      $region33: #{basic_block_forward.3} parent=27 // pred_check
        %p3351 = pneg %p107
      $region34: #{basic_block_forward.3} parent=27 // pred_check_branch
        %3353 = sbr.rel (%p3351) target = $region36
      $region35: #{basic_block_forward.3} parent=27 // pred_region
        _
      $region36: #{basic_block_forward.3} parent=27 // pred_fallthru
        _
      // Predicated region
      $region37: #{basic_block_forward.3} parent=27 // pred_check
        %p3354 = pneg %p133
      $region38: #{basic_block_forward.3} parent=27 // pred_check_branch
        %3356 = sbr.rel (%p3354) target = $region40
      $region39: #{basic_block_forward.3} parent=27 // pred_region
        _
      $region40: #{basic_block_forward.3} parent=27 // pred_fallthru
        _
    $region28: #{basic_block_forward.3} parent=5 // pred_fallthru
      _
    %p3357 = scmp.le.s32.totalorder 2, %s11
    // Predicated region
    $region41: #{basic_block_forward.3} parent=5 // pred_check
      %p3358 = pneg %p3357
    $region42: #{basic_block_forward.3} parent=5 // pred_check_branch
      %3360 = sbr.rel (%p3358) target = $region44
    $region43: #{basic_block_forward.3} parent=5 // pred_region
      %s3361 = ssub.s32 %s11, 2
      // Predicated region
      $region45: #{basic_block_forward.3} parent=43 // pred_check
        %p3362 = pneg %p87
      $region46: #{basic_block_forward.3} parent=43 // pred_check_branch
        %3364 = sbr.rel (%p3362) target = $region48
      $region47: #{basic_block_forward.3} parent=43 // pred_region
        %p3365 = scmp.lt.s32.totalorder %s17, 1
        %s3366 = scalar_select %p3365, %s17, 1
        %s3367 = smul.addr %s3366, 32
        %s3368 = smul.addr %s3367, 4
        %s3369 = scalar_lea.vmem %s2, %s3368
      $region48: #{basic_block_forward.3} parent=43 // pred_fallthru
        _
      // Predicated region
      $region49: #{basic_block_forward.3} parent=43 // pred_check
        %p3370 = pneg %p113
      $region50: #{basic_block_forward.3} parent=43 // pred_check_branch
        %3372 = sbr.rel (%p3370) target = $region52
      $region51: #{basic_block_forward.3} parent=43 // pred_region
        %p3373 = scmp.lt.s32.totalorder %s17, 1
        %s3374 = scalar_select %p3373, %s17, 1
        %s3375 = scalar_lea.vmem %s3, %s3374
      $region52: #{basic_block_forward.3} parent=43 // pred_fallthru
        _
      // Predicated region
      $region53: #{basic_block_forward.3} parent=43 // pred_check
        %p3376 = pneg %p139
      $region54: #{basic_block_forward.3} parent=43 // pred_check_branch
        %3378 = sbr.rel (%p3376) target = $region56
      $region55: #{basic_block_forward.3} parent=43 // pred_region
        %p3379 = scmp.lt.s32.totalorder %s17, 1
        %s3380 = scalar_select %p3379, %s17, 1
        %s3381 = scalar_lea.vmem %s4, %s3380
      $region56: #{basic_block_forward.3} parent=43 // pred_fallthru
        _
    $region44: #{basic_block_forward.3} parent=5 // pred_fallthru
      _
  $region6: #{basic_block_forward.3} parent=0 // loop_footer
    %s15 = sadd.s32 1, %s11
  $region7: #{basic_block_forward.3} parent=0 // loop_footer_branch
    %10 = sbr.rel target = $region3
  $region8: #{basic_block_forward.3} parent=0 // loop_exit
    _

</llo_original>
